<compile_context>
chip_gen: v5e
topology: v5e:2x2
jax: 0.10.0
libtpu: 0.0.40
codegen_flags: <defaults>
</compile_context>

<pallas_src>
import functools

import jax
import jax.numpy as jnp
from jax.experimental import pallas as pl
from jax.experimental.pallas import tpu as pltpu

DIM = 32          # "dim" of the module (torch default is 128; small here)
N_LAYERS = 3      # "layer" of the module
EPS_LN = 1e-5     # torch.nn.LayerNorm default eps


def _round_up(x, m):
    return ((x + m - 1) // m) * m


def _layernorm(x, g, b):
    mu = jnp.mean(x, axis=-1, keepdims=True)
    var = jnp.mean((x - mu) ** 2, axis=-1, keepdims=True)
    return (x - mu) * jax.lax.rsqrt(var + EPS_LN) * g + b


def _pool(s3):
    # torch "add": L2-norm over features, softmax over sequence, weighted sum.
    # (BT, L, D) -> (BT, D)
    nrm = jnp.sqrt(jnp.sum(s3 * s3, axis=-1, keepdims=True))     # (BT, L, 1)
    mx = jnp.max(nrm, axis=1, keepdims=True)
    e = jnp.exp(nrm - mx)
    w = e / jnp.sum(e, axis=1, keepdims=True)                    # (BT, L, 1)
    return jnp.sum(s3 * w, axis=1)                               # (BT, D)


def attn_graph_attn_kernel(
    seq1_ref, seq2_ref, m1_ref, m2_ref,
    w_in_ref, b_in_ref, ln_ref,
    wpx_ref, bpx_ref, wpy_ref, bpy_ref,
    fcw_ref, epv_ref,
    o_ref,
    *, n_layers,
):
    f32 = jnp.float32
    BT, L1, D = seq1_ref.shape
    _, L2, _ = seq2_ref.shape
    scale = jnp.sqrt(f32(D))

    # x = relu(l1(seq1)); y = relu(l2(seq2)) — batch folded into matmul M dim.
    xf = jnp.maximum(
        jnp.dot(seq1_ref[...].reshape(BT * L1, D), w_in_ref[0],
                preferred_element_type=f32) + b_in_ref[0], 0.0)          # (BT*L1, D)
    yf = jnp.maximum(
        jnp.dot(seq2_ref[...].reshape(BT * L2, D), w_in_ref[1],
                preferred_element_type=f32) + b_in_ref[1], 0.0)          # (BT*L2, D)

    m1 = m1_ref[...]     # (BT, L1, 1)  mask1.view(bsz, -1, 1)
    m2 = m2_ref[...]     # (BT, L2, 1)  mask2.view(bsz, -1, 1)

    for i in range(n_layers):   # static unroll (layer = 3)
        lnp = ln_ref[i]         # (4, D): [gamma1, beta1, gamma2, beta2]
        xf = _layernorm(xf, lnp[0:1, :], lnp[1:2, :])
        yf = _layernorm(yf, lnp[2:3, :], lnp[3:4, :])

        # Fused per-side projections: [w_q | w_x | w_v_x^T] / [w_k | w_y | w_v_y^T]
        # — one lane-dense (BT*L, NP) matmul per side per layer.
        xp_full = jnp.dot(xf, wpx_ref[i], preferred_element_type=f32) + bpx_ref[i]
        yp_full = jnp.dot(yf, wpy_ref[i], preferred_element_type=f32) + bpy_ref[i]

        q3 = xp_full[:, :D].reshape(BT, L1, D)
        x_up3 = jnp.maximum(xp_full[:, D:2 * D], 0.0).reshape(BT, L1, D)
        v_x3 = jnp.maximum(xp_full[:, 2 * D:2 * D + 1], 0.0).reshape(BT, L1, 1)
        k3 = yp_full[:, :D].reshape(BT, L2, D)
        y_up3 = jnp.maximum(yp_full[:, D:2 * D], 0.0).reshape(BT, L2, D)
        v_y3 = jnp.maximum(yp_full[:, 2 * D:2 * D + 1], 0.0).reshape(BT, L2, 1)

        # d = sigmoid(q k^T / sqrt(D)); v = (v_x v_y^T) * d is never materialized —
        # its rank-1 factors are folded into the updates below.
        dd = jax.nn.sigmoid(
            jnp.einsum('bid,bjd->bij', q3, k3, preferred_element_type=f32) / scale)

        x_up_s = v_x3 * x_up3                 # v_x folded into x_update
        y_up_s = v_y3 * y_up3                 # v_y folded into y_update

        # x += (v * mask1) @ y_update ;  y += (v^T * mask2) @ x_update
        x3 = xf.reshape(BT, L1, D) + (v_x3 * m1) * jnp.einsum(
            'bij,bjd->bid', dd, y_up_s, preferred_element_type=f32)
        y3 = yf.reshape(BT, L2, D) + (v_y3 * m2) * jnp.einsum(
            'bij,bid->bjd', dd, x_up_s, preferred_element_type=f32)
        xf = x3.reshape(BT * L1, D)
        yf = y3.reshape(BT * L2, D)

    xp = _pool(xf.reshape(BT, L1, D))         # (BT, D)
    yp = _pool(yf.reshape(BT, L2, D))         # (BT, D)

    # fc: split-weight form avoids the concat; epv rows: [fc bias, out weight^T, out bias].
    fcw = fcw_ref[...]                        # (2D, D)
    epv = epv_ref[...]                        # (3, D)
    h = jnp.maximum(
        jnp.dot(xp, fcw[:D], preferred_element_type=f32)
        + jnp.dot(yp, fcw[D:], preferred_element_type=f32)
        + epv[0:1, :], 0.0)                   # (BT, D)

    # out = sigmoid(h @ w_out + b_out), computed transposed -> lane-dense (1, BT) row.
    logit = jax.lax.dot_general(epv[1:2, :], h, (((1,), (1,)), ((), ())),
                                preferred_element_type=f32) + epv[2:3, 0:1]
    o_ref[0] = jax.nn.sigmoid(logit)          # (1, BT)


def _pack_params(p):
    """Pack the 24 module parameters into 9 kernel inputs (done once, outside the kernel)."""
    f32 = jnp.float32
    D = p['l1w'].shape[0]
    np_cols = _round_up(2 * D + 1, 128)       # lane-dense fused projection width

    def pad_last(a):
        return jnp.pad(a, [(0, 0)] * (a.ndim - 1) + [(0, np_cols - a.shape[-1])])

    w_in = jnp.stack([p['l1w'], p['l2w']]).astype(f32)                     # (2, D, D)
    b_in = jnp.stack([p['l1b'], p['l2b']]).astype(f32)                     # (2, 1, D)
    ln = jnp.concatenate([p['n1g'], p['n1b'], p['n2g'], p['n2b']],
                         axis=1).astype(f32)                               # (NL, 4, D)
    wpx = pad_last(jnp.concatenate(
        [p['wqw'], p['wxw'], jnp.transpose(p['wvxw'], (0, 2, 1))], axis=2)).astype(f32)
    bpx = pad_last(jnp.concatenate([p['wqb'], p['wxb'], p['wvxb']], axis=2)).astype(f32)
    wpy = pad_last(jnp.concatenate(
        [p['wkw'], p['wyw'], jnp.transpose(p['wvyw'], (0, 2, 1))], axis=2)).astype(f32)
    bpy = pad_last(jnp.concatenate([p['wkb'], p['wyb'], p['wvyb']], axis=2)).astype(f32)
    fcw = p['fcw'].astype(f32)                                             # (2D, D)
    epv = jnp.concatenate(
        [p['fcb'], p['outw'].T, jnp.broadcast_to(p['outb'], (1, D))],
        axis=0).astype(f32)                                                # (3, D)
    return w_in, b_in, ln, wpx, bpx, wpy, bpy, fcw, epv


def attn_graph_attn(seq1, seq2, mask1, mask2, params, *, batch_tile=128):
    f32 = jnp.float32
    B, L1, D = seq1.shape
    _, L2, _ = seq2.shape
    n_layers = params['wqw'].shape[0]

    # Batch tile: up to `batch_tile` batches per grid step (padded up to a multiple).
    bt = _round_up(min(batch_tile, _round_up(B, 8)), 8)
    nt = pl.cdiv(B, bt)
    b_pad = nt * bt

    def pad_b(a):
        if b_pad == B:
            return a
        return jnp.pad(a, [(0, b_pad - B)] + [(0, 0)] * (a.ndim - 1))

    seq1p = pad_b(seq1.astype(f32))
    seq2p = pad_b(seq2.astype(f32))
    m1 = pad_b(mask1.reshape(B, L1, 1).astype(f32))
    m2 = pad_b(mask2.reshape(B, L2, 1).astype(f32))

    packed = _pack_params(params)

    def batch_spec(*trailing):
        k = len(trailing)
        return pl.BlockSpec((bt,) + tuple(trailing),
                            lambda t, _k=k: (t,) + (0,) * _k)

    def full_spec(a):
        nd = a.ndim
        return pl.BlockSpec(a.shape, lambda t, _n=nd: (0,) * _n)

    in_specs = [batch_spec(L1, D), batch_spec(L2, D),
                batch_spec(L1, 1), batch_spec(L2, 1)]
    in_specs += [full_spec(a) for a in packed]

    kernel = functools.partial(attn_graph_attn_kernel, n_layers=n_layers)

    out = pl.pallas_call(
        kernel,
        out_shape=jax.ShapeDtypeStruct((nt, 1, bt), f32),
        grid=(nt,),
        in_specs=in_specs,
        out_specs=pl.BlockSpec((1, 1, bt), lambda t: (t, 0, 0)),
        compiler_params=pltpu.CompilerParams(
            dimension_semantics=("parallel",),
            vmem_limit_bytes=48 * 1024 * 1024),
    )(seq1p, seq2p, m1, m2, *packed)

    return out.reshape(nt * bt)[:B].reshape(B, 1)


def make_params(key, dim=DIM, n_layers=N_LAYERS):
    keys = iter(jax.random.split(key, 32))

    def lin(shape, scale=0.1):
        return (scale * jax.random.normal(next(keys), shape)).astype(jnp.float32)

    return dict(
        l1w=lin((dim, dim)), l1b=lin((1, dim)),
        l2w=lin((dim, dim)), l2b=lin((1, dim)),
        n1g=jnp.ones((n_layers, 1, dim), jnp.float32),
        n1b=jnp.zeros((n_layers, 1, dim), jnp.float32),
        n2g=jnp.ones((n_layers, 1, dim), jnp.float32),
        n2b=jnp.zeros((n_layers, 1, dim), jnp.float32),
        wqw=lin((n_layers, dim, dim)), wqb=lin((n_layers, 1, dim)),
        wkw=lin((n_layers, dim, dim)), wkb=lin((n_layers, 1, dim)),
        wvxw=lin((n_layers, 1, dim)), wvxb=lin((n_layers, 1, 1)),
        wvyw=lin((n_layers, 1, dim)), wvyb=lin((n_layers, 1, 1)),
        wxw=lin((n_layers, dim, dim)), wxb=lin((n_layers, 1, dim)),
        wyw=lin((n_layers, dim, dim)), wyb=lin((n_layers, 1, dim)),
        fcw=lin((2 * dim, dim)), fcb=lin((1, dim)),
        outw=lin((dim, 1)), outb=lin((1, 1)),
    )


def reference(seq1, seq2, mask1, mask2, p, dim=DIM, n_layers=N_LAYERS):
    relu = jax.nn.relu
    B = seq1.shape[0]
    x = relu(jnp.einsum('bld,de->ble', seq1, p['l1w']) + p['l1b'])
    y = relu(jnp.einsum('bld,de->ble', seq2, p['l2w']) + p['l2b'])
    m1 = mask1.reshape(B, -1, 1)
    m2 = mask2.reshape(B, -1, 1)
    scale = jnp.sqrt(jnp.float32(dim))

    def ln(t, g, b):
        mu = t.mean(-1, keepdims=True)
        var = ((t - mu) ** 2).mean(-1, keepdims=True)
        return (t - mu) / jnp.sqrt(var + EPS_LN) * g + b

    for i in range(n_layers):
        x = ln(x, p['n1g'][i], p['n1b'][i])
        y = ln(y, p['n2g'][i], p['n2b'][i])
        q = jnp.einsum('bld,de->ble', x, p['wqw'][i]) + p['wqb'][i]
        k = jnp.einsum('bld,de->ble', y, p['wkw'][i]) + p['wkb'][i]
        d = jax.nn.sigmoid(jnp.einsum('bqd,bkd->bqk', q, k) / scale)
        v_x = relu(jnp.einsum('bld,od->blo', x, p['wvxw'][i]) + p['wvxb'][i])
        v_y = relu(jnp.einsum('bld,od->blo', y, p['wvyw'][i]) + p['wvyb'][i])
        v = jnp.einsum('bqo,bko->bqk', v_x, v_y) * d
        x_up = relu(jnp.einsum('bld,de->ble', x, p['wxw'][i]) + p['wxb'][i])
        y_up = relu(jnp.einsum('bld,de->ble', y, p['wyw'][i]) + p['wyb'][i])
        x = x + jnp.einsum('bqk,bkd->bqd', v * m1, y_up)
        y = y + jnp.einsum('bkq,bqd->bkd', jnp.swapaxes(v, 1, 2) * m2, x_up)

    def pool(s):
        nrm = jnp.sqrt(jnp.sum(s * s, axis=2, keepdims=True))
        w = jax.nn.softmax(nrm, axis=1)
        return jnp.einsum('bld,blo->bd', s, w)

    xp, yp = pool(x), pool(y)
    out = jnp.concatenate([xp, yp], axis=1)
    out = relu(out @ p['fcw'] + p['fcb'])
    out = jax.nn.sigmoid(out @ p['outw'] + p['outb'])
    return out


if __name__ == "__main__":
    key = jax.random.PRNGKey(0)
    kp, k1, k2, k3, k4, k5, k6, k7, k8 = jax.random.split(key, 9)

    params = make_params(kp)

    # Small test shapes consistent with the module.
    B, L1, L2 = 2, 8, 8
    seq1 = jax.random.normal(k1, (B, L1, DIM), jnp.float32)
    seq2 = jax.random.normal(k2, (B, L2, DIM), jnp.float32)
    mask1 = (jax.random.uniform(k3, (B, L1)) > 0.3).astype(jnp.float32)
    mask2 = (jax.random.uniform(k4, (B, L2)) > 0.3).astype(jnp.float32)

    out = attn_graph_attn(seq1, seq2, mask1, mask2, params)
    jax.block_until_ready(out)
    ref = reference(seq1, seq2, mask1, mask2, params)
    assert out.shape == (B, 1), out.shape
    assert jnp.allclose(out, ref, rtol=1e-3, atol=1e-3), (out, ref)

    # Second check: multi-tile grid + batch padding path (B not a multiple of the tile).
    B2 = 20
    seq1b = jax.random.normal(k5, (B2, L1, DIM), jnp.float32)
    seq2b = jax.random.normal(k6, (B2, L2, DIM), jnp.float32)
    mask1b = (jax.random.uniform(k7, (B2, L1)) > 0.3).astype(jnp.float32)
    mask2b = (jax.random.uniform(k8, (B2, L2)) > 0.3).astype(jnp.float32)
    out2 = attn_graph_attn(seq1b, seq2b, mask1b, mask2b, params, batch_tile=8)
    jax.block_until_ready(out2)
    ref2 = reference(seq1b, seq2b, mask1b, mask2b, params)
    assert out2.shape == (B2, 1), out2.shape
    assert jnp.allclose(out2, ref2, rtol=1e-3, atol=1e-3), (out2, ref2)

    print("KERNEL_OK")
</pallas_src>

<mosaic_0001>
module attributes {stable_mosaic.version = 11 : i64} {
  func.func @attn_graph_attn_kernel(%arg0: i32, %arg1: memref<8x8x32xf32, #tpu.memory_space<vmem>>, %arg2: memref<8x8x32xf32, #tpu.memory_space<vmem>>, %arg3: memref<8x8x1xf32, #tpu.memory_space<vmem>>, %arg4: memref<8x8x1xf32, #tpu.memory_space<vmem>>, %arg5: memref<2x32x32xf32, #tpu.memory_space<vmem>>, %arg6: memref<2x1x32xf32, #tpu.memory_space<vmem>>, %arg7: memref<3x4x32xf32, #tpu.memory_space<vmem>>, %arg8: memref<3x32x128xf32, #tpu.memory_space<vmem>>, %arg9: memref<3x1x128xf32, #tpu.memory_space<vmem>>, %arg10: memref<3x32x128xf32, #tpu.memory_space<vmem>>, %arg11: memref<3x1x128xf32, #tpu.memory_space<vmem>>, %arg12: memref<64x32xf32, #tpu.memory_space<vmem>>, %arg13: memref<3x32xf32, #tpu.memory_space<vmem>>, %arg14: memref<1x1x8xf32, #tpu.memory_space<vmem>>) attributes {dimension_semantics = [#tpu.dimension_semantics<parallel>], iteration_bounds = array<i64: 1>, scalar_prefetch = 0 : i64, scratch_operands = 0 : i64, tpu.core_type = #tpu.core_type<tc>, window_params = [{transform_indices = @transform_0, window_bounds = array<i64: 8, 8, 32>}, {transform_indices = @transform_1, window_bounds = array<i64: 8, 8, 32>}, {transform_indices = @transform_2, window_bounds = array<i64: 8, 8, 1>}, {transform_indices = @transform_3, window_bounds = array<i64: 8, 8, 1>}, {pipeline_mode = #tpu.pipeline_mode<synchronous>, transform_indices = @transform_4, window_bounds = array<i64: 2, 32, 32>}, {pipeline_mode = #tpu.pipeline_mode<synchronous>, transform_indices = @transform_5, window_bounds = array<i64: 2, 1, 32>}, {pipeline_mode = #tpu.pipeline_mode<synchronous>, transform_indices = @transform_6, window_bounds = array<i64: 3, 4, 32>}, {pipeline_mode = #tpu.pipeline_mode<synchronous>, transform_indices = @transform_7, window_bounds = array<i64: 3, 32, 128>}, {pipeline_mode = #tpu.pipeline_mode<synchronous>, transform_indices = @transform_8, window_bounds = array<i64: 3, 1, 128>}, {pipeline_mode = #tpu.pipeline_mode<synchronous>, transform_indices = @transform_9, window_bounds = array<i64: 3, 32, 128>}, {pipeline_mode = #tpu.pipeline_mode<synchronous>, transform_indices = @transform_10, window_bounds = array<i64: 3, 1, 128>}, {pipeline_mode = #tpu.pipeline_mode<synchronous>, transform_indices = @transform_11, window_bounds = array<i64: 64, 32>}, {pipeline_mode = #tpu.pipeline_mode<synchronous>, transform_indices = @transform_12, window_bounds = array<i64: 3, 32>}, {transform_indices = @transform_13, window_bounds = array<i64: 1, 1, 8>}]} {
    %cst = arith.constant 3.200000e+01 : f32
    %0 = math.sqrt %cst : f32
    %c0 = arith.constant 0 : index
    %c0_0 = arith.constant 0 : index
    %c0_1 = arith.constant 0 : index
    %1 = vector.load %arg1[%c0, %c0_0, %c0_1] : memref<8x8x32xf32, #tpu.memory_space<vmem>>, vector<8x8x32xf32>
    %2 = vector.shape_cast %1 : vector<8x8x32xf32> to vector<64x32xf32>
    %c0_2 = arith.constant 0 : index
    %c0_3 = arith.constant 0 : index
    %c0_4 = arith.constant 0 : index
    %3 = vector.load %arg5[%c0_2, %c0_3, %c0_4] : memref<2x32x32xf32, #tpu.memory_space<vmem>>, vector<1x32x32xf32>
    %4 = vector.shape_cast %3 : vector<1x32x32xf32> to vector<32x32xf32>
    %cst_5 = arith.constant dense<0.000000e+00> : vector<64x32xf32>
    %5 = tpu.matmul %2, %4, %cst_5 {dimension_numbers = #tpu.dot_dimension_numbers<[1], [0], [0], [1], [0, 0, 1, 1], [], []>} : vector<64x32xf32>, vector<32x32xf32>, vector<64x32xf32> -> vector<64x32xf32>
    %c0_6 = arith.constant 0 : index
    %c0_7 = arith.constant 0 : index
    %c0_8 = arith.constant 0 : index
    %6 = vector.load %arg6[%c0_6, %c0_7, %c0_8] : memref<2x1x32xf32, #tpu.memory_space<vmem>>, vector<1x1x32xf32>
    %7 = vector.shape_cast %6 : vector<1x1x32xf32> to vector<1x32xf32>
    %8 = vector.broadcast %7 : vector<1x32xf32> to vector<64x32xf32>
    %9 = arith.addf %5, %8 : vector<64x32xf32>
    %cst_9 = arith.constant 0.000000e+00 : f32
    %10 = vector.broadcast %cst_9 : f32 to vector<64x32xf32>
    %11 = arith.maximumf %9, %10 : vector<64x32xf32>
    %c0_10 = arith.constant 0 : index
    %c0_11 = arith.constant 0 : index
    %c0_12 = arith.constant 0 : index
    %12 = vector.load %arg2[%c0_10, %c0_11, %c0_12] : memref<8x8x32xf32, #tpu.memory_space<vmem>>, vector<8x8x32xf32>
    %13 = vector.shape_cast %12 : vector<8x8x32xf32> to vector<64x32xf32>
    %c1 = arith.constant 1 : index
    %c0_13 = arith.constant 0 : index
    %c0_14 = arith.constant 0 : index
    %14 = vector.load %arg5[%c1, %c0_13, %c0_14] : memref<2x32x32xf32, #tpu.memory_space<vmem>>, vector<1x32x32xf32>
    %15 = vector.shape_cast %14 : vector<1x32x32xf32> to vector<32x32xf32>
    %cst_15 = arith.constant dense<0.000000e+00> : vector<64x32xf32>
    %16 = tpu.matmul %13, %15, %cst_15 {dimension_numbers = #tpu.dot_dimension_numbers<[1], [0], [0], [1], [0, 0, 1, 1], [], []>} : vector<64x32xf32>, vector<32x32xf32>, vector<64x32xf32> -> vector<64x32xf32>
    %c1_16 = arith.constant 1 : index
    %c0_17 = arith.constant 0 : index
    %c0_18 = arith.constant 0 : index
    %17 = vector.load %arg6[%c1_16, %c0_17, %c0_18] : memref<2x1x32xf32, #tpu.memory_space<vmem>>, vector<1x1x32xf32>
    %18 = vector.shape_cast %17 : vector<1x1x32xf32> to vector<1x32xf32>
    %19 = vector.broadcast %18 : vector<1x32xf32> to vector<64x32xf32>
    %20 = arith.addf %16, %19 : vector<64x32xf32>
    %cst_19 = arith.constant 0.000000e+00 : f32
    %21 = vector.broadcast %cst_19 : f32 to vector<64x32xf32>
    %22 = arith.maximumf %20, %21 : vector<64x32xf32>
    %c0_20 = arith.constant 0 : index
    %c0_21 = arith.constant 0 : index
    %c0_22 = arith.constant 0 : index
    %23 = vector.load %arg3[%c0_20, %c0_21, %c0_22] : memref<8x8x1xf32, #tpu.memory_space<vmem>>, vector<8x8x1xf32>
    %c0_23 = arith.constant 0 : index
    %c0_24 = arith.constant 0 : index
    %c0_25 = arith.constant 0 : index
    %24 = vector.load %arg4[%c0_23, %c0_24, %c0_25] : memref<8x8x1xf32, #tpu.memory_space<vmem>>, vector<8x8x1xf32>
    %c0_26 = arith.constant 0 : index
    %c0_27 = arith.constant 0 : index
    %c0_28 = arith.constant 0 : index
    %25 = vector.load %arg7[%c0_26, %c0_27, %c0_28] : memref<3x4x32xf32, #tpu.memory_space<vmem>>, vector<1x4x32xf32>
    %26 = vector.shape_cast %25 : vector<1x4x32xf32> to vector<4x32xf32>
    %27 = vector.extract_strided_slice %26 {offsets = [0, 0], sizes = [1, 32], strides = [1, 1]} : vector<4x32xf32> to vector<1x32xf32>
    %28 = vector.extract_strided_slice %26 {offsets = [1, 0], sizes = [1, 32], strides = [1, 1]} : vector<4x32xf32> to vector<1x32xf32>
    %cst_29 = arith.constant dense<0.000000e+00> : vector<64xf32>
    %29 = vector.multi_reduction <add>, %11, %cst_29 [1] : vector<64x32xf32> to vector<64xf32>
    %30 = vector.shape_cast %29 : vector<64xf32> to vector<64x1xf32>
    %cst_30 = arith.constant 3.200000e+01 : f32
    %31 = vector.broadcast %cst_30 : f32 to vector<64x1xf32>
    %32 = arith.divf %30, %31 : vector<64x1xf32>
    %33 = vector.broadcast %32 : vector<64x1xf32> to vector<64x32xf32>
    %34 = arith.subf %11, %33 : vector<64x32xf32>
    %35 = arith.mulf %34, %34 : vector<64x32xf32>
    %cst_31 = arith.constant dense<0.000000e+00> : vector<64xf32>
    %36 = vector.multi_reduction <add>, %35, %cst_31 [1] : vector<64x32xf32> to vector<64xf32>
    %37 = vector.shape_cast %36 : vector<64xf32> to vector<64x1xf32>
    %cst_32 = arith.constant 3.200000e+01 : f32
    %38 = vector.broadcast %cst_32 : f32 to vector<64x1xf32>
    %39 = arith.divf %37, %38 : vector<64x1xf32>
    %40 = vector.broadcast %32 : vector<64x1xf32> to vector<64x32xf32>
    %41 = arith.subf %11, %40 : vector<64x32xf32>
    %cst_33 = arith.constant 9.99999974E-6 : f32
    %42 = vector.broadcast %cst_33 : f32 to vector<64x1xf32>
    %43 = arith.addf %39, %42 : vector<64x1xf32>
    %44 = math.rsqrt %43 : vector<64x1xf32>
    %45 = vector.broadcast %44 : vector<64x1xf32> to vector<64x32xf32>
    %46 = arith.mulf %41, %45 : vector<64x32xf32>
    %47 = vector.broadcast %27 : vector<1x32xf32> to vector<64x32xf32>
    %48 = arith.mulf %46, %47 : vector<64x32xf32>
    %49 = vector.broadcast %28 : vector<1x32xf32> to vector<64x32xf32>
    %50 = arith.addf %48, %49 : vector<64x32xf32>
    %51 = vector.extract_strided_slice %26 {offsets = [2, 0], sizes = [1, 32], strides = [1, 1]} : vector<4x32xf32> to vector<1x32xf32>
    %52 = vector.extract_strided_slice %26 {offsets = [3, 0], sizes = [1, 32], strides = [1, 1]} : vector<4x32xf32> to vector<1x32xf32>
    %cst_34 = arith.constant dense<0.000000e+00> : vector<64xf32>
    %53 = vector.multi_reduction <add>, %22, %cst_34 [1] : vector<64x32xf32> to vector<64xf32>
    %54 = vector.shape_cast %53 : vector<64xf32> to vector<64x1xf32>
    %cst_35 = arith.constant 3.200000e+01 : f32
    %55 = vector.broadcast %cst_35 : f32 to vector<64x1xf32>
    %56 = arith.divf %54, %55 : vector<64x1xf32>
    %57 = vector.broadcast %56 : vector<64x1xf32> to vector<64x32xf32>
    %58 = arith.subf %22, %57 : vector<64x32xf32>
    %59 = arith.mulf %58, %58 : vector<64x32xf32>
    %cst_36 = arith.constant dense<0.000000e+00> : vector<64xf32>
    %60 = vector.multi_reduction <add>, %59, %cst_36 [1] : vector<64x32xf32> to vector<64xf32>
    %61 = vector.shape_cast %60 : vector<64xf32> to vector<64x1xf32>
    %cst_37 = arith.constant 3.200000e+01 : f32
    %62 = vector.broadcast %cst_37 : f32 to vector<64x1xf32>
    %63 = arith.divf %61, %62 : vector<64x1xf32>
    %64 = vector.broadcast %56 : vector<64x1xf32> to vector<64x32xf32>
    %65 = arith.subf %22, %64 : vector<64x32xf32>
    %cst_38 = arith.constant 9.99999974E-6 : f32
    %66 = vector.broadcast %cst_38 : f32 to vector<64x1xf32>
    %67 = arith.addf %63, %66 : vector<64x1xf32>
    %68 = math.rsqrt %67 : vector<64x1xf32>
    %69 = vector.broadcast %68 : vector<64x1xf32> to vector<64x32xf32>
    %70 = arith.mulf %65, %69 : vector<64x32xf32>
    %71 = vector.broadcast %51 : vector<1x32xf32> to vector<64x32xf32>
    %72 = arith.mulf %70, %71 : vector<64x32xf32>
    %73 = vector.broadcast %52 : vector<1x32xf32> to vector<64x32xf32>
    %74 = arith.addf %72, %73 : vector<64x32xf32>
    %c0_39 = arith.constant 0 : index
    %c0_40 = arith.constant 0 : index
    %c0_41 = arith.constant 0 : index
    %75 = vector.load %arg8[%c0_39, %c0_40, %c0_41] : memref<3x32x128xf32, #tpu.memory_space<vmem>>, vector<1x32x128xf32>
    %76 = vector.shape_cast %75 : vector<1x32x128xf32> to vector<32x128xf32>
    %cst_42 = arith.constant dense<0.000000e+00> : vector<64x128xf32>
    %77 = tpu.matmul %50, %76, %cst_42 {dimension_numbers = #tpu.dot_dimension_numbers<[1], [0], [0], [1], [0, 0, 1, 1], [], []>} : vector<64x32xf32>, vector<32x128xf32>, vector<64x128xf32> -> vector<64x128xf32>
    %c0_43 = arith.constant 0 : index
    %c0_44 = arith.constant 0 : index
    %c0_45 = arith.constant 0 : index
    %78 = vector.load %arg9[%c0_43, %c0_44, %c0_45] : memref<3x1x128xf32, #tpu.memory_space<vmem>>, vector<1x1x128xf32>
    %79 = vector.shape_cast %78 : vector<1x1x128xf32> to vector<1x128xf32>
    %80 = vector.broadcast %79 : vector<1x128xf32> to vector<64x128xf32>
    %81 = arith.addf %77, %80 : vector<64x128xf32>
    %c0_46 = arith.constant 0 : index
    %c0_47 = arith.constant 0 : index
    %c0_48 = arith.constant 0 : index
    %82 = vector.load %arg10[%c0_46, %c0_47, %c0_48] : memref<3x32x128xf32, #tpu.memory_space<vmem>>, vector<1x32x128xf32>
    %83 = vector.shape_cast %82 : vector<1x32x128xf32> to vector<32x128xf32>
    %cst_49 = arith.constant dense<0.000000e+00> : vector<64x128xf32>
    %84 = tpu.matmul %74, %83, %cst_49 {dimension_numbers = #tpu.dot_dimension_numbers<[1], [0], [0], [1], [0, 0, 1, 1], [], []>} : vector<64x32xf32>, vector<32x128xf32>, vector<64x128xf32> -> vector<64x128xf32>
    %c0_50 = arith.constant 0 : index
    %c0_51 = arith.constant 0 : index
    %c0_52 = arith.constant 0 : index
    %85 = vector.load %arg11[%c0_50, %c0_51, %c0_52] : memref<3x1x128xf32, #tpu.memory_space<vmem>>, vector<1x1x128xf32>
    %86 = vector.shape_cast %85 : vector<1x1x128xf32> to vector<1x128xf32>
    %87 = vector.broadcast %86 : vector<1x128xf32> to vector<64x128xf32>
    %88 = arith.addf %84, %87 : vector<64x128xf32>
    %89 = vector.extract_strided_slice %81 {offsets = [0, 0], sizes = [64, 32], strides = [1, 1]} : vector<64x128xf32> to vector<64x32xf32>
    %90 = vector.shape_cast %89 : vector<64x32xf32> to vector<8x8x32xf32>
    %91 = vector.extract_strided_slice %81 {offsets = [0, 32], sizes = [64, 32], strides = [1, 1]} : vector<64x128xf32> to vector<64x32xf32>
    %cst_53 = arith.constant 0.000000e+00 : f32
    %92 = vector.broadcast %cst_53 : f32 to vector<64x32xf32>
    %93 = arith.maximumf %91, %92 : vector<64x32xf32>
    %94 = vector.shape_cast %93 : vector<64x32xf32> to vector<8x8x32xf32>
    %95 = vector.extract_strided_slice %81 {offsets = [0, 64], sizes = [64, 1], strides = [1, 1]} : vector<64x128xf32> to vector<64x1xf32>
    %cst_54 = arith.constant 0.000000e+00 : f32
    %96 = vector.broadcast %cst_54 : f32 to vector<64x1xf32>
    %97 = arith.maximumf %95, %96 : vector<64x1xf32>
    %98 = vector.shape_cast %97 : vector<64x1xf32> to vector<8x8x1xf32>
    %99 = vector.extract_strided_slice %88 {offsets = [0, 0], sizes = [64, 32], strides = [1, 1]} : vector<64x128xf32> to vector<64x32xf32>
    %100 = vector.shape_cast %99 : vector<64x32xf32> to vector<8x8x32xf32>
    %101 = vector.extract_strided_slice %88 {offsets = [0, 32], sizes = [64, 32], strides = [1, 1]} : vector<64x128xf32> to vector<64x32xf32>
    %cst_55 = arith.constant 0.000000e+00 : f32
    %102 = vector.broadcast %cst_55 : f32 to vector<64x32xf32>
    %103 = arith.maximumf %101, %102 : vector<64x32xf32>
    %104 = vector.shape_cast %103 : vector<64x32xf32> to vector<8x8x32xf32>
    %105 = vector.extract_strided_slice %88 {offsets = [0, 64], sizes = [64, 1], strides = [1, 1]} : vector<64x128xf32> to vector<64x1xf32>
    %cst_56 = arith.constant 0.000000e+00 : f32
    %106 = vector.broadcast %cst_56 : f32 to vector<64x1xf32>
    %107 = arith.maximumf %105, %106 : vector<64x1xf32>
    %108 = vector.shape_cast %107 : vector<64x1xf32> to vector<8x8x1xf32>
    "tpu.trace_start"() <{level = 10 : i32, message = "bid,bjd->bij"}> : () -> ()
    %cst_57 = arith.constant dense<0.000000e+00> : vector<8x8x8xf32>
    %109 = tpu.matmul %90, %100, %cst_57 {dimension_numbers = #tpu.dot_dimension_numbers<[2], [2], [1], [1], [0, 0, 0, 1, 1, 1], [0], [0]>} : vector<8x8x32xf32>, vector<8x8x32xf32>, vector<8x8x8xf32> -> vector<8x8x8xf32>
    "tpu.trace_stop"() : () -> ()
    %110 = vector.broadcast %0 : f32 to vector<8x8x8xf32>
    %111 = arith.divf %109, %110 : vector<8x8x8xf32>
    %112 = arith.negf %111 : vector<8x8x8xf32>
    %113 = math.exp %112 : vector<8x8x8xf32>
    %cst_58 = arith.constant 1.000000e+00 : f32
    %114 = vector.broadcast %cst_58 : f32 to vector<8x8x8xf32>
    %115 = arith.addf %114, %113 : vector<8x8x8xf32>
    %116 = arith.divf %114, %115 : vector<8x8x8xf32>
    %117 = vector.broadcast %98 : vector<8x8x1xf32> to vector<8x8x32xf32>
    %118 = arith.mulf %117, %94 : vector<8x8x32xf32>
    %119 = vector.broadcast %108 : vector<8x8x1xf32> to vector<8x8x32xf32>
    %120 = arith.mulf %119, %104 : vector<8x8x32xf32>
    %121 = vector.shape_cast %50 : vector<64x32xf32> to vector<8x8x32xf32>
    %122 = arith.mulf %98, %23 : vector<8x8x1xf32>
    "tpu.trace_start"() <{level = 10 : i32, message = "bij,bjd->bid"}> : () -> ()
    %cst_59 = arith.constant dense<0.000000e+00> : vector<8x8x32xf32>
    %123 = tpu.matmul %116, %120, %cst_59 {dimension_numbers = #tpu.dot_dimension_numbers<[2], [1], [1], [2], [0, 0, 0, 1, 1, 2], [0], [0]>} : vector<8x8x8xf32>, vector<8x8x32xf32>, vector<8x8x32xf32> -> vector<8x8x32xf32>
    "tpu.trace_stop"() : () -> ()
    %124 = vector.broadcast %122 : vector<8x8x1xf32> to vector<8x8x32xf32>
    %125 = arith.mulf %124, %123 : vector<8x8x32xf32>
    %126 = arith.addf %121, %125 : vector<8x8x32xf32>
    %127 = vector.shape_cast %74 : vector<64x32xf32> to vector<8x8x32xf32>
    %128 = arith.mulf %108, %24 : vector<8x8x1xf32>
    "tpu.trace_start"() <{level = 10 : i32, message = "bij,bid->bjd"}> : () -> ()
    %cst_60 = arith.constant dense<0.000000e+00> : vector<8x8x32xf32>
    %129 = tpu.matmul %116, %118, %cst_60 {dimension_numbers = #tpu.dot_dimension_numbers<[1], [1], [2], [2], [0, 0, 0, 2, 1, 2], [0], [0]>} : vector<8x8x8xf32>, vector<8x8x32xf32>, vector<8x8x32xf32> -> vector<8x8x32xf32>
    "tpu.trace_stop"() : () -> ()
    %130 = vector.broadcast %128 : vector<8x8x1xf32> to vector<8x8x32xf32>
    %131 = arith.mulf %130, %129 : vector<8x8x32xf32>
    %132 = arith.addf %127, %131 : vector<8x8x32xf32>
    %133 = vector.shape_cast %126 : vector<8x8x32xf32> to vector<64x32xf32>
    %134 = vector.shape_cast %132 : vector<8x8x32xf32> to vector<64x32xf32>
    %c1_61 = arith.constant 1 : index
    %c0_62 = arith.constant 0 : index
    %c0_63 = arith.constant 0 : index
    %135 = vector.load %arg7[%c1_61, %c0_62, %c0_63] : memref<3x4x32xf32, #tpu.memory_space<vmem>>, vector<1x4x32xf32>
    %136 = vector.shape_cast %135 : vector<1x4x32xf32> to vector<4x32xf32>
    %137 = vector.extract_strided_slice %136 {offsets = [0, 0], sizes = [1, 32], strides = [1, 1]} : vector<4x32xf32> to vector<1x32xf32>
    %138 = vector.extract_strided_slice %136 {offsets = [1, 0], sizes = [1, 32], strides = [1, 1]} : vector<4x32xf32> to vector<1x32xf32>
    %cst_64 = arith.constant dense<0.000000e+00> : vector<64xf32>
    %139 = vector.multi_reduction <add>, %133, %cst_64 [1] : vector<64x32xf32> to vector<64xf32>
    %140 = vector.shape_cast %139 : vector<64xf32> to vector<64x1xf32>
    %cst_65 = arith.constant 3.200000e+01 : f32
    %141 = vector.broadcast %cst_65 : f32 to vector<64x1xf32>
    %142 = arith.divf %140, %141 : vector<64x1xf32>
    %143 = vector.broadcast %142 : vector<64x1xf32> to vector<64x32xf32>
    %144 = arith.subf %133, %143 : vector<64x32xf32>
    %145 = arith.mulf %144, %144 : vector<64x32xf32>
    %cst_66 = arith.constant dense<0.000000e+00> : vector<64xf32>
    %146 = vector.multi_reduction <add>, %145, %cst_66 [1] : vector<64x32xf32> to vector<64xf32>
    %147 = vector.shape_cast %146 : vector<64xf32> to vector<64x1xf32>
    %cst_67 = arith.constant 3.200000e+01 : f32
    %148 = vector.broadcast %cst_67 : f32 to vector<64x1xf32>
    %149 = arith.divf %147, %148 : vector<64x1xf32>
    %150 = vector.broadcast %142 : vector<64x1xf32> to vector<64x32xf32>
    %151 = arith.subf %133, %150 : vector<64x32xf32>
    %cst_68 = arith.constant 9.99999974E-6 : f32
    %152 = vector.broadcast %cst_68 : f32 to vector<64x1xf32>
    %153 = arith.addf %149, %152 : vector<64x1xf32>
    %154 = math.rsqrt %153 : vector<64x1xf32>
    %155 = vector.broadcast %154 : vector<64x1xf32> to vector<64x32xf32>
    %156 = arith.mulf %151, %155 : vector<64x32xf32>
    %157 = vector.broadcast %137 : vector<1x32xf32> to vector<64x32xf32>
    %158 = arith.mulf %156, %157 : vector<64x32xf32>
    %159 = vector.broadcast %138 : vector<1x32xf32> to vector<64x32xf32>
    %160 = arith.addf %158, %159 : vector<64x32xf32>
    %161 = vector.extract_strided_slice %136 {offsets = [2, 0], sizes = [1, 32], strides = [1, 1]} : vector<4x32xf32> to vector<1x32xf32>
    %162 = vector.extract_strided_slice %136 {offsets = [3, 0], sizes = [1, 32], strides = [1, 1]} : vector<4x32xf32> to vector<1x32xf32>
    %cst_69 = arith.constant dense<0.000000e+00> : vector<64xf32>
    %163 = vector.multi_reduction <add>, %134, %cst_69 [1] : vector<64x32xf32> to vector<64xf32>
    %164 = vector.shape_cast %163 : vector<64xf32> to vector<64x1xf32>
    %cst_70 = arith.constant 3.200000e+01 : f32
    %165 = vector.broadcast %cst_70 : f32 to vector<64x1xf32>
    %166 = arith.divf %164, %165 : vector<64x1xf32>
    %167 = vector.broadcast %166 : vector<64x1xf32> to vector<64x32xf32>
    %168 = arith.subf %134, %167 : vector<64x32xf32>
    %169 = arith.mulf %168, %168 : vector<64x32xf32>
    %cst_71 = arith.constant dense<0.000000e+00> : vector<64xf32>
    %170 = vector.multi_reduction <add>, %169, %cst_71 [1] : vector<64x32xf32> to vector<64xf32>
    %171 = vector.shape_cast %170 : vector<64xf32> to vector<64x1xf32>
    %cst_72 = arith.constant 3.200000e+01 : f32
    %172 = vector.broadcast %cst_72 : f32 to vector<64x1xf32>
    %173 = arith.divf %171, %172 : vector<64x1xf32>
    %174 = vector.broadcast %166 : vector<64x1xf32> to vector<64x32xf32>
    %175 = arith.subf %134, %174 : vector<64x32xf32>
    %cst_73 = arith.constant 9.99999974E-6 : f32
    %176 = vector.broadcast %cst_73 : f32 to vector<64x1xf32>
    %177 = arith.addf %173, %176 : vector<64x1xf32>
    %178 = math.rsqrt %177 : vector<64x1xf32>
    %179 = vector.broadcast %178 : vector<64x1xf32> to vector<64x32xf32>
    %180 = arith.mulf %175, %179 : vector<64x32xf32>
    %181 = vector.broadcast %161 : vector<1x32xf32> to vector<64x32xf32>
    %182 = arith.mulf %180, %181 : vector<64x32xf32>
    %183 = vector.broadcast %162 : vector<1x32xf32> to vector<64x32xf32>
    %184 = arith.addf %182, %183 : vector<64x32xf32>
    %c1_74 = arith.constant 1 : index
    %c0_75 = arith.constant 0 : index
    %c0_76 = arith.constant 0 : index
    %185 = vector.load %arg8[%c1_74, %c0_75, %c0_76] : memref<3x32x128xf32, #tpu.memory_space<vmem>>, vector<1x32x128xf32>
    %186 = vector.shape_cast %185 : vector<1x32x128xf32> to vector<32x128xf32>
    %cst_77 = arith.constant dense<0.000000e+00> : vector<64x128xf32>
    %187 = tpu.matmul %160, %186, %cst_77 {dimension_numbers = #tpu.dot_dimension_numbers<[1], [0], [0], [1], [0, 0, 1, 1], [], []>} : vector<64x32xf32>, vector<32x128xf32>, vector<64x128xf32> -> vector<64x128xf32>
    %c1_78 = arith.constant 1 : index
    %c0_79 = arith.constant 0 : index
    %c0_80 = arith.constant 0 : index
    %188 = vector.load %arg9[%c1_78, %c0_79, %c0_80] : memref<3x1x128xf32, #tpu.memory_space<vmem>>, vector<1x1x128xf32>
    %189 = vector.shape_cast %188 : vector<1x1x128xf32> to vector<1x128xf32>
    %190 = vector.broadcast %189 : vector<1x128xf32> to vector<64x128xf32>
    %191 = arith.addf %187, %190 : vector<64x128xf32>
    %c1_81 = arith.constant 1 : index
    %c0_82 = arith.constant 0 : index
    %c0_83 = arith.constant 0 : index
    %192 = vector.load %arg10[%c1_81, %c0_82, %c0_83] : memref<3x32x128xf32, #tpu.memory_space<vmem>>, vector<1x32x128xf32>
    %193 = vector.shape_cast %192 : vector<1x32x128xf32> to vector<32x128xf32>
    %cst_84 = arith.constant dense<0.000000e+00> : vector<64x128xf32>
    %194 = tpu.matmul %184, %193, %cst_84 {dimension_numbers = #tpu.dot_dimension_numbers<[1], [0], [0], [1], [0, 0, 1, 1], [], []>} : vector<64x32xf32>, vector<32x128xf32>, vector<64x128xf32> -> vector<64x128xf32>
    %c1_85 = arith.constant 1 : index
    %c0_86 = arith.constant 0 : index
    %c0_87 = arith.constant 0 : index
    %195 = vector.load %arg11[%c1_85, %c0_86, %c0_87] : memref<3x1x128xf32, #tpu.memory_space<vmem>>, vector<1x1x128xf32>
    %196 = vector.shape_cast %195 : vector<1x1x128xf32> to vector<1x128xf32>
    %197 = vector.broadcast %196 : vector<1x128xf32> to vector<64x128xf32>
    %198 = arith.addf %194, %197 : vector<64x128xf32>
    %199 = vector.extract_strided_slice %191 {offsets = [0, 0], sizes = [64, 32], strides = [1, 1]} : vector<64x128xf32> to vector<64x32xf32>
    %200 = vector.shape_cast %199 : vector<64x32xf32> to vector<8x8x32xf32>
    %201 = vector.extract_strided_slice %191 {offsets = [0, 32], sizes = [64, 32], strides = [1, 1]} : vector<64x128xf32> to vector<64x32xf32>
    %cst_88 = arith.constant 0.000000e+00 : f32
    %202 = vector.broadcast %cst_88 : f32 to vector<64x32xf32>
    %203 = arith.maximumf %201, %202 : vector<64x32xf32>
    %204 = vector.shape_cast %203 : vector<64x32xf32> to vector<8x8x32xf32>
    %205 = vector.extract_strided_slice %191 {offsets = [0, 64], sizes = [64, 1], strides = [1, 1]} : vector<64x128xf32> to vector<64x1xf32>
    %cst_89 = arith.constant 0.000000e+00 : f32
    %206 = vector.broadcast %cst_89 : f32 to vector<64x1xf32>
    %207 = arith.maximumf %205, %206 : vector<64x1xf32>
    %208 = vector.shape_cast %207 : vector<64x1xf32> to vector<8x8x1xf32>
    %209 = vector.extract_strided_slice %198 {offsets = [0, 0], sizes = [64, 32], strides = [1, 1]} : vector<64x128xf32> to vector<64x32xf32>
    %210 = vector.shape_cast %209 : vector<64x32xf32> to vector<8x8x32xf32>
    %211 = vector.extract_strided_slice %198 {offsets = [0, 32], sizes = [64, 32], strides = [1, 1]} : vector<64x128xf32> to vector<64x32xf32>
    %cst_90 = arith.constant 0.000000e+00 : f32
    %212 = vector.broadcast %cst_90 : f32 to vector<64x32xf32>
    %213 = arith.maximumf %211, %212 : vector<64x32xf32>
    %214 = vector.shape_cast %213 : vector<64x32xf32> to vector<8x8x32xf32>
    %215 = vector.extract_strided_slice %198 {offsets = [0, 64], sizes = [64, 1], strides = [1, 1]} : vector<64x128xf32> to vector<64x1xf32>
    %cst_91 = arith.constant 0.000000e+00 : f32
    %216 = vector.broadcast %cst_91 : f32 to vector<64x1xf32>
    %217 = arith.maximumf %215, %216 : vector<64x1xf32>
    %218 = vector.shape_cast %217 : vector<64x1xf32> to vector<8x8x1xf32>
    "tpu.trace_start"() <{level = 10 : i32, message = "bid,bjd->bij"}> : () -> ()
    %cst_92 = arith.constant dense<0.000000e+00> : vector<8x8x8xf32>
    %219 = tpu.matmul %200, %210, %cst_92 {dimension_numbers = #tpu.dot_dimension_numbers<[2], [2], [1], [1], [0, 0, 0, 1, 1, 1], [0], [0]>} : vector<8x8x32xf32>, vector<8x8x32xf32>, vector<8x8x8xf32> -> vector<8x8x8xf32>
    "tpu.trace_stop"() : () -> ()
    %220 = vector.broadcast %0 : f32 to vector<8x8x8xf32>
    %221 = arith.divf %219, %220 : vector<8x8x8xf32>
    %222 = arith.negf %221 : vector<8x8x8xf32>
    %223 = math.exp %222 : vector<8x8x8xf32>
    %cst_93 = arith.constant 1.000000e+00 : f32
    %224 = vector.broadcast %cst_93 : f32 to vector<8x8x8xf32>
    %225 = arith.addf %224, %223 : vector<8x8x8xf32>
    %226 = arith.divf %224, %225 : vector<8x8x8xf32>
    %227 = vector.broadcast %208 : vector<8x8x1xf32> to vector<8x8x32xf32>
    %228 = arith.mulf %227, %204 : vector<8x8x32xf32>
    %229 = vector.broadcast %218 : vector<8x8x1xf32> to vector<8x8x32xf32>
    %230 = arith.mulf %229, %214 : vector<8x8x32xf32>
    %231 = vector.shape_cast %160 : vector<64x32xf32> to vector<8x8x32xf32>
    %232 = arith.mulf %208, %23 : vector<8x8x1xf32>
    "tpu.trace_start"() <{level = 10 : i32, message = "bij,bjd->bid"}> : () -> ()
    %cst_94 = arith.constant dense<0.000000e+00> : vector<8x8x32xf32>
    %233 = tpu.matmul %226, %230, %cst_94 {dimension_numbers = #tpu.dot_dimension_numbers<[2], [1], [1], [2], [0, 0, 0, 1, 1, 2], [0], [0]>} : vector<8x8x8xf32>, vector<8x8x32xf32>, vector<8x8x32xf32> -> vector<8x8x32xf32>
    "tpu.trace_stop"() : () -> ()
    %234 = vector.broadcast %232 : vector<8x8x1xf32> to vector<8x8x32xf32>
    %235 = arith.mulf %234, %233 : vector<8x8x32xf32>
    %236 = arith.addf %231, %235 : vector<8x8x32xf32>
    %237 = vector.shape_cast %184 : vector<64x32xf32> to vector<8x8x32xf32>
    %238 = arith.mulf %218, %24 : vector<8x8x1xf32>
    "tpu.trace_start"() <{level = 10 : i32, message = "bij,bid->bjd"}> : () -> ()
    %cst_95 = arith.constant dense<0.000000e+00> : vector<8x8x32xf32>
    %239 = tpu.matmul %226, %228, %cst_95 {dimension_numbers = #tpu.dot_dimension_numbers<[1], [1], [2], [2], [0, 0, 0, 2, 1, 2], [0], [0]>} : vector<8x8x8xf32>, vector<8x8x32xf32>, vector<8x8x32xf32> -> vector<8x8x32xf32>
    "tpu.trace_stop"() : () -> ()
    %240 = vector.broadcast %238 : vector<8x8x1xf32> to vector<8x8x32xf32>
    %241 = arith.mulf %240, %239 : vector<8x8x32xf32>
    %242 = arith.addf %237, %241 : vector<8x8x32xf32>
    %243 = vector.shape_cast %236 : vector<8x8x32xf32> to vector<64x32xf32>
    %244 = vector.shape_cast %242 : vector<8x8x32xf32> to vector<64x32xf32>
    %c2 = arith.constant 2 : index
    %c0_96 = arith.constant 0 : index
    %c0_97 = arith.constant 0 : index
    %245 = vector.load %arg7[%c2, %c0_96, %c0_97] : memref<3x4x32xf32, #tpu.memory_space<vmem>>, vector<1x4x32xf32>
    %246 = vector.shape_cast %245 : vector<1x4x32xf32> to vector<4x32xf32>
    %247 = vector.extract_strided_slice %246 {offsets = [0, 0], sizes = [1, 32], strides = [1, 1]} : vector<4x32xf32> to vector<1x32xf32>
    %248 = vector.extract_strided_slice %246 {offsets = [1, 0], sizes = [1, 32], strides = [1, 1]} : vector<4x32xf32> to vector<1x32xf32>
    %cst_98 = arith.constant dense<0.000000e+00> : vector<64xf32>
    %249 = vector.multi_reduction <add>, %243, %cst_98 [1] : vector<64x32xf32> to vector<64xf32>
    %250 = vector.shape_cast %249 : vector<64xf32> to vector<64x1xf32>
    %cst_99 = arith.constant 3.200000e+01 : f32
    %251 = vector.broadcast %cst_99 : f32 to vector<64x1xf32>
    %252 = arith.divf %250, %251 : vector<64x1xf32>
    %253 = vector.broadcast %252 : vector<64x1xf32> to vector<64x32xf32>
    %254 = arith.subf %243, %253 : vector<64x32xf32>
    %255 = arith.mulf %254, %254 : vector<64x32xf32>
    %cst_100 = arith.constant dense<0.000000e+00> : vector<64xf32>
    %256 = vector.multi_reduction <add>, %255, %cst_100 [1] : vector<64x32xf32> to vector<64xf32>
    %257 = vector.shape_cast %256 : vector<64xf32> to vector<64x1xf32>
    %cst_101 = arith.constant 3.200000e+01 : f32
    %258 = vector.broadcast %cst_101 : f32 to vector<64x1xf32>
    %259 = arith.divf %257, %258 : vector<64x1xf32>
    %260 = vector.broadcast %252 : vector<64x1xf32> to vector<64x32xf32>
    %261 = arith.subf %243, %260 : vector<64x32xf32>
    %cst_102 = arith.constant 9.99999974E-6 : f32
    %262 = vector.broadcast %cst_102 : f32 to vector<64x1xf32>
    %263 = arith.addf %259, %262 : vector<64x1xf32>
    %264 = math.rsqrt %263 : vector<64x1xf32>
    %265 = vector.broadcast %264 : vector<64x1xf32> to vector<64x32xf32>
    %266 = arith.mulf %261, %265 : vector<64x32xf32>
    %267 = vector.broadcast %247 : vector<1x32xf32> to vector<64x32xf32>
    %268 = arith.mulf %266, %267 : vector<64x32xf32>
    %269 = vector.broadcast %248 : vector<1x32xf32> to vector<64x32xf32>
    %270 = arith.addf %268, %269 : vector<64x32xf32>
    %271 = vector.extract_strided_slice %246 {offsets = [2, 0], sizes = [1, 32], strides = [1, 1]} : vector<4x32xf32> to vector<1x32xf32>
    %272 = vector.extract_strided_slice %246 {offsets = [3, 0], sizes = [1, 32], strides = [1, 1]} : vector<4x32xf32> to vector<1x32xf32>
    %cst_103 = arith.constant dense<0.000000e+00> : vector<64xf32>
    %273 = vector.multi_reduction <add>, %244, %cst_103 [1] : vector<64x32xf32> to vector<64xf32>
    %274 = vector.shape_cast %273 : vector<64xf32> to vector<64x1xf32>
    %cst_104 = arith.constant 3.200000e+01 : f32
    %275 = vector.broadcast %cst_104 : f32 to vector<64x1xf32>
    %276 = arith.divf %274, %275 : vector<64x1xf32>
    %277 = vector.broadcast %276 : vector<64x1xf32> to vector<64x32xf32>
    %278 = arith.subf %244, %277 : vector<64x32xf32>
    %279 = arith.mulf %278, %278 : vector<64x32xf32>
    %cst_105 = arith.constant dense<0.000000e+00> : vector<64xf32>
    %280 = vector.multi_reduction <add>, %279, %cst_105 [1] : vector<64x32xf32> to vector<64xf32>
    %281 = vector.shape_cast %280 : vector<64xf32> to vector<64x1xf32>
    %cst_106 = arith.constant 3.200000e+01 : f32
    %282 = vector.broadcast %cst_106 : f32 to vector<64x1xf32>
    %283 = arith.divf %281, %282 : vector<64x1xf32>
    %284 = vector.broadcast %276 : vector<64x1xf32> to vector<64x32xf32>
    %285 = arith.subf %244, %284 : vector<64x32xf32>
    %cst_107 = arith.constant 9.99999974E-6 : f32
    %286 = vector.broadcast %cst_107 : f32 to vector<64x1xf32>
    %287 = arith.addf %283, %286 : vector<64x1xf32>
    %288 = math.rsqrt %287 : vector<64x1xf32>
    %289 = vector.broadcast %288 : vector<64x1xf32> to vector<64x32xf32>
    %290 = arith.mulf %285, %289 : vector<64x32xf32>
    %291 = vector.broadcast %271 : vector<1x32xf32> to vector<64x32xf32>
    %292 = arith.mulf %290, %291 : vector<64x32xf32>
    %293 = vector.broadcast %272 : vector<1x32xf32> to vector<64x32xf32>
    %294 = arith.addf %292, %293 : vector<64x32xf32>
    %c2_108 = arith.constant 2 : index
    %c0_109 = arith.constant 0 : index
    %c0_110 = arith.constant 0 : index
    %295 = vector.load %arg8[%c2_108, %c0_109, %c0_110] : memref<3x32x128xf32, #tpu.memory_space<vmem>>, vector<1x32x128xf32>
    %296 = vector.shape_cast %295 : vector<1x32x128xf32> to vector<32x128xf32>
    %cst_111 = arith.constant dense<0.000000e+00> : vector<64x128xf32>
    %297 = tpu.matmul %270, %296, %cst_111 {dimension_numbers = #tpu.dot_dimension_numbers<[1], [0], [0], [1], [0, 0, 1, 1], [], []>} : vector<64x32xf32>, vector<32x128xf32>, vector<64x128xf32> -> vector<64x128xf32>
    %c2_112 = arith.constant 2 : index
    %c0_113 = arith.constant 0 : index
    %c0_114 = arith.constant 0 : index
    %298 = vector.load %arg9[%c2_112, %c0_113, %c0_114] : memref<3x1x128xf32, #tpu.memory_space<vmem>>, vector<1x1x128xf32>
    %299 = vector.shape_cast %298 : vector<1x1x128xf32> to vector<1x128xf32>
    %300 = vector.broadcast %299 : vector<1x128xf32> to vector<64x128xf32>
    %301 = arith.addf %297, %300 : vector<64x128xf32>
    %c2_115 = arith.constant 2 : index
    %c0_116 = arith.constant 0 : index
    %c0_117 = arith.constant 0 : index
    %302 = vector.load %arg10[%c2_115, %c0_116, %c0_117] : memref<3x32x128xf32, #tpu.memory_space<vmem>>, vector<1x32x128xf32>
    %303 = vector.shape_cast %302 : vector<1x32x128xf32> to vector<32x128xf32>
    %cst_118 = arith.constant dense<0.000000e+00> : vector<64x128xf32>
    %304 = tpu.matmul %294, %303, %cst_118 {dimension_numbers = #tpu.dot_dimension_numbers<[1], [0], [0], [1], [0, 0, 1, 1], [], []>} : vector<64x32xf32>, vector<32x128xf32>, vector<64x128xf32> -> vector<64x128xf32>
    %c2_119 = arith.constant 2 : index
    %c0_120 = arith.constant 0 : index
    %c0_121 = arith.constant 0 : index
    %305 = vector.load %arg11[%c2_119, %c0_120, %c0_121] : memref<3x1x128xf32, #tpu.memory_space<vmem>>, vector<1x1x128xf32>
    %306 = vector.shape_cast %305 : vector<1x1x128xf32> to vector<1x128xf32>
    %307 = vector.broadcast %306 : vector<1x128xf32> to vector<64x128xf32>
    %308 = arith.addf %304, %307 : vector<64x128xf32>
    %309 = vector.extract_strided_slice %301 {offsets = [0, 0], sizes = [64, 32], strides = [1, 1]} : vector<64x128xf32> to vector<64x32xf32>
    %310 = vector.shape_cast %309 : vector<64x32xf32> to vector<8x8x32xf32>
    %311 = vector.extract_strided_slice %301 {offsets = [0, 32], sizes = [64, 32], strides = [1, 1]} : vector<64x128xf32> to vector<64x32xf32>
    %cst_122 = arith.constant 0.000000e+00 : f32
    %312 = vector.broadcast %cst_122 : f32 to vector<64x32xf32>
    %313 = arith.maximumf %311, %312 : vector<64x32xf32>
    %314 = vector.shape_cast %313 : vector<64x32xf32> to vector<8x8x32xf32>
    %315 = vector.extract_strided_slice %301 {offsets = [0, 64], sizes = [64, 1], strides = [1, 1]} : vector<64x128xf32> to vector<64x1xf32>
    %cst_123 = arith.constant 0.000000e+00 : f32
    %316 = vector.broadcast %cst_123 : f32 to vector<64x1xf32>
    %317 = arith.maximumf %315, %316 : vector<64x1xf32>
    %318 = vector.shape_cast %317 : vector<64x1xf32> to vector<8x8x1xf32>
    %319 = vector.extract_strided_slice %308 {offsets = [0, 0], sizes = [64, 32], strides = [1, 1]} : vector<64x128xf32> to vector<64x32xf32>
    %320 = vector.shape_cast %319 : vector<64x32xf32> to vector<8x8x32xf32>
    %321 = vector.extract_strided_slice %308 {offsets = [0, 32], sizes = [64, 32], strides = [1, 1]} : vector<64x128xf32> to vector<64x32xf32>
    %cst_124 = arith.constant 0.000000e+00 : f32
    %322 = vector.broadcast %cst_124 : f32 to vector<64x32xf32>
    %323 = arith.maximumf %321, %322 : vector<64x32xf32>
    %324 = vector.shape_cast %323 : vector<64x32xf32> to vector<8x8x32xf32>
    %325 = vector.extract_strided_slice %308 {offsets = [0, 64], sizes = [64, 1], strides = [1, 1]} : vector<64x128xf32> to vector<64x1xf32>
    %cst_125 = arith.constant 0.000000e+00 : f32
    %326 = vector.broadcast %cst_125 : f32 to vector<64x1xf32>
    %327 = arith.maximumf %325, %326 : vector<64x1xf32>
    %328 = vector.shape_cast %327 : vector<64x1xf32> to vector<8x8x1xf32>
    "tpu.trace_start"() <{level = 10 : i32, message = "bid,bjd->bij"}> : () -> ()
    %cst_126 = arith.constant dense<0.000000e+00> : vector<8x8x8xf32>
    %329 = tpu.matmul %310, %320, %cst_126 {dimension_numbers = #tpu.dot_dimension_numbers<[2], [2], [1], [1], [0, 0, 0, 1, 1, 1], [0], [0]>} : vector<8x8x32xf32>, vector<8x8x32xf32>, vector<8x8x8xf32> -> vector<8x8x8xf32>
    "tpu.trace_stop"() : () -> ()
    %330 = vector.broadcast %0 : f32 to vector<8x8x8xf32>
    %331 = arith.divf %329, %330 : vector<8x8x8xf32>
    %332 = arith.negf %331 : vector<8x8x8xf32>
    %333 = math.exp %332 : vector<8x8x8xf32>
    %cst_127 = arith.constant 1.000000e+00 : f32
    %334 = vector.broadcast %cst_127 : f32 to vector<8x8x8xf32>
    %335 = arith.addf %334, %333 : vector<8x8x8xf32>
    %336 = arith.divf %334, %335 : vector<8x8x8xf32>
    %337 = vector.broadcast %318 : vector<8x8x1xf32> to vector<8x8x32xf32>
    %338 = arith.mulf %337, %314 : vector<8x8x32xf32>
    %339 = vector.broadcast %328 : vector<8x8x1xf32> to vector<8x8x32xf32>
    %340 = arith.mulf %339, %324 : vector<8x8x32xf32>
    %341 = vector.shape_cast %270 : vector<64x32xf32> to vector<8x8x32xf32>
    %342 = arith.mulf %318, %23 : vector<8x8x1xf32>
    "tpu.trace_start"() <{level = 10 : i32, message = "bij,bjd->bid"}> : () -> ()
    %cst_128 = arith.constant dense<0.000000e+00> : vector<8x8x32xf32>
    %343 = tpu.matmul %336, %340, %cst_128 {dimension_numbers = #tpu.dot_dimension_numbers<[2], [1], [1], [2], [0, 0, 0, 1, 1, 2], [0], [0]>} : vector<8x8x8xf32>, vector<8x8x32xf32>, vector<8x8x32xf32> -> vector<8x8x32xf32>
    "tpu.trace_stop"() : () -> ()
    %344 = vector.broadcast %342 : vector<8x8x1xf32> to vector<8x8x32xf32>
    %345 = arith.mulf %344, %343 : vector<8x8x32xf32>
    %346 = arith.addf %341, %345 : vector<8x8x32xf32>
    %347 = vector.shape_cast %294 : vector<64x32xf32> to vector<8x8x32xf32>
    %348 = arith.mulf %328, %24 : vector<8x8x1xf32>
    "tpu.trace_start"() <{level = 10 : i32, message = "bij,bid->bjd"}> : () -> ()
    %cst_129 = arith.constant dense<0.000000e+00> : vector<8x8x32xf32>
    %349 = tpu.matmul %336, %338, %cst_129 {dimension_numbers = #tpu.dot_dimension_numbers<[1], [1], [2], [2], [0, 0, 0, 2, 1, 2], [0], [0]>} : vector<8x8x8xf32>, vector<8x8x32xf32>, vector<8x8x32xf32> -> vector<8x8x32xf32>
    "tpu.trace_stop"() : () -> ()
    %350 = vector.broadcast %348 : vector<8x8x1xf32> to vector<8x8x32xf32>
    %351 = arith.mulf %350, %349 : vector<8x8x32xf32>
    %352 = arith.addf %347, %351 : vector<8x8x32xf32>
    %353 = vector.shape_cast %346 : vector<8x8x32xf32> to vector<64x32xf32>
    %354 = vector.shape_cast %352 : vector<8x8x32xf32> to vector<64x32xf32>
    %355 = vector.shape_cast %353 : vector<64x32xf32> to vector<8x8x32xf32>
    %356 = arith.mulf %355, %355 : vector<8x8x32xf32>
    %cst_130 = arith.constant dense<0.000000e+00> : vector<8x8xf32>
    %357 = vector.multi_reduction <add>, %356, %cst_130 [2] : vector<8x8x32xf32> to vector<8x8xf32>
    %358 = vector.shape_cast %357 : vector<8x8xf32> to vector<8x8x1xf32>
    %359 = math.sqrt %358 : vector<8x8x1xf32>
    %cst_131 = arith.constant dense<0xFF800000> : vector<8x1xf32>
    %360 = vector.multi_reduction <maximumf>, %359, %cst_131 [1] : vector<8x8x1xf32> to vector<8x1xf32>
    %361 = vector.shape_cast %360 : vector<8x1xf32> to vector<8x1x1xf32>
    %362 = vector.broadcast %361 : vector<8x1x1xf32> to vector<8x8x1xf32>
    %363 = arith.subf %359, %362 : vector<8x8x1xf32>
    %364 = math.exp %363 : vector<8x8x1xf32>
    %cst_132 = arith.constant dense<0.000000e+00> : vector<8x1xf32>
    %365 = vector.multi_reduction <add>, %364, %cst_132 [1] : vector<8x8x1xf32> to vector<8x1xf32>
    %366 = vector.shape_cast %365 : vector<8x1xf32> to vector<8x1x1xf32>
    %367 = vector.broadcast %366 : vector<8x1x1xf32> to vector<8x8x1xf32>
    %368 = arith.divf %364, %367 : vector<8x8x1xf32>
    %369 = vector.broadcast %368 : vector<8x8x1xf32> to vector<8x8x32xf32>
    %370 = arith.mulf %355, %369 : vector<8x8x32xf32>
    %cst_133 = arith.constant dense<0.000000e+00> : vector<8x32xf32>
    %371 = vector.multi_reduction <add>, %370, %cst_133 [1] : vector<8x8x32xf32> to vector<8x32xf32>
    %372 = vector.shape_cast %354 : vector<64x32xf32> to vector<8x8x32xf32>
    %373 = arith.mulf %372, %372 : vector<8x8x32xf32>
    %cst_134 = arith.constant dense<0.000000e+00> : vector<8x8xf32>
    %374 = vector.multi_reduction <add>, %373, %cst_134 [2] : vector<8x8x32xf32> to vector<8x8xf32>
    %375 = vector.shape_cast %374 : vector<8x8xf32> to vector<8x8x1xf32>
    %376 = math.sqrt %375 : vector<8x8x1xf32>
    %cst_135 = arith.constant dense<0xFF800000> : vector<8x1xf32>
    %377 = vector.multi_reduction <maximumf>, %376, %cst_135 [1] : vector<8x8x1xf32> to vector<8x1xf32>
    %378 = vector.shape_cast %377 : vector<8x1xf32> to vector<8x1x1xf32>
    %379 = vector.broadcast %378 : vector<8x1x1xf32> to vector<8x8x1xf32>
    %380 = arith.subf %376, %379 : vector<8x8x1xf32>
    %381 = math.exp %380 : vector<8x8x1xf32>
    %cst_136 = arith.constant dense<0.000000e+00> : vector<8x1xf32>
    %382 = vector.multi_reduction <add>, %381, %cst_136 [1] : vector<8x8x1xf32> to vector<8x1xf32>
    %383 = vector.shape_cast %382 : vector<8x1xf32> to vector<8x1x1xf32>
    %384 = vector.broadcast %383 : vector<8x1x1xf32> to vector<8x8x1xf32>
    %385 = arith.divf %381, %384 : vector<8x8x1xf32>
    %386 = vector.broadcast %385 : vector<8x8x1xf32> to vector<8x8x32xf32>
    %387 = arith.mulf %372, %386 : vector<8x8x32xf32>
    %cst_137 = arith.constant dense<0.000000e+00> : vector<8x32xf32>
    %388 = vector.multi_reduction <add>, %387, %cst_137 [1] : vector<8x8x32xf32> to vector<8x32xf32>
    %c0_138 = arith.constant 0 : index
    %c0_139 = arith.constant 0 : index
    %389 = vector.load %arg12[%c0_138, %c0_139] : memref<64x32xf32, #tpu.memory_space<vmem>>, vector<64x32xf32>
    %c0_140 = arith.constant 0 : index
    %c0_141 = arith.constant 0 : index
    %390 = vector.load %arg13[%c0_140, %c0_141] : memref<3x32xf32, #tpu.memory_space<vmem>>, vector<3x32xf32>
    %391 = vector.extract_strided_slice %389 {offsets = [0, 0], sizes = [32, 32], strides = [1, 1]} : vector<64x32xf32> to vector<32x32xf32>
    %cst_142 = arith.constant dense<0.000000e+00> : vector<8x32xf32>
    %392 = tpu.matmul %371, %391, %cst_142 {dimension_numbers = #tpu.dot_dimension_numbers<[1], [0], [0], [1], [0, 0, 1, 1], [], []>} : vector<8x32xf32>, vector<32x32xf32>, vector<8x32xf32> -> vector<8x32xf32>
    %393 = vector.extract_strided_slice %389 {offsets = [32, 0], sizes = [32, 32], strides = [1, 1]} : vector<64x32xf32> to vector<32x32xf32>
    %cst_143 = arith.constant dense<0.000000e+00> : vector<8x32xf32>
    %394 = tpu.matmul %388, %393, %cst_143 {dimension_numbers = #tpu.dot_dimension_numbers<[1], [0], [0], [1], [0, 0, 1, 1], [], []>} : vector<8x32xf32>, vector<32x32xf32>, vector<8x32xf32> -> vector<8x32xf32>
    %395 = arith.addf %392, %394 : vector<8x32xf32>
    %396 = vector.extract_strided_slice %390 {offsets = [0, 0], sizes = [1, 32], strides = [1, 1]} : vector<3x32xf32> to vector<1x32xf32>
    %397 = vector.broadcast %396 : vector<1x32xf32> to vector<8x32xf32>
    %398 = arith.addf %395, %397 : vector<8x32xf32>
    %cst_144 = arith.constant 0.000000e+00 : f32
    %399 = vector.broadcast %cst_144 : f32 to vector<8x32xf32>
    %400 = arith.maximumf %398, %399 : vector<8x32xf32>
    %401 = vector.extract_strided_slice %390 {offsets = [1, 0], sizes = [1, 32], strides = [1, 1]} : vector<3x32xf32> to vector<1x32xf32>
    %cst_145 = arith.constant dense<0.000000e+00> : vector<1x8xf32>
    %402 = tpu.matmul %401, %400, %cst_145 {dimension_numbers = #tpu.dot_dimension_numbers<[1], [1], [0], [0], [0, 0, 1, 0], [], []>} : vector<1x32xf32>, vector<8x32xf32>, vector<1x8xf32> -> vector<1x8xf32>
    %403 = vector.extract_strided_slice %390 {offsets = [2, 0], sizes = [1, 1], strides = [1, 1]} : vector<3x32xf32> to vector<1x1xf32>
    %404 = vector.broadcast %403 : vector<1x1xf32> to vector<1x8xf32>
    %405 = arith.addf %402, %404 : vector<1x8xf32>
    %406 = arith.negf %405 : vector<1x8xf32>
    %407 = math.exp %406 : vector<1x8xf32>
    %cst_146 = arith.constant 1.000000e+00 : f32
    %408 = vector.broadcast %cst_146 : f32 to vector<1x8xf32>
    %409 = arith.addf %408, %407 : vector<1x8xf32>
    %410 = arith.divf %408, %409 : vector<1x8xf32>
    %c0_147 = arith.constant 0 : index
    %c0_148 = arith.constant 0 : index
    %c0_149 = arith.constant 0 : index
    %411 = vector.load %arg14[%c0_147, %c0_148, %c0_149] : memref<1x1x8xf32, #tpu.memory_space<vmem>>, vector<1x1x8xf32>
    %412 = vector.shape_cast %411 : vector<1x1x8xf32> to vector<1x8xf32>
    %413 = vector.shape_cast %410 : vector<1x8xf32> to vector<1x1x8xf32>
    tpu.vector_store %arg14[%c0_147, %c0_148, %c0_149], %413 {strides = array<i32>} : memref<1x1x8xf32, #tpu.memory_space<vmem>>, vector<1x1x8xf32>,
    return
  }
  func.func @transform_0(%arg0: i32) -> (i32, i32, i32) {
    %c0_i32 = arith.constant 0 : i32
    %c0_i32_0 = arith.constant 0 : i32
    %c0_i32_1 = arith.constant 0 : i32
    return %arg0, %c0_i32, %c0_i32_0 : i32, i32, i32
  }
  func.func @transform_1(%arg0: i32) -> (i32, i32, i32) {
    %c0_i32 = arith.constant 0 : i32
    %c0_i32_0 = arith.constant 0 : i32
    %c0_i32_1 = arith.constant 0 : i32
    return %arg0, %c0_i32, %c0_i32_0 : i32, i32, i32
  }
  func.func @transform_2(%arg0: i32) -> (i32, i32, i32) {
    %c0_i32 = arith.constant 0 : i32
    %c0_i32_0 = arith.constant 0 : i32
    %c0_i32_1 = arith.constant 0 : i32
    return %arg0, %c0_i32, %c0_i32_0 : i32, i32, i32
  }
  func.func @transform_3(%arg0: i32) -> (i32, i32, i32) {
    %c0_i32 = arith.constant 0 : i32
    %c0_i32_0 = arith.constant 0 : i32
    %c0_i32_1 = arith.constant 0 : i32
    return %arg0, %c0_i32, %c0_i32_0 : i32, i32, i32
  }
  func.func @transform_4(%arg0: i32) -> (i32, i32, i32) {
    %c0_i32 = arith.constant 0 : i32
    %c0_i32_0 = arith.constant 0 : i32
    %c0_i32_1 = arith.constant 0 : i32
    %c0_i32_2 = arith.constant 0 : i32
    return %c0_i32, %c0_i32_0, %c0_i32_1 : i32, i32, i32
  }
  func.func @transform_5(%arg0: i32) -> (i32, i32, i32) {
    %c0_i32 = arith.constant 0 : i32
    %c0_i32_0 = arith.constant 0 : i32
    %c0_i32_1 = arith.constant 0 : i32
    %c0_i32_2 = arith.constant 0 : i32
    return %c0_i32, %c0_i32_0, %c0_i32_1 : i32, i32, i32
  }
  func.func @transform_6(%arg0: i32) -> (i32, i32, i32) {
    %c0_i32 = arith.constant 0 : i32
    %c0_i32_0 = arith.constant 0 : i32
    %c0_i32_1 = arith.constant 0 : i32
    %c0_i32_2 = arith.constant 0 : i32
    return %c0_i32, %c0_i32_0, %c0_i32_1 : i32, i32, i32
  }
  func.func @transform_7(%arg0: i32) -> (i32, i32, i32) {
    %c0_i32 = arith.constant 0 : i32
    %c0_i32_0 = arith.constant 0 : i32
    %c0_i32_1 = arith.constant 0 : i32
    %c0_i32_2 = arith.constant 0 : i32
    return %c0_i32, %c0_i32_0, %c0_i32_1 : i32, i32, i32
  }
  func.func @transform_8(%arg0: i32) -> (i32, i32, i32) {
    %c0_i32 = arith.constant 0 : i32
    %c0_i32_0 = arith.constant 0 : i32
    %c0_i32_1 = arith.constant 0 : i32
    %c0_i32_2 = arith.constant 0 : i32
    return %c0_i32, %c0_i32_0, %c0_i32_1 : i32, i32, i32
  }
  func.func @transform_9(%arg0: i32) -> (i32, i32, i32) {
    %c0_i32 = arith.constant 0 : i32
    %c0_i32_0 = arith.constant 0 : i32
    %c0_i32_1 = arith.constant 0 : i32
    %c0_i32_2 = arith.constant 0 : i32
    return %c0_i32, %c0_i32_0, %c0_i32_1 : i32, i32, i32
  }
  func.func @transform_10(%arg0: i32) -> (i32, i32, i32) {
    %c0_i32 = arith.constant 0 : i32
    %c0_i32_0 = arith.constant 0 : i32
    %c0_i32_1 = arith.constant 0 : i32
    %c0_i32_2 = arith.constant 0 : i32
    return %c0_i32, %c0_i32_0, %c0_i32_1 : i32, i32, i32
  }
  func.func @transform_11(%arg0: i32) -> (i32, i32) {
    %c0_i32 = arith.constant 0 : i32
    %c0_i32_0 = arith.constant 0 : i32
    %c0_i32_1 = arith.constant 0 : i32
    return %c0_i32, %c0_i32_0 : i32, i32
  }
  func.func @transform_12(%arg0: i32) -> (i32, i32) {
    %c0_i32 = arith.constant 0 : i32
    %c0_i32_0 = arith.constant 0 : i32
    %c0_i32_1 = arith.constant 0 : i32
    return %c0_i32, %c0_i32_0 : i32, i32
  }
  func.func @transform_13(%arg0: i32) -> (i32, i32, i32) {
    %c0_i32 = arith.constant 0 : i32
    %c0_i32_0 = arith.constant 0 : i32
    %c0_i32_1 = arith.constant 0 : i32
    return %arg0, %c0_i32, %c0_i32_0 : i32, i32, i32
  }
}

</mosaic_0001>

<llo_original>
// kernel: tpu_custom_call.1
$region0: #{tpu_custom_call.1}
  #allocation0 [shape = 'u32[]', space=smem, size = 0x4, offset = 0x4, fixed_abs, tag = 'smem constant byte address 0x4 - core index']
  #allocation1 [shape = 'u32[72,128]{1,0:T(1,128)}', space=vmem, size = 0x9000, scoped, tag = 'internal scratch']
  %s0 = inlined_call_operand.hbm [shape: f32[8,8,32], index: 0, kind: input, shape index: {}]
  %s1 = inlined_call_operand.hbm [shape: f32[8,8,32], index: 1, kind: input, shape index: {}]
  %s2 = inlined_call_operand.vmem [shape: f32[8,8,1], index: 2, kind: input, shape index: {}]
  %s3 = inlined_call_operand.vmem [shape: f32[8,8,1], index: 3, kind: input, shape index: {}]
  %s4 = inlined_call_operand.hbm [shape: f32[2,32,32], index: 4, kind: input, shape index: {}]
  %s5 = inlined_call_operand.hbm [shape: f32[2,1,32], index: 5, kind: input, shape index: {}]
  %s6 = inlined_call_operand.vmem [shape: f32[3,4,32], index: 6, kind: input, shape index: {}]
  %s7 = inlined_call_operand.vmem [shape: f32[3,32,128], index: 7, kind: input, shape index: {}]
  %s8 = inlined_call_operand.hbm [shape: f32[3,1,128], index: 8, kind: input, shape index: {}]
  %s9 = inlined_call_operand.vmem [shape: f32[3,32,128], index: 9, kind: input, shape index: {}]
  %s10 = inlined_call_operand.hbm [shape: f32[3,1,128], index: 10, kind: input, shape index: {}]
  %s11 = inlined_call_operand.vmem [shape: f32[64,32], index: 11, kind: input, shape index: {}]
  %s12 = inlined_call_operand.vmem [shape: f32[3,32], index: 12, kind: input, shape index: {}]
  %s13 = inlined_call_operand.hbm [shape: f32[1,1,8], index: 13, kind: output, shape index: {}]
  %s14 = sld [smem:[#allocation0]]
  $region86: #{tpu_custom_call.1} parent=0
    _
  %s16 = ssub.s32 1, %s14
  %s17 = scalar_select 0, %s16, %s14
  $region1: #{tpu_custom_call.1} parent=0
    #allocation2 [shape = 'u8[32768]{0}', space=vmem, size = 0x8000, scoped, tag = 'input window, operand 0, single buffered']
    #allocation3 [shape = 's32[1]{0}', space=sflag, size = 0x4, scoped, tag = 'scoped memory for tpu_custom_call.1']
    #allocation4 [shape = 's32[1]{0}', space=sflag, size = 0x4, scoped, tag = 'scoped memory for tpu_custom_call.1']
    #allocation5 [shape = 'u8[32768]{0}', space=vmem, size = 0x8000, scoped, tag = 'input window, operand 1, single buffered']
    #allocation6 [shape = 's32[1]{0}', space=sflag, size = 0x4, scoped, tag = 'scoped memory for tpu_custom_call.1']
    #allocation7 [shape = 'u8[32768]{0}', space=vmem, size = 0x8000, scoped, tag = 'input window, operand 4, single buffered']
    #allocation8 [shape = 'u8[1024]{0}', space=vmem, size = 0x400, scoped, tag = 'input window, operand 5, single buffered']
    #allocation9 [shape = 's32[1]{0}', space=sflag, size = 0x4, scoped, tag = 'scoped memory for tpu_custom_call.1']
    #allocation10 [shape = 'u8[1536]{0}', space=vmem, size = 0x800, scoped, tag = 'input window, operand 8, single buffered']
    #allocation11 [shape = 'u8[1536]{0}', space=vmem, size = 0x800, scoped, tag = 'input window, operand 10, single buffered']
    #allocation12 [shape = 's32[1]{0}', space=sflag, size = 0x4, scoped, tag = 'scoped memory for tpu_custom_call.1']
    #allocation13 [shape = 'u8[512]{0}', space=vmem, size = 0x400, scoped, tag = 'output window, operand 0, single buffered']
    %18 = vsyncpa [#allocation3], 0
    %19 = vsyncpa [#allocation6], 0
    %20 = vsyncpa [#allocation9], 0
    %21 = vsyncpa [#allocation12], 0
    %22 = vsyncpa [#allocation4], 0
    // Predicated region
    $region2: #{tpu_custom_call.1} parent=1 // pred_check
      _
    $region3: #{tpu_custom_call.1} parent=1 // pred_check_branch
      %24 = sbr.rel (0) target = $region5
    $region4: #{tpu_custom_call.1} parent=1 // pred_region
      %26 = vsyncadd [#allocation3], 0
      %s27 = sshll.u32 %s0, 4
      %s28 = int_to_ptr.hbm [resolvable:$true] %s27
      %s29 = sshll.u32 [#allocation2], 4
      %s30 = int_to_ptr.vmem [resolvable:$true] %s29
      %35 = dma.hbm_to_vmem [thread:$0]  %s28, 1024, %s30, [#allocation3], 128, 128, 8
    $region5: #{tpu_custom_call.1} parent=1 // pred_fallthru
      _
    // Predicated region
    $region6: #{tpu_custom_call.1} parent=1 // pred_check
      _
    $region7: #{tpu_custom_call.1} parent=1 // pred_check_branch
      %37 = sbr.rel (0) target = $region9
    $region8: #{tpu_custom_call.1} parent=1 // pred_region
      %39 = vsyncadd [#allocation6], 0
      %s40 = sshll.u32 %s1, 4
      %s41 = int_to_ptr.hbm [resolvable:$true] %s40
      %s42 = sshll.u32 [#allocation5], 4
      %s43 = int_to_ptr.vmem [resolvable:$true] %s42
      %48 = dma.hbm_to_vmem [thread:$0]  %s41, 1024, %s43, [#allocation6], 128, 128, 8
    $region9: #{tpu_custom_call.1} parent=1 // pred_fallthru
      _
    // Predicated region
    $region10: #{tpu_custom_call.1} parent=1 // pred_check
      _
    $region11: #{tpu_custom_call.1} parent=1 // pred_check_branch
      %50 = sbr.rel (0) target = $region13
    $region12: #{tpu_custom_call.1} parent=1 // pred_region
      _
    $region13: #{tpu_custom_call.1} parent=1 // pred_fallthru
      _
    // Predicated region
    $region14: #{tpu_custom_call.1} parent=1 // pred_check
      _
    $region15: #{tpu_custom_call.1} parent=1 // pred_check_branch
      %52 = sbr.rel (0) target = $region17
    $region16: #{tpu_custom_call.1} parent=1 // pred_region
      _
    $region17: #{tpu_custom_call.1} parent=1 // pred_fallthru
      _
    // Predicated region
    $region18: #{tpu_custom_call.1} parent=1 // pred_check
      _
    $region19: #{tpu_custom_call.1} parent=1 // pred_check_branch
      %54 = sbr.rel (0) target = $region21
    $region20: #{tpu_custom_call.1} parent=1 // pred_region
      %56 = vsyncadd [#allocation6], 0
      %s57 = sshll.u32 %s4, 4
      %s58 = int_to_ptr.hbm [resolvable:$true] %s57
      %s59 = sshll.u32 [#allocation7], 4
      %s60 = int_to_ptr.vmem [resolvable:$true] %s59
      %65 = dma.hbm_to_vmem [thread:$0]  %s58, 1024, %s60, [#allocation6], 128, 128, 8
    $region21: #{tpu_custom_call.1} parent=1 // pred_fallthru
      _
    // Predicated region
    $region22: #{tpu_custom_call.1} parent=1 // pred_check
      _
    $region23: #{tpu_custom_call.1} parent=1 // pred_check_branch
      %67 = sbr.rel (0) target = $region25
    $region24: #{tpu_custom_call.1} parent=1 // pred_region
      %69 = vsyncadd [#allocation9], 0
      %s70 = sshll.u32 %s5, 4
      %s71 = int_to_ptr.hbm [resolvable:$true] %s70
      %s72 = sshll.u32 [#allocation8], 4
      %s73 = int_to_ptr.vmem [resolvable:$true] %s72
      %78 = dma.hbm_to_vmem [thread:$0]  %s71, 32, %s73, [#allocation9], 16, 16, 1
    $region25: #{tpu_custom_call.1} parent=1 // pred_fallthru
      _
    // Predicated region
    $region26: #{tpu_custom_call.1} parent=1 // pred_check
      _
    $region27: #{tpu_custom_call.1} parent=1 // pred_check_branch
      %80 = sbr.rel (0) target = $region29
    $region28: #{tpu_custom_call.1} parent=1 // pred_region
      _
    $region29: #{tpu_custom_call.1} parent=1 // pred_fallthru
      _
    // Predicated region
    $region30: #{tpu_custom_call.1} parent=1 // pred_check
      _
    $region31: #{tpu_custom_call.1} parent=1 // pred_check_branch
      %82 = sbr.rel (0) target = $region33
    $region32: #{tpu_custom_call.1} parent=1 // pred_region
      _
    $region33: #{tpu_custom_call.1} parent=1 // pred_fallthru
      _
    // Predicated region
    $region34: #{tpu_custom_call.1} parent=1 // pred_check
      _
    $region35: #{tpu_custom_call.1} parent=1 // pred_check_branch
      %84 = sbr.rel (0) target = $region37
    $region36: #{tpu_custom_call.1} parent=1 // pred_region
      %86 = vsyncadd [#allocation9], 0
      %s87 = sshll.u32 %s8, 4
      %s88 = int_to_ptr.hbm [resolvable:$true] %s87
      %s89 = sshll.u32 [#allocation10], 4
      %s90 = int_to_ptr.vmem [resolvable:$true] %s89
      %95 = dma.hbm_to_vmem [thread:$0]  %s88, 48, %s90, [#allocation9], 16, 16, 1
    $region37: #{tpu_custom_call.1} parent=1 // pred_fallthru
      _
    // Predicated region
    $region38: #{tpu_custom_call.1} parent=1 // pred_check
      _
    $region39: #{tpu_custom_call.1} parent=1 // pred_check_branch
      %97 = sbr.rel (0) target = $region41
    $region40: #{tpu_custom_call.1} parent=1 // pred_region
      _
    $region41: #{tpu_custom_call.1} parent=1 // pred_fallthru
      _
    // Predicated region
    $region42: #{tpu_custom_call.1} parent=1 // pred_check
      _
    $region43: #{tpu_custom_call.1} parent=1 // pred_check_branch
      %99 = sbr.rel (0) target = $region45
    $region44: #{tpu_custom_call.1} parent=1 // pred_region
      %101 = vsyncadd [#allocation12], 0
      %s102 = sshll.u32 %s10, 4
      %s103 = int_to_ptr.hbm [resolvable:$true] %s102
      %s104 = sshll.u32 [#allocation11], 4
      %s105 = int_to_ptr.vmem [resolvable:$true] %s104
      %110 = dma.hbm_to_vmem [thread:$0]  %s103, 48, %s105, [#allocation12], 16, 16, 1
    $region45: #{tpu_custom_call.1} parent=1 // pred_fallthru
      _
    // Predicated region
    $region46: #{tpu_custom_call.1} parent=1 // pred_check
      _
    $region47: #{tpu_custom_call.1} parent=1 // pred_check_branch
      %112 = sbr.rel (0) target = $region49
    $region48: #{tpu_custom_call.1} parent=1 // pred_region
      _
    $region49: #{tpu_custom_call.1} parent=1 // pred_fallthru
      _
    // Predicated region
    $region50: #{tpu_custom_call.1} parent=1 // pred_check
      _
    $region51: #{tpu_custom_call.1} parent=1 // pred_check_branch
      %114 = sbr.rel (0) target = $region53
    $region52: #{tpu_custom_call.1} parent=1 // pred_region
      _
    $region53: #{tpu_custom_call.1} parent=1 // pred_fallthru
      _
    // Predicated region
    $region54: #{tpu_custom_call.1} parent=1 // pred_check
      _
    $region55: #{tpu_custom_call.1} parent=1 // pred_check_branch
      %116 = sbr.rel (0) target = $region57
    $region56: #{tpu_custom_call.1} parent=1 // pred_region
      %118 = dma.done [#allocation3], 1024
    $region57: #{tpu_custom_call.1} parent=1 // pred_fallthru
      _
    // Predicated region
    $region58: #{tpu_custom_call.1} parent=1 // pred_check
      _
    $region59: #{tpu_custom_call.1} parent=1 // pred_check_branch
      %120 = sbr.rel (0) target = $region61
    $region60: #{tpu_custom_call.1} parent=1 // pred_region
      %122 = dma.done [#allocation6], 1024
    $region61: #{tpu_custom_call.1} parent=1 // pred_fallthru
      _
    // Predicated region
    $region62: #{tpu_custom_call.1} parent=1 // pred_check
      _
    $region63: #{tpu_custom_call.1} parent=1 // pred_check_branch
      %124 = sbr.rel (0) target = $region65
    $region64: #{tpu_custom_call.1} parent=1 // pred_region
      %126 = dma.done [#allocation6], 1024
    $region65: #{tpu_custom_call.1} parent=1 // pred_fallthru
      _
    // Predicated region
    $region66: #{tpu_custom_call.1} parent=1 // pred_check
      _
    $region67: #{tpu_custom_call.1} parent=1 // pred_check_branch
      %128 = sbr.rel (0) target = $region69
    $region68: #{tpu_custom_call.1} parent=1 // pred_region
      %130 = dma.done [#allocation9], 32
    $region69: #{tpu_custom_call.1} parent=1 // pred_fallthru
      _
    // Predicated region
    $region70: #{tpu_custom_call.1} parent=1 // pred_check
      _
    $region71: #{tpu_custom_call.1} parent=1 // pred_check_branch
      %132 = sbr.rel (0) target = $region73
    $region72: #{tpu_custom_call.1} parent=1 // pred_region
      %134 = dma.done [#allocation9], 48
    $region73: #{tpu_custom_call.1} parent=1 // pred_fallthru
      _
    // Predicated region
    $region74: #{tpu_custom_call.1} parent=1 // pred_check
      _
    $region75: #{tpu_custom_call.1} parent=1 // pred_check_branch
      %136 = sbr.rel (0) target = $region77
    $region76: #{tpu_custom_call.1} parent=1 // pred_region
      %138 = dma.done [#allocation12], 48
    $region77: #{tpu_custom_call.1} parent=1 // pred_fallthru
      _
    %v139 = vld [vmem:[#allocation2] sm:$0xff]
    %v140 = vld [vmem:[#allocation2 + $0x8] sm:$0xff]
    %v141 = vld [vmem:[#allocation2 + $0x10] sm:$0xff]
    %v142 = vld [vmem:[#allocation2 + $0x18] sm:$0xff]
    %v143 = vld [vmem:[#allocation2 + $0x20] sm:$0xff]
    %v144 = vld [vmem:[#allocation2 + $0x28] sm:$0xff]
    %v145 = vld [vmem:[#allocation2 + $0x30] sm:$0xff]
    %v146 = vld [vmem:[#allocation2 + $0x38] sm:$0xff]
    %v147 = vld [vmem:[#allocation7] sm:$0xff]
    %v148 = vld [vmem:[#allocation7 + $0x8] sm:$0xff]
    %v149 = vld [vmem:[#allocation7 + $0x10] sm:$0xff]
    %v150 = vld [vmem:[#allocation7 + $0x18] sm:$0xff]
    %v151 = vld [vmem:[#allocation8] sm:$0x1]
    %v153 = vperm.slane %v151, 0
    %vm155 = vcmask 261120
    %v157 = vsel %vm155, %v139, 0
    %v160 = vsel %vm155, %v140, 0
    %v163 = vsel %vm155, %v141, 0
    %v166 = vsel %vm155, %v142, 0
    %v169 = vsel %vm155, %v143, 0
    %v172 = vsel %vm155, %v144, 0
    %v175 = vsel %vm155, %v145, 0
    %v178 = vsel %vm155, %v146, 0
    %180 = vmatpush.msra.mxu0 0.0
    %181 = vmatpush.msra.mxu0 0.0
    %182 = vmatpush.msra.mxu0 0.0
    %183 = vmatpush.msra.mxu0 0.0
    %184 = vmatpush.msra.mxu0 0.0
    %185 = vmatpush.msra.mxu0 0.0
    %186 = vmatpush.msra.mxu0 0.0
    %187 = vmatpush.msra.mxu0 0.0
    %188 = vmatpush.msra.mxu0 0.0
    %189 = vmatpush.msra.mxu0 0.0
    %190 = vmatpush.msra.mxu0 0.0
    %191 = vmatpush.msra.mxu0 0.0
    %192 = vmatpush.msra.mxu0 %v150
    %193 = vmatpush.msra.mxu0 %v149
    %194 = vmatpush.msra.mxu0 %v148
    %195 = vmatpush.msra.mxu0 %v147
    %196 = vmatmul.f32.gmra.mxu0 %v157
    %v197 = vpop.f32.mrf.mxu0
    %v198 = vadd.f32 %v153, %v197
    %199 = vmatmul.f32.gmra.mxu0 %v160
    %v200 = vpop.f32.mrf.mxu0
    %v201 = vadd.f32 %v153, %v200
    %202 = vmatmul.f32.gmra.mxu0 %v163
    %v203 = vpop.f32.mrf.mxu0
    %v204 = vadd.f32 %v153, %v203
    %205 = vmatmul.f32.gmra.mxu0 %v166
    %v206 = vpop.f32.mrf.mxu0
    %v207 = vadd.f32 %v153, %v206
    %208 = vmatmul.f32.gmra.mxu0 %v169
    %v209 = vpop.f32.mrf.mxu0
    %v210 = vadd.f32 %v153, %v209
    %211 = vmatmul.f32.gmra.mxu0 %v172
    %v212 = vpop.f32.mrf.mxu0
    %v213 = vadd.f32 %v153, %v212
    %214 = vmatmul.f32.gmra.mxu0 %v175
    %v215 = vpop.f32.mrf.mxu0
    %v216 = vadd.f32 %v153, %v215
    %217 = vmatmul.f32.gmra.mxu0 %v178
    %v218 = vpop.f32.mrf.mxu0
    %v219 = vadd.f32 %v153, %v218
    %220 = vdwg.mxu0
    %v221 = vmax.f32 %v198, 0.0
    %v222 = vmax.f32 %v201, 0.0
    %v223 = vmax.f32 %v204, 0.0
    %v224 = vmax.f32 %v207, 0.0
    %v225 = vmax.f32 %v210, 0.0
    %v226 = vmax.f32 %v213, 0.0
    %v227 = vmax.f32 %v216, 0.0
    %v228 = vmax.f32 %v219, 0.0
    %v229 = vld [vmem:[#allocation5] sm:$0xff]
    %v230 = vld [vmem:[#allocation5 + $0x8] sm:$0xff]
    %v231 = vld [vmem:[#allocation5 + $0x10] sm:$0xff]
    %v232 = vld [vmem:[#allocation5 + $0x18] sm:$0xff]
    %v233 = vld [vmem:[#allocation5 + $0x20] sm:$0xff]
    %v234 = vld [vmem:[#allocation5 + $0x28] sm:$0xff]
    %v235 = vld [vmem:[#allocation5 + $0x30] sm:$0xff]
    %v236 = vld [vmem:[#allocation5 + $0x38] sm:$0xff]
    %s237 = scalar_lea.vmem [#allocation7], 32
    %v238 = vld [vmem:[%s237] sm:$0xff]
    %v239 = vld [vmem:[%s237 + $0x8] sm:$0xff]
    %v240 = vld [vmem:[%s237 + $0x10] sm:$0xff]
    %v241 = vld [vmem:[%s237 + $0x18] sm:$0xff]
    %s242 = scalar_lea.vmem [#allocation8], 1
    %v243 = vld [vmem:[%s242] sm:$0x1]
    %v245 = vperm.slane %v243, 0
    %v248 = vsel %vm155, %v229, 0
    %v251 = vsel %vm155, %v230, 0
    %v254 = vsel %vm155, %v231, 0
    %v257 = vsel %vm155, %v232, 0
    %v260 = vsel %vm155, %v233, 0
    %v263 = vsel %vm155, %v234, 0
    %v266 = vsel %vm155, %v235, 0
    %v269 = vsel %vm155, %v236, 0
    %271 = vmatpush.msra.mxu0 0.0
    %272 = vmatpush.msra.mxu0 0.0
    %273 = vmatpush.msra.mxu0 0.0
    %274 = vmatpush.msra.mxu0 0.0
    %275 = vmatpush.msra.mxu0 0.0
    %276 = vmatpush.msra.mxu0 0.0
    %277 = vmatpush.msra.mxu0 0.0
    %278 = vmatpush.msra.mxu0 0.0
    %279 = vmatpush.msra.mxu0 0.0
    %280 = vmatpush.msra.mxu0 0.0
    %281 = vmatpush.msra.mxu0 0.0
    %282 = vmatpush.msra.mxu0 0.0
    %283 = vmatpush.msra.mxu0 %v241
    %284 = vmatpush.msra.mxu0 %v240
    %285 = vmatpush.msra.mxu0 %v239
    %286 = vmatpush.msra.mxu0 %v238
    %287 = vmatmul.f32.gmra.mxu0 %v248
    %v288 = vpop.f32.mrf.mxu0
    %v289 = vadd.f32 %v245, %v288
    %290 = vmatmul.f32.gmra.mxu0 %v251
    %v291 = vpop.f32.mrf.mxu0
    %v292 = vadd.f32 %v245, %v291
    %293 = vmatmul.f32.gmra.mxu0 %v254
    %v294 = vpop.f32.mrf.mxu0
    %v295 = vadd.f32 %v245, %v294
    %296 = vmatmul.f32.gmra.mxu0 %v257
    %v297 = vpop.f32.mrf.mxu0
    %v298 = vadd.f32 %v245, %v297
    %299 = vmatmul.f32.gmra.mxu0 %v260
    %v300 = vpop.f32.mrf.mxu0
    %v301 = vadd.f32 %v245, %v300
    %302 = vmatmul.f32.gmra.mxu0 %v263
    %v303 = vpop.f32.mrf.mxu0
    %v304 = vadd.f32 %v245, %v303
    %305 = vmatmul.f32.gmra.mxu0 %v266
    %v306 = vpop.f32.mrf.mxu0
    %v307 = vadd.f32 %v245, %v306
    %308 = vmatmul.f32.gmra.mxu0 %v269
    %v309 = vpop.f32.mrf.mxu0
    %v310 = vadd.f32 %v245, %v309
    %311 = vdwg.mxu0
    %v312 = vmax.f32 %v289, 0.0
    %v313 = vmax.f32 %v292, 0.0
    %v314 = vmax.f32 %v295, 0.0
    %v315 = vmax.f32 %v298, 0.0
    %v316 = vmax.f32 %v301, 0.0
    %v317 = vmax.f32 %v304, 0.0
    %v318 = vmax.f32 %v307, 0.0
    %v319 = vmax.f32 %v310, 0.0
    %v320 = vld [vmem:[%s2] sm:$0xff]
    %v321 = vld [vmem:[%s2 + $0x8] sm:$0xff]
    %v322 = vld [vmem:[%s2 + $0x10] sm:$0xff]
    %v323 = vld [vmem:[%s2 + $0x18] sm:$0xff]
    %v324 = vld [vmem:[%s2 + $0x20] sm:$0xff]
    %v325 = vld [vmem:[%s2 + $0x28] sm:$0xff]
    %v326 = vld [vmem:[%s2 + $0x30] sm:$0xff]
    %v327 = vld [vmem:[%s2 + $0x38] sm:$0xff]
    %v328 = vld [vmem:[%s3] sm:$0xff]
    %v329 = vld [vmem:[%s3 + $0x8] sm:$0xff]
    %v330 = vld [vmem:[%s3 + $0x10] sm:$0xff]
    %v331 = vld [vmem:[%s3 + $0x18] sm:$0xff]
    %v332 = vld [vmem:[%s3 + $0x20] sm:$0xff]
    %v333 = vld [vmem:[%s3 + $0x28] sm:$0xff]
    %v334 = vld [vmem:[%s3 + $0x30] sm:$0xff]
    %v335 = vld [vmem:[%s3 + $0x38] sm:$0xff]
    %v336 = vld [vmem:[%s6] sm:$0xf]
    %v337 = vsel %vm155, %v221, 0.0
    %338 = vadd.xlane.f32.xlu0 %v337
    %v339 = vpop.xlane.xlu0 %338
    %v340 = vsel %vm155, %v222, 0.0
    %341 = vadd.xlane.f32.xlu0 %v340
    %v342 = vpop.xlane.xlu0 %341
    %v343 = vsel %vm155, %v223, 0.0
    %344 = vadd.xlane.f32.xlu0 %v343
    %v345 = vpop.xlane.xlu0 %344
    %v346 = vsel %vm155, %v224, 0.0
    %347 = vadd.xlane.f32.xlu0 %v346
    %v348 = vpop.xlane.xlu0 %347
    %v349 = vsel %vm155, %v225, 0.0
    %350 = vadd.xlane.f32.xlu0 %v349
    %v351 = vpop.xlane.xlu0 %350
    %v352 = vsel %vm155, %v226, 0.0
    %353 = vadd.xlane.f32.xlu0 %v352
    %v354 = vpop.xlane.xlu0 %353
    %v355 = vsel %vm155, %v227, 0.0
    %356 = vadd.xlane.f32.xlu0 %v355
    %v357 = vpop.xlane.xlu0 %356
    %v358 = vsel %vm155, %v228, 0.0
    %359 = vadd.xlane.f32.xlu0 %v358
    %v360 = vpop.xlane.xlu0 %359
    %v361 = vrcp.pop 32.0
    %v362 = vmul.f32 32.0, %v361
    %v363 = vsub.f32 1.0, %v362
    %v364 = vmul.f32 %v361, %v363
    %v365 = vadd.f32 %v361, %v364
    %vm366 = vweird.f32 %v361
    %v367 = vsel %vm366, %v361, %v365
    %v368 = vmul.f32 %v339, %v367
    %v369 = vmul.f32 %v342, %v367
    %v370 = vmul.f32 %v345, %v367
    %v371 = vmul.f32 %v348, %v367
    %v372 = vmul.f32 %v351, %v367
    %v373 = vmul.f32 %v354, %v367
    %v374 = vmul.f32 %v357, %v367
    %v375 = vmul.f32 %v360, %v367
    %v376 = vsub.f32 %v221, %v368
    %v377 = vsub.f32 %v222, %v369
    %v378 = vsub.f32 %v223, %v370
    %v379 = vsub.f32 %v224, %v371
    %v380 = vsub.f32 %v225, %v372
    %v381 = vsub.f32 %v226, %v373
    %v382 = vsub.f32 %v227, %v374
    %v383 = vsub.f32 %v228, %v375
    %v384 = vmul.f32 %v376, %v376
    %v385 = vmul.f32 %v377, %v377
    %v386 = vmul.f32 %v378, %v378
    %v387 = vmul.f32 %v379, %v379
    %v388 = vmul.f32 %v380, %v380
    %v389 = vmul.f32 %v381, %v381
    %v390 = vmul.f32 %v382, %v382
    %v391 = vmul.f32 %v383, %v383
    %v392 = vsel %vm155, %v384, 0.0
    %393 = vadd.xlane.f32.xlu0 %v392
    %v394 = vpop.xlane.xlu0 %393
    %v395 = vsel %vm155, %v385, 0.0
    %396 = vadd.xlane.f32.xlu0 %v395
    %v397 = vpop.xlane.xlu0 %396
    %v398 = vsel %vm155, %v386, 0.0
    %399 = vadd.xlane.f32.xlu0 %v398
    %v400 = vpop.xlane.xlu0 %399
    %v401 = vsel %vm155, %v387, 0.0
    %402 = vadd.xlane.f32.xlu0 %v401
    %v403 = vpop.xlane.xlu0 %402
    %v404 = vsel %vm155, %v388, 0.0
    %405 = vadd.xlane.f32.xlu0 %v404
    %v406 = vpop.xlane.xlu0 %405
    %v407 = vsel %vm155, %v389, 0.0
    %408 = vadd.xlane.f32.xlu0 %v407
    %v409 = vpop.xlane.xlu0 %408
    %v410 = vsel %vm155, %v390, 0.0
    %411 = vadd.xlane.f32.xlu0 %v410
    %v412 = vpop.xlane.xlu0 %411
    %v413 = vsel %vm155, %v391, 0.0
    %414 = vadd.xlane.f32.xlu0 %v413
    %v415 = vpop.xlane.xlu0 %414
    %v416 = vmul.f32 %v394, %v367
    %v417 = vmul.f32 %v397, %v367
    %v418 = vmul.f32 %v400, %v367
    %v419 = vmul.f32 %v403, %v367
    %v420 = vmul.f32 %v406, %v367
    %v421 = vmul.f32 %v409, %v367
    %v422 = vmul.f32 %v412, %v367
    %v423 = vmul.f32 %v415, %v367
    %v424 = vadd.f32 %v416, 1e-05
    %v425 = vadd.f32 %v417, 1e-05
    %v426 = vadd.f32 %v418, 1e-05
    %v427 = vadd.f32 %v419, 1e-05
    %v428 = vadd.f32 %v420, 1e-05
    %v429 = vadd.f32 %v421, 1e-05
    %v430 = vadd.f32 %v422, 1e-05
    %v431 = vadd.f32 %v423, 1e-05
    %v432 = vrsqrt.pop %v424
    %v433 = vmul.f32 %v432, %v424
    %v434 = vmul.f32 %v433, %v432
    %v435 = vmul.f32 0.5, %v434
    %v436 = vsub.f32 1.5, %v435
    %v437 = vmul.f32 %v432, %v436
    %vm438 = vweird.f32 %v424
    %vm439 = vweird.f32 %v432
    %vm440 = vmor %vm438, %vm439
    %v441 = vsel %vm440, %v432, %v437
    %v442 = vrsqrt.pop %v425
    %v443 = vmul.f32 %v442, %v425
    %v444 = vmul.f32 %v443, %v442
    %v445 = vmul.f32 0.5, %v444
    %v446 = vsub.f32 1.5, %v445
    %v447 = vmul.f32 %v442, %v446
    %vm448 = vweird.f32 %v425
    %vm449 = vweird.f32 %v442
    %vm450 = vmor %vm448, %vm449
    %v451 = vsel %vm450, %v442, %v447
    %v452 = vrsqrt.pop %v426
    %v453 = vmul.f32 %v452, %v426
    %v454 = vmul.f32 %v453, %v452
    %v455 = vmul.f32 0.5, %v454
    %v456 = vsub.f32 1.5, %v455
    %v457 = vmul.f32 %v452, %v456
    %vm458 = vweird.f32 %v426
    %vm459 = vweird.f32 %v452
    %vm460 = vmor %vm458, %vm459
    %v461 = vsel %vm460, %v452, %v457
    %v462 = vrsqrt.pop %v427
    %v463 = vmul.f32 %v462, %v427
    %v464 = vmul.f32 %v463, %v462
    %v465 = vmul.f32 0.5, %v464
    %v466 = vsub.f32 1.5, %v465
    %v467 = vmul.f32 %v462, %v466
    %vm468 = vweird.f32 %v427
    %vm469 = vweird.f32 %v462
    %vm470 = vmor %vm468, %vm469
    %v471 = vsel %vm470, %v462, %v467
    %v472 = vrsqrt.pop %v428
    %v473 = vmul.f32 %v472, %v428
    %v474 = vmul.f32 %v473, %v472
    %v475 = vmul.f32 0.5, %v474
    %v476 = vsub.f32 1.5, %v475
    %v477 = vmul.f32 %v472, %v476
    %vm478 = vweird.f32 %v428
    %vm479 = vweird.f32 %v472
    %vm480 = vmor %vm478, %vm479
    %v481 = vsel %vm480, %v472, %v477
    %v482 = vrsqrt.pop %v429
    %v483 = vmul.f32 %v482, %v429
    %v484 = vmul.f32 %v483, %v482
    %v485 = vmul.f32 0.5, %v484
    %v486 = vsub.f32 1.5, %v485
    %v487 = vmul.f32 %v482, %v486
    %vm488 = vweird.f32 %v429
    %vm489 = vweird.f32 %v482
    %vm490 = vmor %vm488, %vm489
    %v491 = vsel %vm490, %v482, %v487
    %v492 = vrsqrt.pop %v430
    %v493 = vmul.f32 %v492, %v430
    %v494 = vmul.f32 %v493, %v492
    %v495 = vmul.f32 0.5, %v494
    %v496 = vsub.f32 1.5, %v495
    %v497 = vmul.f32 %v492, %v496
    %vm498 = vweird.f32 %v430
    %vm499 = vweird.f32 %v492
    %vm500 = vmor %vm498, %vm499
    %v501 = vsel %vm500, %v492, %v497
    %v502 = vrsqrt.pop %v431
    %v503 = vmul.f32 %v502, %v431
    %v504 = vmul.f32 %v503, %v502
    %v505 = vmul.f32 0.5, %v504
    %v506 = vsub.f32 1.5, %v505
    %v507 = vmul.f32 %v502, %v506
    %vm508 = vweird.f32 %v431
    %vm509 = vweird.f32 %v502
    %vm510 = vmor %vm508, %vm509
    %v511 = vsel %vm510, %v502, %v507
    %v512 = vmul.f32 %v376, %v441
    %v513 = vmul.f32 %v377, %v451
    %v514 = vmul.f32 %v378, %v461
    %v515 = vmul.f32 %v379, %v471
    %v516 = vmul.f32 %v380, %v481
    %v517 = vmul.f32 %v381, %v491
    %v518 = vmul.f32 %v382, %v501
    %v519 = vmul.f32 %v383, %v511
    %v520 = vperm.slane %v336, 0
    %v521 = vmul.f32 %v512, %v520
    %v522 = vmul.f32 %v513, %v520
    %v523 = vmul.f32 %v514, %v520
    %v524 = vmul.f32 %v515, %v520
    %v525 = vmul.f32 %v516, %v520
    %v526 = vmul.f32 %v517, %v520
    %v527 = vmul.f32 %v518, %v520
    %v528 = vmul.f32 %v519, %v520
    %v529 = vperm.slane %v336, 1
    %v530 = vadd.f32 %v521, %v529
    %v531 = vadd.f32 %v522, %v529
    %v532 = vadd.f32 %v523, %v529
    %v533 = vadd.f32 %v524, %v529
    %v534 = vadd.f32 %v525, %v529
    %v535 = vadd.f32 %v526, %v529
    %v536 = vadd.f32 %v527, %v529
    %v537 = vadd.f32 %v528, %v529
    %v538 = vsel %vm155, %v312, 0.0
    %539 = vadd.xlane.f32.xlu0 %v538
    %v540 = vpop.xlane.xlu0 %539
    %v541 = vsel %vm155, %v313, 0.0
    %542 = vadd.xlane.f32.xlu0 %v541
    %v543 = vpop.xlane.xlu0 %542
    %v544 = vsel %vm155, %v314, 0.0
    %545 = vadd.xlane.f32.xlu0 %v544
    %v546 = vpop.xlane.xlu0 %545
    %v547 = vsel %vm155, %v315, 0.0
    %548 = vadd.xlane.f32.xlu0 %v547
    %v549 = vpop.xlane.xlu0 %548
    %v550 = vsel %vm155, %v316, 0.0
    %551 = vadd.xlane.f32.xlu0 %v550
    %v552 = vpop.xlane.xlu0 %551
    %v553 = vsel %vm155, %v317, 0.0
    %554 = vadd.xlane.f32.xlu0 %v553
    %v555 = vpop.xlane.xlu0 %554
    %v556 = vsel %vm155, %v318, 0.0
    %557 = vadd.xlane.f32.xlu0 %v556
    %v558 = vpop.xlane.xlu0 %557
    %v559 = vsel %vm155, %v319, 0.0
    %560 = vadd.xlane.f32.xlu0 %v559
    %v561 = vpop.xlane.xlu0 %560
    %v562 = vmul.f32 %v540, %v367
    %v563 = vmul.f32 %v543, %v367
    %v564 = vmul.f32 %v546, %v367
    %v565 = vmul.f32 %v549, %v367
    %v566 = vmul.f32 %v552, %v367
    %v567 = vmul.f32 %v555, %v367
    %v568 = vmul.f32 %v558, %v367
    %v569 = vmul.f32 %v561, %v367
    %v570 = vsub.f32 %v312, %v562
    %v571 = vsub.f32 %v313, %v563
    %v572 = vsub.f32 %v314, %v564
    %v573 = vsub.f32 %v315, %v565
    %v574 = vsub.f32 %v316, %v566
    %v575 = vsub.f32 %v317, %v567
    %v576 = vsub.f32 %v318, %v568
    %v577 = vsub.f32 %v319, %v569
    %v578 = vmul.f32 %v570, %v570
    %v579 = vmul.f32 %v571, %v571
    %v580 = vmul.f32 %v572, %v572
    %v581 = vmul.f32 %v573, %v573
    %v582 = vmul.f32 %v574, %v574
    %v583 = vmul.f32 %v575, %v575
    %v584 = vmul.f32 %v576, %v576
    %v585 = vmul.f32 %v577, %v577
    %v586 = vsel %vm155, %v578, 0.0
    %587 = vadd.xlane.f32.xlu0 %v586
    %v588 = vpop.xlane.xlu0 %587
    %v589 = vsel %vm155, %v579, 0.0
    %590 = vadd.xlane.f32.xlu0 %v589
    %v591 = vpop.xlane.xlu0 %590
    %v592 = vsel %vm155, %v580, 0.0
    %593 = vadd.xlane.f32.xlu0 %v592
    %v594 = vpop.xlane.xlu0 %593
    %v595 = vsel %vm155, %v581, 0.0
    %596 = vadd.xlane.f32.xlu0 %v595
    %v597 = vpop.xlane.xlu0 %596
    %v598 = vsel %vm155, %v582, 0.0
    %599 = vadd.xlane.f32.xlu0 %v598
    %v600 = vpop.xlane.xlu0 %599
    %v601 = vsel %vm155, %v583, 0.0
    %602 = vadd.xlane.f32.xlu0 %v601
    %v603 = vpop.xlane.xlu0 %602
    %v604 = vsel %vm155, %v584, 0.0
    %605 = vadd.xlane.f32.xlu0 %v604
    %v606 = vpop.xlane.xlu0 %605
    %v607 = vsel %vm155, %v585, 0.0
    %608 = vadd.xlane.f32.xlu0 %v607
    %v609 = vpop.xlane.xlu0 %608
    %v610 = vmul.f32 %v588, %v367
    %v611 = vmul.f32 %v591, %v367
    %v612 = vmul.f32 %v594, %v367
    %v613 = vmul.f32 %v597, %v367
    %v614 = vmul.f32 %v600, %v367
    %v615 = vmul.f32 %v603, %v367
    %v616 = vmul.f32 %v606, %v367
    %v617 = vmul.f32 %v609, %v367
    %v618 = vadd.f32 %v610, 1e-05
    %v619 = vadd.f32 %v611, 1e-05
    %v620 = vadd.f32 %v612, 1e-05
    %v621 = vadd.f32 %v613, 1e-05
    %v622 = vadd.f32 %v614, 1e-05
    %v623 = vadd.f32 %v615, 1e-05
    %v624 = vadd.f32 %v616, 1e-05
    %v625 = vadd.f32 %v617, 1e-05
    %v626 = vrsqrt.pop %v618
    %v627 = vmul.f32 %v626, %v618
    %v628 = vmul.f32 %v627, %v626
    %v629 = vmul.f32 0.5, %v628
    %v630 = vsub.f32 1.5, %v629
    %v631 = vmul.f32 %v626, %v630
    %vm632 = vweird.f32 %v618
    %vm633 = vweird.f32 %v626
    %vm634 = vmor %vm632, %vm633
    %v635 = vsel %vm634, %v626, %v631
    %v636 = vrsqrt.pop %v619
    %v637 = vmul.f32 %v636, %v619
    %v638 = vmul.f32 %v637, %v636
    %v639 = vmul.f32 0.5, %v638
    %v640 = vsub.f32 1.5, %v639
    %v641 = vmul.f32 %v636, %v640
    %vm642 = vweird.f32 %v619
    %vm643 = vweird.f32 %v636
    %vm644 = vmor %vm642, %vm643
    %v645 = vsel %vm644, %v636, %v641
    %v646 = vrsqrt.pop %v620
    %v647 = vmul.f32 %v646, %v620
    %v648 = vmul.f32 %v647, %v646
    %v649 = vmul.f32 0.5, %v648
    %v650 = vsub.f32 1.5, %v649
    %v651 = vmul.f32 %v646, %v650
    %vm652 = vweird.f32 %v620
    %vm653 = vweird.f32 %v646
    %vm654 = vmor %vm652, %vm653
    %v655 = vsel %vm654, %v646, %v651
    %v656 = vrsqrt.pop %v621
    %v657 = vmul.f32 %v656, %v621
    %v658 = vmul.f32 %v657, %v656
    %v659 = vmul.f32 0.5, %v658
    %v660 = vsub.f32 1.5, %v659
    %v661 = vmul.f32 %v656, %v660
    %vm662 = vweird.f32 %v621
    %vm663 = vweird.f32 %v656
    %vm664 = vmor %vm662, %vm663
    %v665 = vsel %vm664, %v656, %v661
    %v666 = vrsqrt.pop %v622
    %v667 = vmul.f32 %v666, %v622
    %v668 = vmul.f32 %v667, %v666
    %v669 = vmul.f32 0.5, %v668
    %v670 = vsub.f32 1.5, %v669
    %v671 = vmul.f32 %v666, %v670
    %vm672 = vweird.f32 %v622
    %vm673 = vweird.f32 %v666
    %vm674 = vmor %vm672, %vm673
    %v675 = vsel %vm674, %v666, %v671
    %v676 = vrsqrt.pop %v623
    %v677 = vmul.f32 %v676, %v623
    %v678 = vmul.f32 %v677, %v676
    %v679 = vmul.f32 0.5, %v678
    %v680 = vsub.f32 1.5, %v679
    %v681 = vmul.f32 %v676, %v680
    %vm682 = vweird.f32 %v623
    %vm683 = vweird.f32 %v676
    %vm684 = vmor %vm682, %vm683
    %v685 = vsel %vm684, %v676, %v681
    %v686 = vrsqrt.pop %v624
    %v687 = vmul.f32 %v686, %v624
    %v688 = vmul.f32 %v687, %v686
    %v689 = vmul.f32 0.5, %v688
    %v690 = vsub.f32 1.5, %v689
    %v691 = vmul.f32 %v686, %v690
    %vm692 = vweird.f32 %v624
    %vm693 = vweird.f32 %v686
    %vm694 = vmor %vm692, %vm693
    %v695 = vsel %vm694, %v686, %v691
    %v696 = vrsqrt.pop %v625
    %v697 = vmul.f32 %v696, %v625
    %v698 = vmul.f32 %v697, %v696
    %v699 = vmul.f32 0.5, %v698
    %v700 = vsub.f32 1.5, %v699
    %v701 = vmul.f32 %v696, %v700
    %vm702 = vweird.f32 %v625
    %vm703 = vweird.f32 %v696
    %vm704 = vmor %vm702, %vm703
    %v705 = vsel %vm704, %v696, %v701
    %v706 = vmul.f32 %v570, %v635
    %v707 = vmul.f32 %v571, %v645
    %v708 = vmul.f32 %v572, %v655
    %v709 = vmul.f32 %v573, %v665
    %v710 = vmul.f32 %v574, %v675
    %v711 = vmul.f32 %v575, %v685
    %v712 = vmul.f32 %v576, %v695
    %v713 = vmul.f32 %v577, %v705
    %v714 = vperm.slane %v336, 2
    %v715 = vmul.f32 %v706, %v714
    %v716 = vmul.f32 %v707, %v714
    %v717 = vmul.f32 %v708, %v714
    %v718 = vmul.f32 %v709, %v714
    %v719 = vmul.f32 %v710, %v714
    %v720 = vmul.f32 %v711, %v714
    %v721 = vmul.f32 %v712, %v714
    %v722 = vmul.f32 %v713, %v714
    %v723 = vperm.slane %v336, 3
    %v724 = vadd.f32 %v715, %v723
    %v725 = vadd.f32 %v716, %v723
    %v726 = vadd.f32 %v717, %v723
    %v727 = vadd.f32 %v718, %v723
    %v728 = vadd.f32 %v719, %v723
    %v729 = vadd.f32 %v720, %v723
    %v730 = vadd.f32 %v721, %v723
    %v731 = vadd.f32 %v722, %v723
    %v732 = vld [vmem:[%s7] sm:$0xff]
    %v733 = vld [vmem:[%s7 + $0x8] sm:$0xff]
    %v734 = vld [vmem:[%s7 + $0x10] sm:$0xff]
    %v735 = vld [vmem:[%s7 + $0x18] sm:$0xff]
    %v736 = vld [vmem:[#allocation10] sm:$0x1]
    %v738 = vperm.slane %v736, 0
    %v741 = vsel %vm155, %v530, 0
    %v744 = vsel %vm155, %v531, 0
    %v747 = vsel %vm155, %v532, 0
    %v750 = vsel %vm155, %v533, 0
    %v753 = vsel %vm155, %v534, 0
    %v756 = vsel %vm155, %v535, 0
    %v759 = vsel %vm155, %v536, 0
    %v762 = vsel %vm155, %v537, 0
    %764 = vmatpush.msra.mxu0 0.0
    %765 = vmatpush.msra.mxu0 0.0
    %766 = vmatpush.msra.mxu0 0.0
    %767 = vmatpush.msra.mxu0 0.0
    %768 = vmatpush.msra.mxu0 0.0
    %769 = vmatpush.msra.mxu0 0.0
    %770 = vmatpush.msra.mxu0 0.0
    %771 = vmatpush.msra.mxu0 0.0
    %772 = vmatpush.msra.mxu0 0.0
    %773 = vmatpush.msra.mxu0 0.0
    %774 = vmatpush.msra.mxu0 0.0
    %775 = vmatpush.msra.mxu0 0.0
    %776 = vmatpush.msra.mxu0 %v735
    %777 = vmatpush.msra.mxu0 %v734
    %778 = vmatpush.msra.mxu0 %v733
    %779 = vmatpush.msra.mxu0 %v732
    %780 = vmatmul.f32.gmra.mxu0 %v741
    %v781 = vpop.f32.mrf.mxu0
    %v782 = vadd.f32 %v738, %v781
    %783 = vmatmul.f32.gmra.mxu0 %v744
    %v784 = vpop.f32.mrf.mxu0
    %v785 = vadd.f32 %v738, %v784
    %786 = vmatmul.f32.gmra.mxu0 %v747
    %v787 = vpop.f32.mrf.mxu0
    %v788 = vadd.f32 %v738, %v787
    %789 = vmatmul.f32.gmra.mxu0 %v750
    %v790 = vpop.f32.mrf.mxu0
    %v791 = vadd.f32 %v738, %v790
    %792 = vmatmul.f32.gmra.mxu0 %v753
    %v793 = vpop.f32.mrf.mxu0
    %v794 = vadd.f32 %v738, %v793
    %795 = vmatmul.f32.gmra.mxu0 %v756
    %v796 = vpop.f32.mrf.mxu0
    %v797 = vadd.f32 %v738, %v796
    %798 = vmatmul.f32.gmra.mxu0 %v759
    %v799 = vpop.f32.mrf.mxu0
    %v800 = vadd.f32 %v738, %v799
    %801 = vmatmul.f32.gmra.mxu0 %v762
    %v802 = vpop.f32.mrf.mxu0
    %v803 = vadd.f32 %v738, %v802
    %804 = vdwg.mxu0
    %v805 = vld [vmem:[%s9] sm:$0xff]
    %v806 = vld [vmem:[%s9 + $0x8] sm:$0xff]
    %v807 = vld [vmem:[%s9 + $0x10] sm:$0xff]
    %v808 = vld [vmem:[%s9 + $0x18] sm:$0xff]
    %v809 = vld [vmem:[#allocation11] sm:$0x1]
    %v811 = vperm.slane %v809, 0
    %v814 = vsel %vm155, %v724, 0
    %v817 = vsel %vm155, %v725, 0
    %v820 = vsel %vm155, %v726, 0
    %v823 = vsel %vm155, %v727, 0
    %v826 = vsel %vm155, %v728, 0
    %v829 = vsel %vm155, %v729, 0
    %v832 = vsel %vm155, %v730, 0
    %v835 = vsel %vm155, %v731, 0
    %837 = vmatpush.msra.mxu0 0.0
    %838 = vmatpush.msra.mxu0 0.0
    %839 = vmatpush.msra.mxu0 0.0
    %840 = vmatpush.msra.mxu0 0.0
    %841 = vmatpush.msra.mxu0 0.0
    %842 = vmatpush.msra.mxu0 0.0
    %843 = vmatpush.msra.mxu0 0.0
    %844 = vmatpush.msra.mxu0 0.0
    %845 = vmatpush.msra.mxu0 0.0
    %846 = vmatpush.msra.mxu0 0.0
    %847 = vmatpush.msra.mxu0 0.0
    %848 = vmatpush.msra.mxu0 0.0
    %849 = vmatpush.msra.mxu0 %v808
    %850 = vmatpush.msra.mxu0 %v807
    %851 = vmatpush.msra.mxu0 %v806
    %852 = vmatpush.msra.mxu0 %v805
    %853 = vmatmul.f32.gmra.mxu0 %v814
    %v854 = vpop.f32.mrf.mxu0
    %v855 = vadd.f32 %v811, %v854
    %856 = vmatmul.f32.gmra.mxu0 %v817
    %v857 = vpop.f32.mrf.mxu0
    %v858 = vadd.f32 %v811, %v857
    %859 = vmatmul.f32.gmra.mxu0 %v820
    %v860 = vpop.f32.mrf.mxu0
    %v861 = vadd.f32 %v811, %v860
    %862 = vmatmul.f32.gmra.mxu0 %v823
    %v863 = vpop.f32.mrf.mxu0
    %v864 = vadd.f32 %v811, %v863
    %865 = vmatmul.f32.gmra.mxu0 %v826
    %v866 = vpop.f32.mrf.mxu0
    %v867 = vadd.f32 %v811, %v866
    %868 = vmatmul.f32.gmra.mxu0 %v829
    %v869 = vpop.f32.mrf.mxu0
    %v870 = vadd.f32 %v811, %v869
    %871 = vmatmul.f32.gmra.mxu0 %v832
    %v872 = vpop.f32.mrf.mxu0
    %v873 = vadd.f32 %v811, %v872
    %874 = vmatmul.f32.gmra.mxu0 %v835
    %v875 = vpop.f32.mrf.mxu0
    %v876 = vadd.f32 %v811, %v875
    %877 = vdwg.mxu0
    %v878 = vmax.f32 %v782, 0.0
    %v879 = vmax.f32 %v785, 0.0
    %v880 = vmax.f32 %v788, 0.0
    %v881 = vmax.f32 %v791, 0.0
    %v882 = vmax.f32 %v794, 0.0
    %v883 = vmax.f32 %v797, 0.0
    %v884 = vmax.f32 %v800, 0.0
    %v885 = vmax.f32 %v803, 0.0
    %v886 = vmax.f32 %v855, 0.0
    %v887 = vmax.f32 %v858, 0.0
    %v888 = vmax.f32 %v861, 0.0
    %v889 = vmax.f32 %v864, 0.0
    %v890 = vmax.f32 %v867, 0.0
    %v891 = vmax.f32 %v870, 0.0
    %v892 = vmax.f32 %v873, 0.0
    %v893 = vmax.f32 %v876, 0.0
    %v895 = vsel %vm155, %v782, 0
    %v898 = vsel %vm155, %v855, 0
    %900 = vmatpush.xpose.msra.mxu0 0.0
    %901 = vmatpush.xpose.msra.mxu0 0.0
    %902 = vmatpush.xpose.msra.mxu0 0.0
    %903 = vmatpush.xpose.msra.mxu0 0.0
    %904 = vmatpush.xpose.msra.mxu0 0.0
    %905 = vmatpush.xpose.msra.mxu0 0.0
    %906 = vmatpush.xpose.msra.mxu0 0.0
    %907 = vmatpush.xpose.msra.mxu0 0.0
    %908 = vmatpush.xpose.msra.mxu0 0.0
    %909 = vmatpush.xpose.msra.mxu0 0.0
    %910 = vmatpush.xpose.msra.mxu0 0.0
    %911 = vmatpush.xpose.msra.mxu0 0.0
    %912 = vmatpush.xpose.msra.mxu0 0.0
    %913 = vmatpush.xpose.msra.mxu0 0.0
    %914 = vmatpush.xpose.msra.mxu0 0.0
    %915 = vmatpush.xpose.msra.mxu0 %v898
    %916 = vmatmul.f32.gmra.mxu0 %v895
    %v917 = vpop.f32.mrf.mxu0
    %v918 = vadd.f32 0.0, %v917
    %919 = vdwg.mxu0
    %v921 = vsel %vm155, %v785, 0
    %v924 = vsel %vm155, %v858, 0
    %926 = vmatpush.xpose.msra.mxu0 0.0
    %927 = vmatpush.xpose.msra.mxu0 0.0
    %928 = vmatpush.xpose.msra.mxu0 0.0
    %929 = vmatpush.xpose.msra.mxu0 0.0
    %930 = vmatpush.xpose.msra.mxu0 0.0
    %931 = vmatpush.xpose.msra.mxu0 0.0
    %932 = vmatpush.xpose.msra.mxu0 0.0
    %933 = vmatpush.xpose.msra.mxu0 0.0
    %934 = vmatpush.xpose.msra.mxu0 0.0
    %935 = vmatpush.xpose.msra.mxu0 0.0
    %936 = vmatpush.xpose.msra.mxu0 0.0
    %937 = vmatpush.xpose.msra.mxu0 0.0
    %938 = vmatpush.xpose.msra.mxu0 0.0
    %939 = vmatpush.xpose.msra.mxu0 0.0
    %940 = vmatpush.xpose.msra.mxu0 0.0
    %941 = vmatpush.xpose.msra.mxu0 %v924
    %942 = vmatmul.f32.gmra.mxu0 %v921
    %v943 = vpop.f32.mrf.mxu0
    %v944 = vadd.f32 0.0, %v943
    %945 = vdwg.mxu0
    %v947 = vsel %vm155, %v788, 0
    %v950 = vsel %vm155, %v861, 0
    %952 = vmatpush.xpose.msra.mxu0 0.0
    %953 = vmatpush.xpose.msra.mxu0 0.0
    %954 = vmatpush.xpose.msra.mxu0 0.0
    %955 = vmatpush.xpose.msra.mxu0 0.0
    %956 = vmatpush.xpose.msra.mxu0 0.0
    %957 = vmatpush.xpose.msra.mxu0 0.0
    %958 = vmatpush.xpose.msra.mxu0 0.0
    %959 = vmatpush.xpose.msra.mxu0 0.0
    %960 = vmatpush.xpose.msra.mxu0 0.0
    %961 = vmatpush.xpose.msra.mxu0 0.0
    %962 = vmatpush.xpose.msra.mxu0 0.0
    %963 = vmatpush.xpose.msra.mxu0 0.0
    %964 = vmatpush.xpose.msra.mxu0 0.0
    %965 = vmatpush.xpose.msra.mxu0 0.0
    %966 = vmatpush.xpose.msra.mxu0 0.0
    %967 = vmatpush.xpose.msra.mxu0 %v950
    %968 = vmatmul.f32.gmra.mxu0 %v947
    %v969 = vpop.f32.mrf.mxu0
    %v970 = vadd.f32 0.0, %v969
    %971 = vdwg.mxu0
    %v973 = vsel %vm155, %v791, 0
    %v976 = vsel %vm155, %v864, 0
    %978 = vmatpush.xpose.msra.mxu0 0.0
    %979 = vmatpush.xpose.msra.mxu0 0.0
    %980 = vmatpush.xpose.msra.mxu0 0.0
    %981 = vmatpush.xpose.msra.mxu0 0.0
    %982 = vmatpush.xpose.msra.mxu0 0.0
    %983 = vmatpush.xpose.msra.mxu0 0.0
    %984 = vmatpush.xpose.msra.mxu0 0.0
    %985 = vmatpush.xpose.msra.mxu0 0.0
    %986 = vmatpush.xpose.msra.mxu0 0.0
    %987 = vmatpush.xpose.msra.mxu0 0.0
    %988 = vmatpush.xpose.msra.mxu0 0.0
    %989 = vmatpush.xpose.msra.mxu0 0.0
    %990 = vmatpush.xpose.msra.mxu0 0.0
    %991 = vmatpush.xpose.msra.mxu0 0.0
    %992 = vmatpush.xpose.msra.mxu0 0.0
    %993 = vmatpush.xpose.msra.mxu0 %v976
    %994 = vmatmul.f32.gmra.mxu0 %v973
    %v995 = vpop.f32.mrf.mxu0
    %v996 = vadd.f32 0.0, %v995
    %997 = vdwg.mxu0
    %v999 = vsel %vm155, %v794, 0
    %v1002 = vsel %vm155, %v867, 0
    %1004 = vmatpush.xpose.msra.mxu0 0.0
    %1005 = vmatpush.xpose.msra.mxu0 0.0
    %1006 = vmatpush.xpose.msra.mxu0 0.0
    %1007 = vmatpush.xpose.msra.mxu0 0.0
    %1008 = vmatpush.xpose.msra.mxu0 0.0
    %1009 = vmatpush.xpose.msra.mxu0 0.0
    %1010 = vmatpush.xpose.msra.mxu0 0.0
    %1011 = vmatpush.xpose.msra.mxu0 0.0
    %1012 = vmatpush.xpose.msra.mxu0 0.0
    %1013 = vmatpush.xpose.msra.mxu0 0.0
    %1014 = vmatpush.xpose.msra.mxu0 0.0
    %1015 = vmatpush.xpose.msra.mxu0 0.0
    %1016 = vmatpush.xpose.msra.mxu0 0.0
    %1017 = vmatpush.xpose.msra.mxu0 0.0
    %1018 = vmatpush.xpose.msra.mxu0 0.0
    %1019 = vmatpush.xpose.msra.mxu0 %v1002
    %1020 = vmatmul.f32.gmra.mxu0 %v999
    %v1021 = vpop.f32.mrf.mxu0
    %v1022 = vadd.f32 0.0, %v1021
    %1023 = vdwg.mxu0
    %v1025 = vsel %vm155, %v797, 0
    %v1028 = vsel %vm155, %v870, 0
    %1030 = vmatpush.xpose.msra.mxu0 0.0
    %1031 = vmatpush.xpose.msra.mxu0 0.0
    %1032 = vmatpush.xpose.msra.mxu0 0.0
    %1033 = vmatpush.xpose.msra.mxu0 0.0
    %1034 = vmatpush.xpose.msra.mxu0 0.0
    %1035 = vmatpush.xpose.msra.mxu0 0.0
    %1036 = vmatpush.xpose.msra.mxu0 0.0
    %1037 = vmatpush.xpose.msra.mxu0 0.0
    %1038 = vmatpush.xpose.msra.mxu0 0.0
    %1039 = vmatpush.xpose.msra.mxu0 0.0
    %1040 = vmatpush.xpose.msra.mxu0 0.0
    %1041 = vmatpush.xpose.msra.mxu0 0.0
    %1042 = vmatpush.xpose.msra.mxu0 0.0
    %1043 = vmatpush.xpose.msra.mxu0 0.0
    %1044 = vmatpush.xpose.msra.mxu0 0.0
    %1045 = vmatpush.xpose.msra.mxu0 %v1028
    %1046 = vmatmul.f32.gmra.mxu0 %v1025
    %v1047 = vpop.f32.mrf.mxu0
    %v1048 = vadd.f32 0.0, %v1047
    %1049 = vdwg.mxu0
    %v1051 = vsel %vm155, %v800, 0
    %v1054 = vsel %vm155, %v873, 0
    %1056 = vmatpush.xpose.msra.mxu0 0.0
    %1057 = vmatpush.xpose.msra.mxu0 0.0
    %1058 = vmatpush.xpose.msra.mxu0 0.0
    %1059 = vmatpush.xpose.msra.mxu0 0.0
    %1060 = vmatpush.xpose.msra.mxu0 0.0
    %1061 = vmatpush.xpose.msra.mxu0 0.0
    %1062 = vmatpush.xpose.msra.mxu0 0.0
    %1063 = vmatpush.xpose.msra.mxu0 0.0
    %1064 = vmatpush.xpose.msra.mxu0 0.0
    %1065 = vmatpush.xpose.msra.mxu0 0.0
    %1066 = vmatpush.xpose.msra.mxu0 0.0
    %1067 = vmatpush.xpose.msra.mxu0 0.0
    %1068 = vmatpush.xpose.msra.mxu0 0.0
    %1069 = vmatpush.xpose.msra.mxu0 0.0
    %1070 = vmatpush.xpose.msra.mxu0 0.0
    %1071 = vmatpush.xpose.msra.mxu0 %v1054
    %1072 = vmatmul.f32.gmra.mxu0 %v1051
    %v1073 = vpop.f32.mrf.mxu0
    %v1074 = vadd.f32 0.0, %v1073
    %1075 = vdwg.mxu0
    %v1077 = vsel %vm155, %v803, 0
    %v1080 = vsel %vm155, %v876, 0
    %1082 = vmatpush.xpose.msra.mxu0 0.0
    %1083 = vmatpush.xpose.msra.mxu0 0.0
    %1084 = vmatpush.xpose.msra.mxu0 0.0
    %1085 = vmatpush.xpose.msra.mxu0 0.0
    %1086 = vmatpush.xpose.msra.mxu0 0.0
    %1087 = vmatpush.xpose.msra.mxu0 0.0
    %1088 = vmatpush.xpose.msra.mxu0 0.0
    %1089 = vmatpush.xpose.msra.mxu0 0.0
    %1090 = vmatpush.xpose.msra.mxu0 0.0
    %1091 = vmatpush.xpose.msra.mxu0 0.0
    %1092 = vmatpush.xpose.msra.mxu0 0.0
    %1093 = vmatpush.xpose.msra.mxu0 0.0
    %1094 = vmatpush.xpose.msra.mxu0 0.0
    %1095 = vmatpush.xpose.msra.mxu0 0.0
    %1096 = vmatpush.xpose.msra.mxu0 0.0
    %1097 = vmatpush.xpose.msra.mxu0 %v1080
    %1098 = vmatmul.f32.gmra.mxu0 %v1077
    %v1099 = vpop.f32.mrf.mxu0
    %v1100 = vadd.f32 0.0, %v1099
    %1101 = vdwg.mxu0
    %v1102 = vrcp.pop 5.656854
    %v1103 = vmul.f32 5.656854, %v1102
    %v1104 = vsub.f32 1.0, %v1103
    %v1105 = vmul.f32 %v1102, %v1104
    %v1106 = vadd.f32 %v1102, %v1105
    %vm1107 = vweird.f32 %v1102
    %v1108 = vsel %vm1107, %v1102, %v1106
    %v1109 = vmul.f32 %v918, %v1108
    %v1110 = vmul.f32 %v944, %v1108
    %v1111 = vmul.f32 %v970, %v1108
    %v1112 = vmul.f32 %v996, %v1108
    %v1113 = vmul.f32 %v1022, %v1108
    %v1114 = vmul.f32 %v1048, %v1108
    %v1115 = vmul.f32 %v1074, %v1108
    %v1116 = vmul.f32 %v1100, %v1108
    %v1117 = vxor.u32 %v1109, 2147483648
    %v1118 = vxor.u32 %v1110, 2147483648
    %v1119 = vxor.u32 %v1111, 2147483648
    %v1120 = vxor.u32 %v1112, 2147483648
    %v1121 = vxor.u32 %v1113, 2147483648
    %v1122 = vxor.u32 %v1114, 2147483648
    %v1123 = vxor.u32 %v1115, 2147483648
    %v1124 = vxor.u32 %v1116, 2147483648
    %v1125 = vmul.f32 %v1117, 1.442695
    %v1126 = vpow.pop %v1125
    %v1127 = vmul.f32 %v1118, 1.442695
    %v1128 = vpow.pop %v1127
    %v1129 = vmul.f32 %v1119, 1.442695
    %v1130 = vpow.pop %v1129
    %v1131 = vmul.f32 %v1120, 1.442695
    %v1132 = vpow.pop %v1131
    %v1133 = vmul.f32 %v1121, 1.442695
    %v1134 = vpow.pop %v1133
    %v1135 = vmul.f32 %v1122, 1.442695
    %v1136 = vpow.pop %v1135
    %v1137 = vmul.f32 %v1123, 1.442695
    %v1138 = vpow.pop %v1137
    %v1139 = vmul.f32 %v1124, 1.442695
    %v1140 = vpow.pop %v1139
    %v1141 = vadd.f32 %v1126, 1.0
    %v1142 = vadd.f32 %v1128, 1.0
    %v1143 = vadd.f32 %v1130, 1.0
    %v1144 = vadd.f32 %v1132, 1.0
    %v1145 = vadd.f32 %v1134, 1.0
    %v1146 = vadd.f32 %v1136, 1.0
    %v1147 = vadd.f32 %v1138, 1.0
    %v1148 = vadd.f32 %v1140, 1.0
    %v1149 = vrcp.pop %v1141
    %v1150 = vmul.f32 %v1141, %v1149
    %v1151 = vsub.f32 1.0, %v1150
    %v1152 = vmul.f32 %v1149, %v1151
    %v1153 = vadd.f32 %v1149, %v1152
    %vm1154 = vweird.f32 %v1141
    %vm1155 = vweird.f32 %v1149
    %vm1156 = vmor %vm1154, %vm1155
    %v1157 = vsel %vm1156, %v1149, %v1153
    %v1158 = vand.u32 2147483647, %v1141
    %vm1159 = vcmp.eq.f32.partialorder %v1158, 8.507059e+37
    %v1160 = vand.u32 %v1141, 2147483648
    %v1161 = vor.u32 1.1754944e-38, %v1160
    %v1162 = vsel %vm1159, %v1161, %v1157
    %v1163 = vmul.f32 1.0, %v1162
    %v1164 = vrcp.pop %v1142
    %v1165 = vmul.f32 %v1142, %v1164
    %v1166 = vsub.f32 1.0, %v1165
    %v1167 = vmul.f32 %v1164, %v1166
    %v1168 = vadd.f32 %v1164, %v1167
    %vm1169 = vweird.f32 %v1142
    %vm1170 = vweird.f32 %v1164
    %vm1171 = vmor %vm1169, %vm1170
    %v1172 = vsel %vm1171, %v1164, %v1168
    %v1173 = vand.u32 2147483647, %v1142
    %vm1174 = vcmp.eq.f32.partialorder %v1173, 8.507059e+37
    %v1175 = vand.u32 %v1142, 2147483648
    %v1176 = vor.u32 1.1754944e-38, %v1175
    %v1177 = vsel %vm1174, %v1176, %v1172
    %v1178 = vmul.f32 1.0, %v1177
    %v1179 = vrcp.pop %v1143
    %v1180 = vmul.f32 %v1143, %v1179
    %v1181 = vsub.f32 1.0, %v1180
    %v1182 = vmul.f32 %v1179, %v1181
    %v1183 = vadd.f32 %v1179, %v1182
    %vm1184 = vweird.f32 %v1143
    %vm1185 = vweird.f32 %v1179
    %vm1186 = vmor %vm1184, %vm1185
    %v1187 = vsel %vm1186, %v1179, %v1183
    %v1188 = vand.u32 2147483647, %v1143
    %vm1189 = vcmp.eq.f32.partialorder %v1188, 8.507059e+37
    %v1190 = vand.u32 %v1143, 2147483648
    %v1191 = vor.u32 1.1754944e-38, %v1190
    %v1192 = vsel %vm1189, %v1191, %v1187
    %v1193 = vmul.f32 1.0, %v1192
    %v1194 = vrcp.pop %v1144
    %v1195 = vmul.f32 %v1144, %v1194
    %v1196 = vsub.f32 1.0, %v1195
    %v1197 = vmul.f32 %v1194, %v1196
    %v1198 = vadd.f32 %v1194, %v1197
    %vm1199 = vweird.f32 %v1144
    %vm1200 = vweird.f32 %v1194
    %vm1201 = vmor %vm1199, %vm1200
    %v1202 = vsel %vm1201, %v1194, %v1198
    %v1203 = vand.u32 2147483647, %v1144
    %vm1204 = vcmp.eq.f32.partialorder %v1203, 8.507059e+37
    %v1205 = vand.u32 %v1144, 2147483648
    %v1206 = vor.u32 1.1754944e-38, %v1205
    %v1207 = vsel %vm1204, %v1206, %v1202
    %v1208 = vmul.f32 1.0, %v1207
    %v1209 = vrcp.pop %v1145
    %v1210 = vmul.f32 %v1145, %v1209
    %v1211 = vsub.f32 1.0, %v1210
    %v1212 = vmul.f32 %v1209, %v1211
    %v1213 = vadd.f32 %v1209, %v1212
    %vm1214 = vweird.f32 %v1145
    %vm1215 = vweird.f32 %v1209
    %vm1216 = vmor %vm1214, %vm1215
    %v1217 = vsel %vm1216, %v1209, %v1213
    %v1218 = vand.u32 2147483647, %v1145
    %vm1219 = vcmp.eq.f32.partialorder %v1218, 8.507059e+37
    %v1220 = vand.u32 %v1145, 2147483648
    %v1221 = vor.u32 1.1754944e-38, %v1220
    %v1222 = vsel %vm1219, %v1221, %v1217
    %v1223 = vmul.f32 1.0, %v1222
    %v1224 = vrcp.pop %v1146
    %v1225 = vmul.f32 %v1146, %v1224
    %v1226 = vsub.f32 1.0, %v1225
    %v1227 = vmul.f32 %v1224, %v1226
    %v1228 = vadd.f32 %v1224, %v1227
    %vm1229 = vweird.f32 %v1146
    %vm1230 = vweird.f32 %v1224
    %vm1231 = vmor %vm1229, %vm1230
    %v1232 = vsel %vm1231, %v1224, %v1228
    %v1233 = vand.u32 2147483647, %v1146
    %vm1234 = vcmp.eq.f32.partialorder %v1233, 8.507059e+37
    %v1235 = vand.u32 %v1146, 2147483648
    %v1236 = vor.u32 1.1754944e-38, %v1235
    %v1237 = vsel %vm1234, %v1236, %v1232
    %v1238 = vmul.f32 1.0, %v1237
    %v1239 = vrcp.pop %v1147
    %v1240 = vmul.f32 %v1147, %v1239
    %v1241 = vsub.f32 1.0, %v1240
    %v1242 = vmul.f32 %v1239, %v1241
    %v1243 = vadd.f32 %v1239, %v1242
    %vm1244 = vweird.f32 %v1147
    %vm1245 = vweird.f32 %v1239
    %vm1246 = vmor %vm1244, %vm1245
    %v1247 = vsel %vm1246, %v1239, %v1243
    %v1248 = vand.u32 2147483647, %v1147
    %vm1249 = vcmp.eq.f32.partialorder %v1248, 8.507059e+37
    %v1250 = vand.u32 %v1147, 2147483648
    %v1251 = vor.u32 1.1754944e-38, %v1250
    %v1252 = vsel %vm1249, %v1251, %v1247
    %v1253 = vmul.f32 1.0, %v1252
    %v1254 = vrcp.pop %v1148
    %v1255 = vmul.f32 %v1148, %v1254
    %v1256 = vsub.f32 1.0, %v1255
    %v1257 = vmul.f32 %v1254, %v1256
    %v1258 = vadd.f32 %v1254, %v1257
    %vm1259 = vweird.f32 %v1148
    %vm1260 = vweird.f32 %v1254
    %vm1261 = vmor %vm1259, %vm1260
    %v1262 = vsel %vm1261, %v1254, %v1258
    %v1263 = vand.u32 2147483647, %v1148
    %vm1264 = vcmp.eq.f32.partialorder %v1263, 8.507059e+37
    %v1265 = vand.u32 %v1148, 2147483648
    %v1266 = vor.u32 1.1754944e-38, %v1265
    %v1267 = vsel %vm1264, %v1266, %v1262
    %v1268 = vmul.f32 1.0, %v1267
    %1270 = vset.pattern.permute.xlu0 64
    %1271 = vperm.xlu0 %1270, %v878
    %v1272 = vpop.permute.xlu0 %1271
    %1275 = vset.pattern.permute.xlu0 64
    %1276 = vperm.xlu0 %1275, %v879
    %v1277 = vpop.permute.xlu0 %1276
    %1280 = vset.pattern.permute.xlu0 64
    %1281 = vperm.xlu0 %1280, %v880
    %v1282 = vpop.permute.xlu0 %1281
    %1285 = vset.pattern.permute.xlu0 64
    %1286 = vperm.xlu0 %1285, %v881
    %v1287 = vpop.permute.xlu0 %1286
    %1290 = vset.pattern.permute.xlu0 64
    %1291 = vperm.xlu0 %1290, %v882
    %v1292 = vpop.permute.xlu0 %1291
    %1295 = vset.pattern.permute.xlu0 64
    %1296 = vperm.xlu0 %1295, %v883
    %v1297 = vpop.permute.xlu0 %1296
    %1300 = vset.pattern.permute.xlu0 64
    %1301 = vperm.xlu0 %1300, %v884
    %v1302 = vpop.permute.xlu0 %1301
    %1305 = vset.pattern.permute.xlu0 64
    %1306 = vperm.xlu0 %1305, %v885
    %v1307 = vpop.permute.xlu0 %1306
    %v1309 = vmul.f32 %v1272, %v878
    %v1310 = vmul.f32 %v1277, %v879
    %v1311 = vmul.f32 %v1282, %v880
    %v1312 = vmul.f32 %v1287, %v881
    %v1313 = vmul.f32 %v1292, %v882
    %v1314 = vmul.f32 %v1297, %v883
    %v1315 = vmul.f32 %v1302, %v884
    %v1316 = vmul.f32 %v1307, %v885
    %1318 = vset.pattern.permute.xlu0 64
    %1319 = vperm.xlu0 %1318, %v886
    %v1320 = vpop.permute.xlu0 %1319
    %1323 = vset.pattern.permute.xlu0 64
    %1324 = vperm.xlu0 %1323, %v887
    %v1325 = vpop.permute.xlu0 %1324
    %1328 = vset.pattern.permute.xlu0 64
    %1329 = vperm.xlu0 %1328, %v888
    %v1330 = vpop.permute.xlu0 %1329
    %1333 = vset.pattern.permute.xlu0 64
    %1334 = vperm.xlu0 %1333, %v889
    %v1335 = vpop.permute.xlu0 %1334
    %1338 = vset.pattern.permute.xlu0 64
    %1339 = vperm.xlu0 %1338, %v890
    %v1340 = vpop.permute.xlu0 %1339
    %1343 = vset.pattern.permute.xlu0 64
    %1344 = vperm.xlu0 %1343, %v891
    %v1345 = vpop.permute.xlu0 %1344
    %1348 = vset.pattern.permute.xlu0 64
    %1349 = vperm.xlu0 %1348, %v892
    %v1350 = vpop.permute.xlu0 %1349
    %1353 = vset.pattern.permute.xlu0 64
    %1354 = vperm.xlu0 %1353, %v893
    %v1355 = vpop.permute.xlu0 %1354
    %v1357 = vmul.f32 %v1320, %v886
    %v1358 = vmul.f32 %v1325, %v887
    %v1359 = vmul.f32 %v1330, %v888
    %v1360 = vmul.f32 %v1335, %v889
    %v1361 = vmul.f32 %v1340, %v890
    %v1362 = vmul.f32 %v1345, %v891
    %v1363 = vmul.f32 %v1350, %v892
    %v1364 = vmul.f32 %v1355, %v893
    %1373 = vrot.lane.b32.xlu0 %v320, 64
    %v1374 = vpop.permute.xlu0 %1373
    %1375 = vrot.lane.b32.xlu0 %v321, 64
    %v1376 = vpop.permute.xlu0 %1375
    %1377 = vrot.lane.b32.xlu0 %v322, 64
    %v1378 = vpop.permute.xlu0 %1377
    %1379 = vrot.lane.b32.xlu0 %v323, 64
    %v1380 = vpop.permute.xlu0 %1379
    %1381 = vrot.lane.b32.xlu0 %v324, 64
    %v1382 = vpop.permute.xlu0 %1381
    %1383 = vrot.lane.b32.xlu0 %v325, 64
    %v1384 = vpop.permute.xlu0 %1383
    %1385 = vrot.lane.b32.xlu0 %v326, 64
    %v1386 = vpop.permute.xlu0 %1385
    %1387 = vrot.lane.b32.xlu0 %v327, 64
    %v1388 = vpop.permute.xlu0 %1387
    %v1397 = vmul.f32 %v878, %v1374
    %v1398 = vmul.f32 %v879, %v1376
    %v1399 = vmul.f32 %v880, %v1378
    %v1400 = vmul.f32 %v881, %v1380
    %v1401 = vmul.f32 %v882, %v1382
    %v1402 = vmul.f32 %v883, %v1384
    %v1403 = vmul.f32 %v884, %v1386
    %v1404 = vmul.f32 %v885, %v1388
    %1406 = vrot.lane.b32.xlu0 %v1357, 96
    %v1407 = vpop.permute.xlu0 %1406
    %vm1409 = vcmask 64512
    %v1411 = vsel %vm1409, %v1163, 0
    %1413 = vmatpush.msra.mxu0 0.0
    %1414 = vmatpush.msra.mxu0 0.0
    %1415 = vmatpush.msra.mxu0 0.0
    %1416 = vmatpush.msra.mxu0 0.0
    %1417 = vmatpush.msra.mxu0 0.0
    %1418 = vmatpush.msra.mxu0 0.0
    %1419 = vmatpush.msra.mxu0 0.0
    %1420 = vmatpush.msra.mxu0 0.0
    %1421 = vmatpush.msra.mxu0 0.0
    %1422 = vmatpush.msra.mxu0 0.0
    %1423 = vmatpush.msra.mxu0 0.0
    %1424 = vmatpush.msra.mxu0 0.0
    %1425 = vmatpush.msra.mxu0 0.0
    %1426 = vmatpush.msra.mxu0 0.0
    %1427 = vmatpush.msra.mxu0 0.0
    %1428 = vmatpush.msra.mxu0 %v1407
    %1429 = vmatmul.f32.gmra.mxu0 %v1411
    %v1430 = vpop.f32.mrf.mxu0
    %v1431 = vadd.f32 0.0, %v1430
    %1432 = vdwg.mxu0
    %1434 = vrot.lane.b32.xlu0 %v1358, 96
    %v1435 = vpop.permute.xlu0 %1434
    %v1438 = vsel %vm1409, %v1178, 0
    %1440 = vmatpush.msra.mxu0 0.0
    %1441 = vmatpush.msra.mxu0 0.0
    %1442 = vmatpush.msra.mxu0 0.0
    %1443 = vmatpush.msra.mxu0 0.0
    %1444 = vmatpush.msra.mxu0 0.0
    %1445 = vmatpush.msra.mxu0 0.0
    %1446 = vmatpush.msra.mxu0 0.0
    %1447 = vmatpush.msra.mxu0 0.0
    %1448 = vmatpush.msra.mxu0 0.0
    %1449 = vmatpush.msra.mxu0 0.0
    %1450 = vmatpush.msra.mxu0 0.0
    %1451 = vmatpush.msra.mxu0 0.0
    %1452 = vmatpush.msra.mxu0 0.0
    %1453 = vmatpush.msra.mxu0 0.0
    %1454 = vmatpush.msra.mxu0 0.0
    %1455 = vmatpush.msra.mxu0 %v1435
    %1456 = vmatmul.f32.gmra.mxu0 %v1438
    %v1457 = vpop.f32.mrf.mxu0
    %v1458 = vadd.f32 0.0, %v1457
    %1459 = vdwg.mxu0
    %1461 = vrot.lane.b32.xlu0 %v1359, 96
    %v1462 = vpop.permute.xlu0 %1461
    %v1465 = vsel %vm1409, %v1193, 0
    %1467 = vmatpush.msra.mxu0 0.0
    %1468 = vmatpush.msra.mxu0 0.0
    %1469 = vmatpush.msra.mxu0 0.0
    %1470 = vmatpush.msra.mxu0 0.0
    %1471 = vmatpush.msra.mxu0 0.0
    %1472 = vmatpush.msra.mxu0 0.0
    %1473 = vmatpush.msra.mxu0 0.0
    %1474 = vmatpush.msra.mxu0 0.0
    %1475 = vmatpush.msra.mxu0 0.0
    %1476 = vmatpush.msra.mxu0 0.0
    %1477 = vmatpush.msra.mxu0 0.0
    %1478 = vmatpush.msra.mxu0 0.0
    %1479 = vmatpush.msra.mxu0 0.0
    %1480 = vmatpush.msra.mxu0 0.0
    %1481 = vmatpush.msra.mxu0 0.0
    %1482 = vmatpush.msra.mxu0 %v1462
    %1483 = vmatmul.f32.gmra.mxu0 %v1465
    %v1484 = vpop.f32.mrf.mxu0
    %v1485 = vadd.f32 0.0, %v1484
    %1486 = vdwg.mxu0
    %1488 = vrot.lane.b32.xlu0 %v1360, 96
    %v1489 = vpop.permute.xlu0 %1488
    %v1492 = vsel %vm1409, %v1208, 0
    %1494 = vmatpush.msra.mxu0 0.0
    %1495 = vmatpush.msra.mxu0 0.0
    %1496 = vmatpush.msra.mxu0 0.0
    %1497 = vmatpush.msra.mxu0 0.0
    %1498 = vmatpush.msra.mxu0 0.0
    %1499 = vmatpush.msra.mxu0 0.0
    %1500 = vmatpush.msra.mxu0 0.0
    %1501 = vmatpush.msra.mxu0 0.0
    %1502 = vmatpush.msra.mxu0 0.0
    %1503 = vmatpush.msra.mxu0 0.0
    %1504 = vmatpush.msra.mxu0 0.0
    %1505 = vmatpush.msra.mxu0 0.0
    %1506 = vmatpush.msra.mxu0 0.0
    %1507 = vmatpush.msra.mxu0 0.0
    %1508 = vmatpush.msra.mxu0 0.0
    %1509 = vmatpush.msra.mxu0 %v1489
    %1510 = vmatmul.f32.gmra.mxu0 %v1492
    %v1511 = vpop.f32.mrf.mxu0
    %v1512 = vadd.f32 0.0, %v1511
    %1513 = vdwg.mxu0
    %1515 = vrot.lane.b32.xlu0 %v1361, 96
    %v1516 = vpop.permute.xlu0 %1515
    %v1519 = vsel %vm1409, %v1223, 0
    %1521 = vmatpush.msra.mxu0 0.0
    %1522 = vmatpush.msra.mxu0 0.0
    %1523 = vmatpush.msra.mxu0 0.0
    %1524 = vmatpush.msra.mxu0 0.0
    %1525 = vmatpush.msra.mxu0 0.0
    %1526 = vmatpush.msra.mxu0 0.0
    %1527 = vmatpush.msra.mxu0 0.0
    %1528 = vmatpush.msra.mxu0 0.0
    %1529 = vmatpush.msra.mxu0 0.0
    %1530 = vmatpush.msra.mxu0 0.0
    %1531 = vmatpush.msra.mxu0 0.0
    %1532 = vmatpush.msra.mxu0 0.0
    %1533 = vmatpush.msra.mxu0 0.0
    %1534 = vmatpush.msra.mxu0 0.0
    %1535 = vmatpush.msra.mxu0 0.0
    %1536 = vmatpush.msra.mxu0 %v1516
    %1537 = vmatmul.f32.gmra.mxu0 %v1519
    %v1538 = vpop.f32.mrf.mxu0
    %v1539 = vadd.f32 0.0, %v1538
    %1540 = vdwg.mxu0
    %1542 = vrot.lane.b32.xlu0 %v1362, 96
    %v1543 = vpop.permute.xlu0 %1542
    %v1546 = vsel %vm1409, %v1238, 0
    %1548 = vmatpush.msra.mxu0 0.0
    %1549 = vmatpush.msra.mxu0 0.0
    %1550 = vmatpush.msra.mxu0 0.0
    %1551 = vmatpush.msra.mxu0 0.0
    %1552 = vmatpush.msra.mxu0 0.0
    %1553 = vmatpush.msra.mxu0 0.0
    %1554 = vmatpush.msra.mxu0 0.0
    %1555 = vmatpush.msra.mxu0 0.0
    %1556 = vmatpush.msra.mxu0 0.0
    %1557 = vmatpush.msra.mxu0 0.0
    %1558 = vmatpush.msra.mxu0 0.0
    %1559 = vmatpush.msra.mxu0 0.0
    %1560 = vmatpush.msra.mxu0 0.0
    %1561 = vmatpush.msra.mxu0 0.0
    %1562 = vmatpush.msra.mxu0 0.0
    %1563 = vmatpush.msra.mxu0 %v1543
    %1564 = vmatmul.f32.gmra.mxu0 %v1546
    %v1565 = vpop.f32.mrf.mxu0
    %v1566 = vadd.f32 0.0, %v1565
    %1567 = vdwg.mxu0
    %1569 = vrot.lane.b32.xlu0 %v1363, 96
    %v1570 = vpop.permute.xlu0 %1569
    %v1573 = vsel %vm1409, %v1253, 0
    %1575 = vmatpush.msra.mxu0 0.0
    %1576 = vmatpush.msra.mxu0 0.0
    %1577 = vmatpush.msra.mxu0 0.0
    %1578 = vmatpush.msra.mxu0 0.0
    %1579 = vmatpush.msra.mxu0 0.0
    %1580 = vmatpush.msra.mxu0 0.0
    %1581 = vmatpush.msra.mxu0 0.0
    %1582 = vmatpush.msra.mxu0 0.0
    %1583 = vmatpush.msra.mxu0 0.0
    %1584 = vmatpush.msra.mxu0 0.0
    %1585 = vmatpush.msra.mxu0 0.0
    %1586 = vmatpush.msra.mxu0 0.0
    %1587 = vmatpush.msra.mxu0 0.0
    %1588 = vmatpush.msra.mxu0 0.0
    %1589 = vmatpush.msra.mxu0 0.0
    %1590 = vmatpush.msra.mxu0 %v1570
    %1591 = vmatmul.f32.gmra.mxu0 %v1573
    %v1592 = vpop.f32.mrf.mxu0
    %v1593 = vadd.f32 0.0, %v1592
    %1594 = vdwg.mxu0
    %1596 = vrot.lane.b32.xlu0 %v1364, 96
    %v1597 = vpop.permute.xlu0 %1596
    %v1600 = vsel %vm1409, %v1268, 0
    %1602 = vmatpush.msra.mxu0 0.0
    %1603 = vmatpush.msra.mxu0 0.0
    %1604 = vmatpush.msra.mxu0 0.0
    %1605 = vmatpush.msra.mxu0 0.0
    %1606 = vmatpush.msra.mxu0 0.0
    %1607 = vmatpush.msra.mxu0 0.0
    %1608 = vmatpush.msra.mxu0 0.0
    %1609 = vmatpush.msra.mxu0 0.0
    %1610 = vmatpush.msra.mxu0 0.0
    %1611 = vmatpush.msra.mxu0 0.0
    %1612 = vmatpush.msra.mxu0 0.0
    %1613 = vmatpush.msra.mxu0 0.0
    %1614 = vmatpush.msra.mxu0 0.0
    %1615 = vmatpush.msra.mxu0 0.0
    %1616 = vmatpush.msra.mxu0 0.0
    %1617 = vmatpush.msra.mxu0 %v1597
    %1618 = vmatmul.f32.gmra.mxu0 %v1600
    %v1619 = vpop.f32.mrf.mxu0
    %v1620 = vadd.f32 0.0, %v1619
    %1621 = vdwg.mxu0
    %1623 = vset.pattern.permute.xlu0 64
    %1624 = vperm.xlu0 %1623, %v1397
    %v1625 = vpop.permute.xlu0 %1624
    %1628 = vset.pattern.permute.xlu0 64
    %1629 = vperm.xlu0 %1628, %v1398
    %v1630 = vpop.permute.xlu0 %1629
    %1633 = vset.pattern.permute.xlu0 64
    %1634 = vperm.xlu0 %1633, %v1399
    %v1635 = vpop.permute.xlu0 %1634
    %1638 = vset.pattern.permute.xlu0 64
    %1639 = vperm.xlu0 %1638, %v1400
    %v1640 = vpop.permute.xlu0 %1639
    %1643 = vset.pattern.permute.xlu0 64
    %1644 = vperm.xlu0 %1643, %v1401
    %v1645 = vpop.permute.xlu0 %1644
    %1648 = vset.pattern.permute.xlu0 64
    %1649 = vperm.xlu0 %1648, %v1402
    %v1650 = vpop.permute.xlu0 %1649
    %1653 = vset.pattern.permute.xlu0 64
    %1654 = vperm.xlu0 %1653, %v1403
    %v1655 = vpop.permute.xlu0 %1654
    %1658 = vset.pattern.permute.xlu0 64
    %1659 = vperm.xlu0 %1658, %v1404
    %v1660 = vpop.permute.xlu0 %1659
    %v1662 = vmul.f32 %v1625, %v1431
    %v1663 = vmul.f32 %v1630, %v1458
    %v1664 = vmul.f32 %v1635, %v1485
    %v1665 = vmul.f32 %v1640, %v1512
    %v1666 = vmul.f32 %v1645, %v1539
    %v1667 = vmul.f32 %v1650, %v1566
    %v1668 = vmul.f32 %v1655, %v1593
    %v1669 = vmul.f32 %v1660, %v1620
    %v1670 = vadd.f32 %v530, %v1662
    %v1671 = vadd.f32 %v531, %v1663
    %v1672 = vadd.f32 %v532, %v1664
    %v1673 = vadd.f32 %v533, %v1665
    %v1674 = vadd.f32 %v534, %v1666
    %v1675 = vadd.f32 %v535, %v1667
    %v1676 = vadd.f32 %v536, %v1668
    %v1677 = vadd.f32 %v537, %v1669
    %1686 = vrot.lane.b32.xlu0 %v328, 64
    %v1687 = vpop.permute.xlu0 %1686
    %1688 = vrot.lane.b32.xlu0 %v329, 64
    %v1689 = vpop.permute.xlu0 %1688
    %1690 = vrot.lane.b32.xlu0 %v330, 64
    %v1691 = vpop.permute.xlu0 %1690
    %1692 = vrot.lane.b32.xlu0 %v331, 64
    %v1693 = vpop.permute.xlu0 %1692
    %1694 = vrot.lane.b32.xlu0 %v332, 64
    %v1695 = vpop.permute.xlu0 %1694
    %1696 = vrot.lane.b32.xlu0 %v333, 64
    %v1697 = vpop.permute.xlu0 %1696
    %1698 = vrot.lane.b32.xlu0 %v334, 64
    %v1699 = vpop.permute.xlu0 %1698
    %1700 = vrot.lane.b32.xlu0 %v335, 64
    %v1701 = vpop.permute.xlu0 %1700
    %v1710 = vmul.f32 %v886, %v1687
    %v1711 = vmul.f32 %v887, %v1689
    %v1712 = vmul.f32 %v888, %v1691
    %v1713 = vmul.f32 %v889, %v1693
    %v1714 = vmul.f32 %v890, %v1695
    %v1715 = vmul.f32 %v891, %v1697
    %v1716 = vmul.f32 %v892, %v1699
    %v1717 = vmul.f32 %v893, %v1701
    %1718 = vxpose.xlu0.b32.start [1/16] %v1163, 128
    %1719 = vxpose.xlu0.b32.cont [2/16] 0.0, 128
    %1720 = vxpose.xlu0.b32.cont [3/16] 0.0, 128
    %1721 = vxpose.xlu0.b32.cont [4/16] 0.0, 128
    %1722 = vxpose.xlu0.b32.cont [5/16] 0.0, 128
    %1723 = vxpose.xlu0.b32.cont [6/16] 0.0, 128
    %1724 = vxpose.xlu0.b32.cont [7/16] 0.0, 128
    %1725 = vxpose.xlu0.b32.cont [8/16] 0.0, 128
    %1726 = vxpose.xlu0.b32.cont [9/16] 0.0, 128
    %1727 = vxpose.xlu0.b32.cont [10/16] 0.0, 128
    %1728 = vxpose.xlu0.b32.cont [11/16] 0.0, 128
    %1729 = vxpose.xlu0.b32.cont [12/16] 0.0, 128
    %1730 = vxpose.xlu0.b32.cont [13/16] 0.0, 128
    %1731 = vxpose.xlu0.b32.cont [14/16] 0.0, 128
    %1732 = vxpose.xlu0.b32.cont [15/16] 0.0, 128
    %1733 = vxpose.xlu0.b32.end [16/16] 0.0, 128
    %v1734 = vpop.trf.xlu0
    %v1735 = vpop.trf.xlu0
    %v1736 = vpop.trf.xlu0
    %v1737 = vpop.trf.xlu0
    %v1738 = vpop.trf.xlu0
    %v1739 = vpop.trf.xlu0
    %v1740 = vpop.trf.xlu0
    %v1741 = vpop.trf.xlu0
    %v1742 = vpop.trf.xlu0
    %v1743 = vpop.trf.xlu0
    %v1744 = vpop.trf.xlu0
    %v1745 = vpop.trf.xlu0
    %v1746 = vpop.trf.xlu0
    %v1747 = vpop.trf.xlu0
    %v1748 = vpop.trf.xlu0
    %v1749 = vpop.trf.xlu0
    %1751 = vrot.lane.b32.xlu0 %v1309, 96
    %v1752 = vpop.permute.xlu0 %1751
    %v1755 = vsel %vm1409, %v1734, 0
    %1757 = vmatpush.msra.mxu0 0.0
    %1758 = vmatpush.msra.mxu0 0.0
    %1759 = vmatpush.msra.mxu0 0.0
    %1760 = vmatpush.msra.mxu0 0.0
    %1761 = vmatpush.msra.mxu0 0.0
    %1762 = vmatpush.msra.mxu0 0.0
    %1763 = vmatpush.msra.mxu0 0.0
    %1764 = vmatpush.msra.mxu0 0.0
    %1765 = vmatpush.msra.mxu0 0.0
    %1766 = vmatpush.msra.mxu0 0.0
    %1767 = vmatpush.msra.mxu0 0.0
    %1768 = vmatpush.msra.mxu0 0.0
    %1769 = vmatpush.msra.mxu0 0.0
    %1770 = vmatpush.msra.mxu0 0.0
    %1771 = vmatpush.msra.mxu0 0.0
    %1772 = vmatpush.msra.mxu0 %v1752
    %1773 = vmatmul.f32.gmra.mxu0 %v1755
    %v1774 = vpop.f32.mrf.mxu0
    %v1775 = vadd.f32 0.0, %v1774
    %1776 = vdwg.mxu0
    %1777 = vxpose.xlu0.b32.start [1/16] %v1178, 128
    %1778 = vxpose.xlu0.b32.cont [2/16] 0.0, 128
    %1779 = vxpose.xlu0.b32.cont [3/16] 0.0, 128
    %1780 = vxpose.xlu0.b32.cont [4/16] 0.0, 128
    %1781 = vxpose.xlu0.b32.cont [5/16] 0.0, 128
    %1782 = vxpose.xlu0.b32.cont [6/16] 0.0, 128
    %1783 = vxpose.xlu0.b32.cont [7/16] 0.0, 128
    %1784 = vxpose.xlu0.b32.cont [8/16] 0.0, 128
    %1785 = vxpose.xlu0.b32.cont [9/16] 0.0, 128
    %1786 = vxpose.xlu0.b32.cont [10/16] 0.0, 128
    %1787 = vxpose.xlu0.b32.cont [11/16] 0.0, 128
    %1788 = vxpose.xlu0.b32.cont [12/16] 0.0, 128
    %1789 = vxpose.xlu0.b32.cont [13/16] 0.0, 128
    %1790 = vxpose.xlu0.b32.cont [14/16] 0.0, 128
    %1791 = vxpose.xlu0.b32.cont [15/16] 0.0, 128
    %1792 = vxpose.xlu0.b32.end [16/16] 0.0, 128
    %v1793 = vpop.trf.xlu0
    %v1794 = vpop.trf.xlu0
    %v1795 = vpop.trf.xlu0
    %v1796 = vpop.trf.xlu0
    %v1797 = vpop.trf.xlu0
    %v1798 = vpop.trf.xlu0
    %v1799 = vpop.trf.xlu0
    %v1800 = vpop.trf.xlu0
    %v1801 = vpop.trf.xlu0
    %v1802 = vpop.trf.xlu0
    %v1803 = vpop.trf.xlu0
    %v1804 = vpop.trf.xlu0
    %v1805 = vpop.trf.xlu0
    %v1806 = vpop.trf.xlu0
    %v1807 = vpop.trf.xlu0
    %v1808 = vpop.trf.xlu0
    %1810 = vrot.lane.b32.xlu0 %v1310, 96
    %v1811 = vpop.permute.xlu0 %1810
    %v1814 = vsel %vm1409, %v1793, 0
    %1816 = vmatpush.msra.mxu0 0.0
    %1817 = vmatpush.msra.mxu0 0.0
    %1818 = vmatpush.msra.mxu0 0.0
    %1819 = vmatpush.msra.mxu0 0.0
    %1820 = vmatpush.msra.mxu0 0.0
    %1821 = vmatpush.msra.mxu0 0.0
    %1822 = vmatpush.msra.mxu0 0.0
    %1823 = vmatpush.msra.mxu0 0.0
    %1824 = vmatpush.msra.mxu0 0.0
    %1825 = vmatpush.msra.mxu0 0.0
    %1826 = vmatpush.msra.mxu0 0.0
    %1827 = vmatpush.msra.mxu0 0.0
    %1828 = vmatpush.msra.mxu0 0.0
    %1829 = vmatpush.msra.mxu0 0.0
    %1830 = vmatpush.msra.mxu0 0.0
    %1831 = vmatpush.msra.mxu0 %v1811
    %1832 = vmatmul.f32.gmra.mxu0 %v1814
    %v1833 = vpop.f32.mrf.mxu0
    %v1834 = vadd.f32 0.0, %v1833
    %1835 = vdwg.mxu0
    %1836 = vxpose.xlu0.b32.start [1/16] %v1193, 128
    %1837 = vxpose.xlu0.b32.cont [2/16] 0.0, 128
    %1838 = vxpose.xlu0.b32.cont [3/16] 0.0, 128
    %1839 = vxpose.xlu0.b32.cont [4/16] 0.0, 128
    %1840 = vxpose.xlu0.b32.cont [5/16] 0.0, 128
    %1841 = vxpose.xlu0.b32.cont [6/16] 0.0, 128
    %1842 = vxpose.xlu0.b32.cont [7/16] 0.0, 128
    %1843 = vxpose.xlu0.b32.cont [8/16] 0.0, 128
    %1844 = vxpose.xlu0.b32.cont [9/16] 0.0, 128
    %1845 = vxpose.xlu0.b32.cont [10/16] 0.0, 128
    %1846 = vxpose.xlu0.b32.cont [11/16] 0.0, 128
    %1847 = vxpose.xlu0.b32.cont [12/16] 0.0, 128
    %1848 = vxpose.xlu0.b32.cont [13/16] 0.0, 128
    %1849 = vxpose.xlu0.b32.cont [14/16] 0.0, 128
    %1850 = vxpose.xlu0.b32.cont [15/16] 0.0, 128
    %1851 = vxpose.xlu0.b32.end [16/16] 0.0, 128
    %v1852 = vpop.trf.xlu0
    %v1853 = vpop.trf.xlu0
    %v1854 = vpop.trf.xlu0
    %v1855 = vpop.trf.xlu0
    %v1856 = vpop.trf.xlu0
    %v1857 = vpop.trf.xlu0
    %v1858 = vpop.trf.xlu0
    %v1859 = vpop.trf.xlu0
    %v1860 = vpop.trf.xlu0
    %v1861 = vpop.trf.xlu0
    %v1862 = vpop.trf.xlu0
    %v1863 = vpop.trf.xlu0
    %v1864 = vpop.trf.xlu0
    %v1865 = vpop.trf.xlu0
    %v1866 = vpop.trf.xlu0
    %v1867 = vpop.trf.xlu0
    %1869 = vrot.lane.b32.xlu0 %v1311, 96
    %v1870 = vpop.permute.xlu0 %1869
    %v1873 = vsel %vm1409, %v1852, 0
    %1875 = vmatpush.msra.mxu0 0.0
    %1876 = vmatpush.msra.mxu0 0.0
    %1877 = vmatpush.msra.mxu0 0.0
    %1878 = vmatpush.msra.mxu0 0.0
    %1879 = vmatpush.msra.mxu0 0.0
    %1880 = vmatpush.msra.mxu0 0.0
    %1881 = vmatpush.msra.mxu0 0.0
    %1882 = vmatpush.msra.mxu0 0.0
    %1883 = vmatpush.msra.mxu0 0.0
    %1884 = vmatpush.msra.mxu0 0.0
    %1885 = vmatpush.msra.mxu0 0.0
    %1886 = vmatpush.msra.mxu0 0.0
    %1887 = vmatpush.msra.mxu0 0.0
    %1888 = vmatpush.msra.mxu0 0.0
    %1889 = vmatpush.msra.mxu0 0.0
    %1890 = vmatpush.msra.mxu0 %v1870
    %1891 = vmatmul.f32.gmra.mxu0 %v1873
    %v1892 = vpop.f32.mrf.mxu0
    %v1893 = vadd.f32 0.0, %v1892
    %1894 = vdwg.mxu0
    %1895 = vxpose.xlu0.b32.start [1/16] %v1208, 128
    %1896 = vxpose.xlu0.b32.cont [2/16] 0.0, 128
    %1897 = vxpose.xlu0.b32.cont [3/16] 0.0, 128
    %1898 = vxpose.xlu0.b32.cont [4/16] 0.0, 128
    %1899 = vxpose.xlu0.b32.cont [5/16] 0.0, 128
    %1900 = vxpose.xlu0.b32.cont [6/16] 0.0, 128
    %1901 = vxpose.xlu0.b32.cont [7/16] 0.0, 128
    %1902 = vxpose.xlu0.b32.cont [8/16] 0.0, 128
    %1903 = vxpose.xlu0.b32.cont [9/16] 0.0, 128
    %1904 = vxpose.xlu0.b32.cont [10/16] 0.0, 128
    %1905 = vxpose.xlu0.b32.cont [11/16] 0.0, 128
    %1906 = vxpose.xlu0.b32.cont [12/16] 0.0, 128
    %1907 = vxpose.xlu0.b32.cont [13/16] 0.0, 128
    %1908 = vxpose.xlu0.b32.cont [14/16] 0.0, 128
    %1909 = vxpose.xlu0.b32.cont [15/16] 0.0, 128
    %1910 = vxpose.xlu0.b32.end [16/16] 0.0, 128
    %v1911 = vpop.trf.xlu0
    %v1912 = vpop.trf.xlu0
    %v1913 = vpop.trf.xlu0
    %v1914 = vpop.trf.xlu0
    %v1915 = vpop.trf.xlu0
    %v1916 = vpop.trf.xlu0
    %v1917 = vpop.trf.xlu0
    %v1918 = vpop.trf.xlu0
    %v1919 = vpop.trf.xlu0
    %v1920 = vpop.trf.xlu0
    %v1921 = vpop.trf.xlu0
    %v1922 = vpop.trf.xlu0
    %v1923 = vpop.trf.xlu0
    %v1924 = vpop.trf.xlu0
    %v1925 = vpop.trf.xlu0
    %v1926 = vpop.trf.xlu0
    %1928 = vrot.lane.b32.xlu0 %v1312, 96
    %v1929 = vpop.permute.xlu0 %1928
    %v1932 = vsel %vm1409, %v1911, 0
    %1934 = vmatpush.msra.mxu0 0.0
    %1935 = vmatpush.msra.mxu0 0.0
    %1936 = vmatpush.msra.mxu0 0.0
    %1937 = vmatpush.msra.mxu0 0.0
    %1938 = vmatpush.msra.mxu0 0.0
    %1939 = vmatpush.msra.mxu0 0.0
    %1940 = vmatpush.msra.mxu0 0.0
    %1941 = vmatpush.msra.mxu0 0.0
    %1942 = vmatpush.msra.mxu0 0.0
    %1943 = vmatpush.msra.mxu0 0.0
    %1944 = vmatpush.msra.mxu0 0.0
    %1945 = vmatpush.msra.mxu0 0.0
    %1946 = vmatpush.msra.mxu0 0.0
    %1947 = vmatpush.msra.mxu0 0.0
    %1948 = vmatpush.msra.mxu0 0.0
    %1949 = vmatpush.msra.mxu0 %v1929
    %1950 = vmatmul.f32.gmra.mxu0 %v1932
    %v1951 = vpop.f32.mrf.mxu0
    %v1952 = vadd.f32 0.0, %v1951
    %1953 = vdwg.mxu0
    %1954 = vxpose.xlu0.b32.start [1/16] %v1223, 128
    %1955 = vxpose.xlu0.b32.cont [2/16] 0.0, 128
    %1956 = vxpose.xlu0.b32.cont [3/16] 0.0, 128
    %1957 = vxpose.xlu0.b32.cont [4/16] 0.0, 128
    %1958 = vxpose.xlu0.b32.cont [5/16] 0.0, 128
    %1959 = vxpose.xlu0.b32.cont [6/16] 0.0, 128
    %1960 = vxpose.xlu0.b32.cont [7/16] 0.0, 128
    %1961 = vxpose.xlu0.b32.cont [8/16] 0.0, 128
    %1962 = vxpose.xlu0.b32.cont [9/16] 0.0, 128
    %1963 = vxpose.xlu0.b32.cont [10/16] 0.0, 128
    %1964 = vxpose.xlu0.b32.cont [11/16] 0.0, 128
    %1965 = vxpose.xlu0.b32.cont [12/16] 0.0, 128
    %1966 = vxpose.xlu0.b32.cont [13/16] 0.0, 128
    %1967 = vxpose.xlu0.b32.cont [14/16] 0.0, 128
    %1968 = vxpose.xlu0.b32.cont [15/16] 0.0, 128
    %1969 = vxpose.xlu0.b32.end [16/16] 0.0, 128
    %v1970 = vpop.trf.xlu0
    %v1971 = vpop.trf.xlu0
    %v1972 = vpop.trf.xlu0
    %v1973 = vpop.trf.xlu0
    %v1974 = vpop.trf.xlu0
    %v1975 = vpop.trf.xlu0
    %v1976 = vpop.trf.xlu0
    %v1977 = vpop.trf.xlu0
    %v1978 = vpop.trf.xlu0
    %v1979 = vpop.trf.xlu0
    %v1980 = vpop.trf.xlu0
    %v1981 = vpop.trf.xlu0
    %v1982 = vpop.trf.xlu0
    %v1983 = vpop.trf.xlu0
    %v1984 = vpop.trf.xlu0
    %v1985 = vpop.trf.xlu0
    %1987 = vrot.lane.b32.xlu0 %v1313, 96
    %v1988 = vpop.permute.xlu0 %1987
    %v1991 = vsel %vm1409, %v1970, 0
    %1993 = vmatpush.msra.mxu0 0.0
    %1994 = vmatpush.msra.mxu0 0.0
    %1995 = vmatpush.msra.mxu0 0.0
    %1996 = vmatpush.msra.mxu0 0.0
    %1997 = vmatpush.msra.mxu0 0.0
    %1998 = vmatpush.msra.mxu0 0.0
    %1999 = vmatpush.msra.mxu0 0.0
    %2000 = vmatpush.msra.mxu0 0.0
    %2001 = vmatpush.msra.mxu0 0.0
    %2002 = vmatpush.msra.mxu0 0.0
    %2003 = vmatpush.msra.mxu0 0.0
    %2004 = vmatpush.msra.mxu0 0.0
    %2005 = vmatpush.msra.mxu0 0.0
    %2006 = vmatpush.msra.mxu0 0.0
    %2007 = vmatpush.msra.mxu0 0.0
    %2008 = vmatpush.msra.mxu0 %v1988
    %2009 = vmatmul.f32.gmra.mxu0 %v1991
    %v2010 = vpop.f32.mrf.mxu0
    %v2011 = vadd.f32 0.0, %v2010
    %2012 = vdwg.mxu0
    %2013 = vxpose.xlu0.b32.start [1/16] %v1238, 128
    %2014 = vxpose.xlu0.b32.cont [2/16] 0.0, 128
    %2015 = vxpose.xlu0.b32.cont [3/16] 0.0, 128
    %2016 = vxpose.xlu0.b32.cont [4/16] 0.0, 128
    %2017 = vxpose.xlu0.b32.cont [5/16] 0.0, 128
    %2018 = vxpose.xlu0.b32.cont [6/16] 0.0, 128
    %2019 = vxpose.xlu0.b32.cont [7/16] 0.0, 128
    %2020 = vxpose.xlu0.b32.cont [8/16] 0.0, 128
    %2021 = vxpose.xlu0.b32.cont [9/16] 0.0, 128
    %2022 = vxpose.xlu0.b32.cont [10/16] 0.0, 128
    %2023 = vxpose.xlu0.b32.cont [11/16] 0.0, 128
    %2024 = vxpose.xlu0.b32.cont [12/16] 0.0, 128
    %2025 = vxpose.xlu0.b32.cont [13/16] 0.0, 128
    %2026 = vxpose.xlu0.b32.cont [14/16] 0.0, 128
    %2027 = vxpose.xlu0.b32.cont [15/16] 0.0, 128
    %2028 = vxpose.xlu0.b32.end [16/16] 0.0, 128
    %v2029 = vpop.trf.xlu0
    %v2030 = vpop.trf.xlu0
    %v2031 = vpop.trf.xlu0
    %v2032 = vpop.trf.xlu0
    %v2033 = vpop.trf.xlu0
    %v2034 = vpop.trf.xlu0
    %v2035 = vpop.trf.xlu0
    %v2036 = vpop.trf.xlu0
    %v2037 = vpop.trf.xlu0
    %v2038 = vpop.trf.xlu0
    %v2039 = vpop.trf.xlu0
    %v2040 = vpop.trf.xlu0
    %v2041 = vpop.trf.xlu0
    %v2042 = vpop.trf.xlu0
    %v2043 = vpop.trf.xlu0
    %v2044 = vpop.trf.xlu0
    %2046 = vrot.lane.b32.xlu0 %v1314, 96
    %v2047 = vpop.permute.xlu0 %2046
    %v2050 = vsel %vm1409, %v2029, 0
    %2052 = vmatpush.msra.mxu0 0.0
    %2053 = vmatpush.msra.mxu0 0.0
    %2054 = vmatpush.msra.mxu0 0.0
    %2055 = vmatpush.msra.mxu0 0.0
    %2056 = vmatpush.msra.mxu0 0.0
    %2057 = vmatpush.msra.mxu0 0.0
    %2058 = vmatpush.msra.mxu0 0.0
    %2059 = vmatpush.msra.mxu0 0.0
    %2060 = vmatpush.msra.mxu0 0.0
    %2061 = vmatpush.msra.mxu0 0.0
    %2062 = vmatpush.msra.mxu0 0.0
    %2063 = vmatpush.msra.mxu0 0.0
    %2064 = vmatpush.msra.mxu0 0.0
    %2065 = vmatpush.msra.mxu0 0.0
    %2066 = vmatpush.msra.mxu0 0.0
    %2067 = vmatpush.msra.mxu0 %v2047
    %2068 = vmatmul.f32.gmra.mxu0 %v2050
    %v2069 = vpop.f32.mrf.mxu0
    %v2070 = vadd.f32 0.0, %v2069
    %2071 = vdwg.mxu0
    %2072 = vxpose.xlu0.b32.start [1/16] %v1253, 128
    %2073 = vxpose.xlu0.b32.cont [2/16] 0.0, 128
    %2074 = vxpose.xlu0.b32.cont [3/16] 0.0, 128
    %2075 = vxpose.xlu0.b32.cont [4/16] 0.0, 128
    %2076 = vxpose.xlu0.b32.cont [5/16] 0.0, 128
    %2077 = vxpose.xlu0.b32.cont [6/16] 0.0, 128
    %2078 = vxpose.xlu0.b32.cont [7/16] 0.0, 128
    %2079 = vxpose.xlu0.b32.cont [8/16] 0.0, 128
    %2080 = vxpose.xlu0.b32.cont [9/16] 0.0, 128
    %2081 = vxpose.xlu0.b32.cont [10/16] 0.0, 128
    %2082 = vxpose.xlu0.b32.cont [11/16] 0.0, 128
    %2083 = vxpose.xlu0.b32.cont [12/16] 0.0, 128
    %2084 = vxpose.xlu0.b32.cont [13/16] 0.0, 128
    %2085 = vxpose.xlu0.b32.cont [14/16] 0.0, 128
    %2086 = vxpose.xlu0.b32.cont [15/16] 0.0, 128
    %2087 = vxpose.xlu0.b32.end [16/16] 0.0, 128
    %v2088 = vpop.trf.xlu0
    %v2089 = vpop.trf.xlu0
    %v2090 = vpop.trf.xlu0
    %v2091 = vpop.trf.xlu0
    %v2092 = vpop.trf.xlu0
    %v2093 = vpop.trf.xlu0
    %v2094 = vpop.trf.xlu0
    %v2095 = vpop.trf.xlu0
    %v2096 = vpop.trf.xlu0
    %v2097 = vpop.trf.xlu0
    %v2098 = vpop.trf.xlu0
    %v2099 = vpop.trf.xlu0
    %v2100 = vpop.trf.xlu0
    %v2101 = vpop.trf.xlu0
    %v2102 = vpop.trf.xlu0
    %v2103 = vpop.trf.xlu0
    %2105 = vrot.lane.b32.xlu0 %v1315, 96
    %v2106 = vpop.permute.xlu0 %2105
    %v2109 = vsel %vm1409, %v2088, 0
    %2111 = vmatpush.msra.mxu0 0.0
    %2112 = vmatpush.msra.mxu0 0.0
    %2113 = vmatpush.msra.mxu0 0.0
    %2114 = vmatpush.msra.mxu0 0.0
    %2115 = vmatpush.msra.mxu0 0.0
    %2116 = vmatpush.msra.mxu0 0.0
    %2117 = vmatpush.msra.mxu0 0.0
    %2118 = vmatpush.msra.mxu0 0.0
    %2119 = vmatpush.msra.mxu0 0.0
    %2120 = vmatpush.msra.mxu0 0.0
    %2121 = vmatpush.msra.mxu0 0.0
    %2122 = vmatpush.msra.mxu0 0.0
    %2123 = vmatpush.msra.mxu0 0.0
    %2124 = vmatpush.msra.mxu0 0.0
    %2125 = vmatpush.msra.mxu0 0.0
    %2126 = vmatpush.msra.mxu0 %v2106
    %2127 = vmatmul.f32.gmra.mxu0 %v2109
    %v2128 = vpop.f32.mrf.mxu0
    %v2129 = vadd.f32 0.0, %v2128
    %2130 = vdwg.mxu0
    %2131 = vxpose.xlu0.b32.start [1/16] %v1268, 128
    %2132 = vxpose.xlu0.b32.cont [2/16] 0.0, 128
    %2133 = vxpose.xlu0.b32.cont [3/16] 0.0, 128
    %2134 = vxpose.xlu0.b32.cont [4/16] 0.0, 128
    %2135 = vxpose.xlu0.b32.cont [5/16] 0.0, 128
    %2136 = vxpose.xlu0.b32.cont [6/16] 0.0, 128
    %2137 = vxpose.xlu0.b32.cont [7/16] 0.0, 128
    %2138 = vxpose.xlu0.b32.cont [8/16] 0.0, 128
    %2139 = vxpose.xlu0.b32.cont [9/16] 0.0, 128
    %2140 = vxpose.xlu0.b32.cont [10/16] 0.0, 128
    %2141 = vxpose.xlu0.b32.cont [11/16] 0.0, 128
    %2142 = vxpose.xlu0.b32.cont [12/16] 0.0, 128
    %2143 = vxpose.xlu0.b32.cont [13/16] 0.0, 128
    %2144 = vxpose.xlu0.b32.cont [14/16] 0.0, 128
    %2145 = vxpose.xlu0.b32.cont [15/16] 0.0, 128
    %2146 = vxpose.xlu0.b32.end [16/16] 0.0, 128
    %v2147 = vpop.trf.xlu0
    %v2148 = vpop.trf.xlu0
    %v2149 = vpop.trf.xlu0
    %v2150 = vpop.trf.xlu0
    %v2151 = vpop.trf.xlu0
    %v2152 = vpop.trf.xlu0
    %v2153 = vpop.trf.xlu0
    %v2154 = vpop.trf.xlu0
    %v2155 = vpop.trf.xlu0
    %v2156 = vpop.trf.xlu0
    %v2157 = vpop.trf.xlu0
    %v2158 = vpop.trf.xlu0
    %v2159 = vpop.trf.xlu0
    %v2160 = vpop.trf.xlu0
    %v2161 = vpop.trf.xlu0
    %v2162 = vpop.trf.xlu0
    %2164 = vrot.lane.b32.xlu0 %v1316, 96
    %v2165 = vpop.permute.xlu0 %2164
    %v2168 = vsel %vm1409, %v2147, 0
    %2170 = vmatpush.msra.mxu0 0.0
    %2171 = vmatpush.msra.mxu0 0.0
    %2172 = vmatpush.msra.mxu0 0.0
    %2173 = vmatpush.msra.mxu0 0.0
    %2174 = vmatpush.msra.mxu0 0.0
    %2175 = vmatpush.msra.mxu0 0.0
    %2176 = vmatpush.msra.mxu0 0.0
    %2177 = vmatpush.msra.mxu0 0.0
    %2178 = vmatpush.msra.mxu0 0.0
    %2179 = vmatpush.msra.mxu0 0.0
    %2180 = vmatpush.msra.mxu0 0.0
    %2181 = vmatpush.msra.mxu0 0.0
    %2182 = vmatpush.msra.mxu0 0.0
    %2183 = vmatpush.msra.mxu0 0.0
    %2184 = vmatpush.msra.mxu0 0.0
    %2185 = vmatpush.msra.mxu0 %v2165
    %2186 = vmatmul.f32.gmra.mxu0 %v2168
    %v2187 = vpop.f32.mrf.mxu0
    %v2188 = vadd.f32 0.0, %v2187
    %2189 = vdwg.mxu0
    %2191 = vset.pattern.permute.xlu0 64
    %2192 = vperm.xlu0 %2191, %v1710
    %v2193 = vpop.permute.xlu0 %2192
    %2196 = vset.pattern.permute.xlu0 64
    %2197 = vperm.xlu0 %2196, %v1711
    %v2198 = vpop.permute.xlu0 %2197
    %2201 = vset.pattern.permute.xlu0 64
    %2202 = vperm.xlu0 %2201, %v1712
    %v2203 = vpop.permute.xlu0 %2202
    %2206 = vset.pattern.permute.xlu0 64
    %2207 = vperm.xlu0 %2206, %v1713
    %v2208 = vpop.permute.xlu0 %2207
    %2211 = vset.pattern.permute.xlu0 64
    %2212 = vperm.xlu0 %2211, %v1714
    %v2213 = vpop.permute.xlu0 %2212
    %2216 = vset.pattern.permute.xlu0 64
    %2217 = vperm.xlu0 %2216, %v1715
    %v2218 = vpop.permute.xlu0 %2217
    %2221 = vset.pattern.permute.xlu0 64
    %2222 = vperm.xlu0 %2221, %v1716
    %v2223 = vpop.permute.xlu0 %2222
    %2226 = vset.pattern.permute.xlu0 64
    %2227 = vperm.xlu0 %2226, %v1717
    %v2228 = vpop.permute.xlu0 %2227
    %v2230 = vmul.f32 %v2193, %v1775
    %v2231 = vmul.f32 %v2198, %v1834
    %v2232 = vmul.f32 %v2203, %v1893
    %v2233 = vmul.f32 %v2208, %v1952
    %v2234 = vmul.f32 %v2213, %v2011
    %v2235 = vmul.f32 %v2218, %v2070
    %v2236 = vmul.f32 %v2223, %v2129
    %v2237 = vmul.f32 %v2228, %v2188
    %v2238 = vadd.f32 %v724, %v2230
    %v2239 = vadd.f32 %v725, %v2231
    %v2240 = vadd.f32 %v726, %v2232
    %v2241 = vadd.f32 %v727, %v2233
    %v2242 = vadd.f32 %v728, %v2234
    %v2243 = vadd.f32 %v729, %v2235
    %v2244 = vadd.f32 %v730, %v2236
    %v2245 = vadd.f32 %v731, %v2237
    %s2246 = scalar_lea.vmem %s6, 4
    %v2247 = vld [vmem:[%s2246] sm:$0xf]
    %v2248 = vsel %vm155, %v1670, 0.0
    %2249 = vadd.xlane.f32.xlu0 %v2248
    %v2250 = vpop.xlane.xlu0 %2249
    %v2251 = vsel %vm155, %v1671, 0.0
    %2252 = vadd.xlane.f32.xlu0 %v2251
    %v2253 = vpop.xlane.xlu0 %2252
    %v2254 = vsel %vm155, %v1672, 0.0
    %2255 = vadd.xlane.f32.xlu0 %v2254
    %v2256 = vpop.xlane.xlu0 %2255
    %v2257 = vsel %vm155, %v1673, 0.0
    %2258 = vadd.xlane.f32.xlu0 %v2257
    %v2259 = vpop.xlane.xlu0 %2258
    %v2260 = vsel %vm155, %v1674, 0.0
    %2261 = vadd.xlane.f32.xlu0 %v2260
    %v2262 = vpop.xlane.xlu0 %2261
    %v2263 = vsel %vm155, %v1675, 0.0
    %2264 = vadd.xlane.f32.xlu0 %v2263
    %v2265 = vpop.xlane.xlu0 %2264
    %v2266 = vsel %vm155, %v1676, 0.0
    %2267 = vadd.xlane.f32.xlu0 %v2266
    %v2268 = vpop.xlane.xlu0 %2267
    %v2269 = vsel %vm155, %v1677, 0.0
    %2270 = vadd.xlane.f32.xlu0 %v2269
    %v2271 = vpop.xlane.xlu0 %2270
    %v2272 = vmul.f32 %v2250, %v367
    %v2273 = vmul.f32 %v2253, %v367
    %v2274 = vmul.f32 %v2256, %v367
    %v2275 = vmul.f32 %v2259, %v367
    %v2276 = vmul.f32 %v2262, %v367
    %v2277 = vmul.f32 %v2265, %v367
    %v2278 = vmul.f32 %v2268, %v367
    %v2279 = vmul.f32 %v2271, %v367
    %v2280 = vsub.f32 %v1670, %v2272
    %v2281 = vsub.f32 %v1671, %v2273
    %v2282 = vsub.f32 %v1672, %v2274
    %v2283 = vsub.f32 %v1673, %v2275
    %v2284 = vsub.f32 %v1674, %v2276
    %v2285 = vsub.f32 %v1675, %v2277
    %v2286 = vsub.f32 %v1676, %v2278
    %v2287 = vsub.f32 %v1677, %v2279
    %v2288 = vmul.f32 %v2280, %v2280
    %v2289 = vmul.f32 %v2281, %v2281
    %v2290 = vmul.f32 %v2282, %v2282
    %v2291 = vmul.f32 %v2283, %v2283
    %v2292 = vmul.f32 %v2284, %v2284
    %v2293 = vmul.f32 %v2285, %v2285
    %v2294 = vmul.f32 %v2286, %v2286
    %v2295 = vmul.f32 %v2287, %v2287
    %v2296 = vsel %vm155, %v2288, 0.0
    %2297 = vadd.xlane.f32.xlu0 %v2296
    %v2298 = vpop.xlane.xlu0 %2297
    %v2299 = vsel %vm155, %v2289, 0.0
    %2300 = vadd.xlane.f32.xlu0 %v2299
    %v2301 = vpop.xlane.xlu0 %2300
    %v2302 = vsel %vm155, %v2290, 0.0
    %2303 = vadd.xlane.f32.xlu0 %v2302
    %v2304 = vpop.xlane.xlu0 %2303
    %v2305 = vsel %vm155, %v2291, 0.0
    %2306 = vadd.xlane.f32.xlu0 %v2305
    %v2307 = vpop.xlane.xlu0 %2306
    %v2308 = vsel %vm155, %v2292, 0.0
    %2309 = vadd.xlane.f32.xlu0 %v2308
    %v2310 = vpop.xlane.xlu0 %2309
    %v2311 = vsel %vm155, %v2293, 0.0
    %2312 = vadd.xlane.f32.xlu0 %v2311
    %v2313 = vpop.xlane.xlu0 %2312
    %v2314 = vsel %vm155, %v2294, 0.0
    %2315 = vadd.xlane.f32.xlu0 %v2314
    %v2316 = vpop.xlane.xlu0 %2315
    %v2317 = vsel %vm155, %v2295, 0.0
    %2318 = vadd.xlane.f32.xlu0 %v2317
    %v2319 = vpop.xlane.xlu0 %2318
    %v2320 = vmul.f32 %v2298, %v367
    %v2321 = vmul.f32 %v2301, %v367
    %v2322 = vmul.f32 %v2304, %v367
    %v2323 = vmul.f32 %v2307, %v367
    %v2324 = vmul.f32 %v2310, %v367
    %v2325 = vmul.f32 %v2313, %v367
    %v2326 = vmul.f32 %v2316, %v367
    %v2327 = vmul.f32 %v2319, %v367
    %v2328 = vadd.f32 %v2320, 1e-05
    %v2329 = vadd.f32 %v2321, 1e-05
    %v2330 = vadd.f32 %v2322, 1e-05
    %v2331 = vadd.f32 %v2323, 1e-05
    %v2332 = vadd.f32 %v2324, 1e-05
    %v2333 = vadd.f32 %v2325, 1e-05
    %v2334 = vadd.f32 %v2326, 1e-05
    %v2335 = vadd.f32 %v2327, 1e-05
    %v2336 = vrsqrt.pop %v2328
    %v2337 = vmul.f32 %v2336, %v2328
    %v2338 = vmul.f32 %v2337, %v2336
    %v2339 = vmul.f32 0.5, %v2338
    %v2340 = vsub.f32 1.5, %v2339
    %v2341 = vmul.f32 %v2336, %v2340
    %vm2342 = vweird.f32 %v2328
    %vm2343 = vweird.f32 %v2336
    %vm2344 = vmor %vm2342, %vm2343
    %v2345 = vsel %vm2344, %v2336, %v2341
    %v2346 = vrsqrt.pop %v2329
    %v2347 = vmul.f32 %v2346, %v2329
    %v2348 = vmul.f32 %v2347, %v2346
    %v2349 = vmul.f32 0.5, %v2348
    %v2350 = vsub.f32 1.5, %v2349
    %v2351 = vmul.f32 %v2346, %v2350
    %vm2352 = vweird.f32 %v2329
    %vm2353 = vweird.f32 %v2346
    %vm2354 = vmor %vm2352, %vm2353
    %v2355 = vsel %vm2354, %v2346, %v2351
    %v2356 = vrsqrt.pop %v2330
    %v2357 = vmul.f32 %v2356, %v2330
    %v2358 = vmul.f32 %v2357, %v2356
    %v2359 = vmul.f32 0.5, %v2358
    %v2360 = vsub.f32 1.5, %v2359
    %v2361 = vmul.f32 %v2356, %v2360
    %vm2362 = vweird.f32 %v2330
    %vm2363 = vweird.f32 %v2356
    %vm2364 = vmor %vm2362, %vm2363
    %v2365 = vsel %vm2364, %v2356, %v2361
    %v2366 = vrsqrt.pop %v2331
    %v2367 = vmul.f32 %v2366, %v2331
    %v2368 = vmul.f32 %v2367, %v2366
    %v2369 = vmul.f32 0.5, %v2368
    %v2370 = vsub.f32 1.5, %v2369
    %v2371 = vmul.f32 %v2366, %v2370
    %vm2372 = vweird.f32 %v2331
    %vm2373 = vweird.f32 %v2366
    %vm2374 = vmor %vm2372, %vm2373
    %v2375 = vsel %vm2374, %v2366, %v2371
    %v2376 = vrsqrt.pop %v2332
    %v2377 = vmul.f32 %v2376, %v2332
    %v2378 = vmul.f32 %v2377, %v2376
    %v2379 = vmul.f32 0.5, %v2378
    %v2380 = vsub.f32 1.5, %v2379
    %v2381 = vmul.f32 %v2376, %v2380
    %vm2382 = vweird.f32 %v2332
    %vm2383 = vweird.f32 %v2376
    %vm2384 = vmor %vm2382, %vm2383
    %v2385 = vsel %vm2384, %v2376, %v2381
    %v2386 = vrsqrt.pop %v2333
    %v2387 = vmul.f32 %v2386, %v2333
    %v2388 = vmul.f32 %v2387, %v2386
    %v2389 = vmul.f32 0.5, %v2388
    %v2390 = vsub.f32 1.5, %v2389
    %v2391 = vmul.f32 %v2386, %v2390
    %vm2392 = vweird.f32 %v2333
    %vm2393 = vweird.f32 %v2386
    %vm2394 = vmor %vm2392, %vm2393
    %v2395 = vsel %vm2394, %v2386, %v2391
    %v2396 = vrsqrt.pop %v2334
    %v2397 = vmul.f32 %v2396, %v2334
    %v2398 = vmul.f32 %v2397, %v2396
    %v2399 = vmul.f32 0.5, %v2398
    %v2400 = vsub.f32 1.5, %v2399
    %v2401 = vmul.f32 %v2396, %v2400
    %vm2402 = vweird.f32 %v2334
    %vm2403 = vweird.f32 %v2396
    %vm2404 = vmor %vm2402, %vm2403
    %v2405 = vsel %vm2404, %v2396, %v2401
    %v2406 = vrsqrt.pop %v2335
    %v2407 = vmul.f32 %v2406, %v2335
    %v2408 = vmul.f32 %v2407, %v2406
    %v2409 = vmul.f32 0.5, %v2408
    %v2410 = vsub.f32 1.5, %v2409
    %v2411 = vmul.f32 %v2406, %v2410
    %vm2412 = vweird.f32 %v2335
    %vm2413 = vweird.f32 %v2406
    %vm2414 = vmor %vm2412, %vm2413
    %v2415 = vsel %vm2414, %v2406, %v2411
    %v2416 = vmul.f32 %v2280, %v2345
    %v2417 = vmul.f32 %v2281, %v2355
    %v2418 = vmul.f32 %v2282, %v2365
    %v2419 = vmul.f32 %v2283, %v2375
    %v2420 = vmul.f32 %v2284, %v2385
    %v2421 = vmul.f32 %v2285, %v2395
    %v2422 = vmul.f32 %v2286, %v2405
    %v2423 = vmul.f32 %v2287, %v2415
    %v2424 = vperm.slane %v2247, 0
    %v2425 = vmul.f32 %v2416, %v2424
    %v2426 = vmul.f32 %v2417, %v2424
    %v2427 = vmul.f32 %v2418, %v2424
    %v2428 = vmul.f32 %v2419, %v2424
    %v2429 = vmul.f32 %v2420, %v2424
    %v2430 = vmul.f32 %v2421, %v2424
    %v2431 = vmul.f32 %v2422, %v2424
    %v2432 = vmul.f32 %v2423, %v2424
    %v2433 = vperm.slane %v2247, 1
    %v2434 = vadd.f32 %v2425, %v2433
    %v2435 = vadd.f32 %v2426, %v2433
    %v2436 = vadd.f32 %v2427, %v2433
    %v2437 = vadd.f32 %v2428, %v2433
    %v2438 = vadd.f32 %v2429, %v2433
    %v2439 = vadd.f32 %v2430, %v2433
    %v2440 = vadd.f32 %v2431, %v2433
    %v2441 = vadd.f32 %v2432, %v2433
    %v2442 = vsel %vm155, %v2238, 0.0
    %2443 = vadd.xlane.f32.xlu0 %v2442
    %v2444 = vpop.xlane.xlu0 %2443
    %v2445 = vsel %vm155, %v2239, 0.0
    %2446 = vadd.xlane.f32.xlu0 %v2445
    %v2447 = vpop.xlane.xlu0 %2446
    %v2448 = vsel %vm155, %v2240, 0.0
    %2449 = vadd.xlane.f32.xlu0 %v2448
    %v2450 = vpop.xlane.xlu0 %2449
    %v2451 = vsel %vm155, %v2241, 0.0
    %2452 = vadd.xlane.f32.xlu0 %v2451
    %v2453 = vpop.xlane.xlu0 %2452
    %v2454 = vsel %vm155, %v2242, 0.0
    %2455 = vadd.xlane.f32.xlu0 %v2454
    %v2456 = vpop.xlane.xlu0 %2455
    %v2457 = vsel %vm155, %v2243, 0.0
    %2458 = vadd.xlane.f32.xlu0 %v2457
    %v2459 = vpop.xlane.xlu0 %2458
    %v2460 = vsel %vm155, %v2244, 0.0
    %2461 = vadd.xlane.f32.xlu0 %v2460
    %v2462 = vpop.xlane.xlu0 %2461
    %v2463 = vsel %vm155, %v2245, 0.0
    %2464 = vadd.xlane.f32.xlu0 %v2463
    %v2465 = vpop.xlane.xlu0 %2464
    %v2466 = vmul.f32 %v2444, %v367
    %v2467 = vmul.f32 %v2447, %v367
    %v2468 = vmul.f32 %v2450, %v367
    %v2469 = vmul.f32 %v2453, %v367
    %v2470 = vmul.f32 %v2456, %v367
    %v2471 = vmul.f32 %v2459, %v367
    %v2472 = vmul.f32 %v2462, %v367
    %v2473 = vmul.f32 %v2465, %v367
    %v2474 = vsub.f32 %v2238, %v2466
    %v2475 = vsub.f32 %v2239, %v2467
    %v2476 = vsub.f32 %v2240, %v2468
    %v2477 = vsub.f32 %v2241, %v2469
    %v2478 = vsub.f32 %v2242, %v2470
    %v2479 = vsub.f32 %v2243, %v2471
    %v2480 = vsub.f32 %v2244, %v2472
    %v2481 = vsub.f32 %v2245, %v2473
    %v2482 = vmul.f32 %v2474, %v2474
    %v2483 = vmul.f32 %v2475, %v2475
    %v2484 = vmul.f32 %v2476, %v2476
    %v2485 = vmul.f32 %v2477, %v2477
    %v2486 = vmul.f32 %v2478, %v2478
    %v2487 = vmul.f32 %v2479, %v2479
    %v2488 = vmul.f32 %v2480, %v2480
    %v2489 = vmul.f32 %v2481, %v2481
    %v2490 = vsel %vm155, %v2482, 0.0
    %2491 = vadd.xlane.f32.xlu0 %v2490
    %v2492 = vpop.xlane.xlu0 %2491
    %v2493 = vsel %vm155, %v2483, 0.0
    %2494 = vadd.xlane.f32.xlu0 %v2493
    %v2495 = vpop.xlane.xlu0 %2494
    %v2496 = vsel %vm155, %v2484, 0.0
    %2497 = vadd.xlane.f32.xlu0 %v2496
    %v2498 = vpop.xlane.xlu0 %2497
    %v2499 = vsel %vm155, %v2485, 0.0
    %2500 = vadd.xlane.f32.xlu0 %v2499
    %v2501 = vpop.xlane.xlu0 %2500
    %v2502 = vsel %vm155, %v2486, 0.0
    %2503 = vadd.xlane.f32.xlu0 %v2502
    %v2504 = vpop.xlane.xlu0 %2503
    %v2505 = vsel %vm155, %v2487, 0.0
    %2506 = vadd.xlane.f32.xlu0 %v2505
    %v2507 = vpop.xlane.xlu0 %2506
    %v2508 = vsel %vm155, %v2488, 0.0
    %2509 = vadd.xlane.f32.xlu0 %v2508
    %v2510 = vpop.xlane.xlu0 %2509
    %v2511 = vsel %vm155, %v2489, 0.0
    %2512 = vadd.xlane.f32.xlu0 %v2511
    %v2513 = vpop.xlane.xlu0 %2512
    %v2514 = vmul.f32 %v2492, %v367
    %v2515 = vmul.f32 %v2495, %v367
    %v2516 = vmul.f32 %v2498, %v367
    %v2517 = vmul.f32 %v2501, %v367
    %v2518 = vmul.f32 %v2504, %v367
    %v2519 = vmul.f32 %v2507, %v367
    %v2520 = vmul.f32 %v2510, %v367
    %v2521 = vmul.f32 %v2513, %v367
    %v2522 = vadd.f32 %v2514, 1e-05
    %v2523 = vadd.f32 %v2515, 1e-05
    %v2524 = vadd.f32 %v2516, 1e-05
    %v2525 = vadd.f32 %v2517, 1e-05
    %v2526 = vadd.f32 %v2518, 1e-05
    %v2527 = vadd.f32 %v2519, 1e-05
    %v2528 = vadd.f32 %v2520, 1e-05
    %v2529 = vadd.f32 %v2521, 1e-05
    %v2530 = vrsqrt.pop %v2522
    %v2531 = vmul.f32 %v2530, %v2522
    %v2532 = vmul.f32 %v2531, %v2530
    %v2533 = vmul.f32 0.5, %v2532
    %v2534 = vsub.f32 1.5, %v2533
    %v2535 = vmul.f32 %v2530, %v2534
    %vm2536 = vweird.f32 %v2522
    %vm2537 = vweird.f32 %v2530
    %vm2538 = vmor %vm2536, %vm2537
    %v2539 = vsel %vm2538, %v2530, %v2535
    %v2540 = vrsqrt.pop %v2523
    %v2541 = vmul.f32 %v2540, %v2523
    %v2542 = vmul.f32 %v2541, %v2540
    %v2543 = vmul.f32 0.5, %v2542
    %v2544 = vsub.f32 1.5, %v2543
    %v2545 = vmul.f32 %v2540, %v2544
    %vm2546 = vweird.f32 %v2523
    %vm2547 = vweird.f32 %v2540
    %vm2548 = vmor %vm2546, %vm2547
    %v2549 = vsel %vm2548, %v2540, %v2545
    %v2550 = vrsqrt.pop %v2524
    %v2551 = vmul.f32 %v2550, %v2524
    %v2552 = vmul.f32 %v2551, %v2550
    %v2553 = vmul.f32 0.5, %v2552
    %v2554 = vsub.f32 1.5, %v2553
    %v2555 = vmul.f32 %v2550, %v2554
    %vm2556 = vweird.f32 %v2524
    %vm2557 = vweird.f32 %v2550
    %vm2558 = vmor %vm2556, %vm2557
    %v2559 = vsel %vm2558, %v2550, %v2555
    %v2560 = vrsqrt.pop %v2525
    %v2561 = vmul.f32 %v2560, %v2525
    %v2562 = vmul.f32 %v2561, %v2560
    %v2563 = vmul.f32 0.5, %v2562
    %v2564 = vsub.f32 1.5, %v2563
    %v2565 = vmul.f32 %v2560, %v2564
    %vm2566 = vweird.f32 %v2525
    %vm2567 = vweird.f32 %v2560
    %vm2568 = vmor %vm2566, %vm2567
    %v2569 = vsel %vm2568, %v2560, %v2565
    %v2570 = vrsqrt.pop %v2526
    %v2571 = vmul.f32 %v2570, %v2526
    %v2572 = vmul.f32 %v2571, %v2570
    %v2573 = vmul.f32 0.5, %v2572
    %v2574 = vsub.f32 1.5, %v2573
    %v2575 = vmul.f32 %v2570, %v2574
    %vm2576 = vweird.f32 %v2526
    %vm2577 = vweird.f32 %v2570
    %vm2578 = vmor %vm2576, %vm2577
    %v2579 = vsel %vm2578, %v2570, %v2575
    %v2580 = vrsqrt.pop %v2527
    %v2581 = vmul.f32 %v2580, %v2527
    %v2582 = vmul.f32 %v2581, %v2580
    %v2583 = vmul.f32 0.5, %v2582
    %v2584 = vsub.f32 1.5, %v2583
    %v2585 = vmul.f32 %v2580, %v2584
    %vm2586 = vweird.f32 %v2527
    %vm2587 = vweird.f32 %v2580
    %vm2588 = vmor %vm2586, %vm2587
    %v2589 = vsel %vm2588, %v2580, %v2585
    %v2590 = vrsqrt.pop %v2528
    %v2591 = vmul.f32 %v2590, %v2528
    %v2592 = vmul.f32 %v2591, %v2590
    %v2593 = vmul.f32 0.5, %v2592
    %v2594 = vsub.f32 1.5, %v2593
    %v2595 = vmul.f32 %v2590, %v2594
    %vm2596 = vweird.f32 %v2528
    %vm2597 = vweird.f32 %v2590
    %vm2598 = vmor %vm2596, %vm2597
    %v2599 = vsel %vm2598, %v2590, %v2595
    %v2600 = vrsqrt.pop %v2529
    %v2601 = vmul.f32 %v2600, %v2529
    %v2602 = vmul.f32 %v2601, %v2600
    %v2603 = vmul.f32 0.5, %v2602
    %v2604 = vsub.f32 1.5, %v2603
    %v2605 = vmul.f32 %v2600, %v2604
    %vm2606 = vweird.f32 %v2529
    %vm2607 = vweird.f32 %v2600
    %vm2608 = vmor %vm2606, %vm2607
    %v2609 = vsel %vm2608, %v2600, %v2605
    %v2610 = vmul.f32 %v2474, %v2539
    %v2611 = vmul.f32 %v2475, %v2549
    %v2612 = vmul.f32 %v2476, %v2559
    %v2613 = vmul.f32 %v2477, %v2569
    %v2614 = vmul.f32 %v2478, %v2579
    %v2615 = vmul.f32 %v2479, %v2589
    %v2616 = vmul.f32 %v2480, %v2599
    %v2617 = vmul.f32 %v2481, %v2609
    %v2618 = vperm.slane %v2247, 2
    %v2619 = vmul.f32 %v2610, %v2618
    %v2620 = vmul.f32 %v2611, %v2618
    %v2621 = vmul.f32 %v2612, %v2618
    %v2622 = vmul.f32 %v2613, %v2618
    %v2623 = vmul.f32 %v2614, %v2618
    %v2624 = vmul.f32 %v2615, %v2618
    %v2625 = vmul.f32 %v2616, %v2618
    %v2626 = vmul.f32 %v2617, %v2618
    %v2627 = vperm.slane %v2247, 3
    %v2628 = vadd.f32 %v2619, %v2627
    %v2629 = vadd.f32 %v2620, %v2627
    %v2630 = vadd.f32 %v2621, %v2627
    %v2631 = vadd.f32 %v2622, %v2627
    %v2632 = vadd.f32 %v2623, %v2627
    %v2633 = vadd.f32 %v2624, %v2627
    %v2634 = vadd.f32 %v2625, %v2627
    %v2635 = vadd.f32 %v2626, %v2627
    %s2636 = scalar_lea.vmem %s7, 32
    %v2637 = vld [vmem:[%s2636] sm:$0xff]
    %v2638 = vld [vmem:[%s2636 + $0x8] sm:$0xff]
    %v2639 = vld [vmem:[%s2636 + $0x10] sm:$0xff]
    %v2640 = vld [vmem:[%s2636 + $0x18] sm:$0xff]
    %s2641 = scalar_lea.vmem [#allocation10], 1
    %v2642 = vld [vmem:[%s2641] sm:$0x1]
    %v2644 = vperm.slane %v2642, 0
    %v2647 = vsel %vm155, %v2434, 0
    %v2650 = vsel %vm155, %v2435, 0
    %v2653 = vsel %vm155, %v2436, 0
    %v2656 = vsel %vm155, %v2437, 0
    %v2659 = vsel %vm155, %v2438, 0
    %v2662 = vsel %vm155, %v2439, 0
    %v2665 = vsel %vm155, %v2440, 0
    %v2668 = vsel %vm155, %v2441, 0
    %2670 = vmatpush.msra.mxu0 0.0
    %2671 = vmatpush.msra.mxu0 0.0
    %2672 = vmatpush.msra.mxu0 0.0
    %2673 = vmatpush.msra.mxu0 0.0
    %2674 = vmatpush.msra.mxu0 0.0
    %2675 = vmatpush.msra.mxu0 0.0
    %2676 = vmatpush.msra.mxu0 0.0
    %2677 = vmatpush.msra.mxu0 0.0
    %2678 = vmatpush.msra.mxu0 0.0
    %2679 = vmatpush.msra.mxu0 0.0
    %2680 = vmatpush.msra.mxu0 0.0
    %2681 = vmatpush.msra.mxu0 0.0
    %2682 = vmatpush.msra.mxu0 %v2640
    %2683 = vmatpush.msra.mxu0 %v2639
    %2684 = vmatpush.msra.mxu0 %v2638
    %2685 = vmatpush.msra.mxu0 %v2637
    %2686 = vmatmul.f32.gmra.mxu0 %v2647
    %v2687 = vpop.f32.mrf.mxu0
    %v2688 = vadd.f32 %v2644, %v2687
    %2689 = vmatmul.f32.gmra.mxu0 %v2650
    %v2690 = vpop.f32.mrf.mxu0
    %v2691 = vadd.f32 %v2644, %v2690
    %2692 = vmatmul.f32.gmra.mxu0 %v2653
    %v2693 = vpop.f32.mrf.mxu0
    %v2694 = vadd.f32 %v2644, %v2693
    %2695 = vmatmul.f32.gmra.mxu0 %v2656
    %v2696 = vpop.f32.mrf.mxu0
    %v2697 = vadd.f32 %v2644, %v2696
    %2698 = vmatmul.f32.gmra.mxu0 %v2659
    %v2699 = vpop.f32.mrf.mxu0
    %v2700 = vadd.f32 %v2644, %v2699
    %2701 = vmatmul.f32.gmra.mxu0 %v2662
    %v2702 = vpop.f32.mrf.mxu0
    %v2703 = vadd.f32 %v2644, %v2702
    %2704 = vmatmul.f32.gmra.mxu0 %v2665
    %v2705 = vpop.f32.mrf.mxu0
    %v2706 = vadd.f32 %v2644, %v2705
    %2707 = vmatmul.f32.gmra.mxu0 %v2668
    %v2708 = vpop.f32.mrf.mxu0
    %v2709 = vadd.f32 %v2644, %v2708
    %2710 = vdwg.mxu0
    %s2711 = scalar_lea.vmem %s9, 32
    %v2712 = vld [vmem:[%s2711] sm:$0xff]
    %v2713 = vld [vmem:[%s2711 + $0x8] sm:$0xff]
    %v2714 = vld [vmem:[%s2711 + $0x10] sm:$0xff]
    %v2715 = vld [vmem:[%s2711 + $0x18] sm:$0xff]
    %s2716 = scalar_lea.vmem [#allocation11], 1
    %v2717 = vld [vmem:[%s2716] sm:$0x1]
    %v2719 = vperm.slane %v2717, 0
    %v2722 = vsel %vm155, %v2628, 0
    %v2725 = vsel %vm155, %v2629, 0
    %v2728 = vsel %vm155, %v2630, 0
    %v2731 = vsel %vm155, %v2631, 0
    %v2734 = vsel %vm155, %v2632, 0
    %v2737 = vsel %vm155, %v2633, 0
    %v2740 = vsel %vm155, %v2634, 0
    %v2743 = vsel %vm155, %v2635, 0
    %2745 = vmatpush.msra.mxu0 0.0
    %2746 = vmatpush.msra.mxu0 0.0
    %2747 = vmatpush.msra.mxu0 0.0
    %2748 = vmatpush.msra.mxu0 0.0
    %2749 = vmatpush.msra.mxu0 0.0
    %2750 = vmatpush.msra.mxu0 0.0
    %2751 = vmatpush.msra.mxu0 0.0
    %2752 = vmatpush.msra.mxu0 0.0
    %2753 = vmatpush.msra.mxu0 0.0
    %2754 = vmatpush.msra.mxu0 0.0
    %2755 = vmatpush.msra.mxu0 0.0
    %2756 = vmatpush.msra.mxu0 0.0
    %2757 = vmatpush.msra.mxu0 %v2715
    %2758 = vmatpush.msra.mxu0 %v2714
    %2759 = vmatpush.msra.mxu0 %v2713
    %2760 = vmatpush.msra.mxu0 %v2712
    %2761 = vmatmul.f32.gmra.mxu0 %v2722
    %v2762 = vpop.f32.mrf.mxu0
    %v2763 = vadd.f32 %v2719, %v2762
    %2764 = vmatmul.f32.gmra.mxu0 %v2725
    %v2765 = vpop.f32.mrf.mxu0
    %v2766 = vadd.f32 %v2719, %v2765
    %2767 = vmatmul.f32.gmra.mxu0 %v2728
    %v2768 = vpop.f32.mrf.mxu0
    %v2769 = vadd.f32 %v2719, %v2768
    %2770 = vmatmul.f32.gmra.mxu0 %v2731
    %v2771 = vpop.f32.mrf.mxu0
    %v2772 = vadd.f32 %v2719, %v2771
    %2773 = vmatmul.f32.gmra.mxu0 %v2734
    %v2774 = vpop.f32.mrf.mxu0
    %v2775 = vadd.f32 %v2719, %v2774
    %2776 = vmatmul.f32.gmra.mxu0 %v2737
    %v2777 = vpop.f32.mrf.mxu0
    %v2778 = vadd.f32 %v2719, %v2777
    %2779 = vmatmul.f32.gmra.mxu0 %v2740
    %v2780 = vpop.f32.mrf.mxu0
    %v2781 = vadd.f32 %v2719, %v2780
    %2782 = vmatmul.f32.gmra.mxu0 %v2743
    %v2783 = vpop.f32.mrf.mxu0
    %v2784 = vadd.f32 %v2719, %v2783
    %2785 = vdwg.mxu0
    %v2786 = vmax.f32 %v2688, 0.0
    %v2787 = vmax.f32 %v2691, 0.0
    %v2788 = vmax.f32 %v2694, 0.0
    %v2789 = vmax.f32 %v2697, 0.0
    %v2790 = vmax.f32 %v2700, 0.0
    %v2791 = vmax.f32 %v2703, 0.0
    %v2792 = vmax.f32 %v2706, 0.0
    %v2793 = vmax.f32 %v2709, 0.0
    %v2794 = vmax.f32 %v2763, 0.0
    %v2795 = vmax.f32 %v2766, 0.0
    %v2796 = vmax.f32 %v2769, 0.0
    %v2797 = vmax.f32 %v2772, 0.0
    %v2798 = vmax.f32 %v2775, 0.0
    %v2799 = vmax.f32 %v2778, 0.0
    %v2800 = vmax.f32 %v2781, 0.0
    %v2801 = vmax.f32 %v2784, 0.0
    %v2803 = vsel %vm155, %v2688, 0
    %v2806 = vsel %vm155, %v2763, 0
    %2808 = vmatpush.xpose.msra.mxu0 0.0
    %2809 = vmatpush.xpose.msra.mxu0 0.0
    %2810 = vmatpush.xpose.msra.mxu0 0.0
    %2811 = vmatpush.xpose.msra.mxu0 0.0
    %2812 = vmatpush.xpose.msra.mxu0 0.0
    %2813 = vmatpush.xpose.msra.mxu0 0.0
    %2814 = vmatpush.xpose.msra.mxu0 0.0
    %2815 = vmatpush.xpose.msra.mxu0 0.0
    %2816 = vmatpush.xpose.msra.mxu0 0.0
    %2817 = vmatpush.xpose.msra.mxu0 0.0
    %2818 = vmatpush.xpose.msra.mxu0 0.0
    %2819 = vmatpush.xpose.msra.mxu0 0.0
    %2820 = vmatpush.xpose.msra.mxu0 0.0
    %2821 = vmatpush.xpose.msra.mxu0 0.0
    %2822 = vmatpush.xpose.msra.mxu0 0.0
    %2823 = vmatpush.xpose.msra.mxu0 %v2806
    %2824 = vmatmul.f32.gmra.mxu0 %v2803
    %v2825 = vpop.f32.mrf.mxu0
    %v2826 = vadd.f32 0.0, %v2825
    %2827 = vdwg.mxu0
    %v2829 = vsel %vm155, %v2691, 0
    %v2832 = vsel %vm155, %v2766, 0
    %2834 = vmatpush.xpose.msra.mxu0 0.0
    %2835 = vmatpush.xpose.msra.mxu0 0.0
    %2836 = vmatpush.xpose.msra.mxu0 0.0
    %2837 = vmatpush.xpose.msra.mxu0 0.0
    %2838 = vmatpush.xpose.msra.mxu0 0.0
    %2839 = vmatpush.xpose.msra.mxu0 0.0
    %2840 = vmatpush.xpose.msra.mxu0 0.0
    %2841 = vmatpush.xpose.msra.mxu0 0.0
    %2842 = vmatpush.xpose.msra.mxu0 0.0
    %2843 = vmatpush.xpose.msra.mxu0 0.0
    %2844 = vmatpush.xpose.msra.mxu0 0.0
    %2845 = vmatpush.xpose.msra.mxu0 0.0
    %2846 = vmatpush.xpose.msra.mxu0 0.0
    %2847 = vmatpush.xpose.msra.mxu0 0.0
    %2848 = vmatpush.xpose.msra.mxu0 0.0
    %2849 = vmatpush.xpose.msra.mxu0 %v2832
    %2850 = vmatmul.f32.gmra.mxu0 %v2829
    %v2851 = vpop.f32.mrf.mxu0
    %v2852 = vadd.f32 0.0, %v2851
    %2853 = vdwg.mxu0
    %v2855 = vsel %vm155, %v2694, 0
    %v2858 = vsel %vm155, %v2769, 0
    %2860 = vmatpush.xpose.msra.mxu0 0.0
    %2861 = vmatpush.xpose.msra.mxu0 0.0
    %2862 = vmatpush.xpose.msra.mxu0 0.0
    %2863 = vmatpush.xpose.msra.mxu0 0.0
    %2864 = vmatpush.xpose.msra.mxu0 0.0
    %2865 = vmatpush.xpose.msra.mxu0 0.0
    %2866 = vmatpush.xpose.msra.mxu0 0.0
    %2867 = vmatpush.xpose.msra.mxu0 0.0
    %2868 = vmatpush.xpose.msra.mxu0 0.0
    %2869 = vmatpush.xpose.msra.mxu0 0.0
    %2870 = vmatpush.xpose.msra.mxu0 0.0
    %2871 = vmatpush.xpose.msra.mxu0 0.0
    %2872 = vmatpush.xpose.msra.mxu0 0.0
    %2873 = vmatpush.xpose.msra.mxu0 0.0
    %2874 = vmatpush.xpose.msra.mxu0 0.0
    %2875 = vmatpush.xpose.msra.mxu0 %v2858
    %2876 = vmatmul.f32.gmra.mxu0 %v2855
    %v2877 = vpop.f32.mrf.mxu0
    %v2878 = vadd.f32 0.0, %v2877
    %2879 = vdwg.mxu0
    %v2881 = vsel %vm155, %v2697, 0
    %v2884 = vsel %vm155, %v2772, 0
    %2886 = vmatpush.xpose.msra.mxu0 0.0
    %2887 = vmatpush.xpose.msra.mxu0 0.0
    %2888 = vmatpush.xpose.msra.mxu0 0.0
    %2889 = vmatpush.xpose.msra.mxu0 0.0
    %2890 = vmatpush.xpose.msra.mxu0 0.0
    %2891 = vmatpush.xpose.msra.mxu0 0.0
    %2892 = vmatpush.xpose.msra.mxu0 0.0
    %2893 = vmatpush.xpose.msra.mxu0 0.0
    %2894 = vmatpush.xpose.msra.mxu0 0.0
    %2895 = vmatpush.xpose.msra.mxu0 0.0
    %2896 = vmatpush.xpose.msra.mxu0 0.0
    %2897 = vmatpush.xpose.msra.mxu0 0.0
    %2898 = vmatpush.xpose.msra.mxu0 0.0
    %2899 = vmatpush.xpose.msra.mxu0 0.0
    %2900 = vmatpush.xpose.msra.mxu0 0.0
    %2901 = vmatpush.xpose.msra.mxu0 %v2884
    %2902 = vmatmul.f32.gmra.mxu0 %v2881
    %v2903 = vpop.f32.mrf.mxu0
    %v2904 = vadd.f32 0.0, %v2903
    %2905 = vdwg.mxu0
    %v2907 = vsel %vm155, %v2700, 0
    %v2910 = vsel %vm155, %v2775, 0
    %2912 = vmatpush.xpose.msra.mxu0 0.0
    %2913 = vmatpush.xpose.msra.mxu0 0.0
    %2914 = vmatpush.xpose.msra.mxu0 0.0
    %2915 = vmatpush.xpose.msra.mxu0 0.0
    %2916 = vmatpush.xpose.msra.mxu0 0.0
    %2917 = vmatpush.xpose.msra.mxu0 0.0
    %2918 = vmatpush.xpose.msra.mxu0 0.0
    %2919 = vmatpush.xpose.msra.mxu0 0.0
    %2920 = vmatpush.xpose.msra.mxu0 0.0
    %2921 = vmatpush.xpose.msra.mxu0 0.0
    %2922 = vmatpush.xpose.msra.mxu0 0.0
    %2923 = vmatpush.xpose.msra.mxu0 0.0
    %2924 = vmatpush.xpose.msra.mxu0 0.0
    %2925 = vmatpush.xpose.msra.mxu0 0.0
    %2926 = vmatpush.xpose.msra.mxu0 0.0
    %2927 = vmatpush.xpose.msra.mxu0 %v2910
    %2928 = vmatmul.f32.gmra.mxu0 %v2907
    %v2929 = vpop.f32.mrf.mxu0
    %v2930 = vadd.f32 0.0, %v2929
    %2931 = vdwg.mxu0
    %v2933 = vsel %vm155, %v2703, 0
    %v2936 = vsel %vm155, %v2778, 0
    %2938 = vmatpush.xpose.msra.mxu0 0.0
    %2939 = vmatpush.xpose.msra.mxu0 0.0
    %2940 = vmatpush.xpose.msra.mxu0 0.0
    %2941 = vmatpush.xpose.msra.mxu0 0.0
    %2942 = vmatpush.xpose.msra.mxu0 0.0
    %2943 = vmatpush.xpose.msra.mxu0 0.0
    %2944 = vmatpush.xpose.msra.mxu0 0.0
    %2945 = vmatpush.xpose.msra.mxu0 0.0
    %2946 = vmatpush.xpose.msra.mxu0 0.0
    %2947 = vmatpush.xpose.msra.mxu0 0.0
    %2948 = vmatpush.xpose.msra.mxu0 0.0
    %2949 = vmatpush.xpose.msra.mxu0 0.0
    %2950 = vmatpush.xpose.msra.mxu0 0.0
    %2951 = vmatpush.xpose.msra.mxu0 0.0
    %2952 = vmatpush.xpose.msra.mxu0 0.0
    %2953 = vmatpush.xpose.msra.mxu0 %v2936
    %2954 = vmatmul.f32.gmra.mxu0 %v2933
    %v2955 = vpop.f32.mrf.mxu0
    %v2956 = vadd.f32 0.0, %v2955
    %2957 = vdwg.mxu0
    %v2959 = vsel %vm155, %v2706, 0
    %v2962 = vsel %vm155, %v2781, 0
    %2964 = vmatpush.xpose.msra.mxu0 0.0
    %2965 = vmatpush.xpose.msra.mxu0 0.0
    %2966 = vmatpush.xpose.msra.mxu0 0.0
    %2967 = vmatpush.xpose.msra.mxu0 0.0
    %2968 = vmatpush.xpose.msra.mxu0 0.0
    %2969 = vmatpush.xpose.msra.mxu0 0.0
    %2970 = vmatpush.xpose.msra.mxu0 0.0
    %2971 = vmatpush.xpose.msra.mxu0 0.0
    %2972 = vmatpush.xpose.msra.mxu0 0.0
    %2973 = vmatpush.xpose.msra.mxu0 0.0
    %2974 = vmatpush.xpose.msra.mxu0 0.0
    %2975 = vmatpush.xpose.msra.mxu0 0.0
    %2976 = vmatpush.xpose.msra.mxu0 0.0
    %2977 = vmatpush.xpose.msra.mxu0 0.0
    %2978 = vmatpush.xpose.msra.mxu0 0.0
    %2979 = vmatpush.xpose.msra.mxu0 %v2962
    %2980 = vmatmul.f32.gmra.mxu0 %v2959
    %v2981 = vpop.f32.mrf.mxu0
    %v2982 = vadd.f32 0.0, %v2981
    %2983 = vdwg.mxu0
    %v2985 = vsel %vm155, %v2709, 0
    %v2988 = vsel %vm155, %v2784, 0
    %2990 = vmatpush.xpose.msra.mxu0 0.0
    %2991 = vmatpush.xpose.msra.mxu0 0.0
    %2992 = vmatpush.xpose.msra.mxu0 0.0
    %2993 = vmatpush.xpose.msra.mxu0 0.0
    %2994 = vmatpush.xpose.msra.mxu0 0.0
    %2995 = vmatpush.xpose.msra.mxu0 0.0
    %2996 = vmatpush.xpose.msra.mxu0 0.0
    %2997 = vmatpush.xpose.msra.mxu0 0.0
    %2998 = vmatpush.xpose.msra.mxu0 0.0
    %2999 = vmatpush.xpose.msra.mxu0 0.0
    %3000 = vmatpush.xpose.msra.mxu0 0.0
    %3001 = vmatpush.xpose.msra.mxu0 0.0
    %3002 = vmatpush.xpose.msra.mxu0 0.0
    %3003 = vmatpush.xpose.msra.mxu0 0.0
    %3004 = vmatpush.xpose.msra.mxu0 0.0
    %3005 = vmatpush.xpose.msra.mxu0 %v2988
    %3006 = vmatmul.f32.gmra.mxu0 %v2985
    %v3007 = vpop.f32.mrf.mxu0
    %v3008 = vadd.f32 0.0, %v3007
    %3009 = vdwg.mxu0
    %v3010 = vmul.f32 %v2826, %v1108
    %v3011 = vmul.f32 %v2852, %v1108
    %v3012 = vmul.f32 %v2878, %v1108
    %v3013 = vmul.f32 %v2904, %v1108
    %v3014 = vmul.f32 %v2930, %v1108
    %v3015 = vmul.f32 %v2956, %v1108
    %v3016 = vmul.f32 %v2982, %v1108
    %v3017 = vmul.f32 %v3008, %v1108
    %v3018 = vxor.u32 %v3010, 2147483648
    %v3019 = vxor.u32 %v3011, 2147483648
    %v3020 = vxor.u32 %v3012, 2147483648
    %v3021 = vxor.u32 %v3013, 2147483648
    %v3022 = vxor.u32 %v3014, 2147483648
    %v3023 = vxor.u32 %v3015, 2147483648
    %v3024 = vxor.u32 %v3016, 2147483648
    %v3025 = vxor.u32 %v3017, 2147483648
    %v3026 = vmul.f32 %v3018, 1.442695
    %v3027 = vpow.pop %v3026
    %v3028 = vmul.f32 %v3019, 1.442695
    %v3029 = vpow.pop %v3028
    %v3030 = vmul.f32 %v3020, 1.442695
    %v3031 = vpow.pop %v3030
    %v3032 = vmul.f32 %v3021, 1.442695
    %v3033 = vpow.pop %v3032
    %v3034 = vmul.f32 %v3022, 1.442695
    %v3035 = vpow.pop %v3034
    %v3036 = vmul.f32 %v3023, 1.442695
    %v3037 = vpow.pop %v3036
    %v3038 = vmul.f32 %v3024, 1.442695
    %v3039 = vpow.pop %v3038
    %v3040 = vmul.f32 %v3025, 1.442695
    %v3041 = vpow.pop %v3040
    %v3042 = vadd.f32 %v3027, 1.0
    %v3043 = vadd.f32 %v3029, 1.0
    %v3044 = vadd.f32 %v3031, 1.0
    %v3045 = vadd.f32 %v3033, 1.0
    %v3046 = vadd.f32 %v3035, 1.0
    %v3047 = vadd.f32 %v3037, 1.0
    %v3048 = vadd.f32 %v3039, 1.0
    %v3049 = vadd.f32 %v3041, 1.0
    %v3050 = vrcp.pop %v3042
    %v3051 = vmul.f32 %v3042, %v3050
    %v3052 = vsub.f32 1.0, %v3051
    %v3053 = vmul.f32 %v3050, %v3052
    %v3054 = vadd.f32 %v3050, %v3053
    %vm3055 = vweird.f32 %v3042
    %vm3056 = vweird.f32 %v3050
    %vm3057 = vmor %vm3055, %vm3056
    %v3058 = vsel %vm3057, %v3050, %v3054
    %v3059 = vand.u32 2147483647, %v3042
    %vm3060 = vcmp.eq.f32.partialorder %v3059, 8.507059e+37
    %v3061 = vand.u32 %v3042, 2147483648
    %v3062 = vor.u32 1.1754944e-38, %v3061
    %v3063 = vsel %vm3060, %v3062, %v3058
    %v3064 = vmul.f32 1.0, %v3063
    %v3065 = vrcp.pop %v3043
    %v3066 = vmul.f32 %v3043, %v3065
    %v3067 = vsub.f32 1.0, %v3066
    %v3068 = vmul.f32 %v3065, %v3067
    %v3069 = vadd.f32 %v3065, %v3068
    %vm3070 = vweird.f32 %v3043
    %vm3071 = vweird.f32 %v3065
    %vm3072 = vmor %vm3070, %vm3071
    %v3073 = vsel %vm3072, %v3065, %v3069
    %v3074 = vand.u32 2147483647, %v3043
    %vm3075 = vcmp.eq.f32.partialorder %v3074, 8.507059e+37
    %v3076 = vand.u32 %v3043, 2147483648
    %v3077 = vor.u32 1.1754944e-38, %v3076
    %v3078 = vsel %vm3075, %v3077, %v3073
    %v3079 = vmul.f32 1.0, %v3078
    %v3080 = vrcp.pop %v3044
    %v3081 = vmul.f32 %v3044, %v3080
    %v3082 = vsub.f32 1.0, %v3081
    %v3083 = vmul.f32 %v3080, %v3082
    %v3084 = vadd.f32 %v3080, %v3083
    %vm3085 = vweird.f32 %v3044
    %vm3086 = vweird.f32 %v3080
    %vm3087 = vmor %vm3085, %vm3086
    %v3088 = vsel %vm3087, %v3080, %v3084
    %v3089 = vand.u32 2147483647, %v3044
    %vm3090 = vcmp.eq.f32.partialorder %v3089, 8.507059e+37
    %v3091 = vand.u32 %v3044, 2147483648
    %v3092 = vor.u32 1.1754944e-38, %v3091
    %v3093 = vsel %vm3090, %v3092, %v3088
    %v3094 = vmul.f32 1.0, %v3093
    %v3095 = vrcp.pop %v3045
    %v3096 = vmul.f32 %v3045, %v3095
    %v3097 = vsub.f32 1.0, %v3096
    %v3098 = vmul.f32 %v3095, %v3097
    %v3099 = vadd.f32 %v3095, %v3098
    %vm3100 = vweird.f32 %v3045
    %vm3101 = vweird.f32 %v3095
    %vm3102 = vmor %vm3100, %vm3101
    %v3103 = vsel %vm3102, %v3095, %v3099
    %v3104 = vand.u32 2147483647, %v3045
    %vm3105 = vcmp.eq.f32.partialorder %v3104, 8.507059e+37
    %v3106 = vand.u32 %v3045, 2147483648
    %v3107 = vor.u32 1.1754944e-38, %v3106
    %v3108 = vsel %vm3105, %v3107, %v3103
    %v3109 = vmul.f32 1.0, %v3108
    %v3110 = vrcp.pop %v3046
    %v3111 = vmul.f32 %v3046, %v3110
    %v3112 = vsub.f32 1.0, %v3111
    %v3113 = vmul.f32 %v3110, %v3112
    %v3114 = vadd.f32 %v3110, %v3113
    %vm3115 = vweird.f32 %v3046
    %vm3116 = vweird.f32 %v3110
    %vm3117 = vmor %vm3115, %vm3116
    %v3118 = vsel %vm3117, %v3110, %v3114
    %v3119 = vand.u32 2147483647, %v3046
    %vm3120 = vcmp.eq.f32.partialorder %v3119, 8.507059e+37
    %v3121 = vand.u32 %v3046, 2147483648
    %v3122 = vor.u32 1.1754944e-38, %v3121
    %v3123 = vsel %vm3120, %v3122, %v3118
    %v3124 = vmul.f32 1.0, %v3123
    %v3125 = vrcp.pop %v3047
    %v3126 = vmul.f32 %v3047, %v3125
    %v3127 = vsub.f32 1.0, %v3126
    %v3128 = vmul.f32 %v3125, %v3127
    %v3129 = vadd.f32 %v3125, %v3128
    %vm3130 = vweird.f32 %v3047
    %vm3131 = vweird.f32 %v3125
    %vm3132 = vmor %vm3130, %vm3131
    %v3133 = vsel %vm3132, %v3125, %v3129
    %v3134 = vand.u32 2147483647, %v3047
    %vm3135 = vcmp.eq.f32.partialorder %v3134, 8.507059e+37
    %v3136 = vand.u32 %v3047, 2147483648
    %v3137 = vor.u32 1.1754944e-38, %v3136
    %v3138 = vsel %vm3135, %v3137, %v3133
    %v3139 = vmul.f32 1.0, %v3138
    %v3140 = vrcp.pop %v3048
    %v3141 = vmul.f32 %v3048, %v3140
    %v3142 = vsub.f32 1.0, %v3141
    %v3143 = vmul.f32 %v3140, %v3142
    %v3144 = vadd.f32 %v3140, %v3143
    %vm3145 = vweird.f32 %v3048
    %vm3146 = vweird.f32 %v3140
    %vm3147 = vmor %vm3145, %vm3146
    %v3148 = vsel %vm3147, %v3140, %v3144
    %v3149 = vand.u32 2147483647, %v3048
    %vm3150 = vcmp.eq.f32.partialorder %v3149, 8.507059e+37
    %v3151 = vand.u32 %v3048, 2147483648
    %v3152 = vor.u32 1.1754944e-38, %v3151
    %v3153 = vsel %vm3150, %v3152, %v3148
    %v3154 = vmul.f32 1.0, %v3153
    %v3155 = vrcp.pop %v3049
    %v3156 = vmul.f32 %v3049, %v3155
    %v3157 = vsub.f32 1.0, %v3156
    %v3158 = vmul.f32 %v3155, %v3157
    %v3159 = vadd.f32 %v3155, %v3158
    %vm3160 = vweird.f32 %v3049
    %vm3161 = vweird.f32 %v3155
    %vm3162 = vmor %vm3160, %vm3161
    %v3163 = vsel %vm3162, %v3155, %v3159
    %v3164 = vand.u32 2147483647, %v3049
    %vm3165 = vcmp.eq.f32.partialorder %v3164, 8.507059e+37
    %v3166 = vand.u32 %v3049, 2147483648
    %v3167 = vor.u32 1.1754944e-38, %v3166
    %v3168 = vsel %vm3165, %v3167, %v3163
    %v3169 = vmul.f32 1.0, %v3168
    %3171 = vset.pattern.permute.xlu0 64
    %3172 = vperm.xlu0 %3171, %v2786
    %v3173 = vpop.permute.xlu0 %3172
    %3176 = vset.pattern.permute.xlu0 64
    %3177 = vperm.xlu0 %3176, %v2787
    %v3178 = vpop.permute.xlu0 %3177
    %3181 = vset.pattern.permute.xlu0 64
    %3182 = vperm.xlu0 %3181, %v2788
    %v3183 = vpop.permute.xlu0 %3182
    %3186 = vset.pattern.permute.xlu0 64
    %3187 = vperm.xlu0 %3186, %v2789
    %v3188 = vpop.permute.xlu0 %3187
    %3191 = vset.pattern.permute.xlu0 64
    %3192 = vperm.xlu0 %3191, %v2790
    %v3193 = vpop.permute.xlu0 %3192
    %3196 = vset.pattern.permute.xlu0 64
    %3197 = vperm.xlu0 %3196, %v2791
    %v3198 = vpop.permute.xlu0 %3197
    %3201 = vset.pattern.permute.xlu0 64
    %3202 = vperm.xlu0 %3201, %v2792
    %v3203 = vpop.permute.xlu0 %3202
    %3206 = vset.pattern.permute.xlu0 64
    %3207 = vperm.xlu0 %3206, %v2793
    %v3208 = vpop.permute.xlu0 %3207
    %v3210 = vmul.f32 %v3173, %v2786
    %v3211 = vmul.f32 %v3178, %v2787
    %v3212 = vmul.f32 %v3183, %v2788
    %v3213 = vmul.f32 %v3188, %v2789
    %v3214 = vmul.f32 %v3193, %v2790
    %v3215 = vmul.f32 %v3198, %v2791
    %v3216 = vmul.f32 %v3203, %v2792
    %v3217 = vmul.f32 %v3208, %v2793
    %3219 = vset.pattern.permute.xlu0 64
    %3220 = vperm.xlu0 %3219, %v2794
    %v3221 = vpop.permute.xlu0 %3220
    %3224 = vset.pattern.permute.xlu0 64
    %3225 = vperm.xlu0 %3224, %v2795
    %v3226 = vpop.permute.xlu0 %3225
    %3229 = vset.pattern.permute.xlu0 64
    %3230 = vperm.xlu0 %3229, %v2796
    %v3231 = vpop.permute.xlu0 %3230
    %3234 = vset.pattern.permute.xlu0 64
    %3235 = vperm.xlu0 %3234, %v2797
    %v3236 = vpop.permute.xlu0 %3235
    %3239 = vset.pattern.permute.xlu0 64
    %3240 = vperm.xlu0 %3239, %v2798
    %v3241 = vpop.permute.xlu0 %3240
    %3244 = vset.pattern.permute.xlu0 64
    %3245 = vperm.xlu0 %3244, %v2799
    %v3246 = vpop.permute.xlu0 %3245
    %3249 = vset.pattern.permute.xlu0 64
    %3250 = vperm.xlu0 %3249, %v2800
    %v3251 = vpop.permute.xlu0 %3250
    %3254 = vset.pattern.permute.xlu0 64
    %3255 = vperm.xlu0 %3254, %v2801
    %v3256 = vpop.permute.xlu0 %3255
    %v3258 = vmul.f32 %v3221, %v2794
    %v3259 = vmul.f32 %v3226, %v2795
    %v3260 = vmul.f32 %v3231, %v2796
    %v3261 = vmul.f32 %v3236, %v2797
    %v3262 = vmul.f32 %v3241, %v2798
    %v3263 = vmul.f32 %v3246, %v2799
    %v3264 = vmul.f32 %v3251, %v2800
    %v3265 = vmul.f32 %v3256, %v2801
    %v3266 = vmul.f32 %v2786, %v1374
    %v3267 = vmul.f32 %v2787, %v1376
    %v3268 = vmul.f32 %v2788, %v1378
    %v3269 = vmul.f32 %v2789, %v1380
    %v3270 = vmul.f32 %v2790, %v1382
    %v3271 = vmul.f32 %v2791, %v1384
    %v3272 = vmul.f32 %v2792, %v1386
    %v3273 = vmul.f32 %v2793, %v1388
    %3275 = vrot.lane.b32.xlu0 %v3258, 96
    %v3276 = vpop.permute.xlu0 %3275
    %v3279 = vsel %vm1409, %v3064, 0
    %3281 = vmatpush.msra.mxu0 0.0
    %3282 = vmatpush.msra.mxu0 0.0
    %3283 = vmatpush.msra.mxu0 0.0
    %3284 = vmatpush.msra.mxu0 0.0
    %3285 = vmatpush.msra.mxu0 0.0
    %3286 = vmatpush.msra.mxu0 0.0
    %3287 = vmatpush.msra.mxu0 0.0
    %3288 = vmatpush.msra.mxu0 0.0
    %3289 = vmatpush.msra.mxu0 0.0
    %3290 = vmatpush.msra.mxu0 0.0
    %3291 = vmatpush.msra.mxu0 0.0
    %3292 = vmatpush.msra.mxu0 0.0
    %3293 = vmatpush.msra.mxu0 0.0
    %3294 = vmatpush.msra.mxu0 0.0
    %3295 = vmatpush.msra.mxu0 0.0
    %3296 = vmatpush.msra.mxu0 %v3276
    %3297 = vmatmul.f32.gmra.mxu0 %v3279
    %v3298 = vpop.f32.mrf.mxu0
    %v3299 = vadd.f32 0.0, %v3298
    %3300 = vdwg.mxu0
    %3302 = vrot.lane.b32.xlu0 %v3259, 96
    %v3303 = vpop.permute.xlu0 %3302
    %v3306 = vsel %vm1409, %v3079, 0
    %3308 = vmatpush.msra.mxu0 0.0
    %3309 = vmatpush.msra.mxu0 0.0
    %3310 = vmatpush.msra.mxu0 0.0
    %3311 = vmatpush.msra.mxu0 0.0
    %3312 = vmatpush.msra.mxu0 0.0
    %3313 = vmatpush.msra.mxu0 0.0
    %3314 = vmatpush.msra.mxu0 0.0
    %3315 = vmatpush.msra.mxu0 0.0
    %3316 = vmatpush.msra.mxu0 0.0
    %3317 = vmatpush.msra.mxu0 0.0
    %3318 = vmatpush.msra.mxu0 0.0
    %3319 = vmatpush.msra.mxu0 0.0
    %3320 = vmatpush.msra.mxu0 0.0
    %3321 = vmatpush.msra.mxu0 0.0
    %3322 = vmatpush.msra.mxu0 0.0
    %3323 = vmatpush.msra.mxu0 %v3303
    %3324 = vmatmul.f32.gmra.mxu0 %v3306
    %v3325 = vpop.f32.mrf.mxu0
    %v3326 = vadd.f32 0.0, %v3325
    %3327 = vdwg.mxu0
    %3329 = vrot.lane.b32.xlu0 %v3260, 96
    %v3330 = vpop.permute.xlu0 %3329
    %v3333 = vsel %vm1409, %v3094, 0
    %3335 = vmatpush.msra.mxu0 0.0
    %3336 = vmatpush.msra.mxu0 0.0
    %3337 = vmatpush.msra.mxu0 0.0
    %3338 = vmatpush.msra.mxu0 0.0
    %3339 = vmatpush.msra.mxu0 0.0
    %3340 = vmatpush.msra.mxu0 0.0
    %3341 = vmatpush.msra.mxu0 0.0
    %3342 = vmatpush.msra.mxu0 0.0
    %3343 = vmatpush.msra.mxu0 0.0
    %3344 = vmatpush.msra.mxu0 0.0
    %3345 = vmatpush.msra.mxu0 0.0
    %3346 = vmatpush.msra.mxu0 0.0
    %3347 = vmatpush.msra.mxu0 0.0
    %3348 = vmatpush.msra.mxu0 0.0
    %3349 = vmatpush.msra.mxu0 0.0
    %3350 = vmatpush.msra.mxu0 %v3330
    %3351 = vmatmul.f32.gmra.mxu0 %v3333
    %v3352 = vpop.f32.mrf.mxu0
    %v3353 = vadd.f32 0.0, %v3352
    %3354 = vdwg.mxu0
    %3356 = vrot.lane.b32.xlu0 %v3261, 96
    %v3357 = vpop.permute.xlu0 %3356
    %v3360 = vsel %vm1409, %v3109, 0
    %3362 = vmatpush.msra.mxu0 0.0
    %3363 = vmatpush.msra.mxu0 0.0
    %3364 = vmatpush.msra.mxu0 0.0
    %3365 = vmatpush.msra.mxu0 0.0
    %3366 = vmatpush.msra.mxu0 0.0
    %3367 = vmatpush.msra.mxu0 0.0
    %3368 = vmatpush.msra.mxu0 0.0
    %3369 = vmatpush.msra.mxu0 0.0
    %3370 = vmatpush.msra.mxu0 0.0
    %3371 = vmatpush.msra.mxu0 0.0
    %3372 = vmatpush.msra.mxu0 0.0
    %3373 = vmatpush.msra.mxu0 0.0
    %3374 = vmatpush.msra.mxu0 0.0
    %3375 = vmatpush.msra.mxu0 0.0
    %3376 = vmatpush.msra.mxu0 0.0
    %3377 = vmatpush.msra.mxu0 %v3357
    %3378 = vmatmul.f32.gmra.mxu0 %v3360
    %v3379 = vpop.f32.mrf.mxu0
    %v3380 = vadd.f32 0.0, %v3379
    %3381 = vdwg.mxu0
    %3383 = vrot.lane.b32.xlu0 %v3262, 96
    %v3384 = vpop.permute.xlu0 %3383
    %v3387 = vsel %vm1409, %v3124, 0
    %3389 = vmatpush.msra.mxu0 0.0
    %3390 = vmatpush.msra.mxu0 0.0
    %3391 = vmatpush.msra.mxu0 0.0
    %3392 = vmatpush.msra.mxu0 0.0
    %3393 = vmatpush.msra.mxu0 0.0
    %3394 = vmatpush.msra.mxu0 0.0
    %3395 = vmatpush.msra.mxu0 0.0
    %3396 = vmatpush.msra.mxu0 0.0
    %3397 = vmatpush.msra.mxu0 0.0
    %3398 = vmatpush.msra.mxu0 0.0
    %3399 = vmatpush.msra.mxu0 0.0
    %3400 = vmatpush.msra.mxu0 0.0
    %3401 = vmatpush.msra.mxu0 0.0
    %3402 = vmatpush.msra.mxu0 0.0
    %3403 = vmatpush.msra.mxu0 0.0
    %3404 = vmatpush.msra.mxu0 %v3384
    %3405 = vmatmul.f32.gmra.mxu0 %v3387
    %v3406 = vpop.f32.mrf.mxu0
    %v3407 = vadd.f32 0.0, %v3406
    %3408 = vdwg.mxu0
    %3410 = vrot.lane.b32.xlu0 %v3263, 96
    %v3411 = vpop.permute.xlu0 %3410
    %v3414 = vsel %vm1409, %v3139, 0
    %3416 = vmatpush.msra.mxu0 0.0
    %3417 = vmatpush.msra.mxu0 0.0
    %3418 = vmatpush.msra.mxu0 0.0
    %3419 = vmatpush.msra.mxu0 0.0
    %3420 = vmatpush.msra.mxu0 0.0
    %3421 = vmatpush.msra.mxu0 0.0
    %3422 = vmatpush.msra.mxu0 0.0
    %3423 = vmatpush.msra.mxu0 0.0
    %3424 = vmatpush.msra.mxu0 0.0
    %3425 = vmatpush.msra.mxu0 0.0
    %3426 = vmatpush.msra.mxu0 0.0
    %3427 = vmatpush.msra.mxu0 0.0
    %3428 = vmatpush.msra.mxu0 0.0
    %3429 = vmatpush.msra.mxu0 0.0
    %3430 = vmatpush.msra.mxu0 0.0
    %3431 = vmatpush.msra.mxu0 %v3411
    %3432 = vmatmul.f32.gmra.mxu0 %v3414
    %v3433 = vpop.f32.mrf.mxu0
    %v3434 = vadd.f32 0.0, %v3433
    %3435 = vdwg.mxu0
    %3437 = vrot.lane.b32.xlu0 %v3264, 96
    %v3438 = vpop.permute.xlu0 %3437
    %v3441 = vsel %vm1409, %v3154, 0
    %3443 = vmatpush.msra.mxu0 0.0
    %3444 = vmatpush.msra.mxu0 0.0
    %3445 = vmatpush.msra.mxu0 0.0
    %3446 = vmatpush.msra.mxu0 0.0
    %3447 = vmatpush.msra.mxu0 0.0
    %3448 = vmatpush.msra.mxu0 0.0
    %3449 = vmatpush.msra.mxu0 0.0
    %3450 = vmatpush.msra.mxu0 0.0
    %3451 = vmatpush.msra.mxu0 0.0
    %3452 = vmatpush.msra.mxu0 0.0
    %3453 = vmatpush.msra.mxu0 0.0
    %3454 = vmatpush.msra.mxu0 0.0
    %3455 = vmatpush.msra.mxu0 0.0
    %3456 = vmatpush.msra.mxu0 0.0
    %3457 = vmatpush.msra.mxu0 0.0
    %3458 = vmatpush.msra.mxu0 %v3438
    %3459 = vmatmul.f32.gmra.mxu0 %v3441
    %v3460 = vpop.f32.mrf.mxu0
    %v3461 = vadd.f32 0.0, %v3460
    %3462 = vdwg.mxu0
    %3464 = vrot.lane.b32.xlu0 %v3265, 96
    %v3465 = vpop.permute.xlu0 %3464
    %v3468 = vsel %vm1409, %v3169, 0
    %3470 = vmatpush.msra.mxu0 0.0
    %3471 = vmatpush.msra.mxu0 0.0
    %3472 = vmatpush.msra.mxu0 0.0
    %3473 = vmatpush.msra.mxu0 0.0
    %3474 = vmatpush.msra.mxu0 0.0
    %3475 = vmatpush.msra.mxu0 0.0
    %3476 = vmatpush.msra.mxu0 0.0
    %3477 = vmatpush.msra.mxu0 0.0
    %3478 = vmatpush.msra.mxu0 0.0
    %3479 = vmatpush.msra.mxu0 0.0
    %3480 = vmatpush.msra.mxu0 0.0
    %3481 = vmatpush.msra.mxu0 0.0
    %3482 = vmatpush.msra.mxu0 0.0
    %3483 = vmatpush.msra.mxu0 0.0
    %3484 = vmatpush.msra.mxu0 0.0
    %3485 = vmatpush.msra.mxu0 %v3465
    %3486 = vmatmul.f32.gmra.mxu0 %v3468
    %v3487 = vpop.f32.mrf.mxu0
    %v3488 = vadd.f32 0.0, %v3487
    %3489 = vdwg.mxu0
    %3491 = vset.pattern.permute.xlu0 64
    %3492 = vperm.xlu0 %3491, %v3266
    %v3493 = vpop.permute.xlu0 %3492
    %3496 = vset.pattern.permute.xlu0 64
    %3497 = vperm.xlu0 %3496, %v3267
    %v3498 = vpop.permute.xlu0 %3497
    %3501 = vset.pattern.permute.xlu0 64
    %3502 = vperm.xlu0 %3501, %v3268
    %v3503 = vpop.permute.xlu0 %3502
    %3506 = vset.pattern.permute.xlu0 64
    %3507 = vperm.xlu0 %3506, %v3269
    %v3508 = vpop.permute.xlu0 %3507
    %3511 = vset.pattern.permute.xlu0 64
    %3512 = vperm.xlu0 %3511, %v3270
    %v3513 = vpop.permute.xlu0 %3512
    %3516 = vset.pattern.permute.xlu0 64
    %3517 = vperm.xlu0 %3516, %v3271
    %v3518 = vpop.permute.xlu0 %3517
    %3521 = vset.pattern.permute.xlu0 64
    %3522 = vperm.xlu0 %3521, %v3272
    %v3523 = vpop.permute.xlu0 %3522
    %3526 = vset.pattern.permute.xlu0 64
    %3527 = vperm.xlu0 %3526, %v3273
    %v3528 = vpop.permute.xlu0 %3527
    %v3530 = vmul.f32 %v3493, %v3299
    %v3531 = vmul.f32 %v3498, %v3326
    %v3532 = vmul.f32 %v3503, %v3353
    %v3533 = vmul.f32 %v3508, %v3380
    %v3534 = vmul.f32 %v3513, %v3407
    %v3535 = vmul.f32 %v3518, %v3434
    %v3536 = vmul.f32 %v3523, %v3461
    %v3537 = vmul.f32 %v3528, %v3488
    %v3538 = vadd.f32 %v2434, %v3530
    %v3539 = vadd.f32 %v2435, %v3531
    %v3540 = vadd.f32 %v2436, %v3532
    %v3541 = vadd.f32 %v2437, %v3533
    %v3542 = vadd.f32 %v2438, %v3534
    %v3543 = vadd.f32 %v2439, %v3535
    %v3544 = vadd.f32 %v2440, %v3536
    %v3545 = vadd.f32 %v2441, %v3537
    %v3546 = vmul.f32 %v2794, %v1687
    %v3547 = vmul.f32 %v2795, %v1689
    %v3548 = vmul.f32 %v2796, %v1691
    %v3549 = vmul.f32 %v2797, %v1693
    %v3550 = vmul.f32 %v2798, %v1695
    %v3551 = vmul.f32 %v2799, %v1697
    %v3552 = vmul.f32 %v2800, %v1699
    %v3553 = vmul.f32 %v2801, %v1701
    %3554 = vxpose.xlu0.b32.start [1/16] %v3064, 128
    %3555 = vxpose.xlu0.b32.cont [2/16] 0.0, 128
    %3556 = vxpose.xlu0.b32.cont [3/16] 0.0, 128
    %3557 = vxpose.xlu0.b32.cont [4/16] 0.0, 128
    %3558 = vxpose.xlu0.b32.cont [5/16] 0.0, 128
    %3559 = vxpose.xlu0.b32.cont [6/16] 0.0, 128
    %3560 = vxpose.xlu0.b32.cont [7/16] 0.0, 128
    %3561 = vxpose.xlu0.b32.cont [8/16] 0.0, 128
    %3562 = vxpose.xlu0.b32.cont [9/16] 0.0, 128
    %3563 = vxpose.xlu0.b32.cont [10/16] 0.0, 128
    %3564 = vxpose.xlu0.b32.cont [11/16] 0.0, 128
    %3565 = vxpose.xlu0.b32.cont [12/16] 0.0, 128
    %3566 = vxpose.xlu0.b32.cont [13/16] 0.0, 128
    %3567 = vxpose.xlu0.b32.cont [14/16] 0.0, 128
    %3568 = vxpose.xlu0.b32.cont [15/16] 0.0, 128
    %3569 = vxpose.xlu0.b32.end [16/16] 0.0, 128
    %v3570 = vpop.trf.xlu0
    %v3571 = vpop.trf.xlu0
    %v3572 = vpop.trf.xlu0
    %v3573 = vpop.trf.xlu0
    %v3574 = vpop.trf.xlu0
    %v3575 = vpop.trf.xlu0
    %v3576 = vpop.trf.xlu0
    %v3577 = vpop.trf.xlu0
    %v3578 = vpop.trf.xlu0
    %v3579 = vpop.trf.xlu0
    %v3580 = vpop.trf.xlu0
    %v3581 = vpop.trf.xlu0
    %v3582 = vpop.trf.xlu0
    %v3583 = vpop.trf.xlu0
    %v3584 = vpop.trf.xlu0
    %v3585 = vpop.trf.xlu0
    %3587 = vrot.lane.b32.xlu0 %v3210, 96
    %v3588 = vpop.permute.xlu0 %3587
    %v3591 = vsel %vm1409, %v3570, 0
    %3593 = vmatpush.msra.mxu0 0.0
    %3594 = vmatpush.msra.mxu0 0.0
    %3595 = vmatpush.msra.mxu0 0.0
    %3596 = vmatpush.msra.mxu0 0.0
    %3597 = vmatpush.msra.mxu0 0.0
    %3598 = vmatpush.msra.mxu0 0.0
    %3599 = vmatpush.msra.mxu0 0.0
    %3600 = vmatpush.msra.mxu0 0.0
    %3601 = vmatpush.msra.mxu0 0.0
    %3602 = vmatpush.msra.mxu0 0.0
    %3603 = vmatpush.msra.mxu0 0.0
    %3604 = vmatpush.msra.mxu0 0.0
    %3605 = vmatpush.msra.mxu0 0.0
    %3606 = vmatpush.msra.mxu0 0.0
    %3607 = vmatpush.msra.mxu0 0.0
    %3608 = vmatpush.msra.mxu0 %v3588
    %3609 = vmatmul.f32.gmra.mxu0 %v3591
    %v3610 = vpop.f32.mrf.mxu0
    %v3611 = vadd.f32 0.0, %v3610
    %3612 = vdwg.mxu0
    %3613 = vxpose.xlu0.b32.start [1/16] %v3079, 128
    %3614 = vxpose.xlu0.b32.cont [2/16] 0.0, 128
    %3615 = vxpose.xlu0.b32.cont [3/16] 0.0, 128
    %3616 = vxpose.xlu0.b32.cont [4/16] 0.0, 128
    %3617 = vxpose.xlu0.b32.cont [5/16] 0.0, 128
    %3618 = vxpose.xlu0.b32.cont [6/16] 0.0, 128
    %3619 = vxpose.xlu0.b32.cont [7/16] 0.0, 128
    %3620 = vxpose.xlu0.b32.cont [8/16] 0.0, 128
    %3621 = vxpose.xlu0.b32.cont [9/16] 0.0, 128
    %3622 = vxpose.xlu0.b32.cont [10/16] 0.0, 128
    %3623 = vxpose.xlu0.b32.cont [11/16] 0.0, 128
    %3624 = vxpose.xlu0.b32.cont [12/16] 0.0, 128
    %3625 = vxpose.xlu0.b32.cont [13/16] 0.0, 128
    %3626 = vxpose.xlu0.b32.cont [14/16] 0.0, 128
    %3627 = vxpose.xlu0.b32.cont [15/16] 0.0, 128
    %3628 = vxpose.xlu0.b32.end [16/16] 0.0, 128
    %v3629 = vpop.trf.xlu0
    %v3630 = vpop.trf.xlu0
    %v3631 = vpop.trf.xlu0
    %v3632 = vpop.trf.xlu0
    %v3633 = vpop.trf.xlu0
    %v3634 = vpop.trf.xlu0
    %v3635 = vpop.trf.xlu0
    %v3636 = vpop.trf.xlu0
    %v3637 = vpop.trf.xlu0
    %v3638 = vpop.trf.xlu0
    %v3639 = vpop.trf.xlu0
    %v3640 = vpop.trf.xlu0
    %v3641 = vpop.trf.xlu0
    %v3642 = vpop.trf.xlu0
    %v3643 = vpop.trf.xlu0
    %v3644 = vpop.trf.xlu0
    %3646 = vrot.lane.b32.xlu0 %v3211, 96
    %v3647 = vpop.permute.xlu0 %3646
    %v3650 = vsel %vm1409, %v3629, 0
    %3652 = vmatpush.msra.mxu0 0.0
    %3653 = vmatpush.msra.mxu0 0.0
    %3654 = vmatpush.msra.mxu0 0.0
    %3655 = vmatpush.msra.mxu0 0.0
    %3656 = vmatpush.msra.mxu0 0.0
    %3657 = vmatpush.msra.mxu0 0.0
    %3658 = vmatpush.msra.mxu0 0.0
    %3659 = vmatpush.msra.mxu0 0.0
    %3660 = vmatpush.msra.mxu0 0.0
    %3661 = vmatpush.msra.mxu0 0.0
    %3662 = vmatpush.msra.mxu0 0.0
    %3663 = vmatpush.msra.mxu0 0.0
    %3664 = vmatpush.msra.mxu0 0.0
    %3665 = vmatpush.msra.mxu0 0.0
    %3666 = vmatpush.msra.mxu0 0.0
    %3667 = vmatpush.msra.mxu0 %v3647
    %3668 = vmatmul.f32.gmra.mxu0 %v3650
    %v3669 = vpop.f32.mrf.mxu0
    %v3670 = vadd.f32 0.0, %v3669
    %3671 = vdwg.mxu0
    %3672 = vxpose.xlu0.b32.start [1/16] %v3094, 128
    %3673 = vxpose.xlu0.b32.cont [2/16] 0.0, 128
    %3674 = vxpose.xlu0.b32.cont [3/16] 0.0, 128
    %3675 = vxpose.xlu0.b32.cont [4/16] 0.0, 128
    %3676 = vxpose.xlu0.b32.cont [5/16] 0.0, 128
    %3677 = vxpose.xlu0.b32.cont [6/16] 0.0, 128
    %3678 = vxpose.xlu0.b32.cont [7/16] 0.0, 128
    %3679 = vxpose.xlu0.b32.cont [8/16] 0.0, 128
    %3680 = vxpose.xlu0.b32.cont [9/16] 0.0, 128
    %3681 = vxpose.xlu0.b32.cont [10/16] 0.0, 128
    %3682 = vxpose.xlu0.b32.cont [11/16] 0.0, 128
    %3683 = vxpose.xlu0.b32.cont [12/16] 0.0, 128
    %3684 = vxpose.xlu0.b32.cont [13/16] 0.0, 128
    %3685 = vxpose.xlu0.b32.cont [14/16] 0.0, 128
    %3686 = vxpose.xlu0.b32.cont [15/16] 0.0, 128
    %3687 = vxpose.xlu0.b32.end [16/16] 0.0, 128
    %v3688 = vpop.trf.xlu0
    %v3689 = vpop.trf.xlu0
    %v3690 = vpop.trf.xlu0
    %v3691 = vpop.trf.xlu0
    %v3692 = vpop.trf.xlu0
    %v3693 = vpop.trf.xlu0
    %v3694 = vpop.trf.xlu0
    %v3695 = vpop.trf.xlu0
    %v3696 = vpop.trf.xlu0
    %v3697 = vpop.trf.xlu0
    %v3698 = vpop.trf.xlu0
    %v3699 = vpop.trf.xlu0
    %v3700 = vpop.trf.xlu0
    %v3701 = vpop.trf.xlu0
    %v3702 = vpop.trf.xlu0
    %v3703 = vpop.trf.xlu0
    %3705 = vrot.lane.b32.xlu0 %v3212, 96
    %v3706 = vpop.permute.xlu0 %3705
    %v3709 = vsel %vm1409, %v3688, 0
    %3711 = vmatpush.msra.mxu0 0.0
    %3712 = vmatpush.msra.mxu0 0.0
    %3713 = vmatpush.msra.mxu0 0.0
    %3714 = vmatpush.msra.mxu0 0.0
    %3715 = vmatpush.msra.mxu0 0.0
    %3716 = vmatpush.msra.mxu0 0.0
    %3717 = vmatpush.msra.mxu0 0.0
    %3718 = vmatpush.msra.mxu0 0.0
    %3719 = vmatpush.msra.mxu0 0.0
    %3720 = vmatpush.msra.mxu0 0.0
    %3721 = vmatpush.msra.mxu0 0.0
    %3722 = vmatpush.msra.mxu0 0.0
    %3723 = vmatpush.msra.mxu0 0.0
    %3724 = vmatpush.msra.mxu0 0.0
    %3725 = vmatpush.msra.mxu0 0.0
    %3726 = vmatpush.msra.mxu0 %v3706
    %3727 = vmatmul.f32.gmra.mxu0 %v3709
    %v3728 = vpop.f32.mrf.mxu0
    %v3729 = vadd.f32 0.0, %v3728
    %3730 = vdwg.mxu0
    %3731 = vxpose.xlu0.b32.start [1/16] %v3109, 128
    %3732 = vxpose.xlu0.b32.cont [2/16] 0.0, 128
    %3733 = vxpose.xlu0.b32.cont [3/16] 0.0, 128
    %3734 = vxpose.xlu0.b32.cont [4/16] 0.0, 128
    %3735 = vxpose.xlu0.b32.cont [5/16] 0.0, 128
    %3736 = vxpose.xlu0.b32.cont [6/16] 0.0, 128
    %3737 = vxpose.xlu0.b32.cont [7/16] 0.0, 128
    %3738 = vxpose.xlu0.b32.cont [8/16] 0.0, 128
    %3739 = vxpose.xlu0.b32.cont [9/16] 0.0, 128
    %3740 = vxpose.xlu0.b32.cont [10/16] 0.0, 128
    %3741 = vxpose.xlu0.b32.cont [11/16] 0.0, 128
    %3742 = vxpose.xlu0.b32.cont [12/16] 0.0, 128
    %3743 = vxpose.xlu0.b32.cont [13/16] 0.0, 128
    %3744 = vxpose.xlu0.b32.cont [14/16] 0.0, 128
    %3745 = vxpose.xlu0.b32.cont [15/16] 0.0, 128
    %3746 = vxpose.xlu0.b32.end [16/16] 0.0, 128
    %v3747 = vpop.trf.xlu0
    %v3748 = vpop.trf.xlu0
    %v3749 = vpop.trf.xlu0
    %v3750 = vpop.trf.xlu0
    %v3751 = vpop.trf.xlu0
    %v3752 = vpop.trf.xlu0
    %v3753 = vpop.trf.xlu0
    %v3754 = vpop.trf.xlu0
    %v3755 = vpop.trf.xlu0
    %v3756 = vpop.trf.xlu0
    %v3757 = vpop.trf.xlu0
    %v3758 = vpop.trf.xlu0
    %v3759 = vpop.trf.xlu0
    %v3760 = vpop.trf.xlu0
    %v3761 = vpop.trf.xlu0
    %v3762 = vpop.trf.xlu0
    %3764 = vrot.lane.b32.xlu0 %v3213, 96
    %v3765 = vpop.permute.xlu0 %3764
    %v3768 = vsel %vm1409, %v3747, 0
    %3770 = vmatpush.msra.mxu0 0.0
    %3771 = vmatpush.msra.mxu0 0.0
    %3772 = vmatpush.msra.mxu0 0.0
    %3773 = vmatpush.msra.mxu0 0.0
    %3774 = vmatpush.msra.mxu0 0.0
    %3775 = vmatpush.msra.mxu0 0.0
    %3776 = vmatpush.msra.mxu0 0.0
    %3777 = vmatpush.msra.mxu0 0.0
    %3778 = vmatpush.msra.mxu0 0.0
    %3779 = vmatpush.msra.mxu0 0.0
    %3780 = vmatpush.msra.mxu0 0.0
    %3781 = vmatpush.msra.mxu0 0.0
    %3782 = vmatpush.msra.mxu0 0.0
    %3783 = vmatpush.msra.mxu0 0.0
    %3784 = vmatpush.msra.mxu0 0.0
    %3785 = vmatpush.msra.mxu0 %v3765
    %3786 = vmatmul.f32.gmra.mxu0 %v3768
    %v3787 = vpop.f32.mrf.mxu0
    %v3788 = vadd.f32 0.0, %v3787
    %3789 = vdwg.mxu0
    %3790 = vxpose.xlu0.b32.start [1/16] %v3124, 128
    %3791 = vxpose.xlu0.b32.cont [2/16] 0.0, 128
    %3792 = vxpose.xlu0.b32.cont [3/16] 0.0, 128
    %3793 = vxpose.xlu0.b32.cont [4/16] 0.0, 128
    %3794 = vxpose.xlu0.b32.cont [5/16] 0.0, 128
    %3795 = vxpose.xlu0.b32.cont [6/16] 0.0, 128
    %3796 = vxpose.xlu0.b32.cont [7/16] 0.0, 128
    %3797 = vxpose.xlu0.b32.cont [8/16] 0.0, 128
    %3798 = vxpose.xlu0.b32.cont [9/16] 0.0, 128
    %3799 = vxpose.xlu0.b32.cont [10/16] 0.0, 128
    %3800 = vxpose.xlu0.b32.cont [11/16] 0.0, 128
    %3801 = vxpose.xlu0.b32.cont [12/16] 0.0, 128
    %3802 = vxpose.xlu0.b32.cont [13/16] 0.0, 128
    %3803 = vxpose.xlu0.b32.cont [14/16] 0.0, 128
    %3804 = vxpose.xlu0.b32.cont [15/16] 0.0, 128
    %3805 = vxpose.xlu0.b32.end [16/16] 0.0, 128
    %v3806 = vpop.trf.xlu0
    %v3807 = vpop.trf.xlu0
    %v3808 = vpop.trf.xlu0
    %v3809 = vpop.trf.xlu0
    %v3810 = vpop.trf.xlu0
    %v3811 = vpop.trf.xlu0
    %v3812 = vpop.trf.xlu0
    %v3813 = vpop.trf.xlu0
    %v3814 = vpop.trf.xlu0
    %v3815 = vpop.trf.xlu0
    %v3816 = vpop.trf.xlu0
    %v3817 = vpop.trf.xlu0
    %v3818 = vpop.trf.xlu0
    %v3819 = vpop.trf.xlu0
    %v3820 = vpop.trf.xlu0
    %v3821 = vpop.trf.xlu0
    %3823 = vrot.lane.b32.xlu0 %v3214, 96
    %v3824 = vpop.permute.xlu0 %3823
    %v3827 = vsel %vm1409, %v3806, 0
    %3829 = vmatpush.msra.mxu0 0.0
    %3830 = vmatpush.msra.mxu0 0.0
    %3831 = vmatpush.msra.mxu0 0.0
    %3832 = vmatpush.msra.mxu0 0.0
    %3833 = vmatpush.msra.mxu0 0.0
    %3834 = vmatpush.msra.mxu0 0.0
    %3835 = vmatpush.msra.mxu0 0.0
    %3836 = vmatpush.msra.mxu0 0.0
    %3837 = vmatpush.msra.mxu0 0.0
    %3838 = vmatpush.msra.mxu0 0.0
    %3839 = vmatpush.msra.mxu0 0.0
    %3840 = vmatpush.msra.mxu0 0.0
    %3841 = vmatpush.msra.mxu0 0.0
    %3842 = vmatpush.msra.mxu0 0.0
    %3843 = vmatpush.msra.mxu0 0.0
    %3844 = vmatpush.msra.mxu0 %v3824
    %3845 = vmatmul.f32.gmra.mxu0 %v3827
    %v3846 = vpop.f32.mrf.mxu0
    %v3847 = vadd.f32 0.0, %v3846
    %3848 = vdwg.mxu0
    %3849 = vxpose.xlu0.b32.start [1/16] %v3139, 128
    %3850 = vxpose.xlu0.b32.cont [2/16] 0.0, 128
    %3851 = vxpose.xlu0.b32.cont [3/16] 0.0, 128
    %3852 = vxpose.xlu0.b32.cont [4/16] 0.0, 128
    %3853 = vxpose.xlu0.b32.cont [5/16] 0.0, 128
    %3854 = vxpose.xlu0.b32.cont [6/16] 0.0, 128
    %3855 = vxpose.xlu0.b32.cont [7/16] 0.0, 128
    %3856 = vxpose.xlu0.b32.cont [8/16] 0.0, 128
    %3857 = vxpose.xlu0.b32.cont [9/16] 0.0, 128
    %3858 = vxpose.xlu0.b32.cont [10/16] 0.0, 128
    %3859 = vxpose.xlu0.b32.cont [11/16] 0.0, 128
    %3860 = vxpose.xlu0.b32.cont [12/16] 0.0, 128
    %3861 = vxpose.xlu0.b32.cont [13/16] 0.0, 128
    %3862 = vxpose.xlu0.b32.cont [14/16] 0.0, 128
    %3863 = vxpose.xlu0.b32.cont [15/16] 0.0, 128
    %3864 = vxpose.xlu0.b32.end [16/16] 0.0, 128
    %v3865 = vpop.trf.xlu0
    %v3866 = vpop.trf.xlu0
    %v3867 = vpop.trf.xlu0
    %v3868 = vpop.trf.xlu0
    %v3869 = vpop.trf.xlu0
    %v3870 = vpop.trf.xlu0
    %v3871 = vpop.trf.xlu0
    %v3872 = vpop.trf.xlu0
    %v3873 = vpop.trf.xlu0
    %v3874 = vpop.trf.xlu0
    %v3875 = vpop.trf.xlu0
    %v3876 = vpop.trf.xlu0
    %v3877 = vpop.trf.xlu0
    %v3878 = vpop.trf.xlu0
    %v3879 = vpop.trf.xlu0
    %v3880 = vpop.trf.xlu0
    %3882 = vrot.lane.b32.xlu0 %v3215, 96
    %v3883 = vpop.permute.xlu0 %3882
    %v3886 = vsel %vm1409, %v3865, 0
    %3888 = vmatpush.msra.mxu0 0.0
    %3889 = vmatpush.msra.mxu0 0.0
    %3890 = vmatpush.msra.mxu0 0.0
    %3891 = vmatpush.msra.mxu0 0.0
    %3892 = vmatpush.msra.mxu0 0.0
    %3893 = vmatpush.msra.mxu0 0.0
    %3894 = vmatpush.msra.mxu0 0.0
    %3895 = vmatpush.msra.mxu0 0.0
    %3896 = vmatpush.msra.mxu0 0.0
    %3897 = vmatpush.msra.mxu0 0.0
    %3898 = vmatpush.msra.mxu0 0.0
    %3899 = vmatpush.msra.mxu0 0.0
    %3900 = vmatpush.msra.mxu0 0.0
    %3901 = vmatpush.msra.mxu0 0.0
    %3902 = vmatpush.msra.mxu0 0.0
    %3903 = vmatpush.msra.mxu0 %v3883
    %3904 = vmatmul.f32.gmra.mxu0 %v3886
    %v3905 = vpop.f32.mrf.mxu0
    %v3906 = vadd.f32 0.0, %v3905
    %3907 = vdwg.mxu0
    %3908 = vxpose.xlu0.b32.start [1/16] %v3154, 128
    %3909 = vxpose.xlu0.b32.cont [2/16] 0.0, 128
    %3910 = vxpose.xlu0.b32.cont [3/16] 0.0, 128
    %3911 = vxpose.xlu0.b32.cont [4/16] 0.0, 128
    %3912 = vxpose.xlu0.b32.cont [5/16] 0.0, 128
    %3913 = vxpose.xlu0.b32.cont [6/16] 0.0, 128
    %3914 = vxpose.xlu0.b32.cont [7/16] 0.0, 128
    %3915 = vxpose.xlu0.b32.cont [8/16] 0.0, 128
    %3916 = vxpose.xlu0.b32.cont [9/16] 0.0, 128
    %3917 = vxpose.xlu0.b32.cont [10/16] 0.0, 128
    %3918 = vxpose.xlu0.b32.cont [11/16] 0.0, 128
    %3919 = vxpose.xlu0.b32.cont [12/16] 0.0, 128
    %3920 = vxpose.xlu0.b32.cont [13/16] 0.0, 128
    %3921 = vxpose.xlu0.b32.cont [14/16] 0.0, 128
    %3922 = vxpose.xlu0.b32.cont [15/16] 0.0, 128
    %3923 = vxpose.xlu0.b32.end [16/16] 0.0, 128
    %v3924 = vpop.trf.xlu0
    %v3925 = vpop.trf.xlu0
    %v3926 = vpop.trf.xlu0
    %v3927 = vpop.trf.xlu0
    %v3928 = vpop.trf.xlu0
    %v3929 = vpop.trf.xlu0
    %v3930 = vpop.trf.xlu0
    %v3931 = vpop.trf.xlu0
    %v3932 = vpop.trf.xlu0
    %v3933 = vpop.trf.xlu0
    %v3934 = vpop.trf.xlu0
    %v3935 = vpop.trf.xlu0
    %v3936 = vpop.trf.xlu0
    %v3937 = vpop.trf.xlu0
    %v3938 = vpop.trf.xlu0
    %v3939 = vpop.trf.xlu0
    %3941 = vrot.lane.b32.xlu0 %v3216, 96
    %v3942 = vpop.permute.xlu0 %3941
    %v3945 = vsel %vm1409, %v3924, 0
    %3947 = vmatpush.msra.mxu0 0.0
    %3948 = vmatpush.msra.mxu0 0.0
    %3949 = vmatpush.msra.mxu0 0.0
    %3950 = vmatpush.msra.mxu0 0.0
    %3951 = vmatpush.msra.mxu0 0.0
    %3952 = vmatpush.msra.mxu0 0.0
    %3953 = vmatpush.msra.mxu0 0.0
    %3954 = vmatpush.msra.mxu0 0.0
    %3955 = vmatpush.msra.mxu0 0.0
    %3956 = vmatpush.msra.mxu0 0.0
    %3957 = vmatpush.msra.mxu0 0.0
    %3958 = vmatpush.msra.mxu0 0.0
    %3959 = vmatpush.msra.mxu0 0.0
    %3960 = vmatpush.msra.mxu0 0.0
    %3961 = vmatpush.msra.mxu0 0.0
    %3962 = vmatpush.msra.mxu0 %v3942
    %3963 = vmatmul.f32.gmra.mxu0 %v3945
    %v3964 = vpop.f32.mrf.mxu0
    %v3965 = vadd.f32 0.0, %v3964
    %3966 = vdwg.mxu0
    %3967 = vxpose.xlu0.b32.start [1/16] %v3169, 128
    %3968 = vxpose.xlu0.b32.cont [2/16] 0.0, 128
    %3969 = vxpose.xlu0.b32.cont [3/16] 0.0, 128
    %3970 = vxpose.xlu0.b32.cont [4/16] 0.0, 128
    %3971 = vxpose.xlu0.b32.cont [5/16] 0.0, 128
    %3972 = vxpose.xlu0.b32.cont [6/16] 0.0, 128
    %3973 = vxpose.xlu0.b32.cont [7/16] 0.0, 128
    %3974 = vxpose.xlu0.b32.cont [8/16] 0.0, 128
    %3975 = vxpose.xlu0.b32.cont [9/16] 0.0, 128
    %3976 = vxpose.xlu0.b32.cont [10/16] 0.0, 128
    %3977 = vxpose.xlu0.b32.cont [11/16] 0.0, 128
    %3978 = vxpose.xlu0.b32.cont [12/16] 0.0, 128
    %3979 = vxpose.xlu0.b32.cont [13/16] 0.0, 128
    %3980 = vxpose.xlu0.b32.cont [14/16] 0.0, 128
    %3981 = vxpose.xlu0.b32.cont [15/16] 0.0, 128
    %3982 = vxpose.xlu0.b32.end [16/16] 0.0, 128
    %v3983 = vpop.trf.xlu0
    %v3984 = vpop.trf.xlu0
    %v3985 = vpop.trf.xlu0
    %v3986 = vpop.trf.xlu0
    %v3987 = vpop.trf.xlu0
    %v3988 = vpop.trf.xlu0
    %v3989 = vpop.trf.xlu0
    %v3990 = vpop.trf.xlu0
    %v3991 = vpop.trf.xlu0
    %v3992 = vpop.trf.xlu0
    %v3993 = vpop.trf.xlu0
    %v3994 = vpop.trf.xlu0
    %v3995 = vpop.trf.xlu0
    %v3996 = vpop.trf.xlu0
    %v3997 = vpop.trf.xlu0
    %v3998 = vpop.trf.xlu0
    %4000 = vrot.lane.b32.xlu0 %v3217, 96
    %v4001 = vpop.permute.xlu0 %4000
    %v4004 = vsel %vm1409, %v3983, 0
    %4006 = vmatpush.msra.mxu0 0.0
    %4007 = vmatpush.msra.mxu0 0.0
    %4008 = vmatpush.msra.mxu0 0.0
    %4009 = vmatpush.msra.mxu0 0.0
    %4010 = vmatpush.msra.mxu0 0.0
    %4011 = vmatpush.msra.mxu0 0.0
    %4012 = vmatpush.msra.mxu0 0.0
    %4013 = vmatpush.msra.mxu0 0.0
    %4014 = vmatpush.msra.mxu0 0.0
    %4015 = vmatpush.msra.mxu0 0.0
    %4016 = vmatpush.msra.mxu0 0.0
    %4017 = vmatpush.msra.mxu0 0.0
    %4018 = vmatpush.msra.mxu0 0.0
    %4019 = vmatpush.msra.mxu0 0.0
    %4020 = vmatpush.msra.mxu0 0.0
    %4021 = vmatpush.msra.mxu0 %v4001
    %4022 = vmatmul.f32.gmra.mxu0 %v4004
    %v4023 = vpop.f32.mrf.mxu0
    %v4024 = vadd.f32 0.0, %v4023
    %4025 = vdwg.mxu0
    %4027 = vset.pattern.permute.xlu0 64
    %4028 = vperm.xlu0 %4027, %v3546
    %v4029 = vpop.permute.xlu0 %4028
    %4032 = vset.pattern.permute.xlu0 64
    %4033 = vperm.xlu0 %4032, %v3547
    %v4034 = vpop.permute.xlu0 %4033
    %4037 = vset.pattern.permute.xlu0 64
    %4038 = vperm.xlu0 %4037, %v3548
    %v4039 = vpop.permute.xlu0 %4038
    %4042 = vset.pattern.permute.xlu0 64
    %4043 = vperm.xlu0 %4042, %v3549
    %v4044 = vpop.permute.xlu0 %4043
    %4047 = vset.pattern.permute.xlu0 64
    %4048 = vperm.xlu0 %4047, %v3550
    %v4049 = vpop.permute.xlu0 %4048
    %4052 = vset.pattern.permute.xlu0 64
    %4053 = vperm.xlu0 %4052, %v3551
    %v4054 = vpop.permute.xlu0 %4053
    %4057 = vset.pattern.permute.xlu0 64
    %4058 = vperm.xlu0 %4057, %v3552
    %v4059 = vpop.permute.xlu0 %4058
    %4062 = vset.pattern.permute.xlu0 64
    %4063 = vperm.xlu0 %4062, %v3553
    %v4064 = vpop.permute.xlu0 %4063
    %v4066 = vmul.f32 %v4029, %v3611
    %v4067 = vmul.f32 %v4034, %v3670
    %v4068 = vmul.f32 %v4039, %v3729
    %v4069 = vmul.f32 %v4044, %v3788
    %v4070 = vmul.f32 %v4049, %v3847
    %v4071 = vmul.f32 %v4054, %v3906
    %v4072 = vmul.f32 %v4059, %v3965
    %v4073 = vmul.f32 %v4064, %v4024
    %v4074 = vadd.f32 %v2628, %v4066
    %v4075 = vadd.f32 %v2629, %v4067
    %v4076 = vadd.f32 %v2630, %v4068
    %v4077 = vadd.f32 %v2631, %v4069
    %v4078 = vadd.f32 %v2632, %v4070
    %v4079 = vadd.f32 %v2633, %v4071
    %v4080 = vadd.f32 %v2634, %v4072
    %v4081 = vadd.f32 %v2635, %v4073
    %s4082 = scalar_lea.vmem %s6, 8
    %v4083 = vld [vmem:[%s4082] sm:$0xf]
    %v4084 = vsel %vm155, %v3538, 0.0
    %4085 = vadd.xlane.f32.xlu0 %v4084
    %v4086 = vpop.xlane.xlu0 %4085
    %v4087 = vsel %vm155, %v3539, 0.0
    %4088 = vadd.xlane.f32.xlu0 %v4087
    %v4089 = vpop.xlane.xlu0 %4088
    %v4090 = vsel %vm155, %v3540, 0.0
    %4091 = vadd.xlane.f32.xlu0 %v4090
    %v4092 = vpop.xlane.xlu0 %4091
    %v4093 = vsel %vm155, %v3541, 0.0
    %4094 = vadd.xlane.f32.xlu0 %v4093
    %v4095 = vpop.xlane.xlu0 %4094
    %v4096 = vsel %vm155, %v3542, 0.0
    %4097 = vadd.xlane.f32.xlu0 %v4096
    %v4098 = vpop.xlane.xlu0 %4097
    %v4099 = vsel %vm155, %v3543, 0.0
    %4100 = vadd.xlane.f32.xlu0 %v4099
    %v4101 = vpop.xlane.xlu0 %4100
    %v4102 = vsel %vm155, %v3544, 0.0
    %4103 = vadd.xlane.f32.xlu0 %v4102
    %v4104 = vpop.xlane.xlu0 %4103
    %v4105 = vsel %vm155, %v3545, 0.0
    %4106 = vadd.xlane.f32.xlu0 %v4105
    %v4107 = vpop.xlane.xlu0 %4106
    %v4108 = vmul.f32 %v4086, %v367
    %v4109 = vmul.f32 %v4089, %v367
    %v4110 = vmul.f32 %v4092, %v367
    %v4111 = vmul.f32 %v4095, %v367
    %v4112 = vmul.f32 %v4098, %v367
    %v4113 = vmul.f32 %v4101, %v367
    %v4114 = vmul.f32 %v4104, %v367
    %v4115 = vmul.f32 %v4107, %v367
    %v4116 = vsub.f32 %v3538, %v4108
    %v4117 = vsub.f32 %v3539, %v4109
    %v4118 = vsub.f32 %v3540, %v4110
    %v4119 = vsub.f32 %v3541, %v4111
    %v4120 = vsub.f32 %v3542, %v4112
    %v4121 = vsub.f32 %v3543, %v4113
    %v4122 = vsub.f32 %v3544, %v4114
    %v4123 = vsub.f32 %v3545, %v4115
    %v4124 = vmul.f32 %v4116, %v4116
    %v4125 = vmul.f32 %v4117, %v4117
    %v4126 = vmul.f32 %v4118, %v4118
    %v4127 = vmul.f32 %v4119, %v4119
    %v4128 = vmul.f32 %v4120, %v4120
    %v4129 = vmul.f32 %v4121, %v4121
    %v4130 = vmul.f32 %v4122, %v4122
    %v4131 = vmul.f32 %v4123, %v4123
    %v4132 = vsel %vm155, %v4124, 0.0
    %4133 = vadd.xlane.f32.xlu0 %v4132
    %v4134 = vpop.xlane.xlu0 %4133
    %v4135 = vsel %vm155, %v4125, 0.0
    %4136 = vadd.xlane.f32.xlu0 %v4135
    %v4137 = vpop.xlane.xlu0 %4136
    %v4138 = vsel %vm155, %v4126, 0.0
    %4139 = vadd.xlane.f32.xlu0 %v4138
    %v4140 = vpop.xlane.xlu0 %4139
    %v4141 = vsel %vm155, %v4127, 0.0
    %4142 = vadd.xlane.f32.xlu0 %v4141
    %v4143 = vpop.xlane.xlu0 %4142
    %v4144 = vsel %vm155, %v4128, 0.0
    %4145 = vadd.xlane.f32.xlu0 %v4144
    %v4146 = vpop.xlane.xlu0 %4145
    %v4147 = vsel %vm155, %v4129, 0.0
    %4148 = vadd.xlane.f32.xlu0 %v4147
    %v4149 = vpop.xlane.xlu0 %4148
    %v4150 = vsel %vm155, %v4130, 0.0
    %4151 = vadd.xlane.f32.xlu0 %v4150
    %v4152 = vpop.xlane.xlu0 %4151
    %v4153 = vsel %vm155, %v4131, 0.0
    %4154 = vadd.xlane.f32.xlu0 %v4153
    %v4155 = vpop.xlane.xlu0 %4154
    %v4156 = vmul.f32 %v4134, %v367
    %v4157 = vmul.f32 %v4137, %v367
    %v4158 = vmul.f32 %v4140, %v367
    %v4159 = vmul.f32 %v4143, %v367
    %v4160 = vmul.f32 %v4146, %v367
    %v4161 = vmul.f32 %v4149, %v367
    %v4162 = vmul.f32 %v4152, %v367
    %v4163 = vmul.f32 %v4155, %v367
    %v4164 = vadd.f32 %v4156, 1e-05
    %v4165 = vadd.f32 %v4157, 1e-05
    %v4166 = vadd.f32 %v4158, 1e-05
    %v4167 = vadd.f32 %v4159, 1e-05
    %v4168 = vadd.f32 %v4160, 1e-05
    %v4169 = vadd.f32 %v4161, 1e-05
    %v4170 = vadd.f32 %v4162, 1e-05
    %v4171 = vadd.f32 %v4163, 1e-05
    %v4172 = vrsqrt.pop %v4164
    %v4173 = vmul.f32 %v4172, %v4164
    %v4174 = vmul.f32 %v4173, %v4172
    %v4175 = vmul.f32 0.5, %v4174
    %v4176 = vsub.f32 1.5, %v4175
    %v4177 = vmul.f32 %v4172, %v4176
    %vm4178 = vweird.f32 %v4164
    %vm4179 = vweird.f32 %v4172
    %vm4180 = vmor %vm4178, %vm4179
    %v4181 = vsel %vm4180, %v4172, %v4177
    %v4182 = vrsqrt.pop %v4165
    %v4183 = vmul.f32 %v4182, %v4165
    %v4184 = vmul.f32 %v4183, %v4182
    %v4185 = vmul.f32 0.5, %v4184
    %v4186 = vsub.f32 1.5, %v4185
    %v4187 = vmul.f32 %v4182, %v4186
    %vm4188 = vweird.f32 %v4165
    %vm4189 = vweird.f32 %v4182
    %vm4190 = vmor %vm4188, %vm4189
    %v4191 = vsel %vm4190, %v4182, %v4187
    %v4192 = vrsqrt.pop %v4166
    %v4193 = vmul.f32 %v4192, %v4166
    %v4194 = vmul.f32 %v4193, %v4192
    %v4195 = vmul.f32 0.5, %v4194
    %v4196 = vsub.f32 1.5, %v4195
    %v4197 = vmul.f32 %v4192, %v4196
    %vm4198 = vweird.f32 %v4166
    %vm4199 = vweird.f32 %v4192
    %vm4200 = vmor %vm4198, %vm4199
    %v4201 = vsel %vm4200, %v4192, %v4197
    %v4202 = vrsqrt.pop %v4167
    %v4203 = vmul.f32 %v4202, %v4167
    %v4204 = vmul.f32 %v4203, %v4202
    %v4205 = vmul.f32 0.5, %v4204
    %v4206 = vsub.f32 1.5, %v4205
    %v4207 = vmul.f32 %v4202, %v4206
    %vm4208 = vweird.f32 %v4167
    %vm4209 = vweird.f32 %v4202
    %vm4210 = vmor %vm4208, %vm4209
    %v4211 = vsel %vm4210, %v4202, %v4207
    %v4212 = vrsqrt.pop %v4168
    %v4213 = vmul.f32 %v4212, %v4168
    %v4214 = vmul.f32 %v4213, %v4212
    %v4215 = vmul.f32 0.5, %v4214
    %v4216 = vsub.f32 1.5, %v4215
    %v4217 = vmul.f32 %v4212, %v4216
    %vm4218 = vweird.f32 %v4168
    %vm4219 = vweird.f32 %v4212
    %vm4220 = vmor %vm4218, %vm4219
    %v4221 = vsel %vm4220, %v4212, %v4217
    %v4222 = vrsqrt.pop %v4169
    %v4223 = vmul.f32 %v4222, %v4169
    %v4224 = vmul.f32 %v4223, %v4222
    %v4225 = vmul.f32 0.5, %v4224
    %v4226 = vsub.f32 1.5, %v4225
    %v4227 = vmul.f32 %v4222, %v4226
    %vm4228 = vweird.f32 %v4169
    %vm4229 = vweird.f32 %v4222
    %vm4230 = vmor %vm4228, %vm4229
    %v4231 = vsel %vm4230, %v4222, %v4227
    %v4232 = vrsqrt.pop %v4170
    %v4233 = vmul.f32 %v4232, %v4170
    %v4234 = vmul.f32 %v4233, %v4232
    %v4235 = vmul.f32 0.5, %v4234
    %v4236 = vsub.f32 1.5, %v4235
    %v4237 = vmul.f32 %v4232, %v4236
    %vm4238 = vweird.f32 %v4170
    %vm4239 = vweird.f32 %v4232
    %vm4240 = vmor %vm4238, %vm4239
    %v4241 = vsel %vm4240, %v4232, %v4237
    %v4242 = vrsqrt.pop %v4171
    %v4243 = vmul.f32 %v4242, %v4171
    %v4244 = vmul.f32 %v4243, %v4242
    %v4245 = vmul.f32 0.5, %v4244
    %v4246 = vsub.f32 1.5, %v4245
    %v4247 = vmul.f32 %v4242, %v4246
    %vm4248 = vweird.f32 %v4171
    %vm4249 = vweird.f32 %v4242
    %vm4250 = vmor %vm4248, %vm4249
    %v4251 = vsel %vm4250, %v4242, %v4247
    %v4252 = vmul.f32 %v4116, %v4181
    %v4253 = vmul.f32 %v4117, %v4191
    %v4254 = vmul.f32 %v4118, %v4201
    %v4255 = vmul.f32 %v4119, %v4211
    %v4256 = vmul.f32 %v4120, %v4221
    %v4257 = vmul.f32 %v4121, %v4231
    %v4258 = vmul.f32 %v4122, %v4241
    %v4259 = vmul.f32 %v4123, %v4251
    %v4260 = vperm.slane %v4083, 0
    %v4261 = vmul.f32 %v4252, %v4260
    %v4262 = vmul.f32 %v4253, %v4260
    %v4263 = vmul.f32 %v4254, %v4260
    %v4264 = vmul.f32 %v4255, %v4260
    %v4265 = vmul.f32 %v4256, %v4260
    %v4266 = vmul.f32 %v4257, %v4260
    %v4267 = vmul.f32 %v4258, %v4260
    %v4268 = vmul.f32 %v4259, %v4260
    %v4269 = vperm.slane %v4083, 1
    %v4270 = vadd.f32 %v4261, %v4269
    %v4271 = vadd.f32 %v4262, %v4269
    %v4272 = vadd.f32 %v4263, %v4269
    %v4273 = vadd.f32 %v4264, %v4269
    %v4274 = vadd.f32 %v4265, %v4269
    %v4275 = vadd.f32 %v4266, %v4269
    %v4276 = vadd.f32 %v4267, %v4269
    %v4277 = vadd.f32 %v4268, %v4269
    %v4278 = vsel %vm155, %v4074, 0.0
    %4279 = vadd.xlane.f32.xlu0 %v4278
    %v4280 = vpop.xlane.xlu0 %4279
    %v4281 = vsel %vm155, %v4075, 0.0
    %4282 = vadd.xlane.f32.xlu0 %v4281
    %v4283 = vpop.xlane.xlu0 %4282
    %v4284 = vsel %vm155, %v4076, 0.0
    %4285 = vadd.xlane.f32.xlu0 %v4284
    %v4286 = vpop.xlane.xlu0 %4285
    %v4287 = vsel %vm155, %v4077, 0.0
    %4288 = vadd.xlane.f32.xlu0 %v4287
    %v4289 = vpop.xlane.xlu0 %4288
    %v4290 = vsel %vm155, %v4078, 0.0
    %4291 = vadd.xlane.f32.xlu0 %v4290
    %v4292 = vpop.xlane.xlu0 %4291
    %v4293 = vsel %vm155, %v4079, 0.0
    %4294 = vadd.xlane.f32.xlu0 %v4293
    %v4295 = vpop.xlane.xlu0 %4294
    %v4296 = vsel %vm155, %v4080, 0.0
    %4297 = vadd.xlane.f32.xlu0 %v4296
    %v4298 = vpop.xlane.xlu0 %4297
    %v4299 = vsel %vm155, %v4081, 0.0
    %4300 = vadd.xlane.f32.xlu0 %v4299
    %v4301 = vpop.xlane.xlu0 %4300
    %v4302 = vmul.f32 %v4280, %v367
    %v4303 = vmul.f32 %v4283, %v367
    %v4304 = vmul.f32 %v4286, %v367
    %v4305 = vmul.f32 %v4289, %v367
    %v4306 = vmul.f32 %v4292, %v367
    %v4307 = vmul.f32 %v4295, %v367
    %v4308 = vmul.f32 %v4298, %v367
    %v4309 = vmul.f32 %v4301, %v367
    %v4310 = vsub.f32 %v4074, %v4302
    %v4311 = vsub.f32 %v4075, %v4303
    %v4312 = vsub.f32 %v4076, %v4304
    %v4313 = vsub.f32 %v4077, %v4305
    %v4314 = vsub.f32 %v4078, %v4306
    %v4315 = vsub.f32 %v4079, %v4307
    %v4316 = vsub.f32 %v4080, %v4308
    %v4317 = vsub.f32 %v4081, %v4309
    %v4318 = vmul.f32 %v4310, %v4310
    %v4319 = vmul.f32 %v4311, %v4311
    %v4320 = vmul.f32 %v4312, %v4312
    %v4321 = vmul.f32 %v4313, %v4313
    %v4322 = vmul.f32 %v4314, %v4314
    %v4323 = vmul.f32 %v4315, %v4315
    %v4324 = vmul.f32 %v4316, %v4316
    %v4325 = vmul.f32 %v4317, %v4317
    %v4326 = vsel %vm155, %v4318, 0.0
    %4327 = vadd.xlane.f32.xlu0 %v4326
    %v4328 = vpop.xlane.xlu0 %4327
    %v4329 = vsel %vm155, %v4319, 0.0
    %4330 = vadd.xlane.f32.xlu0 %v4329
    %v4331 = vpop.xlane.xlu0 %4330
    %v4332 = vsel %vm155, %v4320, 0.0
    %4333 = vadd.xlane.f32.xlu0 %v4332
    %v4334 = vpop.xlane.xlu0 %4333
    %v4335 = vsel %vm155, %v4321, 0.0
    %4336 = vadd.xlane.f32.xlu0 %v4335
    %v4337 = vpop.xlane.xlu0 %4336
    %v4338 = vsel %vm155, %v4322, 0.0
    %4339 = vadd.xlane.f32.xlu0 %v4338
    %v4340 = vpop.xlane.xlu0 %4339
    %v4341 = vsel %vm155, %v4323, 0.0
    %4342 = vadd.xlane.f32.xlu0 %v4341
    %v4343 = vpop.xlane.xlu0 %4342
    %v4344 = vsel %vm155, %v4324, 0.0
    %4345 = vadd.xlane.f32.xlu0 %v4344
    %v4346 = vpop.xlane.xlu0 %4345
    %v4347 = vsel %vm155, %v4325, 0.0
    %4348 = vadd.xlane.f32.xlu0 %v4347
    %v4349 = vpop.xlane.xlu0 %4348
    %v4350 = vmul.f32 %v4328, %v367
    %v4351 = vmul.f32 %v4331, %v367
    %v4352 = vmul.f32 %v4334, %v367
    %v4353 = vmul.f32 %v4337, %v367
    %v4354 = vmul.f32 %v4340, %v367
    %v4355 = vmul.f32 %v4343, %v367
    %v4356 = vmul.f32 %v4346, %v367
    %v4357 = vmul.f32 %v4349, %v367
    %v4358 = vadd.f32 %v4350, 1e-05
    %v4359 = vadd.f32 %v4351, 1e-05
    %v4360 = vadd.f32 %v4352, 1e-05
    %v4361 = vadd.f32 %v4353, 1e-05
    %v4362 = vadd.f32 %v4354, 1e-05
    %v4363 = vadd.f32 %v4355, 1e-05
    %v4364 = vadd.f32 %v4356, 1e-05
    %v4365 = vadd.f32 %v4357, 1e-05
    %v4366 = vrsqrt.pop %v4358
    %v4367 = vmul.f32 %v4366, %v4358
    %v4368 = vmul.f32 %v4367, %v4366
    %v4369 = vmul.f32 0.5, %v4368
    %v4370 = vsub.f32 1.5, %v4369
    %v4371 = vmul.f32 %v4366, %v4370
    %vm4372 = vweird.f32 %v4358
    %vm4373 = vweird.f32 %v4366
    %vm4374 = vmor %vm4372, %vm4373
    %v4375 = vsel %vm4374, %v4366, %v4371
    %v4376 = vrsqrt.pop %v4359
    %v4377 = vmul.f32 %v4376, %v4359
    %v4378 = vmul.f32 %v4377, %v4376
    %v4379 = vmul.f32 0.5, %v4378
    %v4380 = vsub.f32 1.5, %v4379
    %v4381 = vmul.f32 %v4376, %v4380
    %vm4382 = vweird.f32 %v4359
    %vm4383 = vweird.f32 %v4376
    %vm4384 = vmor %vm4382, %vm4383
    %v4385 = vsel %vm4384, %v4376, %v4381
    %v4386 = vrsqrt.pop %v4360
    %v4387 = vmul.f32 %v4386, %v4360
    %v4388 = vmul.f32 %v4387, %v4386
    %v4389 = vmul.f32 0.5, %v4388
    %v4390 = vsub.f32 1.5, %v4389
    %v4391 = vmul.f32 %v4386, %v4390
    %vm4392 = vweird.f32 %v4360
    %vm4393 = vweird.f32 %v4386
    %vm4394 = vmor %vm4392, %vm4393
    %v4395 = vsel %vm4394, %v4386, %v4391
    %v4396 = vrsqrt.pop %v4361
    %v4397 = vmul.f32 %v4396, %v4361
    %v4398 = vmul.f32 %v4397, %v4396
    %v4399 = vmul.f32 0.5, %v4398
    %v4400 = vsub.f32 1.5, %v4399
    %v4401 = vmul.f32 %v4396, %v4400
    %vm4402 = vweird.f32 %v4361
    %vm4403 = vweird.f32 %v4396
    %vm4404 = vmor %vm4402, %vm4403
    %v4405 = vsel %vm4404, %v4396, %v4401
    %v4406 = vrsqrt.pop %v4362
    %v4407 = vmul.f32 %v4406, %v4362
    %v4408 = vmul.f32 %v4407, %v4406
    %v4409 = vmul.f32 0.5, %v4408
    %v4410 = vsub.f32 1.5, %v4409
    %v4411 = vmul.f32 %v4406, %v4410
    %vm4412 = vweird.f32 %v4362
    %vm4413 = vweird.f32 %v4406
    %vm4414 = vmor %vm4412, %vm4413
    %v4415 = vsel %vm4414, %v4406, %v4411
    %v4416 = vrsqrt.pop %v4363
    %v4417 = vmul.f32 %v4416, %v4363
    %v4418 = vmul.f32 %v4417, %v4416
    %v4419 = vmul.f32 0.5, %v4418
    %v4420 = vsub.f32 1.5, %v4419
    %v4421 = vmul.f32 %v4416, %v4420
    %vm4422 = vweird.f32 %v4363
    %vm4423 = vweird.f32 %v4416
    %vm4424 = vmor %vm4422, %vm4423
    %v4425 = vsel %vm4424, %v4416, %v4421
    %v4426 = vrsqrt.pop %v4364
    %v4427 = vmul.f32 %v4426, %v4364
    %v4428 = vmul.f32 %v4427, %v4426
    %v4429 = vmul.f32 0.5, %v4428
    %v4430 = vsub.f32 1.5, %v4429
    %v4431 = vmul.f32 %v4426, %v4430
    %vm4432 = vweird.f32 %v4364
    %vm4433 = vweird.f32 %v4426
    %vm4434 = vmor %vm4432, %vm4433
    %v4435 = vsel %vm4434, %v4426, %v4431
    %v4436 = vrsqrt.pop %v4365
    %v4437 = vmul.f32 %v4436, %v4365
    %v4438 = vmul.f32 %v4437, %v4436
    %v4439 = vmul.f32 0.5, %v4438
    %v4440 = vsub.f32 1.5, %v4439
    %v4441 = vmul.f32 %v4436, %v4440
    %vm4442 = vweird.f32 %v4365
    %vm4443 = vweird.f32 %v4436
    %vm4444 = vmor %vm4442, %vm4443
    %v4445 = vsel %vm4444, %v4436, %v4441
    %v4446 = vmul.f32 %v4310, %v4375
    %v4447 = vmul.f32 %v4311, %v4385
    %v4448 = vmul.f32 %v4312, %v4395
    %v4449 = vmul.f32 %v4313, %v4405
    %v4450 = vmul.f32 %v4314, %v4415
    %v4451 = vmul.f32 %v4315, %v4425
    %v4452 = vmul.f32 %v4316, %v4435
    %v4453 = vmul.f32 %v4317, %v4445
    %v4454 = vperm.slane %v4083, 2
    %v4455 = vmul.f32 %v4446, %v4454
    %v4456 = vmul.f32 %v4447, %v4454
    %v4457 = vmul.f32 %v4448, %v4454
    %v4458 = vmul.f32 %v4449, %v4454
    %v4459 = vmul.f32 %v4450, %v4454
    %v4460 = vmul.f32 %v4451, %v4454
    %v4461 = vmul.f32 %v4452, %v4454
    %v4462 = vmul.f32 %v4453, %v4454
    %v4463 = vperm.slane %v4083, 3
    %v4464 = vadd.f32 %v4455, %v4463
    %v4465 = vadd.f32 %v4456, %v4463
    %v4466 = vadd.f32 %v4457, %v4463
    %v4467 = vadd.f32 %v4458, %v4463
    %v4468 = vadd.f32 %v4459, %v4463
    %v4469 = vadd.f32 %v4460, %v4463
    %v4470 = vadd.f32 %v4461, %v4463
    %v4471 = vadd.f32 %v4462, %v4463
    %s4472 = scalar_lea.vmem %s7, 64
    %v4473 = vld [vmem:[%s4472] sm:$0xff]
    %v4474 = vld [vmem:[%s4472 + $0x8] sm:$0xff]
    %v4475 = vld [vmem:[%s4472 + $0x10] sm:$0xff]
    %v4476 = vld [vmem:[%s4472 + $0x18] sm:$0xff]
    %s4477 = scalar_lea.vmem [#allocation10], 2
    %v4478 = vld [vmem:[%s4477] sm:$0x1]
    %v4480 = vperm.slane %v4478, 0
    %v4483 = vsel %vm155, %v4270, 0
    %v4486 = vsel %vm155, %v4271, 0
    %v4489 = vsel %vm155, %v4272, 0
    %v4492 = vsel %vm155, %v4273, 0
    %v4495 = vsel %vm155, %v4274, 0
    %v4498 = vsel %vm155, %v4275, 0
    %v4501 = vsel %vm155, %v4276, 0
    %v4504 = vsel %vm155, %v4277, 0
    %4506 = vmatpush.msra.mxu0 0.0
    %4507 = vmatpush.msra.mxu0 0.0
    %4508 = vmatpush.msra.mxu0 0.0
    %4509 = vmatpush.msra.mxu0 0.0
    %4510 = vmatpush.msra.mxu0 0.0
    %4511 = vmatpush.msra.mxu0 0.0
    %4512 = vmatpush.msra.mxu0 0.0
    %4513 = vmatpush.msra.mxu0 0.0
    %4514 = vmatpush.msra.mxu0 0.0
    %4515 = vmatpush.msra.mxu0 0.0
    %4516 = vmatpush.msra.mxu0 0.0
    %4517 = vmatpush.msra.mxu0 0.0
    %4518 = vmatpush.msra.mxu0 %v4476
    %4519 = vmatpush.msra.mxu0 %v4475
    %4520 = vmatpush.msra.mxu0 %v4474
    %4521 = vmatpush.msra.mxu0 %v4473
    %4522 = vmatmul.f32.gmra.mxu0 %v4483
    %v4523 = vpop.f32.mrf.mxu0
    %v4524 = vadd.f32 %v4480, %v4523
    %4525 = vmatmul.f32.gmra.mxu0 %v4486
    %v4526 = vpop.f32.mrf.mxu0
    %v4527 = vadd.f32 %v4480, %v4526
    %4528 = vmatmul.f32.gmra.mxu0 %v4489
    %v4529 = vpop.f32.mrf.mxu0
    %v4530 = vadd.f32 %v4480, %v4529
    %4531 = vmatmul.f32.gmra.mxu0 %v4492
    %v4532 = vpop.f32.mrf.mxu0
    %v4533 = vadd.f32 %v4480, %v4532
    %4534 = vmatmul.f32.gmra.mxu0 %v4495
    %v4535 = vpop.f32.mrf.mxu0
    %v4536 = vadd.f32 %v4480, %v4535
    %4537 = vmatmul.f32.gmra.mxu0 %v4498
    %v4538 = vpop.f32.mrf.mxu0
    %v4539 = vadd.f32 %v4480, %v4538
    %4540 = vmatmul.f32.gmra.mxu0 %v4501
    %v4541 = vpop.f32.mrf.mxu0
    %v4542 = vadd.f32 %v4480, %v4541
    %4543 = vmatmul.f32.gmra.mxu0 %v4504
    %v4544 = vpop.f32.mrf.mxu0
    %v4545 = vadd.f32 %v4480, %v4544
    %4546 = vdwg.mxu0
    %s4547 = scalar_lea.vmem %s9, 64
    %v4548 = vld [vmem:[%s4547] sm:$0xff]
    %v4549 = vld [vmem:[%s4547 + $0x8] sm:$0xff]
    %v4550 = vld [vmem:[%s4547 + $0x10] sm:$0xff]
    %v4551 = vld [vmem:[%s4547 + $0x18] sm:$0xff]
    %s4552 = scalar_lea.vmem [#allocation11], 2
    %v4553 = vld [vmem:[%s4552] sm:$0x1]
    %v4555 = vperm.slane %v4553, 0
    %v4558 = vsel %vm155, %v4464, 0
    %v4561 = vsel %vm155, %v4465, 0
    %v4564 = vsel %vm155, %v4466, 0
    %v4567 = vsel %vm155, %v4467, 0
    %v4570 = vsel %vm155, %v4468, 0
    %v4573 = vsel %vm155, %v4469, 0
    %v4576 = vsel %vm155, %v4470, 0
    %v4579 = vsel %vm155, %v4471, 0
    %4581 = vmatpush.msra.mxu0 0.0
    %4582 = vmatpush.msra.mxu0 0.0
    %4583 = vmatpush.msra.mxu0 0.0
    %4584 = vmatpush.msra.mxu0 0.0
    %4585 = vmatpush.msra.mxu0 0.0
    %4586 = vmatpush.msra.mxu0 0.0
    %4587 = vmatpush.msra.mxu0 0.0
    %4588 = vmatpush.msra.mxu0 0.0
    %4589 = vmatpush.msra.mxu0 0.0
    %4590 = vmatpush.msra.mxu0 0.0
    %4591 = vmatpush.msra.mxu0 0.0
    %4592 = vmatpush.msra.mxu0 0.0
    %4593 = vmatpush.msra.mxu0 %v4551
    %4594 = vmatpush.msra.mxu0 %v4550
    %4595 = vmatpush.msra.mxu0 %v4549
    %4596 = vmatpush.msra.mxu0 %v4548
    %4597 = vmatmul.f32.gmra.mxu0 %v4558
    %v4598 = vpop.f32.mrf.mxu0
    %v4599 = vadd.f32 %v4555, %v4598
    %4600 = vmatmul.f32.gmra.mxu0 %v4561
    %v4601 = vpop.f32.mrf.mxu0
    %v4602 = vadd.f32 %v4555, %v4601
    %4603 = vmatmul.f32.gmra.mxu0 %v4564
    %v4604 = vpop.f32.mrf.mxu0
    %v4605 = vadd.f32 %v4555, %v4604
    %4606 = vmatmul.f32.gmra.mxu0 %v4567
    %v4607 = vpop.f32.mrf.mxu0
    %v4608 = vadd.f32 %v4555, %v4607
    %4609 = vmatmul.f32.gmra.mxu0 %v4570
    %v4610 = vpop.f32.mrf.mxu0
    %v4611 = vadd.f32 %v4555, %v4610
    %4612 = vmatmul.f32.gmra.mxu0 %v4573
    %v4613 = vpop.f32.mrf.mxu0
    %v4614 = vadd.f32 %v4555, %v4613
    %4615 = vmatmul.f32.gmra.mxu0 %v4576
    %v4616 = vpop.f32.mrf.mxu0
    %v4617 = vadd.f32 %v4555, %v4616
    %4618 = vmatmul.f32.gmra.mxu0 %v4579
    %v4619 = vpop.f32.mrf.mxu0
    %v4620 = vadd.f32 %v4555, %v4619
    %4621 = vdwg.mxu0
    %v4622 = vmax.f32 %v4524, 0.0
    %v4623 = vmax.f32 %v4527, 0.0
    %v4624 = vmax.f32 %v4530, 0.0
    %v4625 = vmax.f32 %v4533, 0.0
    %v4626 = vmax.f32 %v4536, 0.0
    %v4627 = vmax.f32 %v4539, 0.0
    %v4628 = vmax.f32 %v4542, 0.0
    %v4629 = vmax.f32 %v4545, 0.0
    %v4630 = vmax.f32 %v4599, 0.0
    %v4631 = vmax.f32 %v4602, 0.0
    %v4632 = vmax.f32 %v4605, 0.0
    %v4633 = vmax.f32 %v4608, 0.0
    %v4634 = vmax.f32 %v4611, 0.0
    %v4635 = vmax.f32 %v4614, 0.0
    %v4636 = vmax.f32 %v4617, 0.0
    %v4637 = vmax.f32 %v4620, 0.0
    %v4639 = vsel %vm155, %v4524, 0
    %v4642 = vsel %vm155, %v4599, 0
    %4644 = vmatpush.xpose.msra.mxu0 0.0
    %4645 = vmatpush.xpose.msra.mxu0 0.0
    %4646 = vmatpush.xpose.msra.mxu0 0.0
    %4647 = vmatpush.xpose.msra.mxu0 0.0
    %4648 = vmatpush.xpose.msra.mxu0 0.0
    %4649 = vmatpush.xpose.msra.mxu0 0.0
    %4650 = vmatpush.xpose.msra.mxu0 0.0
    %4651 = vmatpush.xpose.msra.mxu0 0.0
    %4652 = vmatpush.xpose.msra.mxu0 0.0
    %4653 = vmatpush.xpose.msra.mxu0 0.0
    %4654 = vmatpush.xpose.msra.mxu0 0.0
    %4655 = vmatpush.xpose.msra.mxu0 0.0
    %4656 = vmatpush.xpose.msra.mxu0 0.0
    %4657 = vmatpush.xpose.msra.mxu0 0.0
    %4658 = vmatpush.xpose.msra.mxu0 0.0
    %4659 = vmatpush.xpose.msra.mxu0 %v4642
    %4660 = vmatmul.f32.gmra.mxu0 %v4639
    %v4661 = vpop.f32.mrf.mxu0
    %v4662 = vadd.f32 0.0, %v4661
    %4663 = vdwg.mxu0
    %v4665 = vsel %vm155, %v4527, 0
    %v4668 = vsel %vm155, %v4602, 0
    %4670 = vmatpush.xpose.msra.mxu0 0.0
    %4671 = vmatpush.xpose.msra.mxu0 0.0
    %4672 = vmatpush.xpose.msra.mxu0 0.0
    %4673 = vmatpush.xpose.msra.mxu0 0.0
    %4674 = vmatpush.xpose.msra.mxu0 0.0
    %4675 = vmatpush.xpose.msra.mxu0 0.0
    %4676 = vmatpush.xpose.msra.mxu0 0.0
    %4677 = vmatpush.xpose.msra.mxu0 0.0
    %4678 = vmatpush.xpose.msra.mxu0 0.0
    %4679 = vmatpush.xpose.msra.mxu0 0.0
    %4680 = vmatpush.xpose.msra.mxu0 0.0
    %4681 = vmatpush.xpose.msra.mxu0 0.0
    %4682 = vmatpush.xpose.msra.mxu0 0.0
    %4683 = vmatpush.xpose.msra.mxu0 0.0
    %4684 = vmatpush.xpose.msra.mxu0 0.0
    %4685 = vmatpush.xpose.msra.mxu0 %v4668
    %4686 = vmatmul.f32.gmra.mxu0 %v4665
    %v4687 = vpop.f32.mrf.mxu0
    %v4688 = vadd.f32 0.0, %v4687
    %4689 = vdwg.mxu0
    %v4691 = vsel %vm155, %v4530, 0
    %v4694 = vsel %vm155, %v4605, 0
    %4696 = vmatpush.xpose.msra.mxu0 0.0
    %4697 = vmatpush.xpose.msra.mxu0 0.0
    %4698 = vmatpush.xpose.msra.mxu0 0.0
    %4699 = vmatpush.xpose.msra.mxu0 0.0
    %4700 = vmatpush.xpose.msra.mxu0 0.0
    %4701 = vmatpush.xpose.msra.mxu0 0.0
    %4702 = vmatpush.xpose.msra.mxu0 0.0
    %4703 = vmatpush.xpose.msra.mxu0 0.0
    %4704 = vmatpush.xpose.msra.mxu0 0.0
    %4705 = vmatpush.xpose.msra.mxu0 0.0
    %4706 = vmatpush.xpose.msra.mxu0 0.0
    %4707 = vmatpush.xpose.msra.mxu0 0.0
    %4708 = vmatpush.xpose.msra.mxu0 0.0
    %4709 = vmatpush.xpose.msra.mxu0 0.0
    %4710 = vmatpush.xpose.msra.mxu0 0.0
    %4711 = vmatpush.xpose.msra.mxu0 %v4694
    %4712 = vmatmul.f32.gmra.mxu0 %v4691
    %v4713 = vpop.f32.mrf.mxu0
    %v4714 = vadd.f32 0.0, %v4713
    %4715 = vdwg.mxu0
    %v4717 = vsel %vm155, %v4533, 0
    %v4720 = vsel %vm155, %v4608, 0
    %4722 = vmatpush.xpose.msra.mxu0 0.0
    %4723 = vmatpush.xpose.msra.mxu0 0.0
    %4724 = vmatpush.xpose.msra.mxu0 0.0
    %4725 = vmatpush.xpose.msra.mxu0 0.0
    %4726 = vmatpush.xpose.msra.mxu0 0.0
    %4727 = vmatpush.xpose.msra.mxu0 0.0
    %4728 = vmatpush.xpose.msra.mxu0 0.0
    %4729 = vmatpush.xpose.msra.mxu0 0.0
    %4730 = vmatpush.xpose.msra.mxu0 0.0
    %4731 = vmatpush.xpose.msra.mxu0 0.0
    %4732 = vmatpush.xpose.msra.mxu0 0.0
    %4733 = vmatpush.xpose.msra.mxu0 0.0
    %4734 = vmatpush.xpose.msra.mxu0 0.0
    %4735 = vmatpush.xpose.msra.mxu0 0.0
    %4736 = vmatpush.xpose.msra.mxu0 0.0
    %4737 = vmatpush.xpose.msra.mxu0 %v4720
    %4738 = vmatmul.f32.gmra.mxu0 %v4717
    %v4739 = vpop.f32.mrf.mxu0
    %v4740 = vadd.f32 0.0, %v4739
    %4741 = vdwg.mxu0
    %v4743 = vsel %vm155, %v4536, 0
    %v4746 = vsel %vm155, %v4611, 0
    %4748 = vmatpush.xpose.msra.mxu0 0.0
    %4749 = vmatpush.xpose.msra.mxu0 0.0
    %4750 = vmatpush.xpose.msra.mxu0 0.0
    %4751 = vmatpush.xpose.msra.mxu0 0.0
    %4752 = vmatpush.xpose.msra.mxu0 0.0
    %4753 = vmatpush.xpose.msra.mxu0 0.0
    %4754 = vmatpush.xpose.msra.mxu0 0.0
    %4755 = vmatpush.xpose.msra.mxu0 0.0
    %4756 = vmatpush.xpose.msra.mxu0 0.0
    %4757 = vmatpush.xpose.msra.mxu0 0.0
    %4758 = vmatpush.xpose.msra.mxu0 0.0
    %4759 = vmatpush.xpose.msra.mxu0 0.0
    %4760 = vmatpush.xpose.msra.mxu0 0.0
    %4761 = vmatpush.xpose.msra.mxu0 0.0
    %4762 = vmatpush.xpose.msra.mxu0 0.0
    %4763 = vmatpush.xpose.msra.mxu0 %v4746
    %4764 = vmatmul.f32.gmra.mxu0 %v4743
    %v4765 = vpop.f32.mrf.mxu0
    %v4766 = vadd.f32 0.0, %v4765
    %4767 = vdwg.mxu0
    %v4769 = vsel %vm155, %v4539, 0
    %v4772 = vsel %vm155, %v4614, 0
    %4774 = vmatpush.xpose.msra.mxu0 0.0
    %4775 = vmatpush.xpose.msra.mxu0 0.0
    %4776 = vmatpush.xpose.msra.mxu0 0.0
    %4777 = vmatpush.xpose.msra.mxu0 0.0
    %4778 = vmatpush.xpose.msra.mxu0 0.0
    %4779 = vmatpush.xpose.msra.mxu0 0.0
    %4780 = vmatpush.xpose.msra.mxu0 0.0
    %4781 = vmatpush.xpose.msra.mxu0 0.0
    %4782 = vmatpush.xpose.msra.mxu0 0.0
    %4783 = vmatpush.xpose.msra.mxu0 0.0
    %4784 = vmatpush.xpose.msra.mxu0 0.0
    %4785 = vmatpush.xpose.msra.mxu0 0.0
    %4786 = vmatpush.xpose.msra.mxu0 0.0
    %4787 = vmatpush.xpose.msra.mxu0 0.0
    %4788 = vmatpush.xpose.msra.mxu0 0.0
    %4789 = vmatpush.xpose.msra.mxu0 %v4772
    %4790 = vmatmul.f32.gmra.mxu0 %v4769
    %v4791 = vpop.f32.mrf.mxu0
    %v4792 = vadd.f32 0.0, %v4791
    %4793 = vdwg.mxu0
    %v4795 = vsel %vm155, %v4542, 0
    %v4798 = vsel %vm155, %v4617, 0
    %4800 = vmatpush.xpose.msra.mxu0 0.0
    %4801 = vmatpush.xpose.msra.mxu0 0.0
    %4802 = vmatpush.xpose.msra.mxu0 0.0
    %4803 = vmatpush.xpose.msra.mxu0 0.0
    %4804 = vmatpush.xpose.msra.mxu0 0.0
    %4805 = vmatpush.xpose.msra.mxu0 0.0
    %4806 = vmatpush.xpose.msra.mxu0 0.0
    %4807 = vmatpush.xpose.msra.mxu0 0.0
    %4808 = vmatpush.xpose.msra.mxu0 0.0
    %4809 = vmatpush.xpose.msra.mxu0 0.0
    %4810 = vmatpush.xpose.msra.mxu0 0.0
    %4811 = vmatpush.xpose.msra.mxu0 0.0
    %4812 = vmatpush.xpose.msra.mxu0 0.0
    %4813 = vmatpush.xpose.msra.mxu0 0.0
    %4814 = vmatpush.xpose.msra.mxu0 0.0
    %4815 = vmatpush.xpose.msra.mxu0 %v4798
    %4816 = vmatmul.f32.gmra.mxu0 %v4795
    %v4817 = vpop.f32.mrf.mxu0
    %v4818 = vadd.f32 0.0, %v4817
    %4819 = vdwg.mxu0
    %v4821 = vsel %vm155, %v4545, 0
    %v4824 = vsel %vm155, %v4620, 0
    %4826 = vmatpush.xpose.msra.mxu0 0.0
    %4827 = vmatpush.xpose.msra.mxu0 0.0
    %4828 = vmatpush.xpose.msra.mxu0 0.0
    %4829 = vmatpush.xpose.msra.mxu0 0.0
    %4830 = vmatpush.xpose.msra.mxu0 0.0
    %4831 = vmatpush.xpose.msra.mxu0 0.0
    %4832 = vmatpush.xpose.msra.mxu0 0.0
    %4833 = vmatpush.xpose.msra.mxu0 0.0
    %4834 = vmatpush.xpose.msra.mxu0 0.0
    %4835 = vmatpush.xpose.msra.mxu0 0.0
    %4836 = vmatpush.xpose.msra.mxu0 0.0
    %4837 = vmatpush.xpose.msra.mxu0 0.0
    %4838 = vmatpush.xpose.msra.mxu0 0.0
    %4839 = vmatpush.xpose.msra.mxu0 0.0
    %4840 = vmatpush.xpose.msra.mxu0 0.0
    %4841 = vmatpush.xpose.msra.mxu0 %v4824
    %4842 = vmatmul.f32.gmra.mxu0 %v4821
    %v4843 = vpop.f32.mrf.mxu0
    %v4844 = vadd.f32 0.0, %v4843
    %4845 = vdwg.mxu0
    %v4846 = vmul.f32 %v4662, %v1108
    %v4847 = vmul.f32 %v4688, %v1108
    %v4848 = vmul.f32 %v4714, %v1108
    %v4849 = vmul.f32 %v4740, %v1108
    %v4850 = vmul.f32 %v4766, %v1108
    %v4851 = vmul.f32 %v4792, %v1108
    %v4852 = vmul.f32 %v4818, %v1108
    %v4853 = vmul.f32 %v4844, %v1108
    %v4854 = vxor.u32 %v4846, 2147483648
    %v4855 = vxor.u32 %v4847, 2147483648
    %v4856 = vxor.u32 %v4848, 2147483648
    %v4857 = vxor.u32 %v4849, 2147483648
    %v4858 = vxor.u32 %v4850, 2147483648
    %v4859 = vxor.u32 %v4851, 2147483648
    %v4860 = vxor.u32 %v4852, 2147483648
    %v4861 = vxor.u32 %v4853, 2147483648
    %v4862 = vmul.f32 %v4854, 1.442695
    %v4863 = vpow.pop %v4862
    %v4864 = vmul.f32 %v4855, 1.442695
    %v4865 = vpow.pop %v4864
    %v4866 = vmul.f32 %v4856, 1.442695
    %v4867 = vpow.pop %v4866
    %v4868 = vmul.f32 %v4857, 1.442695
    %v4869 = vpow.pop %v4868
    %v4870 = vmul.f32 %v4858, 1.442695
    %v4871 = vpow.pop %v4870
    %v4872 = vmul.f32 %v4859, 1.442695
    %v4873 = vpow.pop %v4872
    %v4874 = vmul.f32 %v4860, 1.442695
    %v4875 = vpow.pop %v4874
    %v4876 = vmul.f32 %v4861, 1.442695
    %v4877 = vpow.pop %v4876
    %v4878 = vadd.f32 %v4863, 1.0
    %v4879 = vadd.f32 %v4865, 1.0
    %v4880 = vadd.f32 %v4867, 1.0
    %v4881 = vadd.f32 %v4869, 1.0
    %v4882 = vadd.f32 %v4871, 1.0
    %v4883 = vadd.f32 %v4873, 1.0
    %v4884 = vadd.f32 %v4875, 1.0
    %v4885 = vadd.f32 %v4877, 1.0
    %v4886 = vrcp.pop %v4878
    %v4887 = vmul.f32 %v4878, %v4886
    %v4888 = vsub.f32 1.0, %v4887
    %v4889 = vmul.f32 %v4886, %v4888
    %v4890 = vadd.f32 %v4886, %v4889
    %vm4891 = vweird.f32 %v4878
    %vm4892 = vweird.f32 %v4886
    %vm4893 = vmor %vm4891, %vm4892
    %v4894 = vsel %vm4893, %v4886, %v4890
    %v4895 = vand.u32 2147483647, %v4878
    %vm4896 = vcmp.eq.f32.partialorder %v4895, 8.507059e+37
    %v4897 = vand.u32 %v4878, 2147483648
    %v4898 = vor.u32 1.1754944e-38, %v4897
    %v4899 = vsel %vm4896, %v4898, %v4894
    %v4900 = vmul.f32 1.0, %v4899
    %v4901 = vrcp.pop %v4879
    %v4902 = vmul.f32 %v4879, %v4901
    %v4903 = vsub.f32 1.0, %v4902
    %v4904 = vmul.f32 %v4901, %v4903
    %v4905 = vadd.f32 %v4901, %v4904
    %vm4906 = vweird.f32 %v4879
    %vm4907 = vweird.f32 %v4901
    %vm4908 = vmor %vm4906, %vm4907
    %v4909 = vsel %vm4908, %v4901, %v4905
    %v4910 = vand.u32 2147483647, %v4879
    %vm4911 = vcmp.eq.f32.partialorder %v4910, 8.507059e+37
    %v4912 = vand.u32 %v4879, 2147483648
    %v4913 = vor.u32 1.1754944e-38, %v4912
    %v4914 = vsel %vm4911, %v4913, %v4909
    %v4915 = vmul.f32 1.0, %v4914
    %v4916 = vrcp.pop %v4880
    %v4917 = vmul.f32 %v4880, %v4916
    %v4918 = vsub.f32 1.0, %v4917
    %v4919 = vmul.f32 %v4916, %v4918
    %v4920 = vadd.f32 %v4916, %v4919
    %vm4921 = vweird.f32 %v4880
    %vm4922 = vweird.f32 %v4916
    %vm4923 = vmor %vm4921, %vm4922
    %v4924 = vsel %vm4923, %v4916, %v4920
    %v4925 = vand.u32 2147483647, %v4880
    %vm4926 = vcmp.eq.f32.partialorder %v4925, 8.507059e+37
    %v4927 = vand.u32 %v4880, 2147483648
    %v4928 = vor.u32 1.1754944e-38, %v4927
    %v4929 = vsel %vm4926, %v4928, %v4924
    %v4930 = vmul.f32 1.0, %v4929
    %v4931 = vrcp.pop %v4881
    %v4932 = vmul.f32 %v4881, %v4931
    %v4933 = vsub.f32 1.0, %v4932
    %v4934 = vmul.f32 %v4931, %v4933
    %v4935 = vadd.f32 %v4931, %v4934
    %vm4936 = vweird.f32 %v4881
    %vm4937 = vweird.f32 %v4931
    %vm4938 = vmor %vm4936, %vm4937
    %v4939 = vsel %vm4938, %v4931, %v4935
    %v4940 = vand.u32 2147483647, %v4881
    %vm4941 = vcmp.eq.f32.partialorder %v4940, 8.507059e+37
    %v4942 = vand.u32 %v4881, 2147483648
    %v4943 = vor.u32 1.1754944e-38, %v4942
    %v4944 = vsel %vm4941, %v4943, %v4939
    %v4945 = vmul.f32 1.0, %v4944
    %v4946 = vrcp.pop %v4882
    %v4947 = vmul.f32 %v4882, %v4946
    %v4948 = vsub.f32 1.0, %v4947
    %v4949 = vmul.f32 %v4946, %v4948
    %v4950 = vadd.f32 %v4946, %v4949
    %vm4951 = vweird.f32 %v4882
    %vm4952 = vweird.f32 %v4946
    %vm4953 = vmor %vm4951, %vm4952
    %v4954 = vsel %vm4953, %v4946, %v4950
    %v4955 = vand.u32 2147483647, %v4882
    %vm4956 = vcmp.eq.f32.partialorder %v4955, 8.507059e+37
    %v4957 = vand.u32 %v4882, 2147483648
    %v4958 = vor.u32 1.1754944e-38, %v4957
    %v4959 = vsel %vm4956, %v4958, %v4954
    %v4960 = vmul.f32 1.0, %v4959
    %v4961 = vrcp.pop %v4883
    %v4962 = vmul.f32 %v4883, %v4961
    %v4963 = vsub.f32 1.0, %v4962
    %v4964 = vmul.f32 %v4961, %v4963
    %v4965 = vadd.f32 %v4961, %v4964
    %vm4966 = vweird.f32 %v4883
    %vm4967 = vweird.f32 %v4961
    %vm4968 = vmor %vm4966, %vm4967
    %v4969 = vsel %vm4968, %v4961, %v4965
    %v4970 = vand.u32 2147483647, %v4883
    %vm4971 = vcmp.eq.f32.partialorder %v4970, 8.507059e+37
    %v4972 = vand.u32 %v4883, 2147483648
    %v4973 = vor.u32 1.1754944e-38, %v4972
    %v4974 = vsel %vm4971, %v4973, %v4969
    %v4975 = vmul.f32 1.0, %v4974
    %v4976 = vrcp.pop %v4884
    %v4977 = vmul.f32 %v4884, %v4976
    %v4978 = vsub.f32 1.0, %v4977
    %v4979 = vmul.f32 %v4976, %v4978
    %v4980 = vadd.f32 %v4976, %v4979
    %vm4981 = vweird.f32 %v4884
    %vm4982 = vweird.f32 %v4976
    %vm4983 = vmor %vm4981, %vm4982
    %v4984 = vsel %vm4983, %v4976, %v4980
    %v4985 = vand.u32 2147483647, %v4884
    %vm4986 = vcmp.eq.f32.partialorder %v4985, 8.507059e+37
    %v4987 = vand.u32 %v4884, 2147483648
    %v4988 = vor.u32 1.1754944e-38, %v4987
    %v4989 = vsel %vm4986, %v4988, %v4984
    %v4990 = vmul.f32 1.0, %v4989
    %v4991 = vrcp.pop %v4885
    %v4992 = vmul.f32 %v4885, %v4991
    %v4993 = vsub.f32 1.0, %v4992
    %v4994 = vmul.f32 %v4991, %v4993
    %v4995 = vadd.f32 %v4991, %v4994
    %vm4996 = vweird.f32 %v4885
    %vm4997 = vweird.f32 %v4991
    %vm4998 = vmor %vm4996, %vm4997
    %v4999 = vsel %vm4998, %v4991, %v4995
    %v5000 = vand.u32 2147483647, %v4885
    %vm5001 = vcmp.eq.f32.partialorder %v5000, 8.507059e+37
    %v5002 = vand.u32 %v4885, 2147483648
    %v5003 = vor.u32 1.1754944e-38, %v5002
    %v5004 = vsel %vm5001, %v5003, %v4999
    %v5005 = vmul.f32 1.0, %v5004
    %5007 = vset.pattern.permute.xlu0 64
    %5008 = vperm.xlu0 %5007, %v4622
    %v5009 = vpop.permute.xlu0 %5008
    %5012 = vset.pattern.permute.xlu0 64
    %5013 = vperm.xlu0 %5012, %v4623
    %v5014 = vpop.permute.xlu0 %5013
    %5017 = vset.pattern.permute.xlu0 64
    %5018 = vperm.xlu0 %5017, %v4624
    %v5019 = vpop.permute.xlu0 %5018
    %5022 = vset.pattern.permute.xlu0 64
    %5023 = vperm.xlu0 %5022, %v4625
    %v5024 = vpop.permute.xlu0 %5023
    %5027 = vset.pattern.permute.xlu0 64
    %5028 = vperm.xlu0 %5027, %v4626
    %v5029 = vpop.permute.xlu0 %5028
    %5032 = vset.pattern.permute.xlu0 64
    %5033 = vperm.xlu0 %5032, %v4627
    %v5034 = vpop.permute.xlu0 %5033
    %5037 = vset.pattern.permute.xlu0 64
    %5038 = vperm.xlu0 %5037, %v4628
    %v5039 = vpop.permute.xlu0 %5038
    %5042 = vset.pattern.permute.xlu0 64
    %5043 = vperm.xlu0 %5042, %v4629
    %v5044 = vpop.permute.xlu0 %5043
    %v5046 = vmul.f32 %v5009, %v4622
    %v5047 = vmul.f32 %v5014, %v4623
    %v5048 = vmul.f32 %v5019, %v4624
    %v5049 = vmul.f32 %v5024, %v4625
    %v5050 = vmul.f32 %v5029, %v4626
    %v5051 = vmul.f32 %v5034, %v4627
    %v5052 = vmul.f32 %v5039, %v4628
    %v5053 = vmul.f32 %v5044, %v4629
    %5055 = vset.pattern.permute.xlu0 64
    %5056 = vperm.xlu0 %5055, %v4630
    %v5057 = vpop.permute.xlu0 %5056
    %5060 = vset.pattern.permute.xlu0 64
    %5061 = vperm.xlu0 %5060, %v4631
    %v5062 = vpop.permute.xlu0 %5061
    %5065 = vset.pattern.permute.xlu0 64
    %5066 = vperm.xlu0 %5065, %v4632
    %v5067 = vpop.permute.xlu0 %5066
    %5070 = vset.pattern.permute.xlu0 64
    %5071 = vperm.xlu0 %5070, %v4633
    %v5072 = vpop.permute.xlu0 %5071
    %5075 = vset.pattern.permute.xlu0 64
    %5076 = vperm.xlu0 %5075, %v4634
    %v5077 = vpop.permute.xlu0 %5076
    %5080 = vset.pattern.permute.xlu0 64
    %5081 = vperm.xlu0 %5080, %v4635
    %v5082 = vpop.permute.xlu0 %5081
    %5085 = vset.pattern.permute.xlu0 64
    %5086 = vperm.xlu0 %5085, %v4636
    %v5087 = vpop.permute.xlu0 %5086
    %5090 = vset.pattern.permute.xlu0 64
    %5091 = vperm.xlu0 %5090, %v4637
    %v5092 = vpop.permute.xlu0 %5091
    %v5094 = vmul.f32 %v5057, %v4630
    %v5095 = vmul.f32 %v5062, %v4631
    %v5096 = vmul.f32 %v5067, %v4632
    %v5097 = vmul.f32 %v5072, %v4633
    %v5098 = vmul.f32 %v5077, %v4634
    %v5099 = vmul.f32 %v5082, %v4635
    %v5100 = vmul.f32 %v5087, %v4636
    %v5101 = vmul.f32 %v5092, %v4637
    %v5102 = vmul.f32 %v4622, %v1374
    %v5103 = vmul.f32 %v4623, %v1376
    %v5104 = vmul.f32 %v4624, %v1378
    %v5105 = vmul.f32 %v4625, %v1380
    %v5106 = vmul.f32 %v4626, %v1382
    %v5107 = vmul.f32 %v4627, %v1384
    %v5108 = vmul.f32 %v4628, %v1386
    %v5109 = vmul.f32 %v4629, %v1388
    %5111 = vrot.lane.b32.xlu0 %v5094, 96
    %v5112 = vpop.permute.xlu0 %5111
    %v5115 = vsel %vm1409, %v4900, 0
    %5117 = vmatpush.msra.mxu0 0.0
    %5118 = vmatpush.msra.mxu0 0.0
    %5119 = vmatpush.msra.mxu0 0.0
    %5120 = vmatpush.msra.mxu0 0.0
    %5121 = vmatpush.msra.mxu0 0.0
    %5122 = vmatpush.msra.mxu0 0.0
    %5123 = vmatpush.msra.mxu0 0.0
    %5124 = vmatpush.msra.mxu0 0.0
    %5125 = vmatpush.msra.mxu0 0.0
    %5126 = vmatpush.msra.mxu0 0.0
    %5127 = vmatpush.msra.mxu0 0.0
    %5128 = vmatpush.msra.mxu0 0.0
    %5129 = vmatpush.msra.mxu0 0.0
    %5130 = vmatpush.msra.mxu0 0.0
    %5131 = vmatpush.msra.mxu0 0.0
    %5132 = vmatpush.msra.mxu0 %v5112
    %5133 = vmatmul.f32.gmra.mxu0 %v5115
    %v5134 = vpop.f32.mrf.mxu0
    %v5135 = vadd.f32 0.0, %v5134
    %5136 = vdwg.mxu0
    %5138 = vrot.lane.b32.xlu0 %v5095, 96
    %v5139 = vpop.permute.xlu0 %5138
    %v5142 = vsel %vm1409, %v4915, 0
    %5144 = vmatpush.msra.mxu0 0.0
    %5145 = vmatpush.msra.mxu0 0.0
    %5146 = vmatpush.msra.mxu0 0.0
    %5147 = vmatpush.msra.mxu0 0.0
    %5148 = vmatpush.msra.mxu0 0.0
    %5149 = vmatpush.msra.mxu0 0.0
    %5150 = vmatpush.msra.mxu0 0.0
    %5151 = vmatpush.msra.mxu0 0.0
    %5152 = vmatpush.msra.mxu0 0.0
    %5153 = vmatpush.msra.mxu0 0.0
    %5154 = vmatpush.msra.mxu0 0.0
    %5155 = vmatpush.msra.mxu0 0.0
    %5156 = vmatpush.msra.mxu0 0.0
    %5157 = vmatpush.msra.mxu0 0.0
    %5158 = vmatpush.msra.mxu0 0.0
    %5159 = vmatpush.msra.mxu0 %v5139
    %5160 = vmatmul.f32.gmra.mxu0 %v5142
    %v5161 = vpop.f32.mrf.mxu0
    %v5162 = vadd.f32 0.0, %v5161
    %5163 = vdwg.mxu0
    %5165 = vrot.lane.b32.xlu0 %v5096, 96
    %v5166 = vpop.permute.xlu0 %5165
    %v5169 = vsel %vm1409, %v4930, 0
    %5171 = vmatpush.msra.mxu0 0.0
    %5172 = vmatpush.msra.mxu0 0.0
    %5173 = vmatpush.msra.mxu0 0.0
    %5174 = vmatpush.msra.mxu0 0.0
    %5175 = vmatpush.msra.mxu0 0.0
    %5176 = vmatpush.msra.mxu0 0.0
    %5177 = vmatpush.msra.mxu0 0.0
    %5178 = vmatpush.msra.mxu0 0.0
    %5179 = vmatpush.msra.mxu0 0.0
    %5180 = vmatpush.msra.mxu0 0.0
    %5181 = vmatpush.msra.mxu0 0.0
    %5182 = vmatpush.msra.mxu0 0.0
    %5183 = vmatpush.msra.mxu0 0.0
    %5184 = vmatpush.msra.mxu0 0.0
    %5185 = vmatpush.msra.mxu0 0.0
    %5186 = vmatpush.msra.mxu0 %v5166
    %5187 = vmatmul.f32.gmra.mxu0 %v5169
    %v5188 = vpop.f32.mrf.mxu0
    %v5189 = vadd.f32 0.0, %v5188
    %5190 = vdwg.mxu0
    %5192 = vrot.lane.b32.xlu0 %v5097, 96
    %v5193 = vpop.permute.xlu0 %5192
    %v5196 = vsel %vm1409, %v4945, 0
    %5198 = vmatpush.msra.mxu0 0.0
    %5199 = vmatpush.msra.mxu0 0.0
    %5200 = vmatpush.msra.mxu0 0.0
    %5201 = vmatpush.msra.mxu0 0.0
    %5202 = vmatpush.msra.mxu0 0.0
    %5203 = vmatpush.msra.mxu0 0.0
    %5204 = vmatpush.msra.mxu0 0.0
    %5205 = vmatpush.msra.mxu0 0.0
    %5206 = vmatpush.msra.mxu0 0.0
    %5207 = vmatpush.msra.mxu0 0.0
    %5208 = vmatpush.msra.mxu0 0.0
    %5209 = vmatpush.msra.mxu0 0.0
    %5210 = vmatpush.msra.mxu0 0.0
    %5211 = vmatpush.msra.mxu0 0.0
    %5212 = vmatpush.msra.mxu0 0.0
    %5213 = vmatpush.msra.mxu0 %v5193
    %5214 = vmatmul.f32.gmra.mxu0 %v5196
    %v5215 = vpop.f32.mrf.mxu0
    %v5216 = vadd.f32 0.0, %v5215
    %5217 = vdwg.mxu0
    %5219 = vrot.lane.b32.xlu0 %v5098, 96
    %v5220 = vpop.permute.xlu0 %5219
    %v5223 = vsel %vm1409, %v4960, 0
    %5225 = vmatpush.msra.mxu0 0.0
    %5226 = vmatpush.msra.mxu0 0.0
    %5227 = vmatpush.msra.mxu0 0.0
    %5228 = vmatpush.msra.mxu0 0.0
    %5229 = vmatpush.msra.mxu0 0.0
    %5230 = vmatpush.msra.mxu0 0.0
    %5231 = vmatpush.msra.mxu0 0.0
    %5232 = vmatpush.msra.mxu0 0.0
    %5233 = vmatpush.msra.mxu0 0.0
    %5234 = vmatpush.msra.mxu0 0.0
    %5235 = vmatpush.msra.mxu0 0.0
    %5236 = vmatpush.msra.mxu0 0.0
    %5237 = vmatpush.msra.mxu0 0.0
    %5238 = vmatpush.msra.mxu0 0.0
    %5239 = vmatpush.msra.mxu0 0.0
    %5240 = vmatpush.msra.mxu0 %v5220
    %5241 = vmatmul.f32.gmra.mxu0 %v5223
    %v5242 = vpop.f32.mrf.mxu0
    %v5243 = vadd.f32 0.0, %v5242
    %5244 = vdwg.mxu0
    %5246 = vrot.lane.b32.xlu0 %v5099, 96
    %v5247 = vpop.permute.xlu0 %5246
    %v5250 = vsel %vm1409, %v4975, 0
    %5252 = vmatpush.msra.mxu0 0.0
    %5253 = vmatpush.msra.mxu0 0.0
    %5254 = vmatpush.msra.mxu0 0.0
    %5255 = vmatpush.msra.mxu0 0.0
    %5256 = vmatpush.msra.mxu0 0.0
    %5257 = vmatpush.msra.mxu0 0.0
    %5258 = vmatpush.msra.mxu0 0.0
    %5259 = vmatpush.msra.mxu0 0.0
    %5260 = vmatpush.msra.mxu0 0.0
    %5261 = vmatpush.msra.mxu0 0.0
    %5262 = vmatpush.msra.mxu0 0.0
    %5263 = vmatpush.msra.mxu0 0.0
    %5264 = vmatpush.msra.mxu0 0.0
    %5265 = vmatpush.msra.mxu0 0.0
    %5266 = vmatpush.msra.mxu0 0.0
    %5267 = vmatpush.msra.mxu0 %v5247
    %5268 = vmatmul.f32.gmra.mxu0 %v5250
    %v5269 = vpop.f32.mrf.mxu0
    %v5270 = vadd.f32 0.0, %v5269
    %5271 = vdwg.mxu0
    %5273 = vrot.lane.b32.xlu0 %v5100, 96
    %v5274 = vpop.permute.xlu0 %5273
    %v5277 = vsel %vm1409, %v4990, 0
    %5279 = vmatpush.msra.mxu0 0.0
    %5280 = vmatpush.msra.mxu0 0.0
    %5281 = vmatpush.msra.mxu0 0.0
    %5282 = vmatpush.msra.mxu0 0.0
    %5283 = vmatpush.msra.mxu0 0.0
    %5284 = vmatpush.msra.mxu0 0.0
    %5285 = vmatpush.msra.mxu0 0.0
    %5286 = vmatpush.msra.mxu0 0.0
    %5287 = vmatpush.msra.mxu0 0.0
    %5288 = vmatpush.msra.mxu0 0.0
    %5289 = vmatpush.msra.mxu0 0.0
    %5290 = vmatpush.msra.mxu0 0.0
    %5291 = vmatpush.msra.mxu0 0.0
    %5292 = vmatpush.msra.mxu0 0.0
    %5293 = vmatpush.msra.mxu0 0.0
    %5294 = vmatpush.msra.mxu0 %v5274
    %5295 = vmatmul.f32.gmra.mxu0 %v5277
    %v5296 = vpop.f32.mrf.mxu0
    %v5297 = vadd.f32 0.0, %v5296
    %5298 = vdwg.mxu0
    %5300 = vrot.lane.b32.xlu0 %v5101, 96
    %v5301 = vpop.permute.xlu0 %5300
    %v5304 = vsel %vm1409, %v5005, 0
    %5306 = vmatpush.msra.mxu0 0.0
    %5307 = vmatpush.msra.mxu0 0.0
    %5308 = vmatpush.msra.mxu0 0.0
    %5309 = vmatpush.msra.mxu0 0.0
    %5310 = vmatpush.msra.mxu0 0.0
    %5311 = vmatpush.msra.mxu0 0.0
    %5312 = vmatpush.msra.mxu0 0.0
    %5313 = vmatpush.msra.mxu0 0.0
    %5314 = vmatpush.msra.mxu0 0.0
    %5315 = vmatpush.msra.mxu0 0.0
    %5316 = vmatpush.msra.mxu0 0.0
    %5317 = vmatpush.msra.mxu0 0.0
    %5318 = vmatpush.msra.mxu0 0.0
    %5319 = vmatpush.msra.mxu0 0.0
    %5320 = vmatpush.msra.mxu0 0.0
    %5321 = vmatpush.msra.mxu0 %v5301
    %5322 = vmatmul.f32.gmra.mxu0 %v5304
    %v5323 = vpop.f32.mrf.mxu0
    %v5324 = vadd.f32 0.0, %v5323
    %5325 = vdwg.mxu0
    %5327 = vset.pattern.permute.xlu0 64
    %5328 = vperm.xlu0 %5327, %v5102
    %v5329 = vpop.permute.xlu0 %5328
    %5332 = vset.pattern.permute.xlu0 64
    %5333 = vperm.xlu0 %5332, %v5103
    %v5334 = vpop.permute.xlu0 %5333
    %5337 = vset.pattern.permute.xlu0 64
    %5338 = vperm.xlu0 %5337, %v5104
    %v5339 = vpop.permute.xlu0 %5338
    %5342 = vset.pattern.permute.xlu0 64
    %5343 = vperm.xlu0 %5342, %v5105
    %v5344 = vpop.permute.xlu0 %5343
    %5347 = vset.pattern.permute.xlu0 64
    %5348 = vperm.xlu0 %5347, %v5106
    %v5349 = vpop.permute.xlu0 %5348
    %5352 = vset.pattern.permute.xlu0 64
    %5353 = vperm.xlu0 %5352, %v5107
    %v5354 = vpop.permute.xlu0 %5353
    %5357 = vset.pattern.permute.xlu0 64
    %5358 = vperm.xlu0 %5357, %v5108
    %v5359 = vpop.permute.xlu0 %5358
    %5362 = vset.pattern.permute.xlu0 64
    %5363 = vperm.xlu0 %5362, %v5109
    %v5364 = vpop.permute.xlu0 %5363
    %v5366 = vmul.f32 %v5329, %v5135
    %v5367 = vmul.f32 %v5334, %v5162
    %v5368 = vmul.f32 %v5339, %v5189
    %v5369 = vmul.f32 %v5344, %v5216
    %v5370 = vmul.f32 %v5349, %v5243
    %v5371 = vmul.f32 %v5354, %v5270
    %v5372 = vmul.f32 %v5359, %v5297
    %v5373 = vmul.f32 %v5364, %v5324
    %v5374 = vadd.f32 %v4270, %v5366
    %v5375 = vadd.f32 %v4271, %v5367
    %v5376 = vadd.f32 %v4272, %v5368
    %v5377 = vadd.f32 %v4273, %v5369
    %v5378 = vadd.f32 %v4274, %v5370
    %v5379 = vadd.f32 %v4275, %v5371
    %v5380 = vadd.f32 %v4276, %v5372
    %v5381 = vadd.f32 %v4277, %v5373
    %v5382 = vmul.f32 %v4630, %v1687
    %v5383 = vmul.f32 %v4631, %v1689
    %v5384 = vmul.f32 %v4632, %v1691
    %v5385 = vmul.f32 %v4633, %v1693
    %v5386 = vmul.f32 %v4634, %v1695
    %v5387 = vmul.f32 %v4635, %v1697
    %v5388 = vmul.f32 %v4636, %v1699
    %v5389 = vmul.f32 %v4637, %v1701
    %5390 = vxpose.xlu0.b32.start [1/16] %v4900, 128
    %5391 = vxpose.xlu0.b32.cont [2/16] 0.0, 128
    %5392 = vxpose.xlu0.b32.cont [3/16] 0.0, 128
    %5393 = vxpose.xlu0.b32.cont [4/16] 0.0, 128
    %5394 = vxpose.xlu0.b32.cont [5/16] 0.0, 128
    %5395 = vxpose.xlu0.b32.cont [6/16] 0.0, 128
    %5396 = vxpose.xlu0.b32.cont [7/16] 0.0, 128
    %5397 = vxpose.xlu0.b32.cont [8/16] 0.0, 128
    %5398 = vxpose.xlu0.b32.cont [9/16] 0.0, 128
    %5399 = vxpose.xlu0.b32.cont [10/16] 0.0, 128
    %5400 = vxpose.xlu0.b32.cont [11/16] 0.0, 128
    %5401 = vxpose.xlu0.b32.cont [12/16] 0.0, 128
    %5402 = vxpose.xlu0.b32.cont [13/16] 0.0, 128
    %5403 = vxpose.xlu0.b32.cont [14/16] 0.0, 128
    %5404 = vxpose.xlu0.b32.cont [15/16] 0.0, 128
    %5405 = vxpose.xlu0.b32.end [16/16] 0.0, 128
    %v5406 = vpop.trf.xlu0
    %v5407 = vpop.trf.xlu0
    %v5408 = vpop.trf.xlu0
    %v5409 = vpop.trf.xlu0
    %v5410 = vpop.trf.xlu0
    %v5411 = vpop.trf.xlu0
    %v5412 = vpop.trf.xlu0
    %v5413 = vpop.trf.xlu0
    %v5414 = vpop.trf.xlu0
    %v5415 = vpop.trf.xlu0
    %v5416 = vpop.trf.xlu0
    %v5417 = vpop.trf.xlu0
    %v5418 = vpop.trf.xlu0
    %v5419 = vpop.trf.xlu0
    %v5420 = vpop.trf.xlu0
    %v5421 = vpop.trf.xlu0
    %5423 = vrot.lane.b32.xlu0 %v5046, 96
    %v5424 = vpop.permute.xlu0 %5423
    %v5427 = vsel %vm1409, %v5406, 0
    %5429 = vmatpush.msra.mxu0 0.0
    %5430 = vmatpush.msra.mxu0 0.0
    %5431 = vmatpush.msra.mxu0 0.0
    %5432 = vmatpush.msra.mxu0 0.0
    %5433 = vmatpush.msra.mxu0 0.0
    %5434 = vmatpush.msra.mxu0 0.0
    %5435 = vmatpush.msra.mxu0 0.0
    %5436 = vmatpush.msra.mxu0 0.0
    %5437 = vmatpush.msra.mxu0 0.0
    %5438 = vmatpush.msra.mxu0 0.0
    %5439 = vmatpush.msra.mxu0 0.0
    %5440 = vmatpush.msra.mxu0 0.0
    %5441 = vmatpush.msra.mxu0 0.0
    %5442 = vmatpush.msra.mxu0 0.0
    %5443 = vmatpush.msra.mxu0 0.0
    %5444 = vmatpush.msra.mxu0 %v5424
    %5445 = vmatmul.f32.gmra.mxu0 %v5427
    %v5446 = vpop.f32.mrf.mxu0
    %v5447 = vadd.f32 0.0, %v5446
    %5448 = vdwg.mxu0
    %5449 = vxpose.xlu0.b32.start [1/16] %v4915, 128
    %5450 = vxpose.xlu0.b32.cont [2/16] 0.0, 128
    %5451 = vxpose.xlu0.b32.cont [3/16] 0.0, 128
    %5452 = vxpose.xlu0.b32.cont [4/16] 0.0, 128
    %5453 = vxpose.xlu0.b32.cont [5/16] 0.0, 128
    %5454 = vxpose.xlu0.b32.cont [6/16] 0.0, 128
    %5455 = vxpose.xlu0.b32.cont [7/16] 0.0, 128
    %5456 = vxpose.xlu0.b32.cont [8/16] 0.0, 128
    %5457 = vxpose.xlu0.b32.cont [9/16] 0.0, 128
    %5458 = vxpose.xlu0.b32.cont [10/16] 0.0, 128
    %5459 = vxpose.xlu0.b32.cont [11/16] 0.0, 128
    %5460 = vxpose.xlu0.b32.cont [12/16] 0.0, 128
    %5461 = vxpose.xlu0.b32.cont [13/16] 0.0, 128
    %5462 = vxpose.xlu0.b32.cont [14/16] 0.0, 128
    %5463 = vxpose.xlu0.b32.cont [15/16] 0.0, 128
    %5464 = vxpose.xlu0.b32.end [16/16] 0.0, 128
    %v5465 = vpop.trf.xlu0
    %v5466 = vpop.trf.xlu0
    %v5467 = vpop.trf.xlu0
    %v5468 = vpop.trf.xlu0
    %v5469 = vpop.trf.xlu0
    %v5470 = vpop.trf.xlu0
    %v5471 = vpop.trf.xlu0
    %v5472 = vpop.trf.xlu0
    %v5473 = vpop.trf.xlu0
    %v5474 = vpop.trf.xlu0
    %v5475 = vpop.trf.xlu0
    %v5476 = vpop.trf.xlu0
    %v5477 = vpop.trf.xlu0
    %v5478 = vpop.trf.xlu0
    %v5479 = vpop.trf.xlu0
    %v5480 = vpop.trf.xlu0
    %5482 = vrot.lane.b32.xlu0 %v5047, 96
    %v5483 = vpop.permute.xlu0 %5482
    %v5486 = vsel %vm1409, %v5465, 0
    %5488 = vmatpush.msra.mxu0 0.0
    %5489 = vmatpush.msra.mxu0 0.0
    %5490 = vmatpush.msra.mxu0 0.0
    %5491 = vmatpush.msra.mxu0 0.0
    %5492 = vmatpush.msra.mxu0 0.0
    %5493 = vmatpush.msra.mxu0 0.0
    %5494 = vmatpush.msra.mxu0 0.0
    %5495 = vmatpush.msra.mxu0 0.0
    %5496 = vmatpush.msra.mxu0 0.0
    %5497 = vmatpush.msra.mxu0 0.0
    %5498 = vmatpush.msra.mxu0 0.0
    %5499 = vmatpush.msra.mxu0 0.0
    %5500 = vmatpush.msra.mxu0 0.0
    %5501 = vmatpush.msra.mxu0 0.0
    %5502 = vmatpush.msra.mxu0 0.0
    %5503 = vmatpush.msra.mxu0 %v5483
    %5504 = vmatmul.f32.gmra.mxu0 %v5486
    %v5505 = vpop.f32.mrf.mxu0
    %v5506 = vadd.f32 0.0, %v5505
    %5507 = vdwg.mxu0
    %5508 = vxpose.xlu0.b32.start [1/16] %v4930, 128
    %5509 = vxpose.xlu0.b32.cont [2/16] 0.0, 128
    %5510 = vxpose.xlu0.b32.cont [3/16] 0.0, 128
    %5511 = vxpose.xlu0.b32.cont [4/16] 0.0, 128
    %5512 = vxpose.xlu0.b32.cont [5/16] 0.0, 128
    %5513 = vxpose.xlu0.b32.cont [6/16] 0.0, 128
    %5514 = vxpose.xlu0.b32.cont [7/16] 0.0, 128
    %5515 = vxpose.xlu0.b32.cont [8/16] 0.0, 128
    %5516 = vxpose.xlu0.b32.cont [9/16] 0.0, 128
    %5517 = vxpose.xlu0.b32.cont [10/16] 0.0, 128
    %5518 = vxpose.xlu0.b32.cont [11/16] 0.0, 128
    %5519 = vxpose.xlu0.b32.cont [12/16] 0.0, 128
    %5520 = vxpose.xlu0.b32.cont [13/16] 0.0, 128
    %5521 = vxpose.xlu0.b32.cont [14/16] 0.0, 128
    %5522 = vxpose.xlu0.b32.cont [15/16] 0.0, 128
    %5523 = vxpose.xlu0.b32.end [16/16] 0.0, 128
    %v5524 = vpop.trf.xlu0
    %v5525 = vpop.trf.xlu0
    %v5526 = vpop.trf.xlu0
    %v5527 = vpop.trf.xlu0
    %v5528 = vpop.trf.xlu0
    %v5529 = vpop.trf.xlu0
    %v5530 = vpop.trf.xlu0
    %v5531 = vpop.trf.xlu0
    %v5532 = vpop.trf.xlu0
    %v5533 = vpop.trf.xlu0
    %v5534 = vpop.trf.xlu0
    %v5535 = vpop.trf.xlu0
    %v5536 = vpop.trf.xlu0
    %v5537 = vpop.trf.xlu0
    %v5538 = vpop.trf.xlu0
    %v5539 = vpop.trf.xlu0
    %5541 = vrot.lane.b32.xlu0 %v5048, 96
    %v5542 = vpop.permute.xlu0 %5541
    %v5545 = vsel %vm1409, %v5524, 0
    %5547 = vmatpush.msra.mxu0 0.0
    %5548 = vmatpush.msra.mxu0 0.0
    %5549 = vmatpush.msra.mxu0 0.0
    %5550 = vmatpush.msra.mxu0 0.0
    %5551 = vmatpush.msra.mxu0 0.0
    %5552 = vmatpush.msra.mxu0 0.0
    %5553 = vmatpush.msra.mxu0 0.0
    %5554 = vmatpush.msra.mxu0 0.0
    %5555 = vmatpush.msra.mxu0 0.0
    %5556 = vmatpush.msra.mxu0 0.0
    %5557 = vmatpush.msra.mxu0 0.0
    %5558 = vmatpush.msra.mxu0 0.0
    %5559 = vmatpush.msra.mxu0 0.0
    %5560 = vmatpush.msra.mxu0 0.0
    %5561 = vmatpush.msra.mxu0 0.0
    %5562 = vmatpush.msra.mxu0 %v5542
    %5563 = vmatmul.f32.gmra.mxu0 %v5545
    %v5564 = vpop.f32.mrf.mxu0
    %v5565 = vadd.f32 0.0, %v5564
    %5566 = vdwg.mxu0
    %5567 = vxpose.xlu0.b32.start [1/16] %v4945, 128
    %5568 = vxpose.xlu0.b32.cont [2/16] 0.0, 128
    %5569 = vxpose.xlu0.b32.cont [3/16] 0.0, 128
    %5570 = vxpose.xlu0.b32.cont [4/16] 0.0, 128
    %5571 = vxpose.xlu0.b32.cont [5/16] 0.0, 128
    %5572 = vxpose.xlu0.b32.cont [6/16] 0.0, 128
    %5573 = vxpose.xlu0.b32.cont [7/16] 0.0, 128
    %5574 = vxpose.xlu0.b32.cont [8/16] 0.0, 128
    %5575 = vxpose.xlu0.b32.cont [9/16] 0.0, 128
    %5576 = vxpose.xlu0.b32.cont [10/16] 0.0, 128
    %5577 = vxpose.xlu0.b32.cont [11/16] 0.0, 128
    %5578 = vxpose.xlu0.b32.cont [12/16] 0.0, 128
    %5579 = vxpose.xlu0.b32.cont [13/16] 0.0, 128
    %5580 = vxpose.xlu0.b32.cont [14/16] 0.0, 128
    %5581 = vxpose.xlu0.b32.cont [15/16] 0.0, 128
    %5582 = vxpose.xlu0.b32.end [16/16] 0.0, 128
    %v5583 = vpop.trf.xlu0
    %v5584 = vpop.trf.xlu0
    %v5585 = vpop.trf.xlu0
    %v5586 = vpop.trf.xlu0
    %v5587 = vpop.trf.xlu0
    %v5588 = vpop.trf.xlu0
    %v5589 = vpop.trf.xlu0
    %v5590 = vpop.trf.xlu0
    %v5591 = vpop.trf.xlu0
    %v5592 = vpop.trf.xlu0
    %v5593 = vpop.trf.xlu0
    %v5594 = vpop.trf.xlu0
    %v5595 = vpop.trf.xlu0
    %v5596 = vpop.trf.xlu0
    %v5597 = vpop.trf.xlu0
    %v5598 = vpop.trf.xlu0
    %5600 = vrot.lane.b32.xlu0 %v5049, 96
    %v5601 = vpop.permute.xlu0 %5600
    %v5604 = vsel %vm1409, %v5583, 0
    %5606 = vmatpush.msra.mxu0 0.0
    %5607 = vmatpush.msra.mxu0 0.0
    %5608 = vmatpush.msra.mxu0 0.0
    %5609 = vmatpush.msra.mxu0 0.0
    %5610 = vmatpush.msra.mxu0 0.0
    %5611 = vmatpush.msra.mxu0 0.0
    %5612 = vmatpush.msra.mxu0 0.0
    %5613 = vmatpush.msra.mxu0 0.0
    %5614 = vmatpush.msra.mxu0 0.0
    %5615 = vmatpush.msra.mxu0 0.0
    %5616 = vmatpush.msra.mxu0 0.0
    %5617 = vmatpush.msra.mxu0 0.0
    %5618 = vmatpush.msra.mxu0 0.0
    %5619 = vmatpush.msra.mxu0 0.0
    %5620 = vmatpush.msra.mxu0 0.0
    %5621 = vmatpush.msra.mxu0 %v5601
    %5622 = vmatmul.f32.gmra.mxu0 %v5604
    %v5623 = vpop.f32.mrf.mxu0
    %v5624 = vadd.f32 0.0, %v5623
    %5625 = vdwg.mxu0
    %5626 = vxpose.xlu0.b32.start [1/16] %v4960, 128
    %5627 = vxpose.xlu0.b32.cont [2/16] 0.0, 128
    %5628 = vxpose.xlu0.b32.cont [3/16] 0.0, 128
    %5629 = vxpose.xlu0.b32.cont [4/16] 0.0, 128
    %5630 = vxpose.xlu0.b32.cont [5/16] 0.0, 128
    %5631 = vxpose.xlu0.b32.cont [6/16] 0.0, 128
    %5632 = vxpose.xlu0.b32.cont [7/16] 0.0, 128
    %5633 = vxpose.xlu0.b32.cont [8/16] 0.0, 128
    %5634 = vxpose.xlu0.b32.cont [9/16] 0.0, 128
    %5635 = vxpose.xlu0.b32.cont [10/16] 0.0, 128
    %5636 = vxpose.xlu0.b32.cont [11/16] 0.0, 128
    %5637 = vxpose.xlu0.b32.cont [12/16] 0.0, 128
    %5638 = vxpose.xlu0.b32.cont [13/16] 0.0, 128
    %5639 = vxpose.xlu0.b32.cont [14/16] 0.0, 128
    %5640 = vxpose.xlu0.b32.cont [15/16] 0.0, 128
    %5641 = vxpose.xlu0.b32.end [16/16] 0.0, 128
    %v5642 = vpop.trf.xlu0
    %v5643 = vpop.trf.xlu0
    %v5644 = vpop.trf.xlu0
    %v5645 = vpop.trf.xlu0
    %v5646 = vpop.trf.xlu0
    %v5647 = vpop.trf.xlu0
    %v5648 = vpop.trf.xlu0
    %v5649 = vpop.trf.xlu0
    %v5650 = vpop.trf.xlu0
    %v5651 = vpop.trf.xlu0
    %v5652 = vpop.trf.xlu0
    %v5653 = vpop.trf.xlu0
    %v5654 = vpop.trf.xlu0
    %v5655 = vpop.trf.xlu0
    %v5656 = vpop.trf.xlu0
    %v5657 = vpop.trf.xlu0
    %5659 = vrot.lane.b32.xlu0 %v5050, 96
    %v5660 = vpop.permute.xlu0 %5659
    %v5663 = vsel %vm1409, %v5642, 0
    %5665 = vmatpush.msra.mxu0 0.0
    %5666 = vmatpush.msra.mxu0 0.0
    %5667 = vmatpush.msra.mxu0 0.0
    %5668 = vmatpush.msra.mxu0 0.0
    %5669 = vmatpush.msra.mxu0 0.0
    %5670 = vmatpush.msra.mxu0 0.0
    %5671 = vmatpush.msra.mxu0 0.0
    %5672 = vmatpush.msra.mxu0 0.0
    %5673 = vmatpush.msra.mxu0 0.0
    %5674 = vmatpush.msra.mxu0 0.0
    %5675 = vmatpush.msra.mxu0 0.0
    %5676 = vmatpush.msra.mxu0 0.0
    %5677 = vmatpush.msra.mxu0 0.0
    %5678 = vmatpush.msra.mxu0 0.0
    %5679 = vmatpush.msra.mxu0 0.0
    %5680 = vmatpush.msra.mxu0 %v5660
    %5681 = vmatmul.f32.gmra.mxu0 %v5663
    %v5682 = vpop.f32.mrf.mxu0
    %v5683 = vadd.f32 0.0, %v5682
    %5684 = vdwg.mxu0
    %5685 = vxpose.xlu0.b32.start [1/16] %v4975, 128
    %5686 = vxpose.xlu0.b32.cont [2/16] 0.0, 128
    %5687 = vxpose.xlu0.b32.cont [3/16] 0.0, 128
    %5688 = vxpose.xlu0.b32.cont [4/16] 0.0, 128
    %5689 = vxpose.xlu0.b32.cont [5/16] 0.0, 128
    %5690 = vxpose.xlu0.b32.cont [6/16] 0.0, 128
    %5691 = vxpose.xlu0.b32.cont [7/16] 0.0, 128
    %5692 = vxpose.xlu0.b32.cont [8/16] 0.0, 128
    %5693 = vxpose.xlu0.b32.cont [9/16] 0.0, 128
    %5694 = vxpose.xlu0.b32.cont [10/16] 0.0, 128
    %5695 = vxpose.xlu0.b32.cont [11/16] 0.0, 128
    %5696 = vxpose.xlu0.b32.cont [12/16] 0.0, 128
    %5697 = vxpose.xlu0.b32.cont [13/16] 0.0, 128
    %5698 = vxpose.xlu0.b32.cont [14/16] 0.0, 128
    %5699 = vxpose.xlu0.b32.cont [15/16] 0.0, 128
    %5700 = vxpose.xlu0.b32.end [16/16] 0.0, 128
    %v5701 = vpop.trf.xlu0
    %v5702 = vpop.trf.xlu0
    %v5703 = vpop.trf.xlu0
    %v5704 = vpop.trf.xlu0
    %v5705 = vpop.trf.xlu0
    %v5706 = vpop.trf.xlu0
    %v5707 = vpop.trf.xlu0
    %v5708 = vpop.trf.xlu0
    %v5709 = vpop.trf.xlu0
    %v5710 = vpop.trf.xlu0
    %v5711 = vpop.trf.xlu0
    %v5712 = vpop.trf.xlu0
    %v5713 = vpop.trf.xlu0
    %v5714 = vpop.trf.xlu0
    %v5715 = vpop.trf.xlu0
    %v5716 = vpop.trf.xlu0
    %5718 = vrot.lane.b32.xlu0 %v5051, 96
    %v5719 = vpop.permute.xlu0 %5718
    %v5722 = vsel %vm1409, %v5701, 0
    %5724 = vmatpush.msra.mxu0 0.0
    %5725 = vmatpush.msra.mxu0 0.0
    %5726 = vmatpush.msra.mxu0 0.0
    %5727 = vmatpush.msra.mxu0 0.0
    %5728 = vmatpush.msra.mxu0 0.0
    %5729 = vmatpush.msra.mxu0 0.0
    %5730 = vmatpush.msra.mxu0 0.0
    %5731 = vmatpush.msra.mxu0 0.0
    %5732 = vmatpush.msra.mxu0 0.0
    %5733 = vmatpush.msra.mxu0 0.0
    %5734 = vmatpush.msra.mxu0 0.0
    %5735 = vmatpush.msra.mxu0 0.0
    %5736 = vmatpush.msra.mxu0 0.0
    %5737 = vmatpush.msra.mxu0 0.0
    %5738 = vmatpush.msra.mxu0 0.0
    %5739 = vmatpush.msra.mxu0 %v5719
    %5740 = vmatmul.f32.gmra.mxu0 %v5722
    %v5741 = vpop.f32.mrf.mxu0
    %v5742 = vadd.f32 0.0, %v5741
    %5743 = vdwg.mxu0
    %5744 = vxpose.xlu0.b32.start [1/16] %v4990, 128
    %5745 = vxpose.xlu0.b32.cont [2/16] 0.0, 128
    %5746 = vxpose.xlu0.b32.cont [3/16] 0.0, 128
    %5747 = vxpose.xlu0.b32.cont [4/16] 0.0, 128
    %5748 = vxpose.xlu0.b32.cont [5/16] 0.0, 128
    %5749 = vxpose.xlu0.b32.cont [6/16] 0.0, 128
    %5750 = vxpose.xlu0.b32.cont [7/16] 0.0, 128
    %5751 = vxpose.xlu0.b32.cont [8/16] 0.0, 128
    %5752 = vxpose.xlu0.b32.cont [9/16] 0.0, 128
    %5753 = vxpose.xlu0.b32.cont [10/16] 0.0, 128
    %5754 = vxpose.xlu0.b32.cont [11/16] 0.0, 128
    %5755 = vxpose.xlu0.b32.cont [12/16] 0.0, 128
    %5756 = vxpose.xlu0.b32.cont [13/16] 0.0, 128
    %5757 = vxpose.xlu0.b32.cont [14/16] 0.0, 128
    %5758 = vxpose.xlu0.b32.cont [15/16] 0.0, 128
    %5759 = vxpose.xlu0.b32.end [16/16] 0.0, 128
    %v5760 = vpop.trf.xlu0
    %v5761 = vpop.trf.xlu0
    %v5762 = vpop.trf.xlu0
    %v5763 = vpop.trf.xlu0
    %v5764 = vpop.trf.xlu0
    %v5765 = vpop.trf.xlu0
    %v5766 = vpop.trf.xlu0
    %v5767 = vpop.trf.xlu0
    %v5768 = vpop.trf.xlu0
    %v5769 = vpop.trf.xlu0
    %v5770 = vpop.trf.xlu0
    %v5771 = vpop.trf.xlu0
    %v5772 = vpop.trf.xlu0
    %v5773 = vpop.trf.xlu0
    %v5774 = vpop.trf.xlu0
    %v5775 = vpop.trf.xlu0
    %5777 = vrot.lane.b32.xlu0 %v5052, 96
    %v5778 = vpop.permute.xlu0 %5777
    %v5781 = vsel %vm1409, %v5760, 0
    %5783 = vmatpush.msra.mxu0 0.0
    %5784 = vmatpush.msra.mxu0 0.0
    %5785 = vmatpush.msra.mxu0 0.0
    %5786 = vmatpush.msra.mxu0 0.0
    %5787 = vmatpush.msra.mxu0 0.0
    %5788 = vmatpush.msra.mxu0 0.0
    %5789 = vmatpush.msra.mxu0 0.0
    %5790 = vmatpush.msra.mxu0 0.0
    %5791 = vmatpush.msra.mxu0 0.0
    %5792 = vmatpush.msra.mxu0 0.0
    %5793 = vmatpush.msra.mxu0 0.0
    %5794 = vmatpush.msra.mxu0 0.0
    %5795 = vmatpush.msra.mxu0 0.0
    %5796 = vmatpush.msra.mxu0 0.0
    %5797 = vmatpush.msra.mxu0 0.0
    %5798 = vmatpush.msra.mxu0 %v5778
    %5799 = vmatmul.f32.gmra.mxu0 %v5781
    %v5800 = vpop.f32.mrf.mxu0
    %v5801 = vadd.f32 0.0, %v5800
    %5802 = vdwg.mxu0
    %5803 = vxpose.xlu0.b32.start [1/16] %v5005, 128
    %5804 = vxpose.xlu0.b32.cont [2/16] 0.0, 128
    %5805 = vxpose.xlu0.b32.cont [3/16] 0.0, 128
    %5806 = vxpose.xlu0.b32.cont [4/16] 0.0, 128
    %5807 = vxpose.xlu0.b32.cont [5/16] 0.0, 128
    %5808 = vxpose.xlu0.b32.cont [6/16] 0.0, 128
    %5809 = vxpose.xlu0.b32.cont [7/16] 0.0, 128
    %5810 = vxpose.xlu0.b32.cont [8/16] 0.0, 128
    %5811 = vxpose.xlu0.b32.cont [9/16] 0.0, 128
    %5812 = vxpose.xlu0.b32.cont [10/16] 0.0, 128
    %5813 = vxpose.xlu0.b32.cont [11/16] 0.0, 128
    %5814 = vxpose.xlu0.b32.cont [12/16] 0.0, 128
    %5815 = vxpose.xlu0.b32.cont [13/16] 0.0, 128
    %5816 = vxpose.xlu0.b32.cont [14/16] 0.0, 128
    %5817 = vxpose.xlu0.b32.cont [15/16] 0.0, 128
    %5818 = vxpose.xlu0.b32.end [16/16] 0.0, 128
    %v5819 = vpop.trf.xlu0
    %v5820 = vpop.trf.xlu0
    %v5821 = vpop.trf.xlu0
    %v5822 = vpop.trf.xlu0
    %v5823 = vpop.trf.xlu0
    %v5824 = vpop.trf.xlu0
    %v5825 = vpop.trf.xlu0
    %v5826 = vpop.trf.xlu0
    %v5827 = vpop.trf.xlu0
    %v5828 = vpop.trf.xlu0
    %v5829 = vpop.trf.xlu0
    %v5830 = vpop.trf.xlu0
    %v5831 = vpop.trf.xlu0
    %v5832 = vpop.trf.xlu0
    %v5833 = vpop.trf.xlu0
    %v5834 = vpop.trf.xlu0
    %5836 = vrot.lane.b32.xlu0 %v5053, 96
    %v5837 = vpop.permute.xlu0 %5836
    %v5840 = vsel %vm1409, %v5819, 0
    %5842 = vmatpush.msra.mxu0 0.0
    %5843 = vmatpush.msra.mxu0 0.0
    %5844 = vmatpush.msra.mxu0 0.0
    %5845 = vmatpush.msra.mxu0 0.0
    %5846 = vmatpush.msra.mxu0 0.0
    %5847 = vmatpush.msra.mxu0 0.0
    %5848 = vmatpush.msra.mxu0 0.0
    %5849 = vmatpush.msra.mxu0 0.0
    %5850 = vmatpush.msra.mxu0 0.0
    %5851 = vmatpush.msra.mxu0 0.0
    %5852 = vmatpush.msra.mxu0 0.0
    %5853 = vmatpush.msra.mxu0 0.0
    %5854 = vmatpush.msra.mxu0 0.0
    %5855 = vmatpush.msra.mxu0 0.0
    %5856 = vmatpush.msra.mxu0 0.0
    %5857 = vmatpush.msra.mxu0 %v5837
    %5858 = vmatmul.f32.gmra.mxu0 %v5840
    %v5859 = vpop.f32.mrf.mxu0
    %v5860 = vadd.f32 0.0, %v5859
    %5861 = vdwg.mxu0
    %5863 = vset.pattern.permute.xlu0 64
    %5864 = vperm.xlu0 %5863, %v5382
    %v5865 = vpop.permute.xlu0 %5864
    %5868 = vset.pattern.permute.xlu0 64
    %5869 = vperm.xlu0 %5868, %v5383
    %v5870 = vpop.permute.xlu0 %5869
    %5873 = vset.pattern.permute.xlu0 64
    %5874 = vperm.xlu0 %5873, %v5384
    %v5875 = vpop.permute.xlu0 %5874
    %5878 = vset.pattern.permute.xlu0 64
    %5879 = vperm.xlu0 %5878, %v5385
    %v5880 = vpop.permute.xlu0 %5879
    %5883 = vset.pattern.permute.xlu0 64
    %5884 = vperm.xlu0 %5883, %v5386
    %v5885 = vpop.permute.xlu0 %5884
    %5888 = vset.pattern.permute.xlu0 64
    %5889 = vperm.xlu0 %5888, %v5387
    %v5890 = vpop.permute.xlu0 %5889
    %5893 = vset.pattern.permute.xlu0 64
    %5894 = vperm.xlu0 %5893, %v5388
    %v5895 = vpop.permute.xlu0 %5894
    %5898 = vset.pattern.permute.xlu0 64
    %5899 = vperm.xlu0 %5898, %v5389
    %v5900 = vpop.permute.xlu0 %5899
    %v5902 = vmul.f32 %v5865, %v5447
    %v5903 = vmul.f32 %v5870, %v5506
    %v5904 = vmul.f32 %v5875, %v5565
    %v5905 = vmul.f32 %v5880, %v5624
    %v5906 = vmul.f32 %v5885, %v5683
    %v5907 = vmul.f32 %v5890, %v5742
    %v5908 = vmul.f32 %v5895, %v5801
    %v5909 = vmul.f32 %v5900, %v5860
    %v5910 = vadd.f32 %v4464, %v5902
    %v5911 = vadd.f32 %v4465, %v5903
    %v5912 = vadd.f32 %v4466, %v5904
    %v5913 = vadd.f32 %v4467, %v5905
    %v5914 = vadd.f32 %v4468, %v5906
    %v5915 = vadd.f32 %v4469, %v5907
    %v5916 = vadd.f32 %v4470, %v5908
    %v5917 = vadd.f32 %v4471, %v5909
    %v5918 = vmul.f32 %v5374, %v5374
    %v5919 = vmul.f32 %v5375, %v5375
    %v5920 = vmul.f32 %v5376, %v5376
    %v5921 = vmul.f32 %v5377, %v5377
    %v5922 = vmul.f32 %v5378, %v5378
    %v5923 = vmul.f32 %v5379, %v5379
    %v5924 = vmul.f32 %v5380, %v5380
    %v5925 = vmul.f32 %v5381, %v5381
    %v5926 = vsel %vm155, %v5918, 0.0
    %5927 = vadd.xlane.f32.xlu0 %v5926
    %v5928 = vpop.xlane.xlu0 %5927
    %v5929 = vsel %vm155, %v5919, 0.0
    %5930 = vadd.xlane.f32.xlu0 %v5929
    %v5931 = vpop.xlane.xlu0 %5930
    %v5932 = vsel %vm155, %v5920, 0.0
    %5933 = vadd.xlane.f32.xlu0 %v5932
    %v5934 = vpop.xlane.xlu0 %5933
    %v5935 = vsel %vm155, %v5921, 0.0
    %5936 = vadd.xlane.f32.xlu0 %v5935
    %v5937 = vpop.xlane.xlu0 %5936
    %v5938 = vsel %vm155, %v5922, 0.0
    %5939 = vadd.xlane.f32.xlu0 %v5938
    %v5940 = vpop.xlane.xlu0 %5939
    %v5941 = vsel %vm155, %v5923, 0.0
    %5942 = vadd.xlane.f32.xlu0 %v5941
    %v5943 = vpop.xlane.xlu0 %5942
    %v5944 = vsel %vm155, %v5924, 0.0
    %5945 = vadd.xlane.f32.xlu0 %v5944
    %v5946 = vpop.xlane.xlu0 %5945
    %v5947 = vsel %vm155, %v5925, 0.0
    %5948 = vadd.xlane.f32.xlu0 %v5947
    %v5949 = vpop.xlane.xlu0 %5948
    %v5950 = vrsqrt.pop %v5928
    %v5951 = vmul.f32 %v5950, %v5928
    %v5952 = vmul.f32 %v5951, %v5950
    %v5953 = vmul.f32 0.5, %v5952
    %v5954 = vsub.f32 1.5, %v5953
    %v5955 = vmul.f32 %v5950, %v5954
    %v5956 = vmul.f32 %v5928, %v5955
    %vm5957 = vcmp.eq.f32.partialorder %v5928, inf
    %v5958 = vsel %vm5957, %v5928, %v5956
    %vm5959 = vcmp.eq.f32.partialorder %v5928, 0.0
    %v5960 = vand.u32 %v5928, 2147483648
    %v5961 = vsel %vm5959, %v5960, %v5958
    %v5962 = vrsqrt.pop %v5931
    %v5963 = vmul.f32 %v5962, %v5931
    %v5964 = vmul.f32 %v5963, %v5962
    %v5965 = vmul.f32 0.5, %v5964
    %v5966 = vsub.f32 1.5, %v5965
    %v5967 = vmul.f32 %v5962, %v5966
    %v5968 = vmul.f32 %v5931, %v5967
    %vm5969 = vcmp.eq.f32.partialorder %v5931, inf
    %v5970 = vsel %vm5969, %v5931, %v5968
    %vm5971 = vcmp.eq.f32.partialorder %v5931, 0.0
    %v5972 = vand.u32 %v5931, 2147483648
    %v5973 = vsel %vm5971, %v5972, %v5970
    %v5974 = vrsqrt.pop %v5934
    %v5975 = vmul.f32 %v5974, %v5934
    %v5976 = vmul.f32 %v5975, %v5974
    %v5977 = vmul.f32 0.5, %v5976
    %v5978 = vsub.f32 1.5, %v5977
    %v5979 = vmul.f32 %v5974, %v5978
    %v5980 = vmul.f32 %v5934, %v5979
    %vm5981 = vcmp.eq.f32.partialorder %v5934, inf
    %v5982 = vsel %vm5981, %v5934, %v5980
    %vm5983 = vcmp.eq.f32.partialorder %v5934, 0.0
    %v5984 = vand.u32 %v5934, 2147483648
    %v5985 = vsel %vm5983, %v5984, %v5982
    %v5986 = vrsqrt.pop %v5937
    %v5987 = vmul.f32 %v5986, %v5937
    %v5988 = vmul.f32 %v5987, %v5986
    %v5989 = vmul.f32 0.5, %v5988
    %v5990 = vsub.f32 1.5, %v5989
    %v5991 = vmul.f32 %v5986, %v5990
    %v5992 = vmul.f32 %v5937, %v5991
    %vm5993 = vcmp.eq.f32.partialorder %v5937, inf
    %v5994 = vsel %vm5993, %v5937, %v5992
    %vm5995 = vcmp.eq.f32.partialorder %v5937, 0.0
    %v5996 = vand.u32 %v5937, 2147483648
    %v5997 = vsel %vm5995, %v5996, %v5994
    %v5998 = vrsqrt.pop %v5940
    %v5999 = vmul.f32 %v5998, %v5940
    %v6000 = vmul.f32 %v5999, %v5998
    %v6001 = vmul.f32 0.5, %v6000
    %v6002 = vsub.f32 1.5, %v6001
    %v6003 = vmul.f32 %v5998, %v6002
    %v6004 = vmul.f32 %v5940, %v6003
    %vm6005 = vcmp.eq.f32.partialorder %v5940, inf
    %v6006 = vsel %vm6005, %v5940, %v6004
    %vm6007 = vcmp.eq.f32.partialorder %v5940, 0.0
    %v6008 = vand.u32 %v5940, 2147483648
    %v6009 = vsel %vm6007, %v6008, %v6006
    %v6010 = vrsqrt.pop %v5943
    %v6011 = vmul.f32 %v6010, %v5943
    %v6012 = vmul.f32 %v6011, %v6010
    %v6013 = vmul.f32 0.5, %v6012
    %v6014 = vsub.f32 1.5, %v6013
    %v6015 = vmul.f32 %v6010, %v6014
    %v6016 = vmul.f32 %v5943, %v6015
    %vm6017 = vcmp.eq.f32.partialorder %v5943, inf
    %v6018 = vsel %vm6017, %v5943, %v6016
    %vm6019 = vcmp.eq.f32.partialorder %v5943, 0.0
    %v6020 = vand.u32 %v5943, 2147483648
    %v6021 = vsel %vm6019, %v6020, %v6018
    %v6022 = vrsqrt.pop %v5946
    %v6023 = vmul.f32 %v6022, %v5946
    %v6024 = vmul.f32 %v6023, %v6022
    %v6025 = vmul.f32 0.5, %v6024
    %v6026 = vsub.f32 1.5, %v6025
    %v6027 = vmul.f32 %v6022, %v6026
    %v6028 = vmul.f32 %v5946, %v6027
    %vm6029 = vcmp.eq.f32.partialorder %v5946, inf
    %v6030 = vsel %vm6029, %v5946, %v6028
    %vm6031 = vcmp.eq.f32.partialorder %v5946, 0.0
    %v6032 = vand.u32 %v5946, 2147483648
    %v6033 = vsel %vm6031, %v6032, %v6030
    %v6034 = vrsqrt.pop %v5949
    %v6035 = vmul.f32 %v6034, %v5949
    %v6036 = vmul.f32 %v6035, %v6034
    %v6037 = vmul.f32 0.5, %v6036
    %v6038 = vsub.f32 1.5, %v6037
    %v6039 = vmul.f32 %v6034, %v6038
    %v6040 = vmul.f32 %v5949, %v6039
    %vm6041 = vcmp.eq.f32.partialorder %v5949, inf
    %v6042 = vsel %vm6041, %v5949, %v6040
    %vm6043 = vcmp.eq.f32.partialorder %v5949, 0.0
    %v6044 = vand.u32 %v5949, 2147483648
    %v6045 = vsel %vm6043, %v6044, %v6042
    %v6046 = vrot.slane %v5961, 4
    %v6047 = vmax.f32 %v5961, %v6046
    %v6048 = vrot.slane %v6047, 2
    %v6049 = vmax.f32 %v6047, %v6048
    %v6050 = vrot.slane %v6049, 1
    %v6051 = vmax.f32 %v6049, %v6050
    %v6052 = vrot.slane %v5973, 4
    %v6053 = vmax.f32 %v5973, %v6052
    %v6054 = vrot.slane %v6053, 2
    %v6055 = vmax.f32 %v6053, %v6054
    %v6056 = vrot.slane %v6055, 1
    %v6057 = vmax.f32 %v6055, %v6056
    %v6058 = vrot.slane %v5985, 4
    %v6059 = vmax.f32 %v5985, %v6058
    %v6060 = vrot.slane %v6059, 2
    %v6061 = vmax.f32 %v6059, %v6060
    %v6062 = vrot.slane %v6061, 1
    %v6063 = vmax.f32 %v6061, %v6062
    %v6064 = vrot.slane %v5997, 4
    %v6065 = vmax.f32 %v5997, %v6064
    %v6066 = vrot.slane %v6065, 2
    %v6067 = vmax.f32 %v6065, %v6066
    %v6068 = vrot.slane %v6067, 1
    %v6069 = vmax.f32 %v6067, %v6068
    %v6070 = vrot.slane %v6009, 4
    %v6071 = vmax.f32 %v6009, %v6070
    %v6072 = vrot.slane %v6071, 2
    %v6073 = vmax.f32 %v6071, %v6072
    %v6074 = vrot.slane %v6073, 1
    %v6075 = vmax.f32 %v6073, %v6074
    %v6076 = vrot.slane %v6021, 4
    %v6077 = vmax.f32 %v6021, %v6076
    %v6078 = vrot.slane %v6077, 2
    %v6079 = vmax.f32 %v6077, %v6078
    %v6080 = vrot.slane %v6079, 1
    %v6081 = vmax.f32 %v6079, %v6080
    %v6082 = vrot.slane %v6033, 4
    %v6083 = vmax.f32 %v6033, %v6082
    %v6084 = vrot.slane %v6083, 2
    %v6085 = vmax.f32 %v6083, %v6084
    %v6086 = vrot.slane %v6085, 1
    %v6087 = vmax.f32 %v6085, %v6086
    %v6088 = vrot.slane %v6045, 4
    %v6089 = vmax.f32 %v6045, %v6088
    %v6090 = vrot.slane %v6089, 2
    %v6091 = vmax.f32 %v6089, %v6090
    %v6092 = vrot.slane %v6091, 1
    %v6093 = vmax.f32 %v6091, %v6092
    %v6094 = vsub.f32 %v5961, %v6051
    %v6095 = vsub.f32 %v5973, %v6057
    %v6096 = vsub.f32 %v5985, %v6063
    %v6097 = vsub.f32 %v5997, %v6069
    %v6098 = vsub.f32 %v6009, %v6075
    %v6099 = vsub.f32 %v6021, %v6081
    %v6100 = vsub.f32 %v6033, %v6087
    %v6101 = vsub.f32 %v6045, %v6093
    %v6102 = vmul.f32 %v6094, 1.442695
    %v6103 = vpow.pop %v6102
    %v6104 = vmul.f32 %v6095, 1.442695
    %v6105 = vpow.pop %v6104
    %v6106 = vmul.f32 %v6096, 1.442695
    %v6107 = vpow.pop %v6106
    %v6108 = vmul.f32 %v6097, 1.442695
    %v6109 = vpow.pop %v6108
    %v6110 = vmul.f32 %v6098, 1.442695
    %v6111 = vpow.pop %v6110
    %v6112 = vmul.f32 %v6099, 1.442695
    %v6113 = vpow.pop %v6112
    %v6114 = vmul.f32 %v6100, 1.442695
    %v6115 = vpow.pop %v6114
    %v6116 = vmul.f32 %v6101, 1.442695
    %v6117 = vpow.pop %v6116
    %v6118 = vrot.slane %v6103, 4
    %v6119 = vadd.f32 %v6103, %v6118
    %v6120 = vrot.slane %v6119, 2
    %v6121 = vadd.f32 %v6119, %v6120
    %v6122 = vrot.slane %v6121, 1
    %v6123 = vadd.f32 %v6121, %v6122
    %v6124 = vrot.slane %v6105, 4
    %v6125 = vadd.f32 %v6105, %v6124
    %v6126 = vrot.slane %v6125, 2
    %v6127 = vadd.f32 %v6125, %v6126
    %v6128 = vrot.slane %v6127, 1
    %v6129 = vadd.f32 %v6127, %v6128
    %v6130 = vrot.slane %v6107, 4
    %v6131 = vadd.f32 %v6107, %v6130
    %v6132 = vrot.slane %v6131, 2
    %v6133 = vadd.f32 %v6131, %v6132
    %v6134 = vrot.slane %v6133, 1
    %v6135 = vadd.f32 %v6133, %v6134
    %v6136 = vrot.slane %v6109, 4
    %v6137 = vadd.f32 %v6109, %v6136
    %v6138 = vrot.slane %v6137, 2
    %v6139 = vadd.f32 %v6137, %v6138
    %v6140 = vrot.slane %v6139, 1
    %v6141 = vadd.f32 %v6139, %v6140
    %v6142 = vrot.slane %v6111, 4
    %v6143 = vadd.f32 %v6111, %v6142
    %v6144 = vrot.slane %v6143, 2
    %v6145 = vadd.f32 %v6143, %v6144
    %v6146 = vrot.slane %v6145, 1
    %v6147 = vadd.f32 %v6145, %v6146
    %v6148 = vrot.slane %v6113, 4
    %v6149 = vadd.f32 %v6113, %v6148
    %v6150 = vrot.slane %v6149, 2
    %v6151 = vadd.f32 %v6149, %v6150
    %v6152 = vrot.slane %v6151, 1
    %v6153 = vadd.f32 %v6151, %v6152
    %v6154 = vrot.slane %v6115, 4
    %v6155 = vadd.f32 %v6115, %v6154
    %v6156 = vrot.slane %v6155, 2
    %v6157 = vadd.f32 %v6155, %v6156
    %v6158 = vrot.slane %v6157, 1
    %v6159 = vadd.f32 %v6157, %v6158
    %v6160 = vrot.slane %v6117, 4
    %v6161 = vadd.f32 %v6117, %v6160
    %v6162 = vrot.slane %v6161, 2
    %v6163 = vadd.f32 %v6161, %v6162
    %v6164 = vrot.slane %v6163, 1
    %v6165 = vadd.f32 %v6163, %v6164
    %v6166 = vrcp.pop %v6123
    %v6167 = vmul.f32 %v6123, %v6166
    %v6168 = vsub.f32 1.0, %v6167
    %v6169 = vmul.f32 %v6166, %v6168
    %v6170 = vadd.f32 %v6166, %v6169
    %vm6171 = vweird.f32 %v6123
    %vm6172 = vweird.f32 %v6166
    %vm6173 = vmor %vm6171, %vm6172
    %v6174 = vsel %vm6173, %v6166, %v6170
    %v6175 = vand.u32 2147483647, %v6123
    %vm6176 = vcmp.eq.f32.partialorder %v6175, 8.507059e+37
    %v6177 = vand.u32 %v6123, 2147483648
    %v6178 = vor.u32 1.1754944e-38, %v6177
    %v6179 = vsel %vm6176, %v6178, %v6174
    %v6180 = vmul.f32 %v6103, %v6179
    %v6181 = vrcp.pop %v6129
    %v6182 = vmul.f32 %v6129, %v6181
    %v6183 = vsub.f32 1.0, %v6182
    %v6184 = vmul.f32 %v6181, %v6183
    %v6185 = vadd.f32 %v6181, %v6184
    %vm6186 = vweird.f32 %v6129
    %vm6187 = vweird.f32 %v6181
    %vm6188 = vmor %vm6186, %vm6187
    %v6189 = vsel %vm6188, %v6181, %v6185
    %v6190 = vand.u32 2147483647, %v6129
    %vm6191 = vcmp.eq.f32.partialorder %v6190, 8.507059e+37
    %v6192 = vand.u32 %v6129, 2147483648
    %v6193 = vor.u32 1.1754944e-38, %v6192
    %v6194 = vsel %vm6191, %v6193, %v6189
    %v6195 = vmul.f32 %v6105, %v6194
    %v6196 = vrcp.pop %v6135
    %v6197 = vmul.f32 %v6135, %v6196
    %v6198 = vsub.f32 1.0, %v6197
    %v6199 = vmul.f32 %v6196, %v6198
    %v6200 = vadd.f32 %v6196, %v6199
    %vm6201 = vweird.f32 %v6135
    %vm6202 = vweird.f32 %v6196
    %vm6203 = vmor %vm6201, %vm6202
    %v6204 = vsel %vm6203, %v6196, %v6200
    %v6205 = vand.u32 2147483647, %v6135
    %vm6206 = vcmp.eq.f32.partialorder %v6205, 8.507059e+37
    %v6207 = vand.u32 %v6135, 2147483648
    %v6208 = vor.u32 1.1754944e-38, %v6207
    %v6209 = vsel %vm6206, %v6208, %v6204
    %v6210 = vmul.f32 %v6107, %v6209
    %v6211 = vrcp.pop %v6141
    %v6212 = vmul.f32 %v6141, %v6211
    %v6213 = vsub.f32 1.0, %v6212
    %v6214 = vmul.f32 %v6211, %v6213
    %v6215 = vadd.f32 %v6211, %v6214
    %vm6216 = vweird.f32 %v6141
    %vm6217 = vweird.f32 %v6211
    %vm6218 = vmor %vm6216, %vm6217
    %v6219 = vsel %vm6218, %v6211, %v6215
    %v6220 = vand.u32 2147483647, %v6141
    %vm6221 = vcmp.eq.f32.partialorder %v6220, 8.507059e+37
    %v6222 = vand.u32 %v6141, 2147483648
    %v6223 = vor.u32 1.1754944e-38, %v6222
    %v6224 = vsel %vm6221, %v6223, %v6219
    %v6225 = vmul.f32 %v6109, %v6224
    %v6226 = vrcp.pop %v6147
    %v6227 = vmul.f32 %v6147, %v6226
    %v6228 = vsub.f32 1.0, %v6227
    %v6229 = vmul.f32 %v6226, %v6228
    %v6230 = vadd.f32 %v6226, %v6229
    %vm6231 = vweird.f32 %v6147
    %vm6232 = vweird.f32 %v6226
    %vm6233 = vmor %vm6231, %vm6232
    %v6234 = vsel %vm6233, %v6226, %v6230
    %v6235 = vand.u32 2147483647, %v6147
    %vm6236 = vcmp.eq.f32.partialorder %v6235, 8.507059e+37
    %v6237 = vand.u32 %v6147, 2147483648
    %v6238 = vor.u32 1.1754944e-38, %v6237
    %v6239 = vsel %vm6236, %v6238, %v6234
    %v6240 = vmul.f32 %v6111, %v6239
    %v6241 = vrcp.pop %v6153
    %v6242 = vmul.f32 %v6153, %v6241
    %v6243 = vsub.f32 1.0, %v6242
    %v6244 = vmul.f32 %v6241, %v6243
    %v6245 = vadd.f32 %v6241, %v6244
    %vm6246 = vweird.f32 %v6153
    %vm6247 = vweird.f32 %v6241
    %vm6248 = vmor %vm6246, %vm6247
    %v6249 = vsel %vm6248, %v6241, %v6245
    %v6250 = vand.u32 2147483647, %v6153
    %vm6251 = vcmp.eq.f32.partialorder %v6250, 8.507059e+37
    %v6252 = vand.u32 %v6153, 2147483648
    %v6253 = vor.u32 1.1754944e-38, %v6252
    %v6254 = vsel %vm6251, %v6253, %v6249
    %v6255 = vmul.f32 %v6113, %v6254
    %v6256 = vrcp.pop %v6159
    %v6257 = vmul.f32 %v6159, %v6256
    %v6258 = vsub.f32 1.0, %v6257
    %v6259 = vmul.f32 %v6256, %v6258
    %v6260 = vadd.f32 %v6256, %v6259
    %vm6261 = vweird.f32 %v6159
    %vm6262 = vweird.f32 %v6256
    %vm6263 = vmor %vm6261, %vm6262
    %v6264 = vsel %vm6263, %v6256, %v6260
    %v6265 = vand.u32 2147483647, %v6159
    %vm6266 = vcmp.eq.f32.partialorder %v6265, 8.507059e+37
    %v6267 = vand.u32 %v6159, 2147483648
    %v6268 = vor.u32 1.1754944e-38, %v6267
    %v6269 = vsel %vm6266, %v6268, %v6264
    %v6270 = vmul.f32 %v6115, %v6269
    %v6271 = vrcp.pop %v6165
    %v6272 = vmul.f32 %v6165, %v6271
    %v6273 = vsub.f32 1.0, %v6272
    %v6274 = vmul.f32 %v6271, %v6273
    %v6275 = vadd.f32 %v6271, %v6274
    %vm6276 = vweird.f32 %v6165
    %vm6277 = vweird.f32 %v6271
    %vm6278 = vmor %vm6276, %vm6277
    %v6279 = vsel %vm6278, %v6271, %v6275
    %v6280 = vand.u32 2147483647, %v6165
    %vm6281 = vcmp.eq.f32.partialorder %v6280, 8.507059e+37
    %v6282 = vand.u32 %v6165, 2147483648
    %v6283 = vor.u32 1.1754944e-38, %v6282
    %v6284 = vsel %vm6281, %v6283, %v6279
    %v6285 = vmul.f32 %v6117, %v6284
    %v6286 = vmul.f32 %v5374, %v6180
    %v6287 = vmul.f32 %v5375, %v6195
    %v6288 = vmul.f32 %v5376, %v6210
    %v6289 = vmul.f32 %v5377, %v6225
    %v6290 = vmul.f32 %v5378, %v6240
    %v6291 = vmul.f32 %v5379, %v6255
    %v6292 = vmul.f32 %v5380, %v6270
    %v6293 = vmul.f32 %v5381, %v6285
    %v6294 = vsel %vm155, %v6286, 0.0
    %v6295 = vrot.slane %v6294, 4
    %v6296 = vadd.f32 %v6294, %v6295
    %v6297 = vrot.slane %v6296, 2
    %v6298 = vadd.f32 %v6296, %v6297
    %v6299 = vrot.slane %v6298, 1
    %v6300 = vadd.f32 %v6298, %v6299
    %v6301 = vsel %vm155, %v6287, 0.0
    %v6302 = vrot.slane %v6301, 4
    %v6303 = vadd.f32 %v6301, %v6302
    %v6304 = vrot.slane %v6303, 2
    %v6305 = vadd.f32 %v6303, %v6304
    %v6306 = vrot.slane %v6305, 1
    %v6307 = vadd.f32 %v6305, %v6306
    %v6308 = vsel %vm155, %v6288, 0.0
    %v6309 = vrot.slane %v6308, 4
    %v6310 = vadd.f32 %v6308, %v6309
    %v6311 = vrot.slane %v6310, 2
    %v6312 = vadd.f32 %v6310, %v6311
    %v6313 = vrot.slane %v6312, 1
    %v6314 = vadd.f32 %v6312, %v6313
    %v6315 = vsel %vm155, %v6289, 0.0
    %v6316 = vrot.slane %v6315, 4
    %v6317 = vadd.f32 %v6315, %v6316
    %v6318 = vrot.slane %v6317, 2
    %v6319 = vadd.f32 %v6317, %v6318
    %v6320 = vrot.slane %v6319, 1
    %v6321 = vadd.f32 %v6319, %v6320
    %v6322 = vsel %vm155, %v6290, 0.0
    %v6323 = vrot.slane %v6322, 4
    %v6324 = vadd.f32 %v6322, %v6323
    %v6325 = vrot.slane %v6324, 2
    %v6326 = vadd.f32 %v6324, %v6325
    %v6327 = vrot.slane %v6326, 1
    %v6328 = vadd.f32 %v6326, %v6327
    %v6329 = vsel %vm155, %v6291, 0.0
    %v6330 = vrot.slane %v6329, 4
    %v6331 = vadd.f32 %v6329, %v6330
    %v6332 = vrot.slane %v6331, 2
    %v6333 = vadd.f32 %v6331, %v6332
    %v6334 = vrot.slane %v6333, 1
    %v6335 = vadd.f32 %v6333, %v6334
    %v6336 = vsel %vm155, %v6292, 0.0
    %v6337 = vrot.slane %v6336, 4
    %v6338 = vadd.f32 %v6336, %v6337
    %v6339 = vrot.slane %v6338, 2
    %v6340 = vadd.f32 %v6338, %v6339
    %v6341 = vrot.slane %v6340, 1
    %v6342 = vadd.f32 %v6340, %v6341
    %v6343 = vsel %vm155, %v6293, 0.0
    %v6344 = vrot.slane %v6343, 4
    %v6345 = vadd.f32 %v6343, %v6344
    %v6346 = vrot.slane %v6345, 2
    %v6347 = vadd.f32 %v6345, %v6346
    %v6348 = vrot.slane %v6347, 1
    %v6349 = vadd.f32 %v6347, %v6348
    %v6350 = vmul.f32 %v5910, %v5910
    %v6351 = vmul.f32 %v5911, %v5911
    %v6352 = vmul.f32 %v5912, %v5912
    %v6353 = vmul.f32 %v5913, %v5913
    %v6354 = vmul.f32 %v5914, %v5914
    %v6355 = vmul.f32 %v5915, %v5915
    %v6356 = vmul.f32 %v5916, %v5916
    %v6357 = vmul.f32 %v5917, %v5917
    %v6358 = vsel %vm155, %v6350, 0.0
    %6359 = vadd.xlane.f32.xlu0 %v6358
    %v6360 = vpop.xlane.xlu0 %6359
    %v6361 = vsel %vm155, %v6351, 0.0
    %6362 = vadd.xlane.f32.xlu0 %v6361
    %v6363 = vpop.xlane.xlu0 %6362
    %v6364 = vsel %vm155, %v6352, 0.0
    %6365 = vadd.xlane.f32.xlu0 %v6364
    %v6366 = vpop.xlane.xlu0 %6365
    %v6367 = vsel %vm155, %v6353, 0.0
    %6368 = vadd.xlane.f32.xlu0 %v6367
    %v6369 = vpop.xlane.xlu0 %6368
    %v6370 = vsel %vm155, %v6354, 0.0
    %6371 = vadd.xlane.f32.xlu0 %v6370
    %v6372 = vpop.xlane.xlu0 %6371
    %v6373 = vsel %vm155, %v6355, 0.0
    %6374 = vadd.xlane.f32.xlu0 %v6373
    %v6375 = vpop.xlane.xlu0 %6374
    %v6376 = vsel %vm155, %v6356, 0.0
    %6377 = vadd.xlane.f32.xlu0 %v6376
    %v6378 = vpop.xlane.xlu0 %6377
    %v6379 = vsel %vm155, %v6357, 0.0
    %6380 = vadd.xlane.f32.xlu0 %v6379
    %v6381 = vpop.xlane.xlu0 %6380
    %v6382 = vrsqrt.pop %v6360
    %v6383 = vmul.f32 %v6382, %v6360
    %v6384 = vmul.f32 %v6383, %v6382
    %v6385 = vmul.f32 0.5, %v6384
    %v6386 = vsub.f32 1.5, %v6385
    %v6387 = vmul.f32 %v6382, %v6386
    %v6388 = vmul.f32 %v6360, %v6387
    %vm6389 = vcmp.eq.f32.partialorder %v6360, inf
    %v6390 = vsel %vm6389, %v6360, %v6388
    %vm6391 = vcmp.eq.f32.partialorder %v6360, 0.0
    %v6392 = vand.u32 %v6360, 2147483648
    %v6393 = vsel %vm6391, %v6392, %v6390
    %v6394 = vrsqrt.pop %v6363
    %v6395 = vmul.f32 %v6394, %v6363
    %v6396 = vmul.f32 %v6395, %v6394
    %v6397 = vmul.f32 0.5, %v6396
    %v6398 = vsub.f32 1.5, %v6397
    %v6399 = vmul.f32 %v6394, %v6398
    %v6400 = vmul.f32 %v6363, %v6399
    %vm6401 = vcmp.eq.f32.partialorder %v6363, inf
    %v6402 = vsel %vm6401, %v6363, %v6400
    %vm6403 = vcmp.eq.f32.partialorder %v6363, 0.0
    %v6404 = vand.u32 %v6363, 2147483648
    %v6405 = vsel %vm6403, %v6404, %v6402
    %v6406 = vrsqrt.pop %v6366
    %v6407 = vmul.f32 %v6406, %v6366
    %v6408 = vmul.f32 %v6407, %v6406
    %v6409 = vmul.f32 0.5, %v6408
    %v6410 = vsub.f32 1.5, %v6409
    %v6411 = vmul.f32 %v6406, %v6410
    %v6412 = vmul.f32 %v6366, %v6411
    %vm6413 = vcmp.eq.f32.partialorder %v6366, inf
    %v6414 = vsel %vm6413, %v6366, %v6412
    %vm6415 = vcmp.eq.f32.partialorder %v6366, 0.0
    %v6416 = vand.u32 %v6366, 2147483648
    %v6417 = vsel %vm6415, %v6416, %v6414
    %v6418 = vrsqrt.pop %v6369
    %v6419 = vmul.f32 %v6418, %v6369
    %v6420 = vmul.f32 %v6419, %v6418
    %v6421 = vmul.f32 0.5, %v6420
    %v6422 = vsub.f32 1.5, %v6421
    %v6423 = vmul.f32 %v6418, %v6422
    %v6424 = vmul.f32 %v6369, %v6423
    %vm6425 = vcmp.eq.f32.partialorder %v6369, inf
    %v6426 = vsel %vm6425, %v6369, %v6424
    %vm6427 = vcmp.eq.f32.partialorder %v6369, 0.0
    %v6428 = vand.u32 %v6369, 2147483648
    %v6429 = vsel %vm6427, %v6428, %v6426
    %v6430 = vrsqrt.pop %v6372
    %v6431 = vmul.f32 %v6430, %v6372
    %v6432 = vmul.f32 %v6431, %v6430
    %v6433 = vmul.f32 0.5, %v6432
    %v6434 = vsub.f32 1.5, %v6433
    %v6435 = vmul.f32 %v6430, %v6434
    %v6436 = vmul.f32 %v6372, %v6435
    %vm6437 = vcmp.eq.f32.partialorder %v6372, inf
    %v6438 = vsel %vm6437, %v6372, %v6436
    %vm6439 = vcmp.eq.f32.partialorder %v6372, 0.0
    %v6440 = vand.u32 %v6372, 2147483648
    %v6441 = vsel %vm6439, %v6440, %v6438
    %v6442 = vrsqrt.pop %v6375
    %v6443 = vmul.f32 %v6442, %v6375
    %v6444 = vmul.f32 %v6443, %v6442
    %v6445 = vmul.f32 0.5, %v6444
    %v6446 = vsub.f32 1.5, %v6445
    %v6447 = vmul.f32 %v6442, %v6446
    %v6448 = vmul.f32 %v6375, %v6447
    %vm6449 = vcmp.eq.f32.partialorder %v6375, inf
    %v6450 = vsel %vm6449, %v6375, %v6448
    %vm6451 = vcmp.eq.f32.partialorder %v6375, 0.0
    %v6452 = vand.u32 %v6375, 2147483648
    %v6453 = vsel %vm6451, %v6452, %v6450
    %v6454 = vrsqrt.pop %v6378
    %v6455 = vmul.f32 %v6454, %v6378
    %v6456 = vmul.f32 %v6455, %v6454
    %v6457 = vmul.f32 0.5, %v6456
    %v6458 = vsub.f32 1.5, %v6457
    %v6459 = vmul.f32 %v6454, %v6458
    %v6460 = vmul.f32 %v6378, %v6459
    %vm6461 = vcmp.eq.f32.partialorder %v6378, inf
    %v6462 = vsel %vm6461, %v6378, %v6460
    %vm6463 = vcmp.eq.f32.partialorder %v6378, 0.0
    %v6464 = vand.u32 %v6378, 2147483648
    %v6465 = vsel %vm6463, %v6464, %v6462
    %v6466 = vrsqrt.pop %v6381
    %v6467 = vmul.f32 %v6466, %v6381
    %v6468 = vmul.f32 %v6467, %v6466
    %v6469 = vmul.f32 0.5, %v6468
    %v6470 = vsub.f32 1.5, %v6469
    %v6471 = vmul.f32 %v6466, %v6470
    %v6472 = vmul.f32 %v6381, %v6471
    %vm6473 = vcmp.eq.f32.partialorder %v6381, inf
    %v6474 = vsel %vm6473, %v6381, %v6472
    %vm6475 = vcmp.eq.f32.partialorder %v6381, 0.0
    %v6476 = vand.u32 %v6381, 2147483648
    %v6477 = vsel %vm6475, %v6476, %v6474
    %v6478 = vrot.slane %v6393, 4
    %v6479 = vmax.f32 %v6393, %v6478
    %v6480 = vrot.slane %v6479, 2
    %v6481 = vmax.f32 %v6479, %v6480
    %v6482 = vrot.slane %v6481, 1
    %v6483 = vmax.f32 %v6481, %v6482
    %v6484 = vrot.slane %v6405, 4
    %v6485 = vmax.f32 %v6405, %v6484
    %v6486 = vrot.slane %v6485, 2
    %v6487 = vmax.f32 %v6485, %v6486
    %v6488 = vrot.slane %v6487, 1
    %v6489 = vmax.f32 %v6487, %v6488
    %v6490 = vrot.slane %v6417, 4
    %v6491 = vmax.f32 %v6417, %v6490
    %v6492 = vrot.slane %v6491, 2
    %v6493 = vmax.f32 %v6491, %v6492
    %v6494 = vrot.slane %v6493, 1
    %v6495 = vmax.f32 %v6493, %v6494
    %v6496 = vrot.slane %v6429, 4
    %v6497 = vmax.f32 %v6429, %v6496
    %v6498 = vrot.slane %v6497, 2
    %v6499 = vmax.f32 %v6497, %v6498
    %v6500 = vrot.slane %v6499, 1
    %v6501 = vmax.f32 %v6499, %v6500
    %v6502 = vrot.slane %v6441, 4
    %v6503 = vmax.f32 %v6441, %v6502
    %v6504 = vrot.slane %v6503, 2
    %v6505 = vmax.f32 %v6503, %v6504
    %v6506 = vrot.slane %v6505, 1
    %v6507 = vmax.f32 %v6505, %v6506
    %v6508 = vrot.slane %v6453, 4
    %v6509 = vmax.f32 %v6453, %v6508
    %v6510 = vrot.slane %v6509, 2
    %v6511 = vmax.f32 %v6509, %v6510
    %v6512 = vrot.slane %v6511, 1
    %v6513 = vmax.f32 %v6511, %v6512
    %v6514 = vrot.slane %v6465, 4
    %v6515 = vmax.f32 %v6465, %v6514
    %v6516 = vrot.slane %v6515, 2
    %v6517 = vmax.f32 %v6515, %v6516
    %v6518 = vrot.slane %v6517, 1
    %v6519 = vmax.f32 %v6517, %v6518
    %v6520 = vrot.slane %v6477, 4
    %v6521 = vmax.f32 %v6477, %v6520
    %v6522 = vrot.slane %v6521, 2
    %v6523 = vmax.f32 %v6521, %v6522
    %v6524 = vrot.slane %v6523, 1
    %v6525 = vmax.f32 %v6523, %v6524
    %v6526 = vsub.f32 %v6393, %v6483
    %v6527 = vsub.f32 %v6405, %v6489
    %v6528 = vsub.f32 %v6417, %v6495
    %v6529 = vsub.f32 %v6429, %v6501
    %v6530 = vsub.f32 %v6441, %v6507
    %v6531 = vsub.f32 %v6453, %v6513
    %v6532 = vsub.f32 %v6465, %v6519
    %v6533 = vsub.f32 %v6477, %v6525
    %v6534 = vmul.f32 %v6526, 1.442695
    %v6535 = vpow.pop %v6534
    %v6536 = vmul.f32 %v6527, 1.442695
    %v6537 = vpow.pop %v6536
    %v6538 = vmul.f32 %v6528, 1.442695
    %v6539 = vpow.pop %v6538
    %v6540 = vmul.f32 %v6529, 1.442695
    %v6541 = vpow.pop %v6540
    %v6542 = vmul.f32 %v6530, 1.442695
    %v6543 = vpow.pop %v6542
    %v6544 = vmul.f32 %v6531, 1.442695
    %v6545 = vpow.pop %v6544
    %v6546 = vmul.f32 %v6532, 1.442695
    %v6547 = vpow.pop %v6546
    %v6548 = vmul.f32 %v6533, 1.442695
    %v6549 = vpow.pop %v6548
    %v6550 = vrot.slane %v6535, 4
    %v6551 = vadd.f32 %v6535, %v6550
    %v6552 = vrot.slane %v6551, 2
    %v6553 = vadd.f32 %v6551, %v6552
    %v6554 = vrot.slane %v6553, 1
    %v6555 = vadd.f32 %v6553, %v6554
    %v6556 = vrot.slane %v6537, 4
    %v6557 = vadd.f32 %v6537, %v6556
    %v6558 = vrot.slane %v6557, 2
    %v6559 = vadd.f32 %v6557, %v6558
    %v6560 = vrot.slane %v6559, 1
    %v6561 = vadd.f32 %v6559, %v6560
    %v6562 = vrot.slane %v6539, 4
    %v6563 = vadd.f32 %v6539, %v6562
    %v6564 = vrot.slane %v6563, 2
    %v6565 = vadd.f32 %v6563, %v6564
    %v6566 = vrot.slane %v6565, 1
    %v6567 = vadd.f32 %v6565, %v6566
    %v6568 = vrot.slane %v6541, 4
    %v6569 = vadd.f32 %v6541, %v6568
    %v6570 = vrot.slane %v6569, 2
    %v6571 = vadd.f32 %v6569, %v6570
    %v6572 = vrot.slane %v6571, 1
    %v6573 = vadd.f32 %v6571, %v6572
    %v6574 = vrot.slane %v6543, 4
    %v6575 = vadd.f32 %v6543, %v6574
    %v6576 = vrot.slane %v6575, 2
    %v6577 = vadd.f32 %v6575, %v6576
    %v6578 = vrot.slane %v6577, 1
    %v6579 = vadd.f32 %v6577, %v6578
    %v6580 = vrot.slane %v6545, 4
    %v6581 = vadd.f32 %v6545, %v6580
    %v6582 = vrot.slane %v6581, 2
    %v6583 = vadd.f32 %v6581, %v6582
    %v6584 = vrot.slane %v6583, 1
    %v6585 = vadd.f32 %v6583, %v6584
    %v6586 = vrot.slane %v6547, 4
    %v6587 = vadd.f32 %v6547, %v6586
    %v6588 = vrot.slane %v6587, 2
    %v6589 = vadd.f32 %v6587, %v6588
    %v6590 = vrot.slane %v6589, 1
    %v6591 = vadd.f32 %v6589, %v6590
    %v6592 = vrot.slane %v6549, 4
    %v6593 = vadd.f32 %v6549, %v6592
    %v6594 = vrot.slane %v6593, 2
    %v6595 = vadd.f32 %v6593, %v6594
    %v6596 = vrot.slane %v6595, 1
    %v6597 = vadd.f32 %v6595, %v6596
    %v6598 = vrcp.pop %v6555
    %v6599 = vmul.f32 %v6555, %v6598
    %v6600 = vsub.f32 1.0, %v6599
    %v6601 = vmul.f32 %v6598, %v6600
    %v6602 = vadd.f32 %v6598, %v6601
    %vm6603 = vweird.f32 %v6555
    %vm6604 = vweird.f32 %v6598
    %vm6605 = vmor %vm6603, %vm6604
    %v6606 = vsel %vm6605, %v6598, %v6602
    %v6607 = vand.u32 2147483647, %v6555
    %vm6608 = vcmp.eq.f32.partialorder %v6607, 8.507059e+37
    %v6609 = vand.u32 %v6555, 2147483648
    %v6610 = vor.u32 1.1754944e-38, %v6609
    %v6611 = vsel %vm6608, %v6610, %v6606
    %v6612 = vmul.f32 %v6535, %v6611
    %v6613 = vrcp.pop %v6561
    %v6614 = vmul.f32 %v6561, %v6613
    %v6615 = vsub.f32 1.0, %v6614
    %v6616 = vmul.f32 %v6613, %v6615
    %v6617 = vadd.f32 %v6613, %v6616
    %vm6618 = vweird.f32 %v6561
    %vm6619 = vweird.f32 %v6613
    %vm6620 = vmor %vm6618, %vm6619
    %v6621 = vsel %vm6620, %v6613, %v6617
    %v6622 = vand.u32 2147483647, %v6561
    %vm6623 = vcmp.eq.f32.partialorder %v6622, 8.507059e+37
    %v6624 = vand.u32 %v6561, 2147483648
    %v6625 = vor.u32 1.1754944e-38, %v6624
    %v6626 = vsel %vm6623, %v6625, %v6621
    %v6627 = vmul.f32 %v6537, %v6626
    %v6628 = vrcp.pop %v6567
    %v6629 = vmul.f32 %v6567, %v6628
    %v6630 = vsub.f32 1.0, %v6629
    %v6631 = vmul.f32 %v6628, %v6630
    %v6632 = vadd.f32 %v6628, %v6631
    %vm6633 = vweird.f32 %v6567
    %vm6634 = vweird.f32 %v6628
    %vm6635 = vmor %vm6633, %vm6634
    %v6636 = vsel %vm6635, %v6628, %v6632
    %v6637 = vand.u32 2147483647, %v6567
    %vm6638 = vcmp.eq.f32.partialorder %v6637, 8.507059e+37
    %v6639 = vand.u32 %v6567, 2147483648
    %v6640 = vor.u32 1.1754944e-38, %v6639
    %v6641 = vsel %vm6638, %v6640, %v6636
    %v6642 = vmul.f32 %v6539, %v6641
    %v6643 = vrcp.pop %v6573
    %v6644 = vmul.f32 %v6573, %v6643
    %v6645 = vsub.f32 1.0, %v6644
    %v6646 = vmul.f32 %v6643, %v6645
    %v6647 = vadd.f32 %v6643, %v6646
    %vm6648 = vweird.f32 %v6573
    %vm6649 = vweird.f32 %v6643
    %vm6650 = vmor %vm6648, %vm6649
    %v6651 = vsel %vm6650, %v6643, %v6647
    %v6652 = vand.u32 2147483647, %v6573
    %vm6653 = vcmp.eq.f32.partialorder %v6652, 8.507059e+37
    %v6654 = vand.u32 %v6573, 2147483648
    %v6655 = vor.u32 1.1754944e-38, %v6654
    %v6656 = vsel %vm6653, %v6655, %v6651
    %v6657 = vmul.f32 %v6541, %v6656
    %v6658 = vrcp.pop %v6579
    %v6659 = vmul.f32 %v6579, %v6658
    %v6660 = vsub.f32 1.0, %v6659
    %v6661 = vmul.f32 %v6658, %v6660
    %v6662 = vadd.f32 %v6658, %v6661
    %vm6663 = vweird.f32 %v6579
    %vm6664 = vweird.f32 %v6658
    %vm6665 = vmor %vm6663, %vm6664
    %v6666 = vsel %vm6665, %v6658, %v6662
    %v6667 = vand.u32 2147483647, %v6579
    %vm6668 = vcmp.eq.f32.partialorder %v6667, 8.507059e+37
    %v6669 = vand.u32 %v6579, 2147483648
    %v6670 = vor.u32 1.1754944e-38, %v6669
    %v6671 = vsel %vm6668, %v6670, %v6666
    %v6672 = vmul.f32 %v6543, %v6671
    %v6673 = vrcp.pop %v6585
    %v6674 = vmul.f32 %v6585, %v6673
    %v6675 = vsub.f32 1.0, %v6674
    %v6676 = vmul.f32 %v6673, %v6675
    %v6677 = vadd.f32 %v6673, %v6676
    %vm6678 = vweird.f32 %v6585
    %vm6679 = vweird.f32 %v6673
    %vm6680 = vmor %vm6678, %vm6679
    %v6681 = vsel %vm6680, %v6673, %v6677
    %v6682 = vand.u32 2147483647, %v6585
    %vm6683 = vcmp.eq.f32.partialorder %v6682, 8.507059e+37
    %v6684 = vand.u32 %v6585, 2147483648
    %v6685 = vor.u32 1.1754944e-38, %v6684
    %v6686 = vsel %vm6683, %v6685, %v6681
    %v6687 = vmul.f32 %v6545, %v6686
    %v6688 = vrcp.pop %v6591
    %v6689 = vmul.f32 %v6591, %v6688
    %v6690 = vsub.f32 1.0, %v6689
    %v6691 = vmul.f32 %v6688, %v6690
    %v6692 = vadd.f32 %v6688, %v6691
    %vm6693 = vweird.f32 %v6591
    %vm6694 = vweird.f32 %v6688
    %vm6695 = vmor %vm6693, %vm6694
    %v6696 = vsel %vm6695, %v6688, %v6692
    %v6697 = vand.u32 2147483647, %v6591
    %vm6698 = vcmp.eq.f32.partialorder %v6697, 8.507059e+37
    %v6699 = vand.u32 %v6591, 2147483648
    %v6700 = vor.u32 1.1754944e-38, %v6699
    %v6701 = vsel %vm6698, %v6700, %v6696
    %v6702 = vmul.f32 %v6547, %v6701
    %v6703 = vrcp.pop %v6597
    %v6704 = vmul.f32 %v6597, %v6703
    %v6705 = vsub.f32 1.0, %v6704
    %v6706 = vmul.f32 %v6703, %v6705
    %v6707 = vadd.f32 %v6703, %v6706
    %vm6708 = vweird.f32 %v6597
    %vm6709 = vweird.f32 %v6703
    %vm6710 = vmor %vm6708, %vm6709
    %v6711 = vsel %vm6710, %v6703, %v6707
    %v6712 = vand.u32 2147483647, %v6597
    %vm6713 = vcmp.eq.f32.partialorder %v6712, 8.507059e+37
    %v6714 = vand.u32 %v6597, 2147483648
    %v6715 = vor.u32 1.1754944e-38, %v6714
    %v6716 = vsel %vm6713, %v6715, %v6711
    %v6717 = vmul.f32 %v6549, %v6716
    %v6718 = vmul.f32 %v5910, %v6612
    %v6719 = vmul.f32 %v5911, %v6627
    %v6720 = vmul.f32 %v5912, %v6642
    %v6721 = vmul.f32 %v5913, %v6657
    %v6722 = vmul.f32 %v5914, %v6672
    %v6723 = vmul.f32 %v5915, %v6687
    %v6724 = vmul.f32 %v5916, %v6702
    %v6725 = vmul.f32 %v5917, %v6717
    %v6726 = vsel %vm155, %v6718, 0.0
    %v6727 = vrot.slane %v6726, 4
    %v6728 = vadd.f32 %v6726, %v6727
    %v6729 = vrot.slane %v6728, 2
    %v6730 = vadd.f32 %v6728, %v6729
    %v6731 = vrot.slane %v6730, 1
    %v6732 = vadd.f32 %v6730, %v6731
    %v6733 = vsel %vm155, %v6719, 0.0
    %v6734 = vrot.slane %v6733, 4
    %v6735 = vadd.f32 %v6733, %v6734
    %v6736 = vrot.slane %v6735, 2
    %v6737 = vadd.f32 %v6735, %v6736
    %v6738 = vrot.slane %v6737, 1
    %v6739 = vadd.f32 %v6737, %v6738
    %v6740 = vsel %vm155, %v6720, 0.0
    %v6741 = vrot.slane %v6740, 4
    %v6742 = vadd.f32 %v6740, %v6741
    %v6743 = vrot.slane %v6742, 2
    %v6744 = vadd.f32 %v6742, %v6743
    %v6745 = vrot.slane %v6744, 1
    %v6746 = vadd.f32 %v6744, %v6745
    %v6747 = vsel %vm155, %v6721, 0.0
    %v6748 = vrot.slane %v6747, 4
    %v6749 = vadd.f32 %v6747, %v6748
    %v6750 = vrot.slane %v6749, 2
    %v6751 = vadd.f32 %v6749, %v6750
    %v6752 = vrot.slane %v6751, 1
    %v6753 = vadd.f32 %v6751, %v6752
    %v6754 = vsel %vm155, %v6722, 0.0
    %v6755 = vrot.slane %v6754, 4
    %v6756 = vadd.f32 %v6754, %v6755
    %v6757 = vrot.slane %v6756, 2
    %v6758 = vadd.f32 %v6756, %v6757
    %v6759 = vrot.slane %v6758, 1
    %v6760 = vadd.f32 %v6758, %v6759
    %v6761 = vsel %vm155, %v6723, 0.0
    %v6762 = vrot.slane %v6761, 4
    %v6763 = vadd.f32 %v6761, %v6762
    %v6764 = vrot.slane %v6763, 2
    %v6765 = vadd.f32 %v6763, %v6764
    %v6766 = vrot.slane %v6765, 1
    %v6767 = vadd.f32 %v6765, %v6766
    %v6768 = vsel %vm155, %v6724, 0.0
    %v6769 = vrot.slane %v6768, 4
    %v6770 = vadd.f32 %v6768, %v6769
    %v6771 = vrot.slane %v6770, 2
    %v6772 = vadd.f32 %v6770, %v6771
    %v6773 = vrot.slane %v6772, 1
    %v6774 = vadd.f32 %v6772, %v6773
    %v6775 = vsel %vm155, %v6725, 0.0
    %v6776 = vrot.slane %v6775, 4
    %v6777 = vadd.f32 %v6775, %v6776
    %v6778 = vrot.slane %v6777, 2
    %v6779 = vadd.f32 %v6777, %v6778
    %v6780 = vrot.slane %v6779, 1
    %v6781 = vadd.f32 %v6779, %v6780
    %v6782 = vld [vmem:[%s11] sm:$0xff]
    %v6783 = vld [vmem:[%s11 + $0x8] sm:$0xff]
    %v6784 = vld [vmem:[%s11 + $0x10] sm:$0xff]
    %v6785 = vld [vmem:[%s11 + $0x18] sm:$0xff]
    %v6786 = vld [vmem:[%s11 + $0x20] sm:$0xff]
    %v6787 = vld [vmem:[%s11 + $0x28] sm:$0xff]
    %v6788 = vld [vmem:[%s11 + $0x30] sm:$0xff]
    %v6789 = vld [vmem:[%s11 + $0x38] sm:$0xff]
    %v6790 = vld [vmem:[%s12] sm:$0x7]
    %vm6799 = vcmask 1041409
    %v6800 = vsel %vm6799, %v6739, %v6732
    %vm6801 = vcmask 1042434
    %v6802 = vsel %vm6801, %v6746, %v6800
    %vm6803 = vcmask 1043459
    %v6804 = vsel %vm6803, %v6753, %v6802
    %vm6805 = vcmask 1044484
    %v6806 = vsel %vm6805, %v6760, %v6804
    %vm6807 = vcmask 1045509
    %v6808 = vsel %vm6807, %v6767, %v6806
    %vm6809 = vcmask 1046534
    %v6810 = vsel %vm6809, %v6774, %v6808
    %vm6811 = vcmask 1047559
    %v6812 = vsel %vm6811, %v6781, %v6810
    %v6813 = vsel %vm155, %v6812, 0
    %6815 = vmatpush.msra.mxu0 0.0
    %6816 = vmatpush.msra.mxu0 0.0
    %6817 = vmatpush.msra.mxu0 0.0
    %6818 = vmatpush.msra.mxu0 0.0
    %6819 = vmatpush.msra.mxu0 0.0
    %6820 = vmatpush.msra.mxu0 0.0
    %6821 = vmatpush.msra.mxu0 0.0
    %6822 = vmatpush.msra.mxu0 0.0
    %6823 = vmatpush.msra.mxu0 0.0
    %6824 = vmatpush.msra.mxu0 0.0
    %6825 = vmatpush.msra.mxu0 0.0
    %6826 = vmatpush.msra.mxu0 0.0
    %6827 = vmatpush.msra.mxu0 %v6789
    %6828 = vmatpush.msra.mxu0 %v6788
    %6829 = vmatpush.msra.mxu0 %v6787
    %6830 = vmatpush.msra.mxu0 %v6786
    %6831 = vmatmul.f32.gmra.mxu0 %v6813
    %v6832 = vpop.f32.mrf.mxu0
    %v6833 = vadd.f32 0.0, %v6832
    %6834 = vdwg.mxu0
    %v6843 = vsel %vm6799, %v6307, %v6300
    %v6844 = vsel %vm6801, %v6314, %v6843
    %v6845 = vsel %vm6803, %v6321, %v6844
    %v6846 = vsel %vm6805, %v6328, %v6845
    %v6847 = vsel %vm6807, %v6335, %v6846
    %v6848 = vsel %vm6809, %v6342, %v6847
    %v6849 = vsel %vm6811, %v6349, %v6848
    %v6850 = vsel %vm155, %v6849, 0
    %6852 = vmatpush.msra.mxu0 0.0
    %6853 = vmatpush.msra.mxu0 0.0
    %6854 = vmatpush.msra.mxu0 0.0
    %6855 = vmatpush.msra.mxu0 0.0
    %6856 = vmatpush.msra.mxu0 0.0
    %6857 = vmatpush.msra.mxu0 0.0
    %6858 = vmatpush.msra.mxu0 0.0
    %6859 = vmatpush.msra.mxu0 0.0
    %6860 = vmatpush.msra.mxu0 0.0
    %6861 = vmatpush.msra.mxu0 0.0
    %6862 = vmatpush.msra.mxu0 0.0
    %6863 = vmatpush.msra.mxu0 0.0
    %6864 = vmatpush.msra.mxu0 %v6785
    %6865 = vmatpush.msra.mxu0 %v6784
    %6866 = vmatpush.msra.mxu0 %v6783
    %6867 = vmatpush.msra.mxu0 %v6782
    %6868 = vmatmul.f32.gmra.mxu0 %v6850
    %v6869 = vpop.f32.mrf.mxu0
    %v6870 = vadd.f32 %v6833, %v6869
    %6871 = vdwg.mxu0
    %v6872 = vperm.slane %v6790, 0
    %v6873 = vadd.f32 %v6870, %v6872
    %v6874 = vmax.f32 %v6873, 0.0
    %6876 = vset.pattern.permute.xlu0 0
    %6877 = vperm.xlu0 %6876, %v6790
    %v6878 = vpop.permute.xlu0 %6877
    %v6879 = vrot.slane %v6790, 1
    %v6880 = vrot.slane %v6878, 2
    %v6882 = vsel %vm155, %v6879, 0
    %v6885 = vsel %vm155, %v6874, 0
    %6887 = vmatpush.xpose.msra.mxu0 0.0
    %6888 = vmatpush.xpose.msra.mxu0 0.0
    %6889 = vmatpush.xpose.msra.mxu0 0.0
    %6890 = vmatpush.xpose.msra.mxu0 0.0
    %6891 = vmatpush.xpose.msra.mxu0 0.0
    %6892 = vmatpush.xpose.msra.mxu0 0.0
    %6893 = vmatpush.xpose.msra.mxu0 0.0
    %6894 = vmatpush.xpose.msra.mxu0 0.0
    %6895 = vmatpush.xpose.msra.mxu0 0.0
    %6896 = vmatpush.xpose.msra.mxu0 0.0
    %6897 = vmatpush.xpose.msra.mxu0 0.0
    %6898 = vmatpush.xpose.msra.mxu0 0.0
    %6899 = vmatpush.xpose.msra.mxu0 0.0
    %6900 = vmatpush.xpose.msra.mxu0 0.0
    %6901 = vmatpush.xpose.msra.mxu0 0.0
    %6902 = vmatpush.xpose.msra.mxu0 %v6885
    %6903 = vmatmul.f32.gmra.mxu0 %v6882
    %v6904 = vpop.f32.mrf.mxu0
    %v6905 = vadd.f32 %v6880, %v6904
    %6906 = vdwg.mxu0
    %v6907 = vxor.u32 %v6905, 2147483648
    %v6908 = vmul.f32 %v6907, 1.442695
    %v6909 = vpow.pop %v6908
    %v6910 = vadd.f32 %v6909, 1.0
    %v6911 = vrcp.pop %v6910
    %v6912 = vmul.f32 %v6910, %v6911
    %v6913 = vsub.f32 1.0, %v6912
    %v6914 = vmul.f32 %v6911, %v6913
    %v6915 = vadd.f32 %v6911, %v6914
    %vm6916 = vweird.f32 %v6910
    %vm6917 = vweird.f32 %v6911
    %vm6918 = vmor %vm6916, %vm6917
    %v6919 = vsel %vm6918, %v6911, %v6915
    %v6920 = vand.u32 2147483647, %v6910
    %vm6921 = vcmp.eq.f32.partialorder %v6920, 8.507059e+37
    %v6922 = vand.u32 %v6910, 2147483648
    %v6923 = vor.u32 1.1754944e-38, %v6922
    %v6924 = vsel %vm6921, %v6923, %v6919
    %v6925 = vmul.f32 1.0, %v6924
    %vm6926 = vcmask 57344
    %6927 = vst.msk [vmem:[#allocation13] sm:$0x1] %vm6926, %v6925
    // Predicated region
    $region78: #{tpu_custom_call.1} parent=1 // pred_check
      _
    $region79: #{tpu_custom_call.1} parent=1 // pred_check_branch
      %6929 = sbr.rel (0) target = $region81
    $region80: #{tpu_custom_call.1} parent=1 // pred_region
      %6931 = vsyncadd [#allocation4], 0
      %s6933 = sshll.u32 [#allocation13], 4
      %s6934 = int_to_ptr.vmem [resolvable:$true] %s6933
      %s6935 = sshll.u32 %s13, 4
      %s6936 = int_to_ptr.hbm [resolvable:$true] %s6935
      %6938 = dma.vmem_to_hbm [thread:$0]  %s6934, 16, %s6936, [#allocation4]
    $region81: #{tpu_custom_call.1} parent=1 // pred_fallthru
      _
    // Predicated region
    $region82: #{tpu_custom_call.1} parent=1 // pred_check
      _
    $region83: #{tpu_custom_call.1} parent=1 // pred_check_branch
      %6940 = sbr.rel (0) target = $region85
    $region84: #{tpu_custom_call.1} parent=1 // pred_region
      %6942 = dma.done [#allocation4], 16
    $region85: #{tpu_custom_call.1} parent=1 // pred_fallthru
      _
    %6943 = vsyncpa [#allocation3], 1
    %6944 = vsyncpa [#allocation6], 1
    %6945 = vsyncpa [#allocation9], 1
    %6946 = vsyncpa [#allocation12], 1
    %6947 = vsyncpa [#allocation4], 1

</llo_original>
